<compile_context>
chip_gen: v7x
topology: tpu7x:2x2x1
jax: 0.10.0
libtpu: 0.0.40
codegen_flags: <defaults>
</compile_context>

<pallas_src>
import jax
import jax.numpy as jnp
from jax.experimental import pallas as pl
from jax.experimental.pallas import tpu as pltpu

_C = 32  # channel width of every conv layer / FC hidden layer


# ---------------------------------------------------------------------------
# Fused forward kernel (one grid step == one batch element)
# ---------------------------------------------------------------------------
def _fused_forward_kernel(
    x_ref,                                    # (1, H, W, 1)  f32
    w0_ref, s0_ref, t0_ref,                   # (9, 32) f32, (1, 32), (1, 32)
    w1_ref, s1_ref, t1_ref,                   # (288, 32) bf16, (1, 32), (1, 32)
    w2a_ref, s2a_ref, t2a_ref,                # (288, 32) bf16, ...
    w2b_ref, s2b_ref, t2b_ref,                # (288, 32) bf16, ...
    fc1w_ref, fc1b_ref,                       # (32, 32) f32, (1, 32)
    fc2w_ref, fc2b_ref,                       # (32, 32) f32, (1, 32)
    fc3w_ref, fc3b_ref,                       # (32, nc) f32, (1, nc)
    out_ref,                                  # (1, 1, nc) f32
    pad1_ref,                                 # scratch (1, H+2, W+2, 1)  f32
    pad_ref,                                  # scratch (1, H+2, W+2, 32) f32
    patch_ref,                                # scratch (H*W, 288) bf16 (im2col)
):
    _, h, w, _ = x_ref.shape
    m = h * w
    c = _C

    # Zero the halo buffers every invocation (cheap; and required when the
    # batch axis is sharded across TensorCores, since each core has its own
    # private scratch). The 1-pixel borders stay zero; interiors get rewritten.
    pad1_ref[...] = jnp.zeros_like(pad1_ref)
    pad_ref[...] = jnp.zeros_like(pad_ref)

    # ---- ConvolutionBlock 1: 3x3 conv (cin=1) + folded BN + ReLU (VPU) ----
    pad1_ref[:, 1:h + 1, 1:w + 1, :] = x_ref[...]
    acc = jnp.zeros((m, c), jnp.float32)
    for ky in range(3):
        for kx in range(3):
            k = ky * 3 + kx
            win = pad1_ref[:, ky:ky + h, kx:kx + w, :].reshape(m, 1)
            acc = acc + win * w0_ref[k:k + 1, :]                 # (m,1)*(1,32)
    a1 = jnp.maximum(acc * s0_ref[...] + t0_ref[...], 0.0)       # (m, 32) f32

    # ---- conv3x3 (cin=32) via im2col + one bf16 MXU matmul (K = 288) ------
    def conv32(act, w_ref, s_ref, t_ref, residual=None):
        pad_ref[:, 1:h + 1, 1:w + 1, :] = act.reshape(1, h, w, c)
        for ky in range(3):
            for kx in range(3):
                k = ky * 3 + kx
                tap = pad_ref[:, ky:ky + h, kx:kx + w, :].reshape(m, c)
                patch_ref[:, k * c:(k + 1) * c] = tap.astype(jnp.bfloat16)
        y = jnp.dot(patch_ref[...], w_ref[...],                  # (m,288)@(288,32)
                    preferred_element_type=jnp.float32)          # f32 accumulate
        y = y * s_ref[...] + t_ref[...]                          # folded BN (f32)
        if residual is not None:
            y = y + residual
        return jnp.maximum(y, 0.0)

    a2 = conv32(a1, w1_ref, s1_ref, t1_ref)                      # ConvolutionBlock 2
    r = conv32(a2, w2a_ref, s2a_ref, t2a_ref)                    # ResidualBlock conv a
    a4 = conv32(r, w2b_ref, s2b_ref, t2b_ref, residual=a2)       # conv b + skip + ReLU

    # ---- AdaptiveMaxPool2d((1,1)) + Flatten + classifier (fused head) -----
    pooled = jnp.max(a4, axis=0, keepdims=True)                  # (1, 32) global max
    h1 = jnp.maximum(
        jnp.dot(pooled, fc1w_ref[...], preferred_element_type=jnp.float32)
        + fc1b_ref[...], 0.0)
    h2 = jnp.maximum(
        jnp.dot(h1, fc2w_ref[...], preferred_element_type=jnp.float32)
        + fc2b_ref[...], 0.0)
    logits = jnp.dot(h2, fc3w_ref[...], preferred_element_type=jnp.float32) \
        + fc3b_ref[...]
    out_ref[...] = jax.nn.sigmoid(logits).reshape(1, 1, -1)


# ---------------------------------------------------------------------------
# Wrapper: weight folding + single pallas_call with a parallel batch grid
# ---------------------------------------------------------------------------
def initial_model_forward(x, p):
    """x: (N, H, W) float32 -> (N, num_classes) sigmoid probabilities."""
    n, h, w = x.shape
    num_classes = p["fc3w"].shape[-1]
    c = _C

    # torch: x.unsqueeze(1) (NCHW); here: trailing channel (NHWC).
    x4 = x.astype(jnp.float32)[..., None]                        # (N, H, W, 1)

    # Conv weights flattened HWIO (3,3,cin,cout) -> (9*cin, cout), row order
    # (ky, kx, cin), matching the im2col column order in the kernel. Layers
    # with cin=32 feed the MXU in bf16 (f32 accumulation); layer 1 stays f32.
    w0 = p["w0"].reshape(9, c).astype(jnp.float32)
    w1 = p["w1"].reshape(9 * c, c).astype(jnp.bfloat16)
    w2a = p["w2a"].reshape(9 * c, c).astype(jnp.bfloat16)
    w2b = p["w2b"].reshape(9 * c, c).astype(jnp.bfloat16)

    def row(v):
        return v.reshape(1, -1).astype(jnp.float32)

    args = [
        x4,
        w0, row(p["s0"]), row(p["t0"]),
        w1, row(p["s1"]), row(p["t1"]),
        w2a, row(p["s2a"]), row(p["t2a"]),
        w2b, row(p["s2b"]), row(p["t2b"]),
        p["fc1w"].astype(jnp.float32), row(p["fc1b"]),
        p["fc2w"].astype(jnp.float32), row(p["fc2b"]),
        p["fc3w"].astype(jnp.float32), row(p["fc3b"]),
    ]

    def full_spec(a):
        # Whole (tiny) array resident in VMEM, same block for every grid step.
        return pl.BlockSpec(a.shape, lambda b, _nd=a.ndim: (0,) * _nd)

    in_specs = ([pl.BlockSpec((1, h, w, 1), lambda b: (b, 0, 0, 0))]
                + [full_spec(a) for a in args[1:]])
    out_specs = pl.BlockSpec((1, 1, num_classes), lambda b: (b, 0, 0))

    grid_spec = pltpu.PrefetchScalarGridSpec(
        num_scalar_prefetch=0,
        grid=(n,),                                   # one image per grid step
        in_specs=in_specs,
        out_specs=out_specs,
        scratch_shapes=[
            pltpu.VMEM((1, h + 2, w + 2, 1), jnp.float32),   # halo, layer 1
            pltpu.VMEM((1, h + 2, w + 2, c), jnp.float32),   # halo, layers 2-4
            pltpu.VMEM((h * w, 9 * c), jnp.bfloat16),        # im2col patches
        ],
    )

    out = pl.pallas_call(
        _fused_forward_kernel,
        out_shape=jax.ShapeDtypeStruct((n, 1, num_classes), jnp.float32),
        grid_spec=grid_spec,
        compiler_params=pltpu.CompilerParams(
            # Batch elements are independent -> shard across v7x's 2 TensorCores.
            dimension_semantics=("parallel",)),
    )(*args)

    # torch: sigmoid(logits.squeeze(1)) — squeeze(1) is a no-op for num_classes > 1.
    # TODO(synk): for num_classes == 1 PyTorch would return shape (N,), not (N, 1).
    # TODO(synk): Dropout(0.3) in FCBlock is identity in eval mode (no RNG path emitted).
    return out.reshape(n, num_classes)


# ---------------------------------------------------------------------------
# Parameters (deterministic synthetic init)
# ---------------------------------------------------------------------------
def init_params(key, num_classes):
    ks = jax.random.split(key, 16)

    def conv_w(k, cin, cout):
        return 0.1 * jax.random.normal(k, (3, 3, cin, cout), jnp.float32)

    def bn(k, ch):
        k1, k2 = jax.random.split(k)
        scale = 1.0 + 0.05 * jax.random.normal(k1, (ch,), jnp.float32)  # gamma/sqrt(var+eps)
        shift = 0.02 * jax.random.normal(k2, (ch,), jnp.float32)        # beta - mean*scale
        return scale, shift

    def lin(k, cin, cout):
        k1, k2 = jax.random.split(k)
        wt = 0.1 * jax.random.normal(k1, (cin, cout), jnp.float32)
        b = 0.02 * jax.random.normal(k2, (cout,), jnp.float32)
        return wt, b

    p = {}
    p["w0"] = conv_w(ks[0], 1, 32);  p["s0"], p["t0"] = bn(ks[1], 32)
    p["w1"] = conv_w(ks[2], 32, 32); p["s1"], p["t1"] = bn(ks[3], 32)
    p["w2a"] = conv_w(ks[4], 32, 32); p["s2a"], p["t2a"] = bn(ks[5], 32)
    p["w2b"] = conv_w(ks[6], 32, 32); p["s2b"], p["t2b"] = bn(ks[7], 32)
    p["fc1w"], p["fc1b"] = lin(ks[8], 32, 32)
    p["fc2w"], p["fc2b"] = lin(ks[9], 32, 32)
    p["fc3w"], p["fc3b"] = lin(ks[10], 32, num_classes)
    return p


# Pure-JAX f32 reference (module semantics) for the correctness check.
def reference_forward(x, p):
    def conv(h, wgt, s, t, residual=None, relu=True):
        y = jax.lax.conv_general_dilated(
            h, wgt, window_strides=(1, 1), padding="SAME",
            dimension_numbers=("NHWC", "HWIO", "NHWC"))
        y = y * s + t
        if residual is not None:
            y = y + residual
        if relu:
            y = jnp.maximum(y, 0.0)
        return y

    h = x.astype(jnp.float32)[..., None]
    h = conv(h, p["w0"], p["s0"], p["t0"])
    h = conv(h, p["w1"], p["s1"], p["t1"])
    r = conv(h, p["w2a"], p["s2a"], p["t2a"])
    h = conv(r, p["w2b"], p["s2b"], p["t2b"], residual=h)
    pooled = jnp.max(h, axis=(1, 2))
    h1 = jnp.maximum(pooled @ p["fc1w"] + p["fc1b"], 0.0)
    h2 = jnp.maximum(h1 @ p["fc2w"] + p["fc2b"], 0.0)
    return jax.nn.sigmoid(h2 @ p["fc3w"] + p["fc3b"])


if __name__ == "__main__":
    num_classes = 4
    key = jax.random.PRNGKey(0)
    k_x, k_p = jax.random.split(key)

    x = jax.random.normal(k_x, (2, 16, 16), jnp.float32)  # (N, H, W)
    params = init_params(k_p, num_classes)

    out = jax.jit(initial_model_forward)(x, params)
    out = jax.block_until_ready(out)

    ref = reference_forward(x, params)
    assert out.shape == (2, num_classes), out.shape
    # Kernel feeds the conv matmuls to the MXU in bf16 (f32 accumulation);
    # reference is pure f32, hence the slightly loosened tolerance.
    assert jnp.allclose(out, ref, atol=1e-2, rtol=1e-2), (out, ref)

    print("KERNEL_OK")
</pallas_src>

<mosaic_0001>
module attributes {stable_mosaic.version = 11 : i64} {
  func.func @_fused_forward_kernel(%arg0: i32, %arg1: memref<1x16x16x1xf32, #tpu.memory_space<vmem>>, %arg2: memref<9x32xf32, #tpu.memory_space<vmem>>, %arg3: memref<1x32xf32, #tpu.memory_space<vmem>>, %arg4: memref<1x32xf32, #tpu.memory_space<vmem>>, %arg5: memref<288x32xbf16, #tpu.memory_space<vmem>>, %arg6: memref<1x32xf32, #tpu.memory_space<vmem>>, %arg7: memref<1x32xf32, #tpu.memory_space<vmem>>, %arg8: memref<288x32xbf16, #tpu.memory_space<vmem>>, %arg9: memref<1x32xf32, #tpu.memory_space<vmem>>, %arg10: memref<1x32xf32, #tpu.memory_space<vmem>>, %arg11: memref<288x32xbf16, #tpu.memory_space<vmem>>, %arg12: memref<1x32xf32, #tpu.memory_space<vmem>>, %arg13: memref<1x32xf32, #tpu.memory_space<vmem>>, %arg14: memref<32x32xf32, #tpu.memory_space<vmem>>, %arg15: memref<1x32xf32, #tpu.memory_space<vmem>>, %arg16: memref<32x32xf32, #tpu.memory_space<vmem>>, %arg17: memref<1x32xf32, #tpu.memory_space<vmem>>, %arg18: memref<32x4xf32, #tpu.memory_space<vmem>>, %arg19: memref<1x4xf32, #tpu.memory_space<vmem>>, %arg20: memref<1x1x4xf32, #tpu.memory_space<vmem>>, %arg21: memref<1x18x18x1xf32, #tpu.memory_space<vmem>>, %arg22: memref<1x18x18x32xf32, #tpu.memory_space<vmem>>, %arg23: memref<256x288xbf16, #tpu.memory_space<vmem>>) attributes {dimension_semantics = [#tpu.dimension_semantics<parallel>], iteration_bounds = array<i64: 2>, scalar_prefetch = 0 : i64, scratch_operands = 3 : i64, tpu.core_type = #tpu.core_type<tc>, window_params = [{transform_indices = @transform_0, window_bounds = array<i64: 1, 16, 16, 1>}, {pipeline_mode = #tpu.pipeline_mode<synchronous>, transform_indices = @transform_1, window_bounds = array<i64: 9, 32>}, {pipeline_mode = #tpu.pipeline_mode<synchronous>, transform_indices = @transform_2, window_bounds = array<i64: 1, 32>}, {pipeline_mode = #tpu.pipeline_mode<synchronous>, transform_indices = @transform_3, window_bounds = array<i64: 1, 32>}, {pipeline_mode = #tpu.pipeline_mode<synchronous>, transform_indices = @transform_4, window_bounds = array<i64: 288, 32>}, {pipeline_mode = #tpu.pipeline_mode<synchronous>, transform_indices = @transform_5, window_bounds = array<i64: 1, 32>}, {pipeline_mode = #tpu.pipeline_mode<synchronous>, transform_indices = @transform_6, window_bounds = array<i64: 1, 32>}, {pipeline_mode = #tpu.pipeline_mode<synchronous>, transform_indices = @transform_7, window_bounds = array<i64: 288, 32>}, {pipeline_mode = #tpu.pipeline_mode<synchronous>, transform_indices = @transform_8, window_bounds = array<i64: 1, 32>}, {pipeline_mode = #tpu.pipeline_mode<synchronous>, transform_indices = @transform_9, window_bounds = array<i64: 1, 32>}, {pipeline_mode = #tpu.pipeline_mode<synchronous>, transform_indices = @transform_10, window_bounds = array<i64: 288, 32>}, {pipeline_mode = #tpu.pipeline_mode<synchronous>, transform_indices = @transform_11, window_bounds = array<i64: 1, 32>}, {pipeline_mode = #tpu.pipeline_mode<synchronous>, transform_indices = @transform_12, window_bounds = array<i64: 1, 32>}, {pipeline_mode = #tpu.pipeline_mode<synchronous>, transform_indices = @transform_13, window_bounds = array<i64: 32, 32>}, {pipeline_mode = #tpu.pipeline_mode<synchronous>, transform_indices = @transform_14, window_bounds = array<i64: 1, 32>}, {pipeline_mode = #tpu.pipeline_mode<synchronous>, transform_indices = @transform_15, window_bounds = array<i64: 32, 32>}, {pipeline_mode = #tpu.pipeline_mode<synchronous>, transform_indices = @transform_16, window_bounds = array<i64: 1, 32>}, {pipeline_mode = #tpu.pipeline_mode<synchronous>, transform_indices = @transform_17, window_bounds = array<i64: 32, 4>}, {pipeline_mode = #tpu.pipeline_mode<synchronous>, transform_indices = @transform_18, window_bounds = array<i64: 1, 4>}, {transform_indices = @transform_19, window_bounds = array<i64: 1, 1, 4>}]} {
    %cst = arith.constant 0.000000e+00 : f32
    %0 = vector.broadcast %cst : f32 to vector<1x18x18x1xf32>
    %c0 = arith.constant 0 : index
    %c0_0 = arith.constant 0 : index
    %c0_1 = arith.constant 0 : index
    %c0_2 = arith.constant 0 : index
    %1 = vector.load %arg21[%c0, %c0_0, %c0_1, %c0_2] : memref<1x18x18x1xf32, #tpu.memory_space<vmem>>, vector<1x18x18x1xf32>
    tpu.vector_store %arg21[%c0, %c0_0, %c0_1, %c0_2], %0 {strides = array<i32>} : memref<1x18x18x1xf32, #tpu.memory_space<vmem>>, vector<1x18x18x1xf32>,
    %cst_3 = arith.constant 0.000000e+00 : f32
    %2 = vector.broadcast %cst_3 : f32 to vector<1x18x18x32xf32>
    %c0_4 = arith.constant 0 : index
    %c0_5 = arith.constant 0 : index
    %c0_6 = arith.constant 0 : index
    %c0_7 = arith.constant 0 : index
    %3 = vector.load %arg22[%c0_4, %c0_5, %c0_6, %c0_7] : memref<1x18x18x32xf32, #tpu.memory_space<vmem>>, vector<1x18x18x32xf32>
    tpu.vector_store %arg22[%c0_4, %c0_5, %c0_6, %c0_7], %2 {strides = array<i32>} : memref<1x18x18x32xf32, #tpu.memory_space<vmem>>, vector<1x18x18x32xf32>,
    %c0_8 = arith.constant 0 : index
    %c0_9 = arith.constant 0 : index
    %c0_10 = arith.constant 0 : index
    %c0_11 = arith.constant 0 : index
    %4 = vector.load %arg1[%c0_8, %c0_9, %c0_10, %c0_11] : memref<1x16x16x1xf32, #tpu.memory_space<vmem>>, vector<1x16x16x1xf32>
    %c0_12 = arith.constant 0 : index
    %c1 = arith.constant 1 : index
    %c1_13 = arith.constant 1 : index
    %c0_14 = arith.constant 0 : index
    %5 = vector.load %arg21[%c0_12, %c1, %c1_13, %c0_14] : memref<1x18x18x1xf32, #tpu.memory_space<vmem>>, vector<1x16x16x1xf32>
    tpu.vector_store %arg21[%c0_12, %c1, %c1_13, %c0_14], %4 {strides = array<i32>} : memref<1x18x18x1xf32, #tpu.memory_space<vmem>>, vector<1x16x16x1xf32>,
    %cst_15 = arith.constant 0.000000e+00 : f32
    %6 = vector.broadcast %cst_15 : f32 to vector<256x32xf32>
    %c0_16 = arith.constant 0 : index
    %c0_17 = arith.constant 0 : index
    %c0_18 = arith.constant 0 : index
    %c0_19 = arith.constant 0 : index
    %7 = vector.load %arg21[%c0_16, %c0_17, %c0_18, %c0_19] : memref<1x18x18x1xf32, #tpu.memory_space<vmem>>, vector<1x16x16x1xf32>
    %8 = vector.shape_cast %7 : vector<1x16x16x1xf32> to vector<256x1xf32>
    %c0_20 = arith.constant 0 : index
    %c0_21 = arith.constant 0 : index
    %9 = vector.load %arg2[%c0_20, %c0_21] : memref<9x32xf32, #tpu.memory_space<vmem>>, vector<1x32xf32>
    %10 = vector.broadcast %8 : vector<256x1xf32> to vector<256x32xf32>
    %11 = vector.broadcast %9 : vector<1x32xf32> to vector<256x32xf32>
    %12 = arith.mulf %10, %11 : vector<256x32xf32>
    %13 = arith.addf %6, %12 : vector<256x32xf32>
    %c0_22 = arith.constant 0 : index
    %c0_23 = arith.constant 0 : index
    %c1_24 = arith.constant 1 : index
    %c0_25 = arith.constant 0 : index
    %14 = vector.load %arg21[%c0_22, %c0_23, %c1_24, %c0_25] : memref<1x18x18x1xf32, #tpu.memory_space<vmem>>, vector<1x16x16x1xf32>
    %15 = vector.shape_cast %14 : vector<1x16x16x1xf32> to vector<256x1xf32>
    %c1_26 = arith.constant 1 : index
    %c0_27 = arith.constant 0 : index
    %16 = vector.load %arg2[%c1_26, %c0_27] : memref<9x32xf32, #tpu.memory_space<vmem>>, vector<1x32xf32>
    %17 = vector.broadcast %15 : vector<256x1xf32> to vector<256x32xf32>
    %18 = vector.broadcast %16 : vector<1x32xf32> to vector<256x32xf32>
    %19 = arith.mulf %17, %18 : vector<256x32xf32>
    %20 = arith.addf %13, %19 : vector<256x32xf32>
    %c0_28 = arith.constant 0 : index
    %c0_29 = arith.constant 0 : index
    %c2 = arith.constant 2 : index
    %c0_30 = arith.constant 0 : index
    %21 = vector.load %arg21[%c0_28, %c0_29, %c2, %c0_30] : memref<1x18x18x1xf32, #tpu.memory_space<vmem>>, vector<1x16x16x1xf32>
    %22 = vector.shape_cast %21 : vector<1x16x16x1xf32> to vector<256x1xf32>
    %c2_31 = arith.constant 2 : index
    %c0_32 = arith.constant 0 : index
    %23 = vector.load %arg2[%c2_31, %c0_32] : memref<9x32xf32, #tpu.memory_space<vmem>>, vector<1x32xf32>
    %24 = vector.broadcast %22 : vector<256x1xf32> to vector<256x32xf32>
    %25 = vector.broadcast %23 : vector<1x32xf32> to vector<256x32xf32>
    %26 = arith.mulf %24, %25 : vector<256x32xf32>
    %27 = arith.addf %20, %26 : vector<256x32xf32>
    %c0_33 = arith.constant 0 : index
    %c1_34 = arith.constant 1 : index
    %c0_35 = arith.constant 0 : index
    %c0_36 = arith.constant 0 : index
    %28 = vector.load %arg21[%c0_33, %c1_34, %c0_35, %c0_36] : memref<1x18x18x1xf32, #tpu.memory_space<vmem>>, vector<1x16x16x1xf32>
    %29 = vector.shape_cast %28 : vector<1x16x16x1xf32> to vector<256x1xf32>
    %c3 = arith.constant 3 : index
    %c0_37 = arith.constant 0 : index
    %30 = vector.load %arg2[%c3, %c0_37] : memref<9x32xf32, #tpu.memory_space<vmem>>, vector<1x32xf32>
    %31 = vector.broadcast %29 : vector<256x1xf32> to vector<256x32xf32>
    %32 = vector.broadcast %30 : vector<1x32xf32> to vector<256x32xf32>
    %33 = arith.mulf %31, %32 : vector<256x32xf32>
    %34 = arith.addf %27, %33 : vector<256x32xf32>
    %c0_38 = arith.constant 0 : index
    %c1_39 = arith.constant 1 : index
    %c1_40 = arith.constant 1 : index
    %c0_41 = arith.constant 0 : index
    %35 = vector.load %arg21[%c0_38, %c1_39, %c1_40, %c0_41] : memref<1x18x18x1xf32, #tpu.memory_space<vmem>>, vector<1x16x16x1xf32>
    %36 = vector.shape_cast %35 : vector<1x16x16x1xf32> to vector<256x1xf32>
    %c4 = arith.constant 4 : index
    %c0_42 = arith.constant 0 : index
    %37 = vector.load %arg2[%c4, %c0_42] : memref<9x32xf32, #tpu.memory_space<vmem>>, vector<1x32xf32>
    %38 = vector.broadcast %36 : vector<256x1xf32> to vector<256x32xf32>
    %39 = vector.broadcast %37 : vector<1x32xf32> to vector<256x32xf32>
    %40 = arith.mulf %38, %39 : vector<256x32xf32>
    %41 = arith.addf %34, %40 : vector<256x32xf32>
    %c0_43 = arith.constant 0 : index
    %c1_44 = arith.constant 1 : index
    %c2_45 = arith.constant 2 : index
    %c0_46 = arith.constant 0 : index
    %42 = vector.load %arg21[%c0_43, %c1_44, %c2_45, %c0_46] : memref<1x18x18x1xf32, #tpu.memory_space<vmem>>, vector<1x16x16x1xf32>
    %43 = vector.shape_cast %42 : vector<1x16x16x1xf32> to vector<256x1xf32>
    %c5 = arith.constant 5 : index
    %c0_47 = arith.constant 0 : index
    %44 = vector.load %arg2[%c5, %c0_47] : memref<9x32xf32, #tpu.memory_space<vmem>>, vector<1x32xf32>
    %45 = vector.broadcast %43 : vector<256x1xf32> to vector<256x32xf32>
    %46 = vector.broadcast %44 : vector<1x32xf32> to vector<256x32xf32>
    %47 = arith.mulf %45, %46 : vector<256x32xf32>
    %48 = arith.addf %41, %47 : vector<256x32xf32>
    %c0_48 = arith.constant 0 : index
    %c2_49 = arith.constant 2 : index
    %c0_50 = arith.constant 0 : index
    %c0_51 = arith.constant 0 : index
    %49 = vector.load %arg21[%c0_48, %c2_49, %c0_50, %c0_51] : memref<1x18x18x1xf32, #tpu.memory_space<vmem>>, vector<1x16x16x1xf32>
    %50 = vector.shape_cast %49 : vector<1x16x16x1xf32> to vector<256x1xf32>
    %c6 = arith.constant 6 : index
    %c0_52 = arith.constant 0 : index
    %51 = vector.load %arg2[%c6, %c0_52] : memref<9x32xf32, #tpu.memory_space<vmem>>, vector<1x32xf32>
    %52 = vector.broadcast %50 : vector<256x1xf32> to vector<256x32xf32>
    %53 = vector.broadcast %51 : vector<1x32xf32> to vector<256x32xf32>
    %54 = arith.mulf %52, %53 : vector<256x32xf32>
    %55 = arith.addf %48, %54 : vector<256x32xf32>
    %c0_53 = arith.constant 0 : index
    %c2_54 = arith.constant 2 : index
    %c1_55 = arith.constant 1 : index
    %c0_56 = arith.constant 0 : index
    %56 = vector.load %arg21[%c0_53, %c2_54, %c1_55, %c0_56] : memref<1x18x18x1xf32, #tpu.memory_space<vmem>>, vector<1x16x16x1xf32>
    %57 = vector.shape_cast %56 : vector<1x16x16x1xf32> to vector<256x1xf32>
    %c7 = arith.constant 7 : index
    %c0_57 = arith.constant 0 : index
    %58 = vector.load %arg2[%c7, %c0_57] : memref<9x32xf32, #tpu.memory_space<vmem>>, vector<1x32xf32>
    %59 = vector.broadcast %57 : vector<256x1xf32> to vector<256x32xf32>
    %60 = vector.broadcast %58 : vector<1x32xf32> to vector<256x32xf32>
    %61 = arith.mulf %59, %60 : vector<256x32xf32>
    %62 = arith.addf %55, %61 : vector<256x32xf32>
    %c0_58 = arith.constant 0 : index
    %c2_59 = arith.constant 2 : index
    %c2_60 = arith.constant 2 : index
    %c0_61 = arith.constant 0 : index
    %63 = vector.load %arg21[%c0_58, %c2_59, %c2_60, %c0_61] : memref<1x18x18x1xf32, #tpu.memory_space<vmem>>, vector<1x16x16x1xf32>
    %64 = vector.shape_cast %63 : vector<1x16x16x1xf32> to vector<256x1xf32>
    %c8 = arith.constant 8 : index
    %c0_62 = arith.constant 0 : index
    %65 = vector.load %arg2[%c8, %c0_62] : memref<9x32xf32, #tpu.memory_space<vmem>>, vector<1x32xf32>
    %66 = vector.broadcast %64 : vector<256x1xf32> to vector<256x32xf32>
    %67 = vector.broadcast %65 : vector<1x32xf32> to vector<256x32xf32>
    %68 = arith.mulf %66, %67 : vector<256x32xf32>
    %69 = arith.addf %62, %68 : vector<256x32xf32>
    %c0_63 = arith.constant 0 : index
    %c0_64 = arith.constant 0 : index
    %70 = vector.load %arg3[%c0_63, %c0_64] : memref<1x32xf32, #tpu.memory_space<vmem>>, vector<1x32xf32>
    %71 = vector.broadcast %70 : vector<1x32xf32> to vector<256x32xf32>
    %72 = arith.mulf %69, %71 : vector<256x32xf32>
    %c0_65 = arith.constant 0 : index
    %c0_66 = arith.constant 0 : index
    %73 = vector.load %arg4[%c0_65, %c0_66] : memref<1x32xf32, #tpu.memory_space<vmem>>, vector<1x32xf32>
    %74 = vector.broadcast %73 : vector<1x32xf32> to vector<256x32xf32>
    %75 = arith.addf %72, %74 : vector<256x32xf32>
    %cst_67 = arith.constant 0.000000e+00 : f32
    %76 = vector.broadcast %cst_67 : f32 to vector<256x32xf32>
    %77 = arith.maximumf %75, %76 : vector<256x32xf32>
    %78 = vector.shape_cast %77 : vector<256x32xf32> to vector<1x16x16x32xf32>
    %c0_68 = arith.constant 0 : index
    %c1_69 = arith.constant 1 : index
    %c1_70 = arith.constant 1 : index
    %c0_71 = arith.constant 0 : index
    %79 = vector.load %arg22[%c0_68, %c1_69, %c1_70, %c0_71] : memref<1x18x18x32xf32, #tpu.memory_space<vmem>>, vector<1x16x16x32xf32>
    tpu.vector_store %arg22[%c0_68, %c1_69, %c1_70, %c0_71], %78 {strides = array<i32>} : memref<1x18x18x32xf32, #tpu.memory_space<vmem>>, vector<1x16x16x32xf32>,
    %c0_72 = arith.constant 0 : index
    %c0_73 = arith.constant 0 : index
    %c0_74 = arith.constant 0 : index
    %c0_75 = arith.constant 0 : index
    %80 = vector.load %arg22[%c0_72, %c0_73, %c0_74, %c0_75] : memref<1x18x18x32xf32, #tpu.memory_space<vmem>>, vector<1x16x16x32xf32>
    %81 = vector.shape_cast %80 : vector<1x16x16x32xf32> to vector<256x32xf32>
    %82 = arith.truncf %81 : vector<256x32xf32> to vector<256x32xbf16>
    %c0_76 = arith.constant 0 : index
    %c0_77 = arith.constant 0 : index
    %83 = vector.load %arg23[%c0_76, %c0_77] : memref<256x288xbf16, #tpu.memory_space<vmem>>, vector<256x32xbf16>
    tpu.vector_store %arg23[%c0_76, %c0_77], %82 {strides = array<i32>} : memref<256x288xbf16, #tpu.memory_space<vmem>>, vector<256x32xbf16>,
    %c0_78 = arith.constant 0 : index
    %c0_79 = arith.constant 0 : index
    %c1_80 = arith.constant 1 : index
    %c0_81 = arith.constant 0 : index
    %84 = vector.load %arg22[%c0_78, %c0_79, %c1_80, %c0_81] : memref<1x18x18x32xf32, #tpu.memory_space<vmem>>, vector<1x16x16x32xf32>
    %85 = vector.shape_cast %84 : vector<1x16x16x32xf32> to vector<256x32xf32>
    %86 = arith.truncf %85 : vector<256x32xf32> to vector<256x32xbf16>
    %c0_82 = arith.constant 0 : index
    %c32 = arith.constant 32 : index
    %87 = vector.load %arg23[%c0_82, %c32] : memref<256x288xbf16, #tpu.memory_space<vmem>>, vector<256x32xbf16>
    tpu.vector_store %arg23[%c0_82, %c32], %86 {strides = array<i32>} : memref<256x288xbf16, #tpu.memory_space<vmem>>, vector<256x32xbf16>,
    %c0_83 = arith.constant 0 : index
    %c0_84 = arith.constant 0 : index
    %c2_85 = arith.constant 2 : index
    %c0_86 = arith.constant 0 : index
    %88 = vector.load %arg22[%c0_83, %c0_84, %c2_85, %c0_86] : memref<1x18x18x32xf32, #tpu.memory_space<vmem>>, vector<1x16x16x32xf32>
    %89 = vector.shape_cast %88 : vector<1x16x16x32xf32> to vector<256x32xf32>
    %90 = arith.truncf %89 : vector<256x32xf32> to vector<256x32xbf16>
    %c0_87 = arith.constant 0 : index
    %c64 = arith.constant 64 : index
    %91 = vector.load %arg23[%c0_87, %c64] : memref<256x288xbf16, #tpu.memory_space<vmem>>, vector<256x32xbf16>
    tpu.vector_store %arg23[%c0_87, %c64], %90 {strides = array<i32>} : memref<256x288xbf16, #tpu.memory_space<vmem>>, vector<256x32xbf16>,
    %c0_88 = arith.constant 0 : index
    %c1_89 = arith.constant 1 : index
    %c0_90 = arith.constant 0 : index
    %c0_91 = arith.constant 0 : index
    %92 = vector.load %arg22[%c0_88, %c1_89, %c0_90, %c0_91] : memref<1x18x18x32xf32, #tpu.memory_space<vmem>>, vector<1x16x16x32xf32>
    %93 = vector.shape_cast %92 : vector<1x16x16x32xf32> to vector<256x32xf32>
    %94 = arith.truncf %93 : vector<256x32xf32> to vector<256x32xbf16>
    %c0_92 = arith.constant 0 : index
    %c96 = arith.constant 96 : index
    %95 = vector.load %arg23[%c0_92, %c96] : memref<256x288xbf16, #tpu.memory_space<vmem>>, vector<256x32xbf16>
    tpu.vector_store %arg23[%c0_92, %c96], %94 {strides = array<i32>} : memref<256x288xbf16, #tpu.memory_space<vmem>>, vector<256x32xbf16>,
    %c0_93 = arith.constant 0 : index
    %c1_94 = arith.constant 1 : index
    %c1_95 = arith.constant 1 : index
    %c0_96 = arith.constant 0 : index
    %96 = vector.load %arg22[%c0_93, %c1_94, %c1_95, %c0_96] : memref<1x18x18x32xf32, #tpu.memory_space<vmem>>, vector<1x16x16x32xf32>
    %97 = vector.shape_cast %96 : vector<1x16x16x32xf32> to vector<256x32xf32>
    %98 = arith.truncf %97 : vector<256x32xf32> to vector<256x32xbf16>
    %c0_97 = arith.constant 0 : index
    %c128 = arith.constant 128 : index
    %99 = vector.load %arg23[%c0_97, %c128] : memref<256x288xbf16, #tpu.memory_space<vmem>>, vector<256x32xbf16>
    tpu.vector_store %arg23[%c0_97, %c128], %98 {strides = array<i32>} : memref<256x288xbf16, #tpu.memory_space<vmem>>, vector<256x32xbf16>,
    %c0_98 = arith.constant 0 : index
    %c1_99 = arith.constant 1 : index
    %c2_100 = arith.constant 2 : index
    %c0_101 = arith.constant 0 : index
    %100 = vector.load %arg22[%c0_98, %c1_99, %c2_100, %c0_101] : memref<1x18x18x32xf32, #tpu.memory_space<vmem>>, vector<1x16x16x32xf32>
    %101 = vector.shape_cast %100 : vector<1x16x16x32xf32> to vector<256x32xf32>
    %102 = arith.truncf %101 : vector<256x32xf32> to vector<256x32xbf16>
    %c0_102 = arith.constant 0 : index
    %c160 = arith.constant 160 : index
    %103 = vector.load %arg23[%c0_102, %c160] : memref<256x288xbf16, #tpu.memory_space<vmem>>, vector<256x32xbf16>
    tpu.vector_store %arg23[%c0_102, %c160], %102 {strides = array<i32>} : memref<256x288xbf16, #tpu.memory_space<vmem>>, vector<256x32xbf16>,
    %c0_103 = arith.constant 0 : index
    %c2_104 = arith.constant 2 : index
    %c0_105 = arith.constant 0 : index
    %c0_106 = arith.constant 0 : index
    %104 = vector.load %arg22[%c0_103, %c2_104, %c0_105, %c0_106] : memref<1x18x18x32xf32, #tpu.memory_space<vmem>>, vector<1x16x16x32xf32>
    %105 = vector.shape_cast %104 : vector<1x16x16x32xf32> to vector<256x32xf32>
    %106 = arith.truncf %105 : vector<256x32xf32> to vector<256x32xbf16>
    %c0_107 = arith.constant 0 : index
    %c192 = arith.constant 192 : index
    %107 = vector.load %arg23[%c0_107, %c192] : memref<256x288xbf16, #tpu.memory_space<vmem>>, vector<256x32xbf16>
    tpu.vector_store %arg23[%c0_107, %c192], %106 {strides = array<i32>} : memref<256x288xbf16, #tpu.memory_space<vmem>>, vector<256x32xbf16>,
    %c0_108 = arith.constant 0 : index
    %c2_109 = arith.constant 2 : index
    %c1_110 = arith.constant 1 : index
    %c0_111 = arith.constant 0 : index
    %108 = vector.load %arg22[%c0_108, %c2_109, %c1_110, %c0_111] : memref<1x18x18x32xf32, #tpu.memory_space<vmem>>, vector<1x16x16x32xf32>
    %109 = vector.shape_cast %108 : vector<1x16x16x32xf32> to vector<256x32xf32>
    %110 = arith.truncf %109 : vector<256x32xf32> to vector<256x32xbf16>
    %c0_112 = arith.constant 0 : index
    %c224 = arith.constant 224 : index
    %111 = vector.load %arg23[%c0_112, %c224] : memref<256x288xbf16, #tpu.memory_space<vmem>>, vector<256x32xbf16>
    tpu.vector_store %arg23[%c0_112, %c224], %110 {strides = array<i32>} : memref<256x288xbf16, #tpu.memory_space<vmem>>, vector<256x32xbf16>,
    %c0_113 = arith.constant 0 : index
    %c2_114 = arith.constant 2 : index
    %c2_115 = arith.constant 2 : index
    %c0_116 = arith.constant 0 : index
    %112 = vector.load %arg22[%c0_113, %c2_114, %c2_115, %c0_116] : memref<1x18x18x32xf32, #tpu.memory_space<vmem>>, vector<1x16x16x32xf32>
    %113 = vector.shape_cast %112 : vector<1x16x16x32xf32> to vector<256x32xf32>
    %114 = arith.truncf %113 : vector<256x32xf32> to vector<256x32xbf16>
    %c0_117 = arith.constant 0 : index
    %c256 = arith.constant 256 : index
    %115 = vector.load %arg23[%c0_117, %c256] : memref<256x288xbf16, #tpu.memory_space<vmem>>, vector<256x32xbf16>
    tpu.vector_store %arg23[%c0_117, %c256], %114 {strides = array<i32>} : memref<256x288xbf16, #tpu.memory_space<vmem>>, vector<256x32xbf16>,
    %c0_118 = arith.constant 0 : index
    %c0_119 = arith.constant 0 : index
    %116 = vector.load %arg23[%c0_118, %c0_119] : memref<256x288xbf16, #tpu.memory_space<vmem>>, vector<256x288xbf16>
    %c0_120 = arith.constant 0 : index
    %c0_121 = arith.constant 0 : index
    %117 = vector.load %arg5[%c0_120, %c0_121] : memref<288x32xbf16, #tpu.memory_space<vmem>>, vector<288x32xbf16>
    %cst_122 = arith.constant dense<0.000000e+00> : vector<256x32xf32>
    %118 = tpu.matmul %116, %117, %cst_122 {dimension_numbers = #tpu.dot_dimension_numbers<[1], [0], [0], [1], [0, 0, 1, 1], [], []>} : vector<256x288xbf16>, vector<288x32xbf16>, vector<256x32xf32> -> vector<256x32xf32>
    %c0_123 = arith.constant 0 : index
    %c0_124 = arith.constant 0 : index
    %119 = vector.load %arg6[%c0_123, %c0_124] : memref<1x32xf32, #tpu.memory_space<vmem>>, vector<1x32xf32>
    %120 = vector.broadcast %119 : vector<1x32xf32> to vector<256x32xf32>
    %121 = arith.mulf %118, %120 : vector<256x32xf32>
    %c0_125 = arith.constant 0 : index
    %c0_126 = arith.constant 0 : index
    %122 = vector.load %arg7[%c0_125, %c0_126] : memref<1x32xf32, #tpu.memory_space<vmem>>, vector<1x32xf32>
    %123 = vector.broadcast %122 : vector<1x32xf32> to vector<256x32xf32>
    %124 = arith.addf %121, %123 : vector<256x32xf32>
    %cst_127 = arith.constant 0.000000e+00 : f32
    %125 = vector.broadcast %cst_127 : f32 to vector<256x32xf32>
    %126 = arith.maximumf %124, %125 : vector<256x32xf32>
    %127 = vector.shape_cast %126 : vector<256x32xf32> to vector<1x16x16x32xf32>
    %c0_128 = arith.constant 0 : index
    %c1_129 = arith.constant 1 : index
    %c1_130 = arith.constant 1 : index
    %c0_131 = arith.constant 0 : index
    %128 = vector.load %arg22[%c0_128, %c1_129, %c1_130, %c0_131] : memref<1x18x18x32xf32, #tpu.memory_space<vmem>>, vector<1x16x16x32xf32>
    tpu.vector_store %arg22[%c0_128, %c1_129, %c1_130, %c0_131], %127 {strides = array<i32>} : memref<1x18x18x32xf32, #tpu.memory_space<vmem>>, vector<1x16x16x32xf32>,
    %c0_132 = arith.constant 0 : index
    %c0_133 = arith.constant 0 : index
    %c0_134 = arith.constant 0 : index
    %c0_135 = arith.constant 0 : index
    %129 = vector.load %arg22[%c0_132, %c0_133, %c0_134, %c0_135] : memref<1x18x18x32xf32, #tpu.memory_space<vmem>>, vector<1x16x16x32xf32>
    %130 = vector.shape_cast %129 : vector<1x16x16x32xf32> to vector<256x32xf32>
    %131 = arith.truncf %130 : vector<256x32xf32> to vector<256x32xbf16>
    %c0_136 = arith.constant 0 : index
    %c0_137 = arith.constant 0 : index
    %132 = vector.load %arg23[%c0_136, %c0_137] : memref<256x288xbf16, #tpu.memory_space<vmem>>, vector<256x32xbf16>
    tpu.vector_store %arg23[%c0_136, %c0_137], %131 {strides = array<i32>} : memref<256x288xbf16, #tpu.memory_space<vmem>>, vector<256x32xbf16>,
    %c0_138 = arith.constant 0 : index
    %c0_139 = arith.constant 0 : index
    %c1_140 = arith.constant 1 : index
    %c0_141 = arith.constant 0 : index
    %133 = vector.load %arg22[%c0_138, %c0_139, %c1_140, %c0_141] : memref<1x18x18x32xf32, #tpu.memory_space<vmem>>, vector<1x16x16x32xf32>
    %134 = vector.shape_cast %133 : vector<1x16x16x32xf32> to vector<256x32xf32>
    %135 = arith.truncf %134 : vector<256x32xf32> to vector<256x32xbf16>
    %c0_142 = arith.constant 0 : index
    %c32_143 = arith.constant 32 : index
    %136 = vector.load %arg23[%c0_142, %c32_143] : memref<256x288xbf16, #tpu.memory_space<vmem>>, vector<256x32xbf16>
    tpu.vector_store %arg23[%c0_142, %c32_143], %135 {strides = array<i32>} : memref<256x288xbf16, #tpu.memory_space<vmem>>, vector<256x32xbf16>,
    %c0_144 = arith.constant 0 : index
    %c0_145 = arith.constant 0 : index
    %c2_146 = arith.constant 2 : index
    %c0_147 = arith.constant 0 : index
    %137 = vector.load %arg22[%c0_144, %c0_145, %c2_146, %c0_147] : memref<1x18x18x32xf32, #tpu.memory_space<vmem>>, vector<1x16x16x32xf32>
    %138 = vector.shape_cast %137 : vector<1x16x16x32xf32> to vector<256x32xf32>
    %139 = arith.truncf %138 : vector<256x32xf32> to vector<256x32xbf16>
    %c0_148 = arith.constant 0 : index
    %c64_149 = arith.constant 64 : index
    %140 = vector.load %arg23[%c0_148, %c64_149] : memref<256x288xbf16, #tpu.memory_space<vmem>>, vector<256x32xbf16>
    tpu.vector_store %arg23[%c0_148, %c64_149], %139 {strides = array<i32>} : memref<256x288xbf16, #tpu.memory_space<vmem>>, vector<256x32xbf16>,
    %c0_150 = arith.constant 0 : index
    %c1_151 = arith.constant 1 : index
    %c0_152 = arith.constant 0 : index
    %c0_153 = arith.constant 0 : index
    %141 = vector.load %arg22[%c0_150, %c1_151, %c0_152, %c0_153] : memref<1x18x18x32xf32, #tpu.memory_space<vmem>>, vector<1x16x16x32xf32>
    %142 = vector.shape_cast %141 : vector<1x16x16x32xf32> to vector<256x32xf32>
    %143 = arith.truncf %142 : vector<256x32xf32> to vector<256x32xbf16>
    %c0_154 = arith.constant 0 : index
    %c96_155 = arith.constant 96 : index
    %144 = vector.load %arg23[%c0_154, %c96_155] : memref<256x288xbf16, #tpu.memory_space<vmem>>, vector<256x32xbf16>
    tpu.vector_store %arg23[%c0_154, %c96_155], %143 {strides = array<i32>} : memref<256x288xbf16, #tpu.memory_space<vmem>>, vector<256x32xbf16>,
    %c0_156 = arith.constant 0 : index
    %c1_157 = arith.constant 1 : index
    %c1_158 = arith.constant 1 : index
    %c0_159 = arith.constant 0 : index
    %145 = vector.load %arg22[%c0_156, %c1_157, %c1_158, %c0_159] : memref<1x18x18x32xf32, #tpu.memory_space<vmem>>, vector<1x16x16x32xf32>
    %146 = vector.shape_cast %145 : vector<1x16x16x32xf32> to vector<256x32xf32>
    %147 = arith.truncf %146 : vector<256x32xf32> to vector<256x32xbf16>
    %c0_160 = arith.constant 0 : index
    %c128_161 = arith.constant 128 : index
    %148 = vector.load %arg23[%c0_160, %c128_161] : memref<256x288xbf16, #tpu.memory_space<vmem>>, vector<256x32xbf16>
    tpu.vector_store %arg23[%c0_160, %c128_161], %147 {strides = array<i32>} : memref<256x288xbf16, #tpu.memory_space<vmem>>, vector<256x32xbf16>,
    %c0_162 = arith.constant 0 : index
    %c1_163 = arith.constant 1 : index
    %c2_164 = arith.constant 2 : index
    %c0_165 = arith.constant 0 : index
    %149 = vector.load %arg22[%c0_162, %c1_163, %c2_164, %c0_165] : memref<1x18x18x32xf32, #tpu.memory_space<vmem>>, vector<1x16x16x32xf32>
    %150 = vector.shape_cast %149 : vector<1x16x16x32xf32> to vector<256x32xf32>
    %151 = arith.truncf %150 : vector<256x32xf32> to vector<256x32xbf16>
    %c0_166 = arith.constant 0 : index
    %c160_167 = arith.constant 160 : index
    %152 = vector.load %arg23[%c0_166, %c160_167] : memref<256x288xbf16, #tpu.memory_space<vmem>>, vector<256x32xbf16>
    tpu.vector_store %arg23[%c0_166, %c160_167], %151 {strides = array<i32>} : memref<256x288xbf16, #tpu.memory_space<vmem>>, vector<256x32xbf16>,
    %c0_168 = arith.constant 0 : index
    %c2_169 = arith.constant 2 : index
    %c0_170 = arith.constant 0 : index
    %c0_171 = arith.constant 0 : index
    %153 = vector.load %arg22[%c0_168, %c2_169, %c0_170, %c0_171] : memref<1x18x18x32xf32, #tpu.memory_space<vmem>>, vector<1x16x16x32xf32>
    %154 = vector.shape_cast %153 : vector<1x16x16x32xf32> to vector<256x32xf32>
    %155 = arith.truncf %154 : vector<256x32xf32> to vector<256x32xbf16>
    %c0_172 = arith.constant 0 : index
    %c192_173 = arith.constant 192 : index
    %156 = vector.load %arg23[%c0_172, %c192_173] : memref<256x288xbf16, #tpu.memory_space<vmem>>, vector<256x32xbf16>
    tpu.vector_store %arg23[%c0_172, %c192_173], %155 {strides = array<i32>} : memref<256x288xbf16, #tpu.memory_space<vmem>>, vector<256x32xbf16>,
    %c0_174 = arith.constant 0 : index
    %c2_175 = arith.constant 2 : index
    %c1_176 = arith.constant 1 : index
    %c0_177 = arith.constant 0 : index
    %157 = vector.load %arg22[%c0_174, %c2_175, %c1_176, %c0_177] : memref<1x18x18x32xf32, #tpu.memory_space<vmem>>, vector<1x16x16x32xf32>
    %158 = vector.shape_cast %157 : vector<1x16x16x32xf32> to vector<256x32xf32>
    %159 = arith.truncf %158 : vector<256x32xf32> to vector<256x32xbf16>
    %c0_178 = arith.constant 0 : index
    %c224_179 = arith.constant 224 : index
    %160 = vector.load %arg23[%c0_178, %c224_179] : memref<256x288xbf16, #tpu.memory_space<vmem>>, vector<256x32xbf16>
    tpu.vector_store %arg23[%c0_178, %c224_179], %159 {strides = array<i32>} : memref<256x288xbf16, #tpu.memory_space<vmem>>, vector<256x32xbf16>,
    %c0_180 = arith.constant 0 : index
    %c2_181 = arith.constant 2 : index
    %c2_182 = arith.constant 2 : index
    %c0_183 = arith.constant 0 : index
    %161 = vector.load %arg22[%c0_180, %c2_181, %c2_182, %c0_183] : memref<1x18x18x32xf32, #tpu.memory_space<vmem>>, vector<1x16x16x32xf32>
    %162 = vector.shape_cast %161 : vector<1x16x16x32xf32> to vector<256x32xf32>
    %163 = arith.truncf %162 : vector<256x32xf32> to vector<256x32xbf16>
    %c0_184 = arith.constant 0 : index
    %c256_185 = arith.constant 256 : index
    %164 = vector.load %arg23[%c0_184, %c256_185] : memref<256x288xbf16, #tpu.memory_space<vmem>>, vector<256x32xbf16>
    tpu.vector_store %arg23[%c0_184, %c256_185], %163 {strides = array<i32>} : memref<256x288xbf16, #tpu.memory_space<vmem>>, vector<256x32xbf16>,
    %c0_186 = arith.constant 0 : index
    %c0_187 = arith.constant 0 : index
    %165 = vector.load %arg23[%c0_186, %c0_187] : memref<256x288xbf16, #tpu.memory_space<vmem>>, vector<256x288xbf16>
    %c0_188 = arith.constant 0 : index
    %c0_189 = arith.constant 0 : index
    %166 = vector.load %arg8[%c0_188, %c0_189] : memref<288x32xbf16, #tpu.memory_space<vmem>>, vector<288x32xbf16>
    %cst_190 = arith.constant dense<0.000000e+00> : vector<256x32xf32>
    %167 = tpu.matmul %165, %166, %cst_190 {dimension_numbers = #tpu.dot_dimension_numbers<[1], [0], [0], [1], [0, 0, 1, 1], [], []>} : vector<256x288xbf16>, vector<288x32xbf16>, vector<256x32xf32> -> vector<256x32xf32>
    %c0_191 = arith.constant 0 : index
    %c0_192 = arith.constant 0 : index
    %168 = vector.load %arg9[%c0_191, %c0_192] : memref<1x32xf32, #tpu.memory_space<vmem>>, vector<1x32xf32>
    %169 = vector.broadcast %168 : vector<1x32xf32> to vector<256x32xf32>
    %170 = arith.mulf %167, %169 : vector<256x32xf32>
    %c0_193 = arith.constant 0 : index
    %c0_194 = arith.constant 0 : index
    %171 = vector.load %arg10[%c0_193, %c0_194] : memref<1x32xf32, #tpu.memory_space<vmem>>, vector<1x32xf32>
    %172 = vector.broadcast %171 : vector<1x32xf32> to vector<256x32xf32>
    %173 = arith.addf %170, %172 : vector<256x32xf32>
    %cst_195 = arith.constant 0.000000e+00 : f32
    %174 = vector.broadcast %cst_195 : f32 to vector<256x32xf32>
    %175 = arith.maximumf %173, %174 : vector<256x32xf32>
    %176 = vector.shape_cast %175 : vector<256x32xf32> to vector<1x16x16x32xf32>
    %c0_196 = arith.constant 0 : index
    %c1_197 = arith.constant 1 : index
    %c1_198 = arith.constant 1 : index
    %c0_199 = arith.constant 0 : index
    %177 = vector.load %arg22[%c0_196, %c1_197, %c1_198, %c0_199] : memref<1x18x18x32xf32, #tpu.memory_space<vmem>>, vector<1x16x16x32xf32>
    tpu.vector_store %arg22[%c0_196, %c1_197, %c1_198, %c0_199], %176 {strides = array<i32>} : memref<1x18x18x32xf32, #tpu.memory_space<vmem>>, vector<1x16x16x32xf32>,
    %c0_200 = arith.constant 0 : index
    %c0_201 = arith.constant 0 : index
    %c0_202 = arith.constant 0 : index
    %c0_203 = arith.constant 0 : index
    %178 = vector.load %arg22[%c0_200, %c0_201, %c0_202, %c0_203] : memref<1x18x18x32xf32, #tpu.memory_space<vmem>>, vector<1x16x16x32xf32>
    %179 = vector.shape_cast %178 : vector<1x16x16x32xf32> to vector<256x32xf32>
    %180 = arith.truncf %179 : vector<256x32xf32> to vector<256x32xbf16>
    %c0_204 = arith.constant 0 : index
    %c0_205 = arith.constant 0 : index
    %181 = vector.load %arg23[%c0_204, %c0_205] : memref<256x288xbf16, #tpu.memory_space<vmem>>, vector<256x32xbf16>
    tpu.vector_store %arg23[%c0_204, %c0_205], %180 {strides = array<i32>} : memref<256x288xbf16, #tpu.memory_space<vmem>>, vector<256x32xbf16>,
    %c0_206 = arith.constant 0 : index
    %c0_207 = arith.constant 0 : index
    %c1_208 = arith.constant 1 : index
    %c0_209 = arith.constant 0 : index
    %182 = vector.load %arg22[%c0_206, %c0_207, %c1_208, %c0_209] : memref<1x18x18x32xf32, #tpu.memory_space<vmem>>, vector<1x16x16x32xf32>
    %183 = vector.shape_cast %182 : vector<1x16x16x32xf32> to vector<256x32xf32>
    %184 = arith.truncf %183 : vector<256x32xf32> to vector<256x32xbf16>
    %c0_210 = arith.constant 0 : index
    %c32_211 = arith.constant 32 : index
    %185 = vector.load %arg23[%c0_210, %c32_211] : memref<256x288xbf16, #tpu.memory_space<vmem>>, vector<256x32xbf16>
    tpu.vector_store %arg23[%c0_210, %c32_211], %184 {strides = array<i32>} : memref<256x288xbf16, #tpu.memory_space<vmem>>, vector<256x32xbf16>,
    %c0_212 = arith.constant 0 : index
    %c0_213 = arith.constant 0 : index
    %c2_214 = arith.constant 2 : index
    %c0_215 = arith.constant 0 : index
    %186 = vector.load %arg22[%c0_212, %c0_213, %c2_214, %c0_215] : memref<1x18x18x32xf32, #tpu.memory_space<vmem>>, vector<1x16x16x32xf32>
    %187 = vector.shape_cast %186 : vector<1x16x16x32xf32> to vector<256x32xf32>
    %188 = arith.truncf %187 : vector<256x32xf32> to vector<256x32xbf16>
    %c0_216 = arith.constant 0 : index
    %c64_217 = arith.constant 64 : index
    %189 = vector.load %arg23[%c0_216, %c64_217] : memref<256x288xbf16, #tpu.memory_space<vmem>>, vector<256x32xbf16>
    tpu.vector_store %arg23[%c0_216, %c64_217], %188 {strides = array<i32>} : memref<256x288xbf16, #tpu.memory_space<vmem>>, vector<256x32xbf16>,
    %c0_218 = arith.constant 0 : index
    %c1_219 = arith.constant 1 : index
    %c0_220 = arith.constant 0 : index
    %c0_221 = arith.constant 0 : index
    %190 = vector.load %arg22[%c0_218, %c1_219, %c0_220, %c0_221] : memref<1x18x18x32xf32, #tpu.memory_space<vmem>>, vector<1x16x16x32xf32>
    %191 = vector.shape_cast %190 : vector<1x16x16x32xf32> to vector<256x32xf32>
    %192 = arith.truncf %191 : vector<256x32xf32> to vector<256x32xbf16>
    %c0_222 = arith.constant 0 : index
    %c96_223 = arith.constant 96 : index
    %193 = vector.load %arg23[%c0_222, %c96_223] : memref<256x288xbf16, #tpu.memory_space<vmem>>, vector<256x32xbf16>
    tpu.vector_store %arg23[%c0_222, %c96_223], %192 {strides = array<i32>} : memref<256x288xbf16, #tpu.memory_space<vmem>>, vector<256x32xbf16>,
    %c0_224 = arith.constant 0 : index
    %c1_225 = arith.constant 1 : index
    %c1_226 = arith.constant 1 : index
    %c0_227 = arith.constant 0 : index
    %194 = vector.load %arg22[%c0_224, %c1_225, %c1_226, %c0_227] : memref<1x18x18x32xf32, #tpu.memory_space<vmem>>, vector<1x16x16x32xf32>
    %195 = vector.shape_cast %194 : vector<1x16x16x32xf32> to vector<256x32xf32>
    %196 = arith.truncf %195 : vector<256x32xf32> to vector<256x32xbf16>
    %c0_228 = arith.constant 0 : index
    %c128_229 = arith.constant 128 : index
    %197 = vector.load %arg23[%c0_228, %c128_229] : memref<256x288xbf16, #tpu.memory_space<vmem>>, vector<256x32xbf16>
    tpu.vector_store %arg23[%c0_228, %c128_229], %196 {strides = array<i32>} : memref<256x288xbf16, #tpu.memory_space<vmem>>, vector<256x32xbf16>,
    %c0_230 = arith.constant 0 : index
    %c1_231 = arith.constant 1 : index
    %c2_232 = arith.constant 2 : index
    %c0_233 = arith.constant 0 : index
    %198 = vector.load %arg22[%c0_230, %c1_231, %c2_232, %c0_233] : memref<1x18x18x32xf32, #tpu.memory_space<vmem>>, vector<1x16x16x32xf32>
    %199 = vector.shape_cast %198 : vector<1x16x16x32xf32> to vector<256x32xf32>
    %200 = arith.truncf %199 : vector<256x32xf32> to vector<256x32xbf16>
    %c0_234 = arith.constant 0 : index
    %c160_235 = arith.constant 160 : index
    %201 = vector.load %arg23[%c0_234, %c160_235] : memref<256x288xbf16, #tpu.memory_space<vmem>>, vector<256x32xbf16>
    tpu.vector_store %arg23[%c0_234, %c160_235], %200 {strides = array<i32>} : memref<256x288xbf16, #tpu.memory_space<vmem>>, vector<256x32xbf16>,
    %c0_236 = arith.constant 0 : index
    %c2_237 = arith.constant 2 : index
    %c0_238 = arith.constant 0 : index
    %c0_239 = arith.constant 0 : index
    %202 = vector.load %arg22[%c0_236, %c2_237, %c0_238, %c0_239] : memref<1x18x18x32xf32, #tpu.memory_space<vmem>>, vector<1x16x16x32xf32>
    %203 = vector.shape_cast %202 : vector<1x16x16x32xf32> to vector<256x32xf32>
    %204 = arith.truncf %203 : vector<256x32xf32> to vector<256x32xbf16>
    %c0_240 = arith.constant 0 : index
    %c192_241 = arith.constant 192 : index
    %205 = vector.load %arg23[%c0_240, %c192_241] : memref<256x288xbf16, #tpu.memory_space<vmem>>, vector<256x32xbf16>
    tpu.vector_store %arg23[%c0_240, %c192_241], %204 {strides = array<i32>} : memref<256x288xbf16, #tpu.memory_space<vmem>>, vector<256x32xbf16>,
    %c0_242 = arith.constant 0 : index
    %c2_243 = arith.constant 2 : index
    %c1_244 = arith.constant 1 : index
    %c0_245 = arith.constant 0 : index
    %206 = vector.load %arg22[%c0_242, %c2_243, %c1_244, %c0_245] : memref<1x18x18x32xf32, #tpu.memory_space<vmem>>, vector<1x16x16x32xf32>
    %207 = vector.shape_cast %206 : vector<1x16x16x32xf32> to vector<256x32xf32>
    %208 = arith.truncf %207 : vector<256x32xf32> to vector<256x32xbf16>
    %c0_246 = arith.constant 0 : index
    %c224_247 = arith.constant 224 : index
    %209 = vector.load %arg23[%c0_246, %c224_247] : memref<256x288xbf16, #tpu.memory_space<vmem>>, vector<256x32xbf16>
    tpu.vector_store %arg23[%c0_246, %c224_247], %208 {strides = array<i32>} : memref<256x288xbf16, #tpu.memory_space<vmem>>, vector<256x32xbf16>,
    %c0_248 = arith.constant 0 : index
    %c2_249 = arith.constant 2 : index
    %c2_250 = arith.constant 2 : index
    %c0_251 = arith.constant 0 : index
    %210 = vector.load %arg22[%c0_248, %c2_249, %c2_250, %c0_251] : memref<1x18x18x32xf32, #tpu.memory_space<vmem>>, vector<1x16x16x32xf32>
    %211 = vector.shape_cast %210 : vector<1x16x16x32xf32> to vector<256x32xf32>
    %212 = arith.truncf %211 : vector<256x32xf32> to vector<256x32xbf16>
    %c0_252 = arith.constant 0 : index
    %c256_253 = arith.constant 256 : index
    %213 = vector.load %arg23[%c0_252, %c256_253] : memref<256x288xbf16, #tpu.memory_space<vmem>>, vector<256x32xbf16>
    tpu.vector_store %arg23[%c0_252, %c256_253], %212 {strides = array<i32>} : memref<256x288xbf16, #tpu.memory_space<vmem>>, vector<256x32xbf16>,
    %c0_254 = arith.constant 0 : index
    %c0_255 = arith.constant 0 : index
    %214 = vector.load %arg23[%c0_254, %c0_255] : memref<256x288xbf16, #tpu.memory_space<vmem>>, vector<256x288xbf16>
    %c0_256 = arith.constant 0 : index
    %c0_257 = arith.constant 0 : index
    %215 = vector.load %arg11[%c0_256, %c0_257] : memref<288x32xbf16, #tpu.memory_space<vmem>>, vector<288x32xbf16>
    %cst_258 = arith.constant dense<0.000000e+00> : vector<256x32xf32>
    %216 = tpu.matmul %214, %215, %cst_258 {dimension_numbers = #tpu.dot_dimension_numbers<[1], [0], [0], [1], [0, 0, 1, 1], [], []>} : vector<256x288xbf16>, vector<288x32xbf16>, vector<256x32xf32> -> vector<256x32xf32>
    %c0_259 = arith.constant 0 : index
    %c0_260 = arith.constant 0 : index
    %217 = vector.load %arg12[%c0_259, %c0_260] : memref<1x32xf32, #tpu.memory_space<vmem>>, vector<1x32xf32>
    %218 = vector.broadcast %217 : vector<1x32xf32> to vector<256x32xf32>
    %219 = arith.mulf %216, %218 : vector<256x32xf32>
    %c0_261 = arith.constant 0 : index
    %c0_262 = arith.constant 0 : index
    %220 = vector.load %arg13[%c0_261, %c0_262] : memref<1x32xf32, #tpu.memory_space<vmem>>, vector<1x32xf32>
    %221 = vector.broadcast %220 : vector<1x32xf32> to vector<256x32xf32>
    %222 = arith.addf %219, %221 : vector<256x32xf32>
    %223 = arith.addf %222, %126 : vector<256x32xf32>
    %cst_263 = arith.constant 0.000000e+00 : f32
    %224 = vector.broadcast %cst_263 : f32 to vector<256x32xf32>
    %225 = arith.maximumf %223, %224 : vector<256x32xf32>
    %cst_264 = arith.constant dense<0xFF800000> : vector<32xf32>
    %226 = vector.multi_reduction <maximumf>, %225, %cst_264 [0] : vector<256x32xf32> to vector<32xf32>
    %227 = vector.shape_cast %226 : vector<32xf32> to vector<1x32xf32>
    %c0_265 = arith.constant 0 : index
    %c0_266 = arith.constant 0 : index
    %228 = vector.load %arg14[%c0_265, %c0_266] : memref<32x32xf32, #tpu.memory_space<vmem>>, vector<32x32xf32>
    %cst_267 = arith.constant dense<0.000000e+00> : vector<1x32xf32>
    %229 = tpu.matmul %227, %228, %cst_267 {dimension_numbers = #tpu.dot_dimension_numbers<[1], [0], [0], [1], [0, 0, 1, 1], [], []>} : vector<1x32xf32>, vector<32x32xf32>, vector<1x32xf32> -> vector<1x32xf32>
    %c0_268 = arith.constant 0 : index
    %c0_269 = arith.constant 0 : index
    %230 = vector.load %arg15[%c0_268, %c0_269] : memref<1x32xf32, #tpu.memory_space<vmem>>, vector<1x32xf32>
    %231 = arith.addf %229, %230 : vector<1x32xf32>
    %cst_270 = arith.constant 0.000000e+00 : f32
    %232 = vector.broadcast %cst_270 : f32 to vector<1x32xf32>
    %233 = arith.maximumf %231, %232 : vector<1x32xf32>
    %c0_271 = arith.constant 0 : index
    %c0_272 = arith.constant 0 : index
    %234 = vector.load %arg16[%c0_271, %c0_272] : memref<32x32xf32, #tpu.memory_space<vmem>>, vector<32x32xf32>
    %cst_273 = arith.constant dense<0.000000e+00> : vector<1x32xf32>
    %235 = tpu.matmul %233, %234, %cst_273 {dimension_numbers = #tpu.dot_dimension_numbers<[1], [0], [0], [1], [0, 0, 1, 1], [], []>} : vector<1x32xf32>, vector<32x32xf32>, vector<1x32xf32> -> vector<1x32xf32>
    %c0_274 = arith.constant 0 : index
    %c0_275 = arith.constant 0 : index
    %236 = vector.load %arg17[%c0_274, %c0_275] : memref<1x32xf32, #tpu.memory_space<vmem>>, vector<1x32xf32>
    %237 = arith.addf %235, %236 : vector<1x32xf32>
    %cst_276 = arith.constant 0.000000e+00 : f32
    %238 = vector.broadcast %cst_276 : f32 to vector<1x32xf32>
    %239 = arith.maximumf %237, %238 : vector<1x32xf32>
    %c0_277 = arith.constant 0 : index
    %c0_278 = arith.constant 0 : index
    %240 = vector.load %arg18[%c0_277, %c0_278] : memref<32x4xf32, #tpu.memory_space<vmem>>, vector<32x4xf32>
    %cst_279 = arith.constant dense<0.000000e+00> : vector<1x4xf32>
    %241 = tpu.matmul %239, %240, %cst_279 {dimension_numbers = #tpu.dot_dimension_numbers<[1], [0], [0], [1], [0, 0, 1, 1], [], []>} : vector<1x32xf32>, vector<32x4xf32>, vector<1x4xf32> -> vector<1x4xf32>
    %c0_280 = arith.constant 0 : index
    %c0_281 = arith.constant 0 : index
    %242 = vector.load %arg19[%c0_280, %c0_281] : memref<1x4xf32, #tpu.memory_space<vmem>>, vector<1x4xf32>
    %243 = arith.addf %241, %242 : vector<1x4xf32>
    %244 = arith.negf %243 : vector<1x4xf32>
    %245 = math.exp %244 : vector<1x4xf32>
    %cst_282 = arith.constant 1.000000e+00 : f32
    %246 = vector.broadcast %cst_282 : f32 to vector<1x4xf32>
    %247 = arith.addf %246, %245 : vector<1x4xf32>
    %248 = arith.divf %246, %247 : vector<1x4xf32>
    %249 = vector.shape_cast %248 : vector<1x4xf32> to vector<1x1x4xf32>
    %c0_283 = arith.constant 0 : index
    %c0_284 = arith.constant 0 : index
    %c0_285 = arith.constant 0 : index
    %250 = vector.load %arg20[%c0_283, %c0_284, %c0_285] : memref<1x1x4xf32, #tpu.memory_space<vmem>>, vector<1x1x4xf32>
    tpu.vector_store %arg20[%c0_283, %c0_284, %c0_285], %249 {strides = array<i32>} : memref<1x1x4xf32, #tpu.memory_space<vmem>>, vector<1x1x4xf32>,
    return
  }
  func.func @transform_0(%arg0: i32) -> (i32, i32, i32, i32) {
    %c0_i32 = arith.constant 0 : i32
    %c0_i32_0 = arith.constant 0 : i32
    %c0_i32_1 = arith.constant 0 : i32
    %c0_i32_2 = arith.constant 0 : i32
    return %arg0, %c0_i32, %c0_i32_0, %c0_i32_1 : i32, i32, i32, i32
  }
  func.func @transform_1(%arg0: i32) -> (i32, i32) {
    %c0_i32 = arith.constant 0 : i32
    %c0_i32_0 = arith.constant 0 : i32
    %c0_i32_1 = arith.constant 0 : i32
    return %c0_i32, %c0_i32_0 : i32, i32
  }
  func.func @transform_2(%arg0: i32) -> (i32, i32) {
    %c0_i32 = arith.constant 0 : i32
    %c0_i32_0 = arith.constant 0 : i32
    %c0_i32_1 = arith.constant 0 : i32
    return %c0_i32, %c0_i32_0 : i32, i32
  }
  func.func @transform_3(%arg0: i32) -> (i32, i32) {
    %c0_i32 = arith.constant 0 : i32
    %c0_i32_0 = arith.constant 0 : i32
    %c0_i32_1 = arith.constant 0 : i32
    return %c0_i32, %c0_i32_0 : i32, i32
  }
  func.func @transform_4(%arg0: i32) -> (i32, i32) {
    %c0_i32 = arith.constant 0 : i32
    %c0_i32_0 = arith.constant 0 : i32
    %c0_i32_1 = arith.constant 0 : i32
    return %c0_i32, %c0_i32_0 : i32, i32
  }
  func.func @transform_5(%arg0: i32) -> (i32, i32) {
    %c0_i32 = arith.constant 0 : i32
    %c0_i32_0 = arith.constant 0 : i32
    %c0_i32_1 = arith.constant 0 : i32
    return %c0_i32, %c0_i32_0 : i32, i32
  }
  func.func @transform_6(%arg0: i32) -> (i32, i32) {
    %c0_i32 = arith.constant 0 : i32
    %c0_i32_0 = arith.constant 0 : i32
    %c0_i32_1 = arith.constant 0 : i32
    return %c0_i32, %c0_i32_0 : i32, i32
  }
  func.func @transform_7(%arg0: i32) -> (i32, i32) {
    %c0_i32 = arith.constant 0 : i32
    %c0_i32_0 = arith.constant 0 : i32
    %c0_i32_1 = arith.constant 0 : i32
    return %c0_i32, %c0_i32_0 : i32, i32
  }
  func.func @transform_8(%arg0: i32) -> (i32, i32) {
    %c0_i32 = arith.constant 0 : i32
    %c0_i32_0 = arith.constant 0 : i32
    %c0_i32_1 = arith.constant 0 : i32
    return %c0_i32, %c0_i32_0 : i32, i32
  }
  func.func @transform_9(%arg0: i32) -> (i32, i32) {
    %c0_i32 = arith.constant 0 : i32
    %c0_i32_0 = arith.constant 0 : i32
    %c0_i32_1 = arith.constant 0 : i32
    return %c0_i32, %c0_i32_0 : i32, i32
  }
  func.func @transform_10(%arg0: i32) -> (i32, i32) {
    %c0_i32 = arith.constant 0 : i32
    %c0_i32_0 = arith.constant 0 : i32
    %c0_i32_1 = arith.constant 0 : i32
    return %c0_i32, %c0_i32_0 : i32, i32
  }
  func.func @transform_11(%arg0: i32) -> (i32, i32) {
    %c0_i32 = arith.constant 0 : i32
    %c0_i32_0 = arith.constant 0 : i32
    %c0_i32_1 = arith.constant 0 : i32
    return %c0_i32, %c0_i32_0 : i32, i32
  }
  func.func @transform_12(%arg0: i32) -> (i32, i32) {
    %c0_i32 = arith.constant 0 : i32
    %c0_i32_0 = arith.constant 0 : i32
    %c0_i32_1 = arith.constant 0 : i32
    return %c0_i32, %c0_i32_0 : i32, i32
  }
  func.func @transform_13(%arg0: i32) -> (i32, i32) {
    %c0_i32 = arith.constant 0 : i32
    %c0_i32_0 = arith.constant 0 : i32
    %c0_i32_1 = arith.constant 0 : i32
    return %c0_i32, %c0_i32_0 : i32, i32
  }
  func.func @transform_14(%arg0: i32) -> (i32, i32) {
    %c0_i32 = arith.constant 0 : i32
    %c0_i32_0 = arith.constant 0 : i32
    %c0_i32_1 = arith.constant 0 : i32
    return %c0_i32, %c0_i32_0 : i32, i32
  }
  func.func @transform_15(%arg0: i32) -> (i32, i32) {
    %c0_i32 = arith.constant 0 : i32
    %c0_i32_0 = arith.constant 0 : i32
    %c0_i32_1 = arith.constant 0 : i32
    return %c0_i32, %c0_i32_0 : i32, i32
  }
  func.func @transform_16(%arg0: i32) -> (i32, i32) {
    %c0_i32 = arith.constant 0 : i32
    %c0_i32_0 = arith.constant 0 : i32
    %c0_i32_1 = arith.constant 0 : i32
    return %c0_i32, %c0_i32_0 : i32, i32
  }
  func.func @transform_17(%arg0: i32) -> (i32, i32) {
    %c0_i32 = arith.constant 0 : i32
    %c0_i32_0 = arith.constant 0 : i32
    %c0_i32_1 = arith.constant 0 : i32
    return %c0_i32, %c0_i32_0 : i32, i32
  }
  func.func @transform_18(%arg0: i32) -> (i32, i32) {
    %c0_i32 = arith.constant 0 : i32
    %c0_i32_0 = arith.constant 0 : i32
    %c0_i32_1 = arith.constant 0 : i32
    return %c0_i32, %c0_i32_0 : i32, i32
  }
  func.func @transform_19(%arg0: i32) -> (i32, i32, i32) {
    %c0_i32 = arith.constant 0 : i32
    %c0_i32_0 = arith.constant 0 : i32
    %c0_i32_1 = arith.constant 0 : i32
    return %arg0, %c0_i32, %c0_i32_0 : i32, i32, i32
  }
}

</mosaic_0001>

<llo_original>
// kernel: initial_model_forward.1
$region0: #{initial_model_forward.1}
  #allocation0 [shape = 'u32[]', space=smem, size = 0x4, offset = 0x4, fixed_abs, tag = 'smem constant byte address 0x4 - core index']
  #allocation1 [shape = 'u32[144,128]{1,0:T(1,128)}', space=vmem, size = 0x12000, scoped, tag = 'internal scratch']
  #allocation2 [shape = 'f32[1,18,18,1]{3,2,1,0:T(8,128)}', space=vmem, size = 0x36000, scoped, tag = 'scratch operand']
  #allocation3 [shape = 'f32[1,18,18,32]{3,2,1,0:T(8,128)}', space=vmem, size = 0x36000, scoped, tag = 'scratch operand']
  #allocation4 [shape = 'bf16[256,288]{1,0:T(16,128)(2,1)}', space=vmem, size = 0x30000, scoped, tag = 'scratch operand']
  %s0 = inlined_call_operand.vmem [shape: f32[2,16,16,1], index: 0, kind: input, shape index: {}]
  %s1 = inlined_call_operand.vmem [shape: f32[9,32], index: 1, kind: input, shape index: {}]
  %s2 = inlined_call_operand.vmem [shape: f32[1,32], index: 2, kind: input, shape index: {}]
  %s3 = inlined_call_operand.vmem [shape: f32[1,32], index: 3, kind: input, shape index: {}]
  %s4 = inlined_call_operand.vmem [shape: bf16[288,32], index: 4, kind: input, shape index: {}]
  %s5 = inlined_call_operand.vmem [shape: f32[1,32], index: 5, kind: input, shape index: {}]
  %s6 = inlined_call_operand.vmem [shape: f32[1,32], index: 6, kind: input, shape index: {}]
  %s7 = inlined_call_operand.vmem [shape: bf16[288,32], index: 7, kind: input, shape index: {}]
  %s8 = inlined_call_operand.vmem [shape: f32[1,32], index: 8, kind: input, shape index: {}]
  %s9 = inlined_call_operand.vmem [shape: f32[1,32], index: 9, kind: input, shape index: {}]
  %s10 = inlined_call_operand.vmem [shape: bf16[288,32], index: 10, kind: input, shape index: {}]
  %s11 = inlined_call_operand.vmem [shape: f32[1,32], index: 11, kind: input, shape index: {}]
  %s12 = inlined_call_operand.vmem [shape: f32[1,32], index: 12, kind: input, shape index: {}]
  %s13 = inlined_call_operand.vmem [shape: f32[32,32], index: 13, kind: input, shape index: {}]
  %s14 = inlined_call_operand.vmem [shape: f32[1,32], index: 14, kind: input, shape index: {}]
  %s15 = inlined_call_operand.vmem [shape: f32[32,32], index: 15, kind: input, shape index: {}]
  %s16 = inlined_call_operand.vmem [shape: f32[1,32], index: 16, kind: input, shape index: {}]
  %s17 = inlined_call_operand.vmem [shape: f32[32,4], index: 17, kind: input, shape index: {}]
  %s18 = inlined_call_operand.vmem [shape: f32[1,4], index: 18, kind: input, shape index: {}]
  %s19 = inlined_call_operand.hbm [shape: f32[2,1,4], index: 19, kind: output, shape index: {}]
  %s20 = sld [smem:[#allocation0]]
  $region109: #{initial_model_forward.1} parent=0
    _
  %s22 = ssub.s32 1, %s20
  %s23 = scalar_select 0, %s22, %s20
  $region1: #{initial_model_forward.1} parent=0
    #allocation5 [shape = 'u8[1024]{0}', space=vmem, size = 0x400, scoped, tag = 'output window, operand 0']
    #allocation6 [shape = 's32[2]{0}', space=sflag, size = 0x8, scoped, tag = 'scoped memory for initial_model_forward.1']
    %24 = vsyncpa [#allocation6], 0
    %s25 = scalar_lea.sflag [#allocation6], 1
    %26 = vsyncpa %s25, 0
    loop: start=0, step=1, limit=4
    $region2: #{initial_model_forward.1} parent=1 // loop_pre_header
      _
    $region3: #{initial_model_forward.1} parent=1 // loop_header
      %s28 = sphi 0, %s32
      %p29 = scmp.ge.s32.totalorder %s28, 4
      %s38 = sphi 0, %s40
      %s41 = sphi 0, %s38
      %s42 = sphi 0, %s41
      %s58 = sphi 0, %s42
      %s62 = sphi 0, %s62
      %s64 = sphi 0, %s62
      %s65 = sphi 0, %s64
      %s79 = sphi 0, %s65
      %s83 = sphi 0, %s83
      %s85 = sphi 0, %s83
      %s86 = sphi 0, %s85
      %s100 = sphi 0, %s86
      %s104 = sphi 0, %s104
      %s106 = sphi 0, %s104
      %s107 = sphi 0, %s106
      %s121 = sphi 0, %s107
      %s125 = sphi 0, %s125
      %s127 = sphi 0, %s125
      %s128 = sphi 0, %s127
      %s142 = sphi 0, %s128
      %s146 = sphi 0, %s146
      %s148 = sphi 0, %s146
      %s149 = sphi 0, %s148
      %s163 = sphi 0, %s149
      %s167 = sphi 0, %s167
      %s169 = sphi 0, %s167
      %s170 = sphi 0, %s169
      %s184 = sphi 0, %s170
      %s188 = sphi 0, %s188
      %s190 = sphi 0, %s188
      %s191 = sphi 0, %s190
      %s205 = sphi 0, %s191
      %s209 = sphi 0, %s209
      %s211 = sphi 0, %s209
      %s212 = sphi 0, %s211
      %s226 = sphi 0, %s212
      %s230 = sphi 0, %s230
      %s232 = sphi 0, %s230
      %s233 = sphi 0, %s232
      %s247 = sphi 0, %s233
      %s251 = sphi 0, %s251
      %s253 = sphi 0, %s251
      %s254 = sphi 0, %s253
      %s268 = sphi 0, %s254
      %s272 = sphi 0, %s272
      %s274 = sphi 0, %s272
      %s275 = sphi 0, %s274
      %s289 = sphi 0, %s275
      %s293 = sphi 0, %s293
      %s295 = sphi 0, %s293
      %s296 = sphi 0, %s295
      %s310 = sphi 0, %s296
      %s314 = sphi 0, %s314
      %s316 = sphi 0, %s314
      %s317 = sphi 0, %s316
      %s331 = sphi 0, %s317
      %s335 = sphi 0, %s335
      %s337 = sphi 0, %s335
      %s338 = sphi 0, %s337
      %s352 = sphi 0, %s338
      %s356 = sphi 0, %s356
      %s358 = sphi 0, %s356
      %s359 = sphi 0, %s358
      %s373 = sphi 0, %s359
      %s377 = sphi 0, %s377
      %s379 = sphi 0, %s377
      %s380 = sphi 0, %s379
      %s394 = sphi 0, %s380
      %s398 = sphi 0, %s398
      %s400 = sphi 0, %s398
      %s401 = sphi 0, %s400
      %s415 = sphi 0, %s401
      %s419 = sphi 0, %s419
      %s421 = sphi 0, %s419
      %s422 = sphi 0, %s421
      %s436 = sphi 0, %s422
      %s442 = sphi 0, %s444
      %s445 = sphi 0, %s442
      %s446 = sphi 0, %s445
      %s462 = sphi 0, %s446
    $region4: #{initial_model_forward.1} parent=1 // loop_header_branch
      %31 = sbr.rel (%p29) target = $region8
    $region5: #{initial_model_forward.1} parent=1 // loop_body
      %s33 = ssub.s32 %s28, 1
      %s34 = ssub.s32 %s28, 2
      %s35 = sadd.s32 %s28, 1
      %s36 = ssub.s32 %s28, %s35
      %p37 = scmp.eq.s32.totalorder %s36, 0
      %s39 = sadd.s32 %s38, 1
      %s40 = scalar_select %p37, %s38, %s39
      %p43 = pneg %p37
      %p44 = scmp.eq.s32.totalorder %s28, 1
      %p45 = por %p43, %p44
      %p46 = scmp.ne.s32.totalorder %s38, %s41
      %p47 = scmp.eq.s32.totalorder %s28, 0
      %p48 = por %p46, %p47
      %p49 = scmp.ne.s32.totalorder %s38, %s41
      %p50 = scmp.eq.s32.totalorder %s33, 1
      %p51 = por %p49, %p50
      %p52 = scmp.ne.s32.totalorder %s41, %s42
      %p53 = scmp.eq.s32.totalorder %s33, 0
      %p54 = por %p52, %p53
      %p55 = scmp.ne.s32.totalorder %s41, %s42
      %p56 = scmp.eq.s32.totalorder %s34, 1
      %p57 = por %p55, %p56
      %p59 = scmp.ne.s32.totalorder %s42, %s58
      %p60 = scmp.eq.s32.totalorder %s34, 0
      %p61 = por %p59, %p60
      %s63 = sadd.s32 %s62, 1
      %p66 = scmp.eq.s32.totalorder %s28, 1
      %p67 = scmp.ne.s32.totalorder %s62, %s64
      %p68 = scmp.eq.s32.totalorder %s28, 0
      %p69 = por %p67, %p68
      %p70 = scmp.ne.s32.totalorder %s62, %s64
      %p71 = scmp.eq.s32.totalorder %s33, 1
      %p72 = por %p70, %p71
      %p73 = scmp.ne.s32.totalorder %s64, %s65
      %p74 = scmp.eq.s32.totalorder %s33, 0
      %p75 = por %p73, %p74
      %p76 = scmp.ne.s32.totalorder %s64, %s65
      %p77 = scmp.eq.s32.totalorder %s34, 1
      %p78 = por %p76, %p77
      %p80 = scmp.ne.s32.totalorder %s65, %s79
      %p81 = scmp.eq.s32.totalorder %s34, 0
      %p82 = por %p80, %p81
      %s84 = sadd.s32 %s83, 1
      %p87 = scmp.eq.s32.totalorder %s28, 1
      %p88 = scmp.ne.s32.totalorder %s83, %s85
      %p89 = scmp.eq.s32.totalorder %s28, 0
      %p90 = por %p88, %p89
      %p91 = scmp.ne.s32.totalorder %s83, %s85
      %p92 = scmp.eq.s32.totalorder %s33, 1
      %p93 = por %p91, %p92
      %p94 = scmp.ne.s32.totalorder %s85, %s86
      %p95 = scmp.eq.s32.totalorder %s33, 0
      %p96 = por %p94, %p95
      %p97 = scmp.ne.s32.totalorder %s85, %s86
      %p98 = scmp.eq.s32.totalorder %s34, 1
      %p99 = por %p97, %p98
      %p101 = scmp.ne.s32.totalorder %s86, %s100
      %p102 = scmp.eq.s32.totalorder %s34, 0
      %p103 = por %p101, %p102
      %s105 = sadd.s32 %s104, 1
      %p108 = scmp.eq.s32.totalorder %s28, 1
      %p109 = scmp.ne.s32.totalorder %s104, %s106
      %p110 = scmp.eq.s32.totalorder %s28, 0
      %p111 = por %p109, %p110
      %p112 = scmp.ne.s32.totalorder %s104, %s106
      %p113 = scmp.eq.s32.totalorder %s33, 1
      %p114 = por %p112, %p113
      %p115 = scmp.ne.s32.totalorder %s106, %s107
      %p116 = scmp.eq.s32.totalorder %s33, 0
      %p117 = por %p115, %p116
      %p118 = scmp.ne.s32.totalorder %s106, %s107
      %p119 = scmp.eq.s32.totalorder %s34, 1
      %p120 = por %p118, %p119
      %p122 = scmp.ne.s32.totalorder %s107, %s121
      %p123 = scmp.eq.s32.totalorder %s34, 0
      %p124 = por %p122, %p123
      %s126 = sadd.s32 %s125, 1
      %p129 = scmp.eq.s32.totalorder %s28, 1
      %p130 = scmp.ne.s32.totalorder %s125, %s127
      %p131 = scmp.eq.s32.totalorder %s28, 0
      %p132 = por %p130, %p131
      %p133 = scmp.ne.s32.totalorder %s125, %s127
      %p134 = scmp.eq.s32.totalorder %s33, 1
      %p135 = por %p133, %p134
      %p136 = scmp.ne.s32.totalorder %s127, %s128
      %p137 = scmp.eq.s32.totalorder %s33, 0
      %p138 = por %p136, %p137
      %p139 = scmp.ne.s32.totalorder %s127, %s128
      %p140 = scmp.eq.s32.totalorder %s34, 1
      %p141 = por %p139, %p140
      %p143 = scmp.ne.s32.totalorder %s128, %s142
      %p144 = scmp.eq.s32.totalorder %s34, 0
      %p145 = por %p143, %p144
      %s147 = sadd.s32 %s146, 1
      %p150 = scmp.eq.s32.totalorder %s28, 1
      %p151 = scmp.ne.s32.totalorder %s146, %s148
      %p152 = scmp.eq.s32.totalorder %s28, 0
      %p153 = por %p151, %p152
      %p154 = scmp.ne.s32.totalorder %s146, %s148
      %p155 = scmp.eq.s32.totalorder %s33, 1
      %p156 = por %p154, %p155
      %p157 = scmp.ne.s32.totalorder %s148, %s149
      %p158 = scmp.eq.s32.totalorder %s33, 0
      %p159 = por %p157, %p158
      %p160 = scmp.ne.s32.totalorder %s148, %s149
      %p161 = scmp.eq.s32.totalorder %s34, 1
      %p162 = por %p160, %p161
      %p164 = scmp.ne.s32.totalorder %s149, %s163
      %p165 = scmp.eq.s32.totalorder %s34, 0
      %p166 = por %p164, %p165
      %s168 = sadd.s32 %s167, 1
      %p171 = scmp.eq.s32.totalorder %s28, 1
      %p172 = scmp.ne.s32.totalorder %s167, %s169
      %p173 = scmp.eq.s32.totalorder %s28, 0
      %p174 = por %p172, %p173
      %p175 = scmp.ne.s32.totalorder %s167, %s169
      %p176 = scmp.eq.s32.totalorder %s33, 1
      %p177 = por %p175, %p176
      %p178 = scmp.ne.s32.totalorder %s169, %s170
      %p179 = scmp.eq.s32.totalorder %s33, 0
      %p180 = por %p178, %p179
      %p181 = scmp.ne.s32.totalorder %s169, %s170
      %p182 = scmp.eq.s32.totalorder %s34, 1
      %p183 = por %p181, %p182
      %p185 = scmp.ne.s32.totalorder %s170, %s184
      %p186 = scmp.eq.s32.totalorder %s34, 0
      %p187 = por %p185, %p186
      %s189 = sadd.s32 %s188, 1
      %p192 = scmp.eq.s32.totalorder %s28, 1
      %p193 = scmp.ne.s32.totalorder %s188, %s190
      %p194 = scmp.eq.s32.totalorder %s28, 0
      %p195 = por %p193, %p194
      %p196 = scmp.ne.s32.totalorder %s188, %s190
      %p197 = scmp.eq.s32.totalorder %s33, 1
      %p198 = por %p196, %p197
      %p199 = scmp.ne.s32.totalorder %s190, %s191
      %p200 = scmp.eq.s32.totalorder %s33, 0
      %p201 = por %p199, %p200
      %p202 = scmp.ne.s32.totalorder %s190, %s191
      %p203 = scmp.eq.s32.totalorder %s34, 1
      %p204 = por %p202, %p203
      %p206 = scmp.ne.s32.totalorder %s191, %s205
      %p207 = scmp.eq.s32.totalorder %s34, 0
      %p208 = por %p206, %p207
      %s210 = sadd.s32 %s209, 1
      %p213 = scmp.eq.s32.totalorder %s28, 1
      %p214 = scmp.ne.s32.totalorder %s209, %s211
      %p215 = scmp.eq.s32.totalorder %s28, 0
      %p216 = por %p214, %p215
      %p217 = scmp.ne.s32.totalorder %s209, %s211
      %p218 = scmp.eq.s32.totalorder %s33, 1
      %p219 = por %p217, %p218
      %p220 = scmp.ne.s32.totalorder %s211, %s212
      %p221 = scmp.eq.s32.totalorder %s33, 0
      %p222 = por %p220, %p221
      %p223 = scmp.ne.s32.totalorder %s211, %s212
      %p224 = scmp.eq.s32.totalorder %s34, 1
      %p225 = por %p223, %p224
      %p227 = scmp.ne.s32.totalorder %s212, %s226
      %p228 = scmp.eq.s32.totalorder %s34, 0
      %p229 = por %p227, %p228
      %s231 = sadd.s32 %s230, 1
      %p234 = scmp.eq.s32.totalorder %s28, 1
      %p235 = scmp.ne.s32.totalorder %s230, %s232
      %p236 = scmp.eq.s32.totalorder %s28, 0
      %p237 = por %p235, %p236
      %p238 = scmp.ne.s32.totalorder %s230, %s232
      %p239 = scmp.eq.s32.totalorder %s33, 1
      %p240 = por %p238, %p239
      %p241 = scmp.ne.s32.totalorder %s232, %s233
      %p242 = scmp.eq.s32.totalorder %s33, 0
      %p243 = por %p241, %p242
      %p244 = scmp.ne.s32.totalorder %s232, %s233
      %p245 = scmp.eq.s32.totalorder %s34, 1
      %p246 = por %p244, %p245
      %p248 = scmp.ne.s32.totalorder %s233, %s247
      %p249 = scmp.eq.s32.totalorder %s34, 0
      %p250 = por %p248, %p249
      %s252 = sadd.s32 %s251, 1
      %p255 = scmp.eq.s32.totalorder %s28, 1
      %p256 = scmp.ne.s32.totalorder %s251, %s253
      %p257 = scmp.eq.s32.totalorder %s28, 0
      %p258 = por %p256, %p257
      %p259 = scmp.ne.s32.totalorder %s251, %s253
      %p260 = scmp.eq.s32.totalorder %s33, 1
      %p261 = por %p259, %p260
      %p262 = scmp.ne.s32.totalorder %s253, %s254
      %p263 = scmp.eq.s32.totalorder %s33, 0
      %p264 = por %p262, %p263
      %p265 = scmp.ne.s32.totalorder %s253, %s254
      %p266 = scmp.eq.s32.totalorder %s34, 1
      %p267 = por %p265, %p266
      %p269 = scmp.ne.s32.totalorder %s254, %s268
      %p270 = scmp.eq.s32.totalorder %s34, 0
      %p271 = por %p269, %p270
      %s273 = sadd.s32 %s272, 1
      %p276 = scmp.eq.s32.totalorder %s28, 1
      %p277 = scmp.ne.s32.totalorder %s272, %s274
      %p278 = scmp.eq.s32.totalorder %s28, 0
      %p279 = por %p277, %p278
      %p280 = scmp.ne.s32.totalorder %s272, %s274
      %p281 = scmp.eq.s32.totalorder %s33, 1
      %p282 = por %p280, %p281
      %p283 = scmp.ne.s32.totalorder %s274, %s275
      %p284 = scmp.eq.s32.totalorder %s33, 0
      %p285 = por %p283, %p284
      %p286 = scmp.ne.s32.totalorder %s274, %s275
      %p287 = scmp.eq.s32.totalorder %s34, 1
      %p288 = por %p286, %p287
      %p290 = scmp.ne.s32.totalorder %s275, %s289
      %p291 = scmp.eq.s32.totalorder %s34, 0
      %p292 = por %p290, %p291
      %s294 = sadd.s32 %s293, 1
      %p297 = scmp.eq.s32.totalorder %s28, 1
      %p298 = scmp.ne.s32.totalorder %s293, %s295
      %p299 = scmp.eq.s32.totalorder %s28, 0
      %p300 = por %p298, %p299
      %p301 = scmp.ne.s32.totalorder %s293, %s295
      %p302 = scmp.eq.s32.totalorder %s33, 1
      %p303 = por %p301, %p302
      %p304 = scmp.ne.s32.totalorder %s295, %s296
      %p305 = scmp.eq.s32.totalorder %s33, 0
      %p306 = por %p304, %p305
      %p307 = scmp.ne.s32.totalorder %s295, %s296
      %p308 = scmp.eq.s32.totalorder %s34, 1
      %p309 = por %p307, %p308
      %p311 = scmp.ne.s32.totalorder %s296, %s310
      %p312 = scmp.eq.s32.totalorder %s34, 0
      %p313 = por %p311, %p312
      %s315 = sadd.s32 %s314, 1
      %p318 = scmp.eq.s32.totalorder %s28, 1
      %p319 = scmp.ne.s32.totalorder %s314, %s316
      %p320 = scmp.eq.s32.totalorder %s28, 0
      %p321 = por %p319, %p320
      %p322 = scmp.ne.s32.totalorder %s314, %s316
      %p323 = scmp.eq.s32.totalorder %s33, 1
      %p324 = por %p322, %p323
      %p325 = scmp.ne.s32.totalorder %s316, %s317
      %p326 = scmp.eq.s32.totalorder %s33, 0
      %p327 = por %p325, %p326
      %p328 = scmp.ne.s32.totalorder %s316, %s317
      %p329 = scmp.eq.s32.totalorder %s34, 1
      %p330 = por %p328, %p329
      %p332 = scmp.ne.s32.totalorder %s317, %s331
      %p333 = scmp.eq.s32.totalorder %s34, 0
      %p334 = por %p332, %p333
      %s336 = sadd.s32 %s335, 1
      %p339 = scmp.eq.s32.totalorder %s28, 1
      %p340 = scmp.ne.s32.totalorder %s335, %s337
      %p341 = scmp.eq.s32.totalorder %s28, 0
      %p342 = por %p340, %p341
      %p343 = scmp.ne.s32.totalorder %s335, %s337
      %p344 = scmp.eq.s32.totalorder %s33, 1
      %p345 = por %p343, %p344
      %p346 = scmp.ne.s32.totalorder %s337, %s338
      %p347 = scmp.eq.s32.totalorder %s33, 0
      %p348 = por %p346, %p347
      %p349 = scmp.ne.s32.totalorder %s337, %s338
      %p350 = scmp.eq.s32.totalorder %s34, 1
      %p351 = por %p349, %p350
      %p353 = scmp.ne.s32.totalorder %s338, %s352
      %p354 = scmp.eq.s32.totalorder %s34, 0
      %p355 = por %p353, %p354
      %s357 = sadd.s32 %s356, 1
      %p360 = scmp.eq.s32.totalorder %s28, 1
      %p361 = scmp.ne.s32.totalorder %s356, %s358
      %p362 = scmp.eq.s32.totalorder %s28, 0
      %p363 = por %p361, %p362
      %p364 = scmp.ne.s32.totalorder %s356, %s358
      %p365 = scmp.eq.s32.totalorder %s33, 1
      %p366 = por %p364, %p365
      %p367 = scmp.ne.s32.totalorder %s358, %s359
      %p368 = scmp.eq.s32.totalorder %s33, 0
      %p369 = por %p367, %p368
      %p370 = scmp.ne.s32.totalorder %s358, %s359
      %p371 = scmp.eq.s32.totalorder %s34, 1
      %p372 = por %p370, %p371
      %p374 = scmp.ne.s32.totalorder %s359, %s373
      %p375 = scmp.eq.s32.totalorder %s34, 0
      %p376 = por %p374, %p375
      %s378 = sadd.s32 %s377, 1
      %p381 = scmp.eq.s32.totalorder %s28, 1
      %p382 = scmp.ne.s32.totalorder %s377, %s379
      %p383 = scmp.eq.s32.totalorder %s28, 0
      %p384 = por %p382, %p383
      %p385 = scmp.ne.s32.totalorder %s377, %s379
      %p386 = scmp.eq.s32.totalorder %s33, 1
      %p387 = por %p385, %p386
      %p388 = scmp.ne.s32.totalorder %s379, %s380
      %p389 = scmp.eq.s32.totalorder %s33, 0
      %p390 = por %p388, %p389
      %p391 = scmp.ne.s32.totalorder %s379, %s380
      %p392 = scmp.eq.s32.totalorder %s34, 1
      %p393 = por %p391, %p392
      %p395 = scmp.ne.s32.totalorder %s380, %s394
      %p396 = scmp.eq.s32.totalorder %s34, 0
      %p397 = por %p395, %p396
      %s399 = sadd.s32 %s398, 1
      %p402 = scmp.eq.s32.totalorder %s28, 1
      %p403 = scmp.ne.s32.totalorder %s398, %s400
      %p404 = scmp.eq.s32.totalorder %s28, 0
      %p405 = por %p403, %p404
      %p406 = scmp.ne.s32.totalorder %s398, %s400
      %p407 = scmp.eq.s32.totalorder %s33, 1
      %p408 = por %p406, %p407
      %p409 = scmp.ne.s32.totalorder %s400, %s401
      %p410 = scmp.eq.s32.totalorder %s33, 0
      %p411 = por %p409, %p410
      %p412 = scmp.ne.s32.totalorder %s400, %s401
      %p413 = scmp.eq.s32.totalorder %s34, 1
      %p414 = por %p412, %p413
      %p416 = scmp.ne.s32.totalorder %s401, %s415
      %p417 = scmp.eq.s32.totalorder %s34, 0
      %p418 = por %p416, %p417
      %s420 = sadd.s32 %s419, 1
      %p423 = scmp.eq.s32.totalorder %s28, 1
      %p424 = scmp.ne.s32.totalorder %s419, %s421
      %p425 = scmp.eq.s32.totalorder %s28, 0
      %p426 = por %p424, %p425
      %p427 = scmp.ne.s32.totalorder %s419, %s421
      %p428 = scmp.eq.s32.totalorder %s33, 1
      %p429 = por %p427, %p428
      %p430 = scmp.ne.s32.totalorder %s421, %s422
      %p431 = scmp.eq.s32.totalorder %s33, 0
      %p432 = por %p430, %p431
      %p433 = scmp.ne.s32.totalorder %s421, %s422
      %p434 = scmp.eq.s32.totalorder %s34, 1
      %p435 = por %p433, %p434
      %p437 = scmp.ne.s32.totalorder %s422, %s436
      %p438 = scmp.eq.s32.totalorder %s34, 0
      %p439 = por %p437, %p438
      %s440 = ssub.s32 %s28, %s35
      %p441 = scmp.eq.s32.totalorder %s440, 0
      %s443 = sadd.s32 %s442, 1
      %s444 = scalar_select %p441, %s442, %s443
      %p447 = pneg %p441
      %p448 = scmp.eq.s32.totalorder %s28, 1
      %p449 = por %p447, %p448
      %p450 = scmp.ne.s32.totalorder %s442, %s445
      %p451 = scmp.eq.s32.totalorder %s28, 0
      %p452 = por %p450, %p451
      %p453 = scmp.ne.s32.totalorder %s442, %s445
      %p454 = scmp.eq.s32.totalorder %s33, 1
      %p455 = por %p453, %p454
      %p456 = scmp.ne.s32.totalorder %s445, %s446
      %p457 = scmp.eq.s32.totalorder %s33, 0
      %p458 = por %p456, %p457
      %p459 = scmp.ne.s32.totalorder %s445, %s446
      %p460 = scmp.eq.s32.totalorder %s34, 1
      %p461 = por %p459, %p460
      %p463 = scmp.ne.s32.totalorder %s446, %s462
      %p464 = scmp.eq.s32.totalorder %s34, 0
      %p465 = por %p463, %p464
      %p466 = scmp.le.s32.totalorder 1, %s28
      %p467 = scmp.lt.s32.totalorder %s28, 3
      %p468 = pnand %p466, %p467
      %p469 = pneg %p468
      // Predicated region
      $region9: #{initial_model_forward.1} parent=5 // pred_check
        _
      $region10: #{initial_model_forward.1} parent=5 // pred_check_branch
        %471 = sbr.rel (%p468) target = $region12
      $region11: #{initial_model_forward.1} parent=5 // pred_region
        %s472 = ssub.s32 %s28, 1
        // Predicated region
        $region13: #{initial_model_forward.1} parent=11 // pred_check
          %p473 = pneg %p75
        $region14: #{initial_model_forward.1} parent=11 // pred_check_branch
          %475 = sbr.rel (%p473) target = $region16
        $region15: #{initial_model_forward.1} parent=11 // pred_region
          _
        $region16: #{initial_model_forward.1} parent=11 // pred_fallthru
          _
        // Predicated region
        $region17: #{initial_model_forward.1} parent=11 // pred_check
          %p476 = pneg %p96
        $region18: #{initial_model_forward.1} parent=11 // pred_check_branch
          %478 = sbr.rel (%p476) target = $region20
        $region19: #{initial_model_forward.1} parent=11 // pred_region
          _
        $region20: #{initial_model_forward.1} parent=11 // pred_fallthru
          _
        // Predicated region
        $region21: #{initial_model_forward.1} parent=11 // pred_check
          %p479 = pneg %p117
        $region22: #{initial_model_forward.1} parent=11 // pred_check_branch
          %481 = sbr.rel (%p479) target = $region24
        $region23: #{initial_model_forward.1} parent=11 // pred_region
          _
        $region24: #{initial_model_forward.1} parent=11 // pred_fallthru
          _
        // Predicated region
        $region25: #{initial_model_forward.1} parent=11 // pred_check
          %p482 = pneg %p138
        $region26: #{initial_model_forward.1} parent=11 // pred_check_branch
          %484 = sbr.rel (%p482) target = $region28
        $region27: #{initial_model_forward.1} parent=11 // pred_region
          _
        $region28: #{initial_model_forward.1} parent=11 // pred_fallthru
          _
        // Predicated region
        $region29: #{initial_model_forward.1} parent=11 // pred_check
          %p485 = pneg %p159
        $region30: #{initial_model_forward.1} parent=11 // pred_check_branch
          %487 = sbr.rel (%p485) target = $region32
        $region31: #{initial_model_forward.1} parent=11 // pred_region
          _
        $region32: #{initial_model_forward.1} parent=11 // pred_fallthru
          _
        // Predicated region
        $region33: #{initial_model_forward.1} parent=11 // pred_check
          %p488 = pneg %p180
        $region34: #{initial_model_forward.1} parent=11 // pred_check_branch
          %490 = sbr.rel (%p488) target = $region36
        $region35: #{initial_model_forward.1} parent=11 // pred_region
          _
        $region36: #{initial_model_forward.1} parent=11 // pred_fallthru
          _
        // Predicated region
        $region37: #{initial_model_forward.1} parent=11 // pred_check
          %p491 = pneg %p201
        $region38: #{initial_model_forward.1} parent=11 // pred_check_branch
          %493 = sbr.rel (%p491) target = $region40
        $region39: #{initial_model_forward.1} parent=11 // pred_region
          _
        $region40: #{initial_model_forward.1} parent=11 // pred_fallthru
          _
        // Predicated region
        $region41: #{initial_model_forward.1} parent=11 // pred_check
          %p494 = pneg %p222
        $region42: #{initial_model_forward.1} parent=11 // pred_check_branch
          %496 = sbr.rel (%p494) target = $region44
        $region43: #{initial_model_forward.1} parent=11 // pred_region
          _
        $region44: #{initial_model_forward.1} parent=11 // pred_fallthru
          _
        // Predicated region
        $region45: #{initial_model_forward.1} parent=11 // pred_check
          %p497 = pneg %p243
        $region46: #{initial_model_forward.1} parent=11 // pred_check_branch
          %499 = sbr.rel (%p497) target = $region48
        $region47: #{initial_model_forward.1} parent=11 // pred_region
          _
        $region48: #{initial_model_forward.1} parent=11 // pred_fallthru
          _
        // Predicated region
        $region49: #{initial_model_forward.1} parent=11 // pred_check
          %p500 = pneg %p264
        $region50: #{initial_model_forward.1} parent=11 // pred_check_branch
          %502 = sbr.rel (%p500) target = $region52
        $region51: #{initial_model_forward.1} parent=11 // pred_region
          _
        $region52: #{initial_model_forward.1} parent=11 // pred_fallthru
          _
        // Predicated region
        $region53: #{initial_model_forward.1} parent=11 // pred_check
          %p503 = pneg %p285
        $region54: #{initial_model_forward.1} parent=11 // pred_check_branch
          %505 = sbr.rel (%p503) target = $region56
        $region55: #{initial_model_forward.1} parent=11 // pred_region
          _
        $region56: #{initial_model_forward.1} parent=11 // pred_fallthru
          _
        // Predicated region
        $region57: #{initial_model_forward.1} parent=11 // pred_check
          %p506 = pneg %p306
        $region58: #{initial_model_forward.1} parent=11 // pred_check_branch
          %508 = sbr.rel (%p506) target = $region60
        $region59: #{initial_model_forward.1} parent=11 // pred_region
          _
        $region60: #{initial_model_forward.1} parent=11 // pred_fallthru
          _
        // Predicated region
        $region61: #{initial_model_forward.1} parent=11 // pred_check
          %p509 = pneg %p327
        $region62: #{initial_model_forward.1} parent=11 // pred_check_branch
          %511 = sbr.rel (%p509) target = $region64
        $region63: #{initial_model_forward.1} parent=11 // pred_region
          _
        $region64: #{initial_model_forward.1} parent=11 // pred_fallthru
          _
        // Predicated region
        $region65: #{initial_model_forward.1} parent=11 // pred_check
          %p512 = pneg %p348
        $region66: #{initial_model_forward.1} parent=11 // pred_check_branch
          %514 = sbr.rel (%p512) target = $region68
        $region67: #{initial_model_forward.1} parent=11 // pred_region
          _
        $region68: #{initial_model_forward.1} parent=11 // pred_fallthru
          _
        // Predicated region
        $region69: #{initial_model_forward.1} parent=11 // pred_check
          %p515 = pneg %p369
        $region70: #{initial_model_forward.1} parent=11 // pred_check_branch
          %517 = sbr.rel (%p515) target = $region72
        $region71: #{initial_model_forward.1} parent=11 // pred_region
          _
        $region72: #{initial_model_forward.1} parent=11 // pred_fallthru
          _
        // Predicated region
        $region73: #{initial_model_forward.1} parent=11 // pred_check
          %p518 = pneg %p390
        $region74: #{initial_model_forward.1} parent=11 // pred_check_branch
          %520 = sbr.rel (%p518) target = $region76
        $region75: #{initial_model_forward.1} parent=11 // pred_region
          _
        $region76: #{initial_model_forward.1} parent=11 // pred_fallthru
          _
        // Predicated region
        $region77: #{initial_model_forward.1} parent=11 // pred_check
          %p521 = pneg %p411
        $region78: #{initial_model_forward.1} parent=11 // pred_check_branch
          %523 = sbr.rel (%p521) target = $region80
        $region79: #{initial_model_forward.1} parent=11 // pred_region
          _
        $region80: #{initial_model_forward.1} parent=11 // pred_fallthru
          _
        // Predicated region
        $region81: #{initial_model_forward.1} parent=11 // pred_check
          %p524 = pneg %p432
        $region82: #{initial_model_forward.1} parent=11 // pred_check_branch
          %526 = sbr.rel (%p524) target = $region84
        $region83: #{initial_model_forward.1} parent=11 // pred_region
          _
        $region84: #{initial_model_forward.1} parent=11 // pred_fallthru
          _
      $region12: #{initial_model_forward.1} parent=5 // pred_fallthru
        _
      %p527 = scmp.lt.s32.totalorder %s28, 2
      // Predicated region
      $region85: #{initial_model_forward.1} parent=5 // pred_check
        %p528 = pneg %p527
      $region86: #{initial_model_forward.1} parent=5 // pred_check_branch
        %530 = sbr.rel (%p528) target = $region88
      $region87: #{initial_model_forward.1} parent=5 // pred_region
        // Predicated region
        $region89: #{initial_model_forward.1} parent=87 // pred_check
          %p531 = pneg %p48
        $region90: #{initial_model_forward.1} parent=87 // pred_check_branch
          %533 = sbr.rel (%p531) target = $region92
        $region91: #{initial_model_forward.1} parent=87 // pred_region
          %p534 = scmp.lt.s32.totalorder %s28, 1
          %s535 = scalar_select %p534, %s28, 1
          %s536 = smul.addr %s535, 32
          %s537 = smul.addr %s536, 8
          %s538 = scalar_lea.vmem %s0, %s537
        $region92: #{initial_model_forward.1} parent=87 // pred_fallthru
          _
      $region88: #{initial_model_forward.1} parent=5 // pred_fallthru
        _
      %p539 = scmp.le.s32.totalorder 1, %s28
      %p540 = scmp.lt.s32.totalorder %s28, 3
      %p541 = pnand %p539, %p540
      %p542 = pneg %p541
      // Predicated region
      $region93: #{initial_model_forward.1} parent=5 // pred_check
        _
      $region94: #{initial_model_forward.1} parent=5 // pred_check_branch
        %544 = sbr.rel (%p541) target = $region96
      $region95: #{initial_model_forward.1} parent=5 // pred_region
        %s545 = ssub.s32 %s28, 1
        %p546 = scmp.lt.s32.totalorder %s33, 1
        %s547 = scalar_select %p546, %s33, 1
        %s548 = smul.addr %s547, 32
        %s549 = smul.addr %s548, 8
        %s550 = scalar_lea.vmem %s0, %s549
        %p551 = pneg %p54
        %p552 = pneg %p51
        %p553 = pneg %p75
        %p554 = pneg %p72
        %p555 = pneg %p96
        %p556 = pneg %p93
        %p557 = pneg %p117
        %p558 = pneg %p114
        %p559 = pneg %p138
        %p560 = pneg %p135
        %p561 = pneg %p159
        %p562 = pneg %p156
        %p563 = pneg %p180
        %p564 = pneg %p177
        %p565 = pneg %p201
        %p566 = pneg %p198
        %p567 = pneg %p222
        %p568 = pneg %p219
        %p569 = pneg %p243
        %p570 = pneg %p240
        %p571 = pneg %p264
        %p572 = pneg %p261
        %p573 = pneg %p285
        %p574 = pneg %p282
        %p575 = pneg %p306
        %p576 = pneg %p303
        %p577 = pneg %p327
        %p578 = pneg %p324
        %p579 = pneg %p348
        %p580 = pneg %p345
        %p581 = pneg %p369
        %p582 = pneg %p366
        %p583 = pneg %p390
        %p584 = pneg %p387
        %p585 = pneg %p411
        %p586 = pneg %p408
        %p587 = pneg %p432
        %p588 = pneg %p429
        %p589 = pneg %p458
        %p590 = pneg %p455
        %s591 = sand.u32 %s445, 1
        %s592 = scalar_lea.sflag [#allocation6], %s591
        %s593 = sand.u32 %s445, 1
        %s594 = scalar_lea.vmem [#allocation5], %s593
        %p595 = scmp.lt.s32.totalorder %s33, 1
        %s596 = scalar_select %p595, %s33, 1
        %s597 = smul.addr %s596, 32
        %s598 = smul.addr %s597, 8
        %s599 = scalar_lea.vmem %s0, %s598
        %vm601 = vcmask 7168
        %602 = vst.msk [vmem:[#allocation2] sm:$0xff] %vm601, 0.0
        %603 = vst.msk [vmem:[#allocation2 + $0x8] sm:$0xff] %vm601, 0.0
        %vm604 = vcmask 1024
        %605 = vst.msk [vmem:[#allocation2 + $0x10] sm:$0x3] %vm604, 0.0
        %606 = vst.msk [vmem:[#allocation2 + $0x18] sm:$0xff] %vm601, 0.0
        %607 = vst.msk [vmem:[#allocation2 + $0x20] sm:$0xff] %vm601, 0.0
        %608 = vst.msk [vmem:[#allocation2 + $0x28] sm:$0x3] %vm604, 0.0
        %609 = vst.msk [vmem:[#allocation2 + $0x30] sm:$0xff] %vm601, 0.0
        %610 = vst.msk [vmem:[#allocation2 + $0x38] sm:$0xff] %vm601, 0.0
        %611 = vst.msk [vmem:[#allocation2 + $0x40] sm:$0x3] %vm604, 0.0
        %612 = vst.msk [vmem:[#allocation2 + $0x48] sm:$0xff] %vm601, 0.0
        %613 = vst.msk [vmem:[#allocation2 + $0x50] sm:$0xff] %vm601, 0.0
        %614 = vst.msk [vmem:[#allocation2 + $0x58] sm:$0x3] %vm604, 0.0
        %615 = vst.msk [vmem:[#allocation2 + $0x60] sm:$0xff] %vm601, 0.0
        %616 = vst.msk [vmem:[#allocation2 + $0x68] sm:$0xff] %vm601, 0.0
        %617 = vst.msk [vmem:[#allocation2 + $0x70] sm:$0x3] %vm604, 0.0
        %618 = vst.msk [vmem:[#allocation2 + $0x78] sm:$0xff] %vm601, 0.0
        %619 = vst.msk [vmem:[#allocation2 + $0x80] sm:$0xff] %vm601, 0.0
        %620 = vst.msk [vmem:[#allocation2 + $0x88] sm:$0x3] %vm604, 0.0
        %621 = vst.msk [vmem:[#allocation2 + $0x90] sm:$0xff] %vm601, 0.0
        %622 = vst.msk [vmem:[#allocation2 + $0x98] sm:$0xff] %vm601, 0.0
        %623 = vst.msk [vmem:[#allocation2 + $0xa0] sm:$0x3] %vm604, 0.0
        %624 = vst.msk [vmem:[#allocation2 + $0xa8] sm:$0xff] %vm601, 0.0
        %625 = vst.msk [vmem:[#allocation2 + $0xb0] sm:$0xff] %vm601, 0.0
        %626 = vst.msk [vmem:[#allocation2 + $0xb8] sm:$0x3] %vm604, 0.0
        %627 = vst.msk [vmem:[#allocation2 + $0xc0] sm:$0xff] %vm601, 0.0
        %628 = vst.msk [vmem:[#allocation2 + $0xc8] sm:$0xff] %vm601, 0.0
        %629 = vst.msk [vmem:[#allocation2 + $0xd0] sm:$0x3] %vm604, 0.0
        %630 = vst.msk [vmem:[#allocation2 + $0xd8] sm:$0xff] %vm601, 0.0
        %631 = vst.msk [vmem:[#allocation2 + $0xe0] sm:$0xff] %vm601, 0.0
        %632 = vst.msk [vmem:[#allocation2 + $0xe8] sm:$0x3] %vm604, 0.0
        %633 = vst.msk [vmem:[#allocation2 + $0xf0] sm:$0xff] %vm601, 0.0
        %634 = vst.msk [vmem:[#allocation2 + $0xf8] sm:$0xff] %vm601, 0.0
        %635 = vst.msk [vmem:[#allocation2 + $0x100] sm:$0x3] %vm604, 0.0
        %636 = vst.msk [vmem:[#allocation2 + $0x108] sm:$0xff] %vm601, 0.0
        %637 = vst.msk [vmem:[#allocation2 + $0x110] sm:$0xff] %vm601, 0.0
        %638 = vst.msk [vmem:[#allocation2 + $0x118] sm:$0x3] %vm604, 0.0
        %639 = vst.msk [vmem:[#allocation2 + $0x120] sm:$0xff] %vm601, 0.0
        %640 = vst.msk [vmem:[#allocation2 + $0x128] sm:$0xff] %vm601, 0.0
        %641 = vst.msk [vmem:[#allocation2 + $0x130] sm:$0x3] %vm604, 0.0
        %642 = vst.msk [vmem:[#allocation2 + $0x138] sm:$0xff] %vm601, 0.0
        %643 = vst.msk [vmem:[#allocation2 + $0x140] sm:$0xff] %vm601, 0.0
        %644 = vst.msk [vmem:[#allocation2 + $0x148] sm:$0x3] %vm604, 0.0
        %645 = vst.msk [vmem:[#allocation2 + $0x150] sm:$0xff] %vm601, 0.0
        %646 = vst.msk [vmem:[#allocation2 + $0x158] sm:$0xff] %vm601, 0.0
        %647 = vst.msk [vmem:[#allocation2 + $0x160] sm:$0x3] %vm604, 0.0
        %648 = vst.msk [vmem:[#allocation2 + $0x168] sm:$0xff] %vm601, 0.0
        %649 = vst.msk [vmem:[#allocation2 + $0x170] sm:$0xff] %vm601, 0.0
        %650 = vst.msk [vmem:[#allocation2 + $0x178] sm:$0x3] %vm604, 0.0
        %651 = vst.msk [vmem:[#allocation2 + $0x180] sm:$0xff] %vm601, 0.0
        %652 = vst.msk [vmem:[#allocation2 + $0x188] sm:$0xff] %vm601, 0.0
        %653 = vst.msk [vmem:[#allocation2 + $0x190] sm:$0x3] %vm604, 0.0
        %654 = vst.msk [vmem:[#allocation2 + $0x198] sm:$0xff] %vm601, 0.0
        %655 = vst.msk [vmem:[#allocation2 + $0x1a0] sm:$0xff] %vm601, 0.0
        %656 = vst.msk [vmem:[#allocation2 + $0x1a8] sm:$0x3] %vm604, 0.0
        %vm657 = vcmask 261120
        %658 = vst.msk [vmem:[#allocation3] sm:$0xff] %vm657, 0.0
        %659 = vst.msk [vmem:[#allocation3 + $0x8] sm:$0xff] %vm657, 0.0
        %vm660 = vcmask 254976
        %661 = vst.msk [vmem:[#allocation3 + $0x10] sm:$0x3] %vm660, 0.0
        %662 = vst.msk [vmem:[#allocation3 + $0x18] sm:$0xff] %vm657, 0.0
        %663 = vst.msk [vmem:[#allocation3 + $0x20] sm:$0xff] %vm657, 0.0
        %664 = vst.msk [vmem:[#allocation3 + $0x28] sm:$0x3] %vm660, 0.0
        %665 = vst.msk [vmem:[#allocation3 + $0x30] sm:$0xff] %vm657, 0.0
        %666 = vst.msk [vmem:[#allocation3 + $0x38] sm:$0xff] %vm657, 0.0
        %667 = vst.msk [vmem:[#allocation3 + $0x40] sm:$0x3] %vm660, 0.0
        %668 = vst.msk [vmem:[#allocation3 + $0x48] sm:$0xff] %vm657, 0.0
        %669 = vst.msk [vmem:[#allocation3 + $0x50] sm:$0xff] %vm657, 0.0
        %670 = vst.msk [vmem:[#allocation3 + $0x58] sm:$0x3] %vm660, 0.0
        %671 = vst.msk [vmem:[#allocation3 + $0x60] sm:$0xff] %vm657, 0.0
        %672 = vst.msk [vmem:[#allocation3 + $0x68] sm:$0xff] %vm657, 0.0
        %673 = vst.msk [vmem:[#allocation3 + $0x70] sm:$0x3] %vm660, 0.0
        %674 = vst.msk [vmem:[#allocation3 + $0x78] sm:$0xff] %vm657, 0.0
        %675 = vst.msk [vmem:[#allocation3 + $0x80] sm:$0xff] %vm657, 0.0
        %676 = vst.msk [vmem:[#allocation3 + $0x88] sm:$0x3] %vm660, 0.0
        %677 = vst.msk [vmem:[#allocation3 + $0x90] sm:$0xff] %vm657, 0.0
        %678 = vst.msk [vmem:[#allocation3 + $0x98] sm:$0xff] %vm657, 0.0
        %679 = vst.msk [vmem:[#allocation3 + $0xa0] sm:$0x3] %vm660, 0.0
        %680 = vst.msk [vmem:[#allocation3 + $0xa8] sm:$0xff] %vm657, 0.0
        %681 = vst.msk [vmem:[#allocation3 + $0xb0] sm:$0xff] %vm657, 0.0
        %682 = vst.msk [vmem:[#allocation3 + $0xb8] sm:$0x3] %vm660, 0.0
        %683 = vst.msk [vmem:[#allocation3 + $0xc0] sm:$0xff] %vm657, 0.0
        %684 = vst.msk [vmem:[#allocation3 + $0xc8] sm:$0xff] %vm657, 0.0
        %685 = vst.msk [vmem:[#allocation3 + $0xd0] sm:$0x3] %vm660, 0.0
        %686 = vst.msk [vmem:[#allocation3 + $0xd8] sm:$0xff] %vm657, 0.0
        %687 = vst.msk [vmem:[#allocation3 + $0xe0] sm:$0xff] %vm657, 0.0
        %688 = vst.msk [vmem:[#allocation3 + $0xe8] sm:$0x3] %vm660, 0.0
        %689 = vst.msk [vmem:[#allocation3 + $0xf0] sm:$0xff] %vm657, 0.0
        %690 = vst.msk [vmem:[#allocation3 + $0xf8] sm:$0xff] %vm657, 0.0
        %691 = vst.msk [vmem:[#allocation3 + $0x100] sm:$0x3] %vm660, 0.0
        %692 = vst.msk [vmem:[#allocation3 + $0x108] sm:$0xff] %vm657, 0.0
        %693 = vst.msk [vmem:[#allocation3 + $0x110] sm:$0xff] %vm657, 0.0
        %694 = vst.msk [vmem:[#allocation3 + $0x118] sm:$0x3] %vm660, 0.0
        %695 = vst.msk [vmem:[#allocation3 + $0x120] sm:$0xff] %vm657, 0.0
        %696 = vst.msk [vmem:[#allocation3 + $0x128] sm:$0xff] %vm657, 0.0
        %697 = vst.msk [vmem:[#allocation3 + $0x130] sm:$0x3] %vm660, 0.0
        %698 = vst.msk [vmem:[#allocation3 + $0x138] sm:$0xff] %vm657, 0.0
        %699 = vst.msk [vmem:[#allocation3 + $0x140] sm:$0xff] %vm657, 0.0
        %700 = vst.msk [vmem:[#allocation3 + $0x148] sm:$0x3] %vm660, 0.0
        %701 = vst.msk [vmem:[#allocation3 + $0x150] sm:$0xff] %vm657, 0.0
        %702 = vst.msk [vmem:[#allocation3 + $0x158] sm:$0xff] %vm657, 0.0
        %703 = vst.msk [vmem:[#allocation3 + $0x160] sm:$0x3] %vm660, 0.0
        %704 = vst.msk [vmem:[#allocation3 + $0x168] sm:$0xff] %vm657, 0.0
        %705 = vst.msk [vmem:[#allocation3 + $0x170] sm:$0xff] %vm657, 0.0
        %706 = vst.msk [vmem:[#allocation3 + $0x178] sm:$0x3] %vm660, 0.0
        %707 = vst.msk [vmem:[#allocation3 + $0x180] sm:$0xff] %vm657, 0.0
        %708 = vst.msk [vmem:[#allocation3 + $0x188] sm:$0xff] %vm657, 0.0
        %709 = vst.msk [vmem:[#allocation3 + $0x190] sm:$0x3] %vm660, 0.0
        %710 = vst.msk [vmem:[#allocation3 + $0x198] sm:$0xff] %vm657, 0.0
        %711 = vst.msk [vmem:[#allocation3 + $0x1a0] sm:$0xff] %vm657, 0.0
        %712 = vst.msk [vmem:[#allocation3 + $0x1a8] sm:$0x3] %vm660, 0.0
        %v713 = vld [vmem:[%s599] sm:$0xff]
        %v714 = vld [vmem:[%s599 + $0x8] sm:$0xff]
        %v715 = vld [vmem:[%s599 + $0x10] sm:$0xff]
        %v716 = vld [vmem:[%s599 + $0x18] sm:$0xff]
        %v717 = vld [vmem:[%s599 + $0x20] sm:$0xff]
        %v718 = vld [vmem:[%s599 + $0x28] sm:$0xff]
        %v719 = vld [vmem:[%s599 + $0x30] sm:$0xff]
        %v720 = vld [vmem:[%s599 + $0x38] sm:$0xff]
        %v721 = vld [vmem:[%s599 + $0x40] sm:$0xff]
        %v722 = vld [vmem:[%s599 + $0x48] sm:$0xff]
        %v723 = vld [vmem:[%s599 + $0x50] sm:$0xff]
        %v724 = vld [vmem:[%s599 + $0x58] sm:$0xff]
        %v725 = vld [vmem:[%s599 + $0x60] sm:$0xff]
        %v726 = vld [vmem:[%s599 + $0x68] sm:$0xff]
        %v727 = vld [vmem:[%s599 + $0x70] sm:$0xff]
        %v728 = vld [vmem:[%s599 + $0x78] sm:$0xff]
        %v729 = vld [vmem:[%s599 + $0x80] sm:$0xff]
        %v730 = vld [vmem:[%s599 + $0x88] sm:$0xff]
        %v731 = vld [vmem:[%s599 + $0x90] sm:$0xff]
        %v732 = vld [vmem:[%s599 + $0x98] sm:$0xff]
        %v733 = vld [vmem:[%s599 + $0xa0] sm:$0xff]
        %v734 = vld [vmem:[%s599 + $0xa8] sm:$0xff]
        %v735 = vld [vmem:[%s599 + $0xb0] sm:$0xff]
        %v736 = vld [vmem:[%s599 + $0xb8] sm:$0xff]
        %v737 = vld [vmem:[%s599 + $0xc0] sm:$0xff]
        %v738 = vld [vmem:[%s599 + $0xc8] sm:$0xff]
        %v739 = vld [vmem:[%s599 + $0xd0] sm:$0xff]
        %v740 = vld [vmem:[%s599 + $0xd8] sm:$0xff]
        %v741 = vld [vmem:[%s599 + $0xe0] sm:$0xff]
        %v742 = vld [vmem:[%s599 + $0xe8] sm:$0xff]
        %v743 = vld [vmem:[%s599 + $0xf0] sm:$0xff]
        %v744 = vld [vmem:[%s599 + $0xf8] sm:$0xff]
        %s745 = scalar_lea.vmem [#allocation2], 24
        %746 = vst.msk [vmem:[%s745 + $0x1] sm:$0xff] %vm601, %v713
        %747 = vst.msk [vmem:[%s745 + $0x9] sm:$0xff] %vm601, %v714
        %748 = vst.msk [vmem:[%s745 + $0x19] sm:$0xff] %vm601, %v715
        %749 = vst.msk [vmem:[%s745 + $0x21] sm:$0xff] %vm601, %v716
        %750 = vst.msk [vmem:[%s745 + $0x31] sm:$0xff] %vm601, %v717
        %751 = vst.msk [vmem:[%s745 + $0x39] sm:$0xff] %vm601, %v718
        %752 = vst.msk [vmem:[%s745 + $0x49] sm:$0xff] %vm601, %v719
        %753 = vst.msk [vmem:[%s745 + $0x51] sm:$0xff] %vm601, %v720
        %754 = vst.msk [vmem:[%s745 + $0x61] sm:$0xff] %vm601, %v721
        %755 = vst.msk [vmem:[%s745 + $0x69] sm:$0xff] %vm601, %v722
        %756 = vst.msk [vmem:[%s745 + $0x79] sm:$0xff] %vm601, %v723
        %757 = vst.msk [vmem:[%s745 + $0x81] sm:$0xff] %vm601, %v724
        %758 = vst.msk [vmem:[%s745 + $0x91] sm:$0xff] %vm601, %v725
        %759 = vst.msk [vmem:[%s745 + $0x99] sm:$0xff] %vm601, %v726
        %760 = vst.msk [vmem:[%s745 + $0xa9] sm:$0xff] %vm601, %v727
        %761 = vst.msk [vmem:[%s745 + $0xb1] sm:$0xff] %vm601, %v728
        %762 = vst.msk [vmem:[%s745 + $0xc1] sm:$0xff] %vm601, %v729
        %763 = vst.msk [vmem:[%s745 + $0xc9] sm:$0xff] %vm601, %v730
        %764 = vst.msk [vmem:[%s745 + $0xd9] sm:$0xff] %vm601, %v731
        %765 = vst.msk [vmem:[%s745 + $0xe1] sm:$0xff] %vm601, %v732
        %766 = vst.msk [vmem:[%s745 + $0xf1] sm:$0xff] %vm601, %v733
        %767 = vst.msk [vmem:[%s745 + $0xf9] sm:$0xff] %vm601, %v734
        %768 = vst.msk [vmem:[%s745 + $0x109] sm:$0xff] %vm601, %v735
        %769 = vst.msk [vmem:[%s745 + $0x111] sm:$0xff] %vm601, %v736
        %770 = vst.msk [vmem:[%s745 + $0x121] sm:$0xff] %vm601, %v737
        %771 = vst.msk [vmem:[%s745 + $0x129] sm:$0xff] %vm601, %v738
        %772 = vst.msk [vmem:[%s745 + $0x139] sm:$0xff] %vm601, %v739
        %773 = vst.msk [vmem:[%s745 + $0x141] sm:$0xff] %vm601, %v740
        %774 = vst.msk [vmem:[%s745 + $0x151] sm:$0xff] %vm601, %v741
        %775 = vst.msk [vmem:[%s745 + $0x159] sm:$0xff] %vm601, %v742
        %776 = vst.msk [vmem:[%s745 + $0x169] sm:$0xff] %vm601, %v743
        %777 = vst.msk [vmem:[%s745 + $0x171] sm:$0xff] %vm601, %v744
        %v778 = vld [vmem:[#allocation2] sm:$0xff]
        %v779 = vld [vmem:[#allocation2 + $0x8] sm:$0xff]
        %v780 = vld [vmem:[#allocation2 + $0x18] sm:$0xff]
        %v781 = vld [vmem:[#allocation2 + $0x20] sm:$0xff]
        %v782 = vld [vmem:[#allocation2 + $0x30] sm:$0xff]
        %v783 = vld [vmem:[#allocation2 + $0x38] sm:$0xff]
        %v784 = vld [vmem:[#allocation2 + $0x48] sm:$0xff]
        %v785 = vld [vmem:[#allocation2 + $0x50] sm:$0xff]
        %v786 = vld [vmem:[#allocation2 + $0x60] sm:$0xff]
        %v787 = vld [vmem:[#allocation2 + $0x68] sm:$0xff]
        %v788 = vld [vmem:[#allocation2 + $0x78] sm:$0xff]
        %v789 = vld [vmem:[#allocation2 + $0x80] sm:$0xff]
        %v790 = vld [vmem:[#allocation2 + $0x90] sm:$0xff]
        %v791 = vld [vmem:[#allocation2 + $0x98] sm:$0xff]
        %v792 = vld [vmem:[#allocation2 + $0xa8] sm:$0xff]
        %v793 = vld [vmem:[#allocation2 + $0xb0] sm:$0xff]
        %v794 = vld [vmem:[#allocation2 + $0xc0] sm:$0xff]
        %v795 = vld [vmem:[#allocation2 + $0xc8] sm:$0xff]
        %v796 = vld [vmem:[#allocation2 + $0xd8] sm:$0xff]
        %v797 = vld [vmem:[#allocation2 + $0xe0] sm:$0xff]
        %v798 = vld [vmem:[#allocation2 + $0xf0] sm:$0xff]
        %v799 = vld [vmem:[#allocation2 + $0xf8] sm:$0xff]
        %v800 = vld [vmem:[#allocation2 + $0x108] sm:$0xff]
        %v801 = vld [vmem:[#allocation2 + $0x110] sm:$0xff]
        %v802 = vld [vmem:[#allocation2 + $0x120] sm:$0xff]
        %v803 = vld [vmem:[#allocation2 + $0x128] sm:$0xff]
        %v804 = vld [vmem:[#allocation2 + $0x138] sm:$0xff]
        %v805 = vld [vmem:[#allocation2 + $0x140] sm:$0xff]
        %v806 = vld [vmem:[#allocation2 + $0x150] sm:$0xff]
        %v807 = vld [vmem:[#allocation2 + $0x158] sm:$0xff]
        %v808 = vld [vmem:[#allocation2 + $0x168] sm:$0xff]
        %v809 = vld [vmem:[#allocation2 + $0x170] sm:$0xff]
        %v810 = vld [vmem:[%s1] sm:$0x1]
        %812 = vset.pattern.permute.xlu0 0
        %813 = vperm.xlu0 %812, %v778
        %v814 = vpop.permute.xlu0 %813
        %817 = vset.pattern.permute.xlu0 0
        %818 = vperm.xlu0 %817, %v779
        %v819 = vpop.permute.xlu0 %818
        %822 = vset.pattern.permute.xlu0 0
        %823 = vperm.xlu0 %822, %v780
        %v824 = vpop.permute.xlu0 %823
        %827 = vset.pattern.permute.xlu0 0
        %828 = vperm.xlu0 %827, %v781
        %v829 = vpop.permute.xlu0 %828
        %832 = vset.pattern.permute.xlu0 0
        %833 = vperm.xlu0 %832, %v782
        %v834 = vpop.permute.xlu0 %833
        %837 = vset.pattern.permute.xlu0 0
        %838 = vperm.xlu0 %837, %v783
        %v839 = vpop.permute.xlu0 %838
        %842 = vset.pattern.permute.xlu0 0
        %843 = vperm.xlu0 %842, %v784
        %v844 = vpop.permute.xlu0 %843
        %847 = vset.pattern.permute.xlu0 0
        %848 = vperm.xlu0 %847, %v785
        %v849 = vpop.permute.xlu0 %848
        %852 = vset.pattern.permute.xlu0 0
        %853 = vperm.xlu0 %852, %v786
        %v854 = vpop.permute.xlu0 %853
        %857 = vset.pattern.permute.xlu0 0
        %858 = vperm.xlu0 %857, %v787
        %v859 = vpop.permute.xlu0 %858
        %862 = vset.pattern.permute.xlu0 0
        %863 = vperm.xlu0 %862, %v788
        %v864 = vpop.permute.xlu0 %863
        %867 = vset.pattern.permute.xlu0 0
        %868 = vperm.xlu0 %867, %v789
        %v869 = vpop.permute.xlu0 %868
        %872 = vset.pattern.permute.xlu0 0
        %873 = vperm.xlu0 %872, %v790
        %v874 = vpop.permute.xlu0 %873
        %877 = vset.pattern.permute.xlu0 0
        %878 = vperm.xlu0 %877, %v791
        %v879 = vpop.permute.xlu0 %878
        %882 = vset.pattern.permute.xlu0 0
        %883 = vperm.xlu0 %882, %v792
        %v884 = vpop.permute.xlu0 %883
        %887 = vset.pattern.permute.xlu0 0
        %888 = vperm.xlu0 %887, %v793
        %v889 = vpop.permute.xlu0 %888
        %892 = vset.pattern.permute.xlu0 0
        %893 = vperm.xlu0 %892, %v794
        %v894 = vpop.permute.xlu0 %893
        %897 = vset.pattern.permute.xlu0 0
        %898 = vperm.xlu0 %897, %v795
        %v899 = vpop.permute.xlu0 %898
        %902 = vset.pattern.permute.xlu0 0
        %903 = vperm.xlu0 %902, %v796
        %v904 = vpop.permute.xlu0 %903
        %907 = vset.pattern.permute.xlu0 0
        %908 = vperm.xlu0 %907, %v797
        %v909 = vpop.permute.xlu0 %908
        %912 = vset.pattern.permute.xlu0 0
        %913 = vperm.xlu0 %912, %v798
        %v914 = vpop.permute.xlu0 %913
        %917 = vset.pattern.permute.xlu0 0
        %918 = vperm.xlu0 %917, %v799
        %v919 = vpop.permute.xlu0 %918
        %922 = vset.pattern.permute.xlu0 0
        %923 = vperm.xlu0 %922, %v800
        %v924 = vpop.permute.xlu0 %923
        %927 = vset.pattern.permute.xlu0 0
        %928 = vperm.xlu0 %927, %v801
        %v929 = vpop.permute.xlu0 %928
        %932 = vset.pattern.permute.xlu0 0
        %933 = vperm.xlu0 %932, %v802
        %v934 = vpop.permute.xlu0 %933
        %937 = vset.pattern.permute.xlu0 0
        %938 = vperm.xlu0 %937, %v803
        %v939 = vpop.permute.xlu0 %938
        %942 = vset.pattern.permute.xlu0 0
        %943 = vperm.xlu0 %942, %v804
        %v944 = vpop.permute.xlu0 %943
        %947 = vset.pattern.permute.xlu0 0
        %948 = vperm.xlu0 %947, %v805
        %v949 = vpop.permute.xlu0 %948
        %952 = vset.pattern.permute.xlu0 0
        %953 = vperm.xlu0 %952, %v806
        %v954 = vpop.permute.xlu0 %953
        %957 = vset.pattern.permute.xlu0 0
        %958 = vperm.xlu0 %957, %v807
        %v959 = vpop.permute.xlu0 %958
        %962 = vset.pattern.permute.xlu0 0
        %963 = vperm.xlu0 %962, %v808
        %v964 = vpop.permute.xlu0 %963
        %967 = vset.pattern.permute.xlu0 0
        %968 = vperm.xlu0 %967, %v809
        %v969 = vpop.permute.xlu0 %968
        %v971 = vlaneseq
        %v972 = vshrl.u32 %v971, 7
        %v973 = vsub.s32 0, %v972
        %v974 = vrot.slane %v810, %v973
        %v975 = vmul.f32 %v814, %v974
        %v976 = vmul.f32 %v819, %v974
        %v977 = vmul.f32 %v824, %v974
        %v978 = vmul.f32 %v829, %v974
        %v979 = vmul.f32 %v834, %v974
        %v980 = vmul.f32 %v839, %v974
        %v981 = vmul.f32 %v844, %v974
        %v982 = vmul.f32 %v849, %v974
        %v983 = vmul.f32 %v854, %v974
        %v984 = vmul.f32 %v859, %v974
        %v985 = vmul.f32 %v864, %v974
        %v986 = vmul.f32 %v869, %v974
        %v987 = vmul.f32 %v874, %v974
        %v988 = vmul.f32 %v879, %v974
        %v989 = vmul.f32 %v884, %v974
        %v990 = vmul.f32 %v889, %v974
        %v991 = vmul.f32 %v894, %v974
        %v992 = vmul.f32 %v899, %v974
        %v993 = vmul.f32 %v904, %v974
        %v994 = vmul.f32 %v909, %v974
        %v995 = vmul.f32 %v914, %v974
        %v996 = vmul.f32 %v919, %v974
        %v997 = vmul.f32 %v924, %v974
        %v998 = vmul.f32 %v929, %v974
        %v999 = vmul.f32 %v934, %v974
        %v1000 = vmul.f32 %v939, %v974
        %v1001 = vmul.f32 %v944, %v974
        %v1002 = vmul.f32 %v949, %v974
        %v1003 = vmul.f32 %v954, %v974
        %v1004 = vmul.f32 %v959, %v974
        %v1005 = vmul.f32 %v964, %v974
        %v1006 = vmul.f32 %v969, %v974
        %v1007 = vadd.f32 %v975, 0.0
        %v1008 = vadd.f32 %v976, 0.0
        %v1009 = vadd.f32 %v977, 0.0
        %v1010 = vadd.f32 %v978, 0.0
        %v1011 = vadd.f32 %v979, 0.0
        %v1012 = vadd.f32 %v980, 0.0
        %v1013 = vadd.f32 %v981, 0.0
        %v1014 = vadd.f32 %v982, 0.0
        %v1015 = vadd.f32 %v983, 0.0
        %v1016 = vadd.f32 %v984, 0.0
        %v1017 = vadd.f32 %v985, 0.0
        %v1018 = vadd.f32 %v986, 0.0
        %v1019 = vadd.f32 %v987, 0.0
        %v1020 = vadd.f32 %v988, 0.0
        %v1021 = vadd.f32 %v989, 0.0
        %v1022 = vadd.f32 %v990, 0.0
        %v1023 = vadd.f32 %v991, 0.0
        %v1024 = vadd.f32 %v992, 0.0
        %v1025 = vadd.f32 %v993, 0.0
        %v1026 = vadd.f32 %v994, 0.0
        %v1027 = vadd.f32 %v995, 0.0
        %v1028 = vadd.f32 %v996, 0.0
        %v1029 = vadd.f32 %v997, 0.0
        %v1030 = vadd.f32 %v998, 0.0
        %v1031 = vadd.f32 %v999, 0.0
        %v1032 = vadd.f32 %v1000, 0.0
        %v1033 = vadd.f32 %v1001, 0.0
        %v1034 = vadd.f32 %v1002, 0.0
        %v1035 = vadd.f32 %v1003, 0.0
        %v1036 = vadd.f32 %v1004, 0.0
        %v1037 = vadd.f32 %v1005, 0.0
        %v1038 = vadd.f32 %v1006, 0.0
        %v1039 = vld [vmem:[#allocation2 + $0x1] sm:$0xff]
        %v1040 = vld [vmem:[#allocation2 + $0x9] sm:$0xff]
        %v1041 = vld [vmem:[#allocation2 + $0x19] sm:$0xff]
        %v1042 = vld [vmem:[#allocation2 + $0x21] sm:$0xff]
        %v1043 = vld [vmem:[#allocation2 + $0x31] sm:$0xff]
        %v1044 = vld [vmem:[#allocation2 + $0x39] sm:$0xff]
        %v1045 = vld [vmem:[#allocation2 + $0x49] sm:$0xff]
        %v1046 = vld [vmem:[#allocation2 + $0x51] sm:$0xff]
        %v1047 = vld [vmem:[#allocation2 + $0x61] sm:$0xff]
        %v1048 = vld [vmem:[#allocation2 + $0x69] sm:$0xff]
        %v1049 = vld [vmem:[#allocation2 + $0x79] sm:$0xff]
        %v1050 = vld [vmem:[#allocation2 + $0x81] sm:$0xff]
        %v1051 = vld [vmem:[#allocation2 + $0x91] sm:$0xff]
        %v1052 = vld [vmem:[#allocation2 + $0x99] sm:$0xff]
        %v1053 = vld [vmem:[#allocation2 + $0xa9] sm:$0xff]
        %v1054 = vld [vmem:[#allocation2 + $0xb1] sm:$0xff]
        %v1055 = vld [vmem:[#allocation2 + $0xc1] sm:$0xff]
        %v1056 = vld [vmem:[#allocation2 + $0xc9] sm:$0xff]
        %v1057 = vld [vmem:[#allocation2 + $0xd9] sm:$0xff]
        %v1058 = vld [vmem:[#allocation2 + $0xe1] sm:$0xff]
        %v1059 = vld [vmem:[#allocation2 + $0xf1] sm:$0xff]
        %v1060 = vld [vmem:[#allocation2 + $0xf9] sm:$0xff]
        %v1061 = vld [vmem:[#allocation2 + $0x109] sm:$0xff]
        %v1062 = vld [vmem:[#allocation2 + $0x111] sm:$0xff]
        %v1063 = vld [vmem:[#allocation2 + $0x121] sm:$0xff]
        %v1064 = vld [vmem:[#allocation2 + $0x129] sm:$0xff]
        %v1065 = vld [vmem:[#allocation2 + $0x139] sm:$0xff]
        %v1066 = vld [vmem:[#allocation2 + $0x141] sm:$0xff]
        %v1067 = vld [vmem:[#allocation2 + $0x151] sm:$0xff]
        %v1068 = vld [vmem:[#allocation2 + $0x159] sm:$0xff]
        %v1069 = vld [vmem:[#allocation2 + $0x169] sm:$0xff]
        %v1070 = vld [vmem:[#allocation2 + $0x171] sm:$0xff]
        %v1071 = vld [vmem:[%s1 + $0x1] sm:$0x1]
        %1073 = vset.pattern.permute.xlu0 0
        %1074 = vperm.xlu0 %1073, %v1039
        %v1075 = vpop.permute.xlu0 %1074
        %1078 = vset.pattern.permute.xlu0 0
        %1079 = vperm.xlu0 %1078, %v1040
        %v1080 = vpop.permute.xlu0 %1079
        %1083 = vset.pattern.permute.xlu0 0
        %1084 = vperm.xlu0 %1083, %v1041
        %v1085 = vpop.permute.xlu0 %1084
        %1088 = vset.pattern.permute.xlu0 0
        %1089 = vperm.xlu0 %1088, %v1042
        %v1090 = vpop.permute.xlu0 %1089
        %1093 = vset.pattern.permute.xlu0 0
        %1094 = vperm.xlu0 %1093, %v1043
        %v1095 = vpop.permute.xlu0 %1094
        %1098 = vset.pattern.permute.xlu0 0
        %1099 = vperm.xlu0 %1098, %v1044
        %v1100 = vpop.permute.xlu0 %1099
        %1103 = vset.pattern.permute.xlu0 0
        %1104 = vperm.xlu0 %1103, %v1045
        %v1105 = vpop.permute.xlu0 %1104
        %1108 = vset.pattern.permute.xlu0 0
        %1109 = vperm.xlu0 %1108, %v1046
        %v1110 = vpop.permute.xlu0 %1109
        %1113 = vset.pattern.permute.xlu0 0
        %1114 = vperm.xlu0 %1113, %v1047
        %v1115 = vpop.permute.xlu0 %1114
        %1118 = vset.pattern.permute.xlu0 0
        %1119 = vperm.xlu0 %1118, %v1048
        %v1120 = vpop.permute.xlu0 %1119
        %1123 = vset.pattern.permute.xlu0 0
        %1124 = vperm.xlu0 %1123, %v1049
        %v1125 = vpop.permute.xlu0 %1124
        %1128 = vset.pattern.permute.xlu0 0
        %1129 = vperm.xlu0 %1128, %v1050
        %v1130 = vpop.permute.xlu0 %1129
        %1133 = vset.pattern.permute.xlu0 0
        %1134 = vperm.xlu0 %1133, %v1051
        %v1135 = vpop.permute.xlu0 %1134
        %1138 = vset.pattern.permute.xlu0 0
        %1139 = vperm.xlu0 %1138, %v1052
        %v1140 = vpop.permute.xlu0 %1139
        %1143 = vset.pattern.permute.xlu0 0
        %1144 = vperm.xlu0 %1143, %v1053
        %v1145 = vpop.permute.xlu0 %1144
        %1148 = vset.pattern.permute.xlu0 0
        %1149 = vperm.xlu0 %1148, %v1054
        %v1150 = vpop.permute.xlu0 %1149
        %1153 = vset.pattern.permute.xlu0 0
        %1154 = vperm.xlu0 %1153, %v1055
        %v1155 = vpop.permute.xlu0 %1154
        %1158 = vset.pattern.permute.xlu0 0
        %1159 = vperm.xlu0 %1158, %v1056
        %v1160 = vpop.permute.xlu0 %1159
        %1163 = vset.pattern.permute.xlu0 0
        %1164 = vperm.xlu0 %1163, %v1057
        %v1165 = vpop.permute.xlu0 %1164
        %1168 = vset.pattern.permute.xlu0 0
        %1169 = vperm.xlu0 %1168, %v1058
        %v1170 = vpop.permute.xlu0 %1169
        %1173 = vset.pattern.permute.xlu0 0
        %1174 = vperm.xlu0 %1173, %v1059
        %v1175 = vpop.permute.xlu0 %1174
        %1178 = vset.pattern.permute.xlu0 0
        %1179 = vperm.xlu0 %1178, %v1060
        %v1180 = vpop.permute.xlu0 %1179
        %1183 = vset.pattern.permute.xlu0 0
        %1184 = vperm.xlu0 %1183, %v1061
        %v1185 = vpop.permute.xlu0 %1184
        %1188 = vset.pattern.permute.xlu0 0
        %1189 = vperm.xlu0 %1188, %v1062
        %v1190 = vpop.permute.xlu0 %1189
        %1193 = vset.pattern.permute.xlu0 0
        %1194 = vperm.xlu0 %1193, %v1063
        %v1195 = vpop.permute.xlu0 %1194
        %1198 = vset.pattern.permute.xlu0 0
        %1199 = vperm.xlu0 %1198, %v1064
        %v1200 = vpop.permute.xlu0 %1199
        %1203 = vset.pattern.permute.xlu0 0
        %1204 = vperm.xlu0 %1203, %v1065
        %v1205 = vpop.permute.xlu0 %1204
        %1208 = vset.pattern.permute.xlu0 0
        %1209 = vperm.xlu0 %1208, %v1066
        %v1210 = vpop.permute.xlu0 %1209
        %1213 = vset.pattern.permute.xlu0 0
        %1214 = vperm.xlu0 %1213, %v1067
        %v1215 = vpop.permute.xlu0 %1214
        %1218 = vset.pattern.permute.xlu0 0
        %1219 = vperm.xlu0 %1218, %v1068
        %v1220 = vpop.permute.xlu0 %1219
        %1223 = vset.pattern.permute.xlu0 0
        %1224 = vperm.xlu0 %1223, %v1069
        %v1225 = vpop.permute.xlu0 %1224
        %1228 = vset.pattern.permute.xlu0 0
        %1229 = vperm.xlu0 %1228, %v1070
        %v1230 = vpop.permute.xlu0 %1229
        %v1232 = vlaneseq
        %v1233 = vshrl.u32 %v1232, 7
        %v1234 = vsub.s32 0, %v1233
        %v1235 = vrot.slane %v1071, %v1234
        %v1236 = vmul.f32 %v1075, %v1235
        %v1237 = vmul.f32 %v1080, %v1235
        %v1238 = vmul.f32 %v1085, %v1235
        %v1239 = vmul.f32 %v1090, %v1235
        %v1240 = vmul.f32 %v1095, %v1235
        %v1241 = vmul.f32 %v1100, %v1235
        %v1242 = vmul.f32 %v1105, %v1235
        %v1243 = vmul.f32 %v1110, %v1235
        %v1244 = vmul.f32 %v1115, %v1235
        %v1245 = vmul.f32 %v1120, %v1235
        %v1246 = vmul.f32 %v1125, %v1235
        %v1247 = vmul.f32 %v1130, %v1235
        %v1248 = vmul.f32 %v1135, %v1235
        %v1249 = vmul.f32 %v1140, %v1235
        %v1250 = vmul.f32 %v1145, %v1235
        %v1251 = vmul.f32 %v1150, %v1235
        %v1252 = vmul.f32 %v1155, %v1235
        %v1253 = vmul.f32 %v1160, %v1235
        %v1254 = vmul.f32 %v1165, %v1235
        %v1255 = vmul.f32 %v1170, %v1235
        %v1256 = vmul.f32 %v1175, %v1235
        %v1257 = vmul.f32 %v1180, %v1235
        %v1258 = vmul.f32 %v1185, %v1235
        %v1259 = vmul.f32 %v1190, %v1235
        %v1260 = vmul.f32 %v1195, %v1235
        %v1261 = vmul.f32 %v1200, %v1235
        %v1262 = vmul.f32 %v1205, %v1235
        %v1263 = vmul.f32 %v1210, %v1235
        %v1264 = vmul.f32 %v1215, %v1235
        %v1265 = vmul.f32 %v1220, %v1235
        %v1266 = vmul.f32 %v1225, %v1235
        %v1267 = vmul.f32 %v1230, %v1235
        %v1268 = vadd.f32 %v1007, %v1236
        %v1269 = vadd.f32 %v1008, %v1237
        %v1270 = vadd.f32 %v1009, %v1238
        %v1271 = vadd.f32 %v1010, %v1239
        %v1272 = vadd.f32 %v1011, %v1240
        %v1273 = vadd.f32 %v1012, %v1241
        %v1274 = vadd.f32 %v1013, %v1242
        %v1275 = vadd.f32 %v1014, %v1243
        %v1276 = vadd.f32 %v1015, %v1244
        %v1277 = vadd.f32 %v1016, %v1245
        %v1278 = vadd.f32 %v1017, %v1246
        %v1279 = vadd.f32 %v1018, %v1247
        %v1280 = vadd.f32 %v1019, %v1248
        %v1281 = vadd.f32 %v1020, %v1249
        %v1282 = vadd.f32 %v1021, %v1250
        %v1283 = vadd.f32 %v1022, %v1251
        %v1284 = vadd.f32 %v1023, %v1252
        %v1285 = vadd.f32 %v1024, %v1253
        %v1286 = vadd.f32 %v1025, %v1254
        %v1287 = vadd.f32 %v1026, %v1255
        %v1288 = vadd.f32 %v1027, %v1256
        %v1289 = vadd.f32 %v1028, %v1257
        %v1290 = vadd.f32 %v1029, %v1258
        %v1291 = vadd.f32 %v1030, %v1259
        %v1292 = vadd.f32 %v1031, %v1260
        %v1293 = vadd.f32 %v1032, %v1261
        %v1294 = vadd.f32 %v1033, %v1262
        %v1295 = vadd.f32 %v1034, %v1263
        %v1296 = vadd.f32 %v1035, %v1264
        %v1297 = vadd.f32 %v1036, %v1265
        %v1298 = vadd.f32 %v1037, %v1266
        %v1299 = vadd.f32 %v1038, %v1267
        %v1300 = vld [vmem:[#allocation2 + $0x2] sm:$0xff]
        %v1301 = vld [vmem:[#allocation2 + $0xa] sm:$0xff]
        %v1302 = vld [vmem:[#allocation2 + $0x1a] sm:$0xff]
        %v1303 = vld [vmem:[#allocation2 + $0x22] sm:$0xff]
        %v1304 = vld [vmem:[#allocation2 + $0x32] sm:$0xff]
        %v1305 = vld [vmem:[#allocation2 + $0x3a] sm:$0xff]
        %v1306 = vld [vmem:[#allocation2 + $0x4a] sm:$0xff]
        %v1307 = vld [vmem:[#allocation2 + $0x52] sm:$0xff]
        %v1308 = vld [vmem:[#allocation2 + $0x62] sm:$0xff]
        %v1309 = vld [vmem:[#allocation2 + $0x6a] sm:$0xff]
        %v1310 = vld [vmem:[#allocation2 + $0x7a] sm:$0xff]
        %v1311 = vld [vmem:[#allocation2 + $0x82] sm:$0xff]
        %v1312 = vld [vmem:[#allocation2 + $0x92] sm:$0xff]
        %v1313 = vld [vmem:[#allocation2 + $0x9a] sm:$0xff]
        %v1314 = vld [vmem:[#allocation2 + $0xaa] sm:$0xff]
        %v1315 = vld [vmem:[#allocation2 + $0xb2] sm:$0xff]
        %v1316 = vld [vmem:[#allocation2 + $0xc2] sm:$0xff]
        %v1317 = vld [vmem:[#allocation2 + $0xca] sm:$0xff]
        %v1318 = vld [vmem:[#allocation2 + $0xda] sm:$0xff]
        %v1319 = vld [vmem:[#allocation2 + $0xe2] sm:$0xff]
        %v1320 = vld [vmem:[#allocation2 + $0xf2] sm:$0xff]
        %v1321 = vld [vmem:[#allocation2 + $0xfa] sm:$0xff]
        %v1322 = vld [vmem:[#allocation2 + $0x10a] sm:$0xff]
        %v1323 = vld [vmem:[#allocation2 + $0x112] sm:$0xff]
        %v1324 = vld [vmem:[#allocation2 + $0x122] sm:$0xff]
        %v1325 = vld [vmem:[#allocation2 + $0x12a] sm:$0xff]
        %v1326 = vld [vmem:[#allocation2 + $0x13a] sm:$0xff]
        %v1327 = vld [vmem:[#allocation2 + $0x142] sm:$0xff]
        %v1328 = vld [vmem:[#allocation2 + $0x152] sm:$0xff]
        %v1329 = vld [vmem:[#allocation2 + $0x15a] sm:$0xff]
        %v1330 = vld [vmem:[#allocation2 + $0x16a] sm:$0xff]
        %v1331 = vld [vmem:[#allocation2 + $0x172] sm:$0xff]
        %v1332 = vld [vmem:[%s1 + $0x2] sm:$0x1]
        %1334 = vset.pattern.permute.xlu0 0
        %1335 = vperm.xlu0 %1334, %v1300
        %v1336 = vpop.permute.xlu0 %1335
        %1339 = vset.pattern.permute.xlu0 0
        %1340 = vperm.xlu0 %1339, %v1301
        %v1341 = vpop.permute.xlu0 %1340
        %1344 = vset.pattern.permute.xlu0 0
        %1345 = vperm.xlu0 %1344, %v1302
        %v1346 = vpop.permute.xlu0 %1345
        %1349 = vset.pattern.permute.xlu0 0
        %1350 = vperm.xlu0 %1349, %v1303
        %v1351 = vpop.permute.xlu0 %1350
        %1354 = vset.pattern.permute.xlu0 0
        %1355 = vperm.xlu0 %1354, %v1304
        %v1356 = vpop.permute.xlu0 %1355
        %1359 = vset.pattern.permute.xlu0 0
        %1360 = vperm.xlu0 %1359, %v1305
        %v1361 = vpop.permute.xlu0 %1360
        %1364 = vset.pattern.permute.xlu0 0
        %1365 = vperm.xlu0 %1364, %v1306
        %v1366 = vpop.permute.xlu0 %1365
        %1369 = vset.pattern.permute.xlu0 0
        %1370 = vperm.xlu0 %1369, %v1307
        %v1371 = vpop.permute.xlu0 %1370
        %1374 = vset.pattern.permute.xlu0 0
        %1375 = vperm.xlu0 %1374, %v1308
        %v1376 = vpop.permute.xlu0 %1375
        %1379 = vset.pattern.permute.xlu0 0
        %1380 = vperm.xlu0 %1379, %v1309
        %v1381 = vpop.permute.xlu0 %1380
        %1384 = vset.pattern.permute.xlu0 0
        %1385 = vperm.xlu0 %1384, %v1310
        %v1386 = vpop.permute.xlu0 %1385
        %1389 = vset.pattern.permute.xlu0 0
        %1390 = vperm.xlu0 %1389, %v1311
        %v1391 = vpop.permute.xlu0 %1390
        %1394 = vset.pattern.permute.xlu0 0
        %1395 = vperm.xlu0 %1394, %v1312
        %v1396 = vpop.permute.xlu0 %1395
        %1399 = vset.pattern.permute.xlu0 0
        %1400 = vperm.xlu0 %1399, %v1313
        %v1401 = vpop.permute.xlu0 %1400
        %1404 = vset.pattern.permute.xlu0 0
        %1405 = vperm.xlu0 %1404, %v1314
        %v1406 = vpop.permute.xlu0 %1405
        %1409 = vset.pattern.permute.xlu0 0
        %1410 = vperm.xlu0 %1409, %v1315
        %v1411 = vpop.permute.xlu0 %1410
        %1414 = vset.pattern.permute.xlu0 0
        %1415 = vperm.xlu0 %1414, %v1316
        %v1416 = vpop.permute.xlu0 %1415
        %1419 = vset.pattern.permute.xlu0 0
        %1420 = vperm.xlu0 %1419, %v1317
        %v1421 = vpop.permute.xlu0 %1420
        %1424 = vset.pattern.permute.xlu0 0
        %1425 = vperm.xlu0 %1424, %v1318
        %v1426 = vpop.permute.xlu0 %1425
        %1429 = vset.pattern.permute.xlu0 0
        %1430 = vperm.xlu0 %1429, %v1319
        %v1431 = vpop.permute.xlu0 %1430
        %1434 = vset.pattern.permute.xlu0 0
        %1435 = vperm.xlu0 %1434, %v1320
        %v1436 = vpop.permute.xlu0 %1435
        %1439 = vset.pattern.permute.xlu0 0
        %1440 = vperm.xlu0 %1439, %v1321
        %v1441 = vpop.permute.xlu0 %1440
        %1444 = vset.pattern.permute.xlu0 0
        %1445 = vperm.xlu0 %1444, %v1322
        %v1446 = vpop.permute.xlu0 %1445
        %1449 = vset.pattern.permute.xlu0 0
        %1450 = vperm.xlu0 %1449, %v1323
        %v1451 = vpop.permute.xlu0 %1450
        %1454 = vset.pattern.permute.xlu0 0
        %1455 = vperm.xlu0 %1454, %v1324
        %v1456 = vpop.permute.xlu0 %1455
        %1459 = vset.pattern.permute.xlu0 0
        %1460 = vperm.xlu0 %1459, %v1325
        %v1461 = vpop.permute.xlu0 %1460
        %1464 = vset.pattern.permute.xlu0 0
        %1465 = vperm.xlu0 %1464, %v1326
        %v1466 = vpop.permute.xlu0 %1465
        %1469 = vset.pattern.permute.xlu0 0
        %1470 = vperm.xlu0 %1469, %v1327
        %v1471 = vpop.permute.xlu0 %1470
        %1474 = vset.pattern.permute.xlu0 0
        %1475 = vperm.xlu0 %1474, %v1328
        %v1476 = vpop.permute.xlu0 %1475
        %1479 = vset.pattern.permute.xlu0 0
        %1480 = vperm.xlu0 %1479, %v1329
        %v1481 = vpop.permute.xlu0 %1480
        %1484 = vset.pattern.permute.xlu0 0
        %1485 = vperm.xlu0 %1484, %v1330
        %v1486 = vpop.permute.xlu0 %1485
        %1489 = vset.pattern.permute.xlu0 0
        %1490 = vperm.xlu0 %1489, %v1331
        %v1491 = vpop.permute.xlu0 %1490
        %v1493 = vlaneseq
        %v1494 = vshrl.u32 %v1493, 7
        %v1495 = vsub.s32 0, %v1494
        %v1496 = vrot.slane %v1332, %v1495
        %v1497 = vmul.f32 %v1336, %v1496
        %v1498 = vmul.f32 %v1341, %v1496
        %v1499 = vmul.f32 %v1346, %v1496
        %v1500 = vmul.f32 %v1351, %v1496
        %v1501 = vmul.f32 %v1356, %v1496
        %v1502 = vmul.f32 %v1361, %v1496
        %v1503 = vmul.f32 %v1366, %v1496
        %v1504 = vmul.f32 %v1371, %v1496
        %v1505 = vmul.f32 %v1376, %v1496
        %v1506 = vmul.f32 %v1381, %v1496
        %v1507 = vmul.f32 %v1386, %v1496
        %v1508 = vmul.f32 %v1391, %v1496
        %v1509 = vmul.f32 %v1396, %v1496
        %v1510 = vmul.f32 %v1401, %v1496
        %v1511 = vmul.f32 %v1406, %v1496
        %v1512 = vmul.f32 %v1411, %v1496
        %v1513 = vmul.f32 %v1416, %v1496
        %v1514 = vmul.f32 %v1421, %v1496
        %v1515 = vmul.f32 %v1426, %v1496
        %v1516 = vmul.f32 %v1431, %v1496
        %v1517 = vmul.f32 %v1436, %v1496
        %v1518 = vmul.f32 %v1441, %v1496
        %v1519 = vmul.f32 %v1446, %v1496
        %v1520 = vmul.f32 %v1451, %v1496
        %v1521 = vmul.f32 %v1456, %v1496
        %v1522 = vmul.f32 %v1461, %v1496
        %v1523 = vmul.f32 %v1466, %v1496
        %v1524 = vmul.f32 %v1471, %v1496
        %v1525 = vmul.f32 %v1476, %v1496
        %v1526 = vmul.f32 %v1481, %v1496
        %v1527 = vmul.f32 %v1486, %v1496
        %v1528 = vmul.f32 %v1491, %v1496
        %v1529 = vadd.f32 %v1268, %v1497
        %v1530 = vadd.f32 %v1269, %v1498
        %v1531 = vadd.f32 %v1270, %v1499
        %v1532 = vadd.f32 %v1271, %v1500
        %v1533 = vadd.f32 %v1272, %v1501
        %v1534 = vadd.f32 %v1273, %v1502
        %v1535 = vadd.f32 %v1274, %v1503
        %v1536 = vadd.f32 %v1275, %v1504
        %v1537 = vadd.f32 %v1276, %v1505
        %v1538 = vadd.f32 %v1277, %v1506
        %v1539 = vadd.f32 %v1278, %v1507
        %v1540 = vadd.f32 %v1279, %v1508
        %v1541 = vadd.f32 %v1280, %v1509
        %v1542 = vadd.f32 %v1281, %v1510
        %v1543 = vadd.f32 %v1282, %v1511
        %v1544 = vadd.f32 %v1283, %v1512
        %v1545 = vadd.f32 %v1284, %v1513
        %v1546 = vadd.f32 %v1285, %v1514
        %v1547 = vadd.f32 %v1286, %v1515
        %v1548 = vadd.f32 %v1287, %v1516
        %v1549 = vadd.f32 %v1288, %v1517
        %v1550 = vadd.f32 %v1289, %v1518
        %v1551 = vadd.f32 %v1290, %v1519
        %v1552 = vadd.f32 %v1291, %v1520
        %v1553 = vadd.f32 %v1292, %v1521
        %v1554 = vadd.f32 %v1293, %v1522
        %v1555 = vadd.f32 %v1294, %v1523
        %v1556 = vadd.f32 %v1295, %v1524
        %v1557 = vadd.f32 %v1296, %v1525
        %v1558 = vadd.f32 %v1297, %v1526
        %v1559 = vadd.f32 %v1298, %v1527
        %v1560 = vadd.f32 %v1299, %v1528
        %v1561 = vld [vmem:[%s745] sm:$0xff]
        %v1562 = vld [vmem:[%s745 + $0x8] sm:$0xff]
        %v1563 = vld [vmem:[%s745 + $0x18] sm:$0xff]
        %v1564 = vld [vmem:[%s745 + $0x20] sm:$0xff]
        %v1565 = vld [vmem:[%s745 + $0x30] sm:$0xff]
        %v1566 = vld [vmem:[%s745 + $0x38] sm:$0xff]
        %v1567 = vld [vmem:[%s745 + $0x48] sm:$0xff]
        %v1568 = vld [vmem:[%s745 + $0x50] sm:$0xff]
        %v1569 = vld [vmem:[%s745 + $0x60] sm:$0xff]
        %v1570 = vld [vmem:[%s745 + $0x68] sm:$0xff]
        %v1571 = vld [vmem:[%s745 + $0x78] sm:$0xff]
        %v1572 = vld [vmem:[%s745 + $0x80] sm:$0xff]
        %v1573 = vld [vmem:[%s745 + $0x90] sm:$0xff]
        %v1574 = vld [vmem:[%s745 + $0x98] sm:$0xff]
        %v1575 = vld [vmem:[%s745 + $0xa8] sm:$0xff]
        %v1576 = vld [vmem:[%s745 + $0xb0] sm:$0xff]
        %v1577 = vld [vmem:[%s745 + $0xc0] sm:$0xff]
        %v1578 = vld [vmem:[%s745 + $0xc8] sm:$0xff]
        %v1579 = vld [vmem:[%s745 + $0xd8] sm:$0xff]
        %v1580 = vld [vmem:[%s745 + $0xe0] sm:$0xff]
        %v1581 = vld [vmem:[%s745 + $0xf0] sm:$0xff]
        %v1582 = vld [vmem:[%s745 + $0xf8] sm:$0xff]
        %v1583 = vld [vmem:[%s745 + $0x108] sm:$0xff]
        %v1584 = vld [vmem:[%s745 + $0x110] sm:$0xff]
        %v1585 = vld [vmem:[%s745 + $0x120] sm:$0xff]
        %v1586 = vld [vmem:[%s745 + $0x128] sm:$0xff]
        %v1587 = vld [vmem:[%s745 + $0x138] sm:$0xff]
        %v1588 = vld [vmem:[%s745 + $0x140] sm:$0xff]
        %v1589 = vld [vmem:[%s745 + $0x150] sm:$0xff]
        %v1590 = vld [vmem:[%s745 + $0x158] sm:$0xff]
        %v1591 = vld [vmem:[%s745 + $0x168] sm:$0xff]
        %v1592 = vld [vmem:[%s745 + $0x170] sm:$0xff]
        %v1593 = vld [vmem:[%s1 + $0x3] sm:$0x1]
        %1595 = vset.pattern.permute.xlu0 0
        %1596 = vperm.xlu0 %1595, %v1561
        %v1597 = vpop.permute.xlu0 %1596
        %1600 = vset.pattern.permute.xlu0 0
        %1601 = vperm.xlu0 %1600, %v1562
        %v1602 = vpop.permute.xlu0 %1601
        %1605 = vset.pattern.permute.xlu0 0
        %1606 = vperm.xlu0 %1605, %v1563
        %v1607 = vpop.permute.xlu0 %1606
        %1610 = vset.pattern.permute.xlu0 0
        %1611 = vperm.xlu0 %1610, %v1564
        %v1612 = vpop.permute.xlu0 %1611
        %1615 = vset.pattern.permute.xlu0 0
        %1616 = vperm.xlu0 %1615, %v1565
        %v1617 = vpop.permute.xlu0 %1616
        %1620 = vset.pattern.permute.xlu0 0
        %1621 = vperm.xlu0 %1620, %v1566
        %v1622 = vpop.permute.xlu0 %1621
        %1625 = vset.pattern.permute.xlu0 0
        %1626 = vperm.xlu0 %1625, %v1567
        %v1627 = vpop.permute.xlu0 %1626
        %1630 = vset.pattern.permute.xlu0 0
        %1631 = vperm.xlu0 %1630, %v1568
        %v1632 = vpop.permute.xlu0 %1631
        %1635 = vset.pattern.permute.xlu0 0
        %1636 = vperm.xlu0 %1635, %v1569
        %v1637 = vpop.permute.xlu0 %1636
        %1640 = vset.pattern.permute.xlu0 0
        %1641 = vperm.xlu0 %1640, %v1570
        %v1642 = vpop.permute.xlu0 %1641
        %1645 = vset.pattern.permute.xlu0 0
        %1646 = vperm.xlu0 %1645, %v1571
        %v1647 = vpop.permute.xlu0 %1646
        %1650 = vset.pattern.permute.xlu0 0
        %1651 = vperm.xlu0 %1650, %v1572
        %v1652 = vpop.permute.xlu0 %1651
        %1655 = vset.pattern.permute.xlu0 0
        %1656 = vperm.xlu0 %1655, %v1573
        %v1657 = vpop.permute.xlu0 %1656
        %1660 = vset.pattern.permute.xlu0 0
        %1661 = vperm.xlu0 %1660, %v1574
        %v1662 = vpop.permute.xlu0 %1661
        %1665 = vset.pattern.permute.xlu0 0
        %1666 = vperm.xlu0 %1665, %v1575
        %v1667 = vpop.permute.xlu0 %1666
        %1670 = vset.pattern.permute.xlu0 0
        %1671 = vperm.xlu0 %1670, %v1576
        %v1672 = vpop.permute.xlu0 %1671
        %1675 = vset.pattern.permute.xlu0 0
        %1676 = vperm.xlu0 %1675, %v1577
        %v1677 = vpop.permute.xlu0 %1676
        %1680 = vset.pattern.permute.xlu0 0
        %1681 = vperm.xlu0 %1680, %v1578
        %v1682 = vpop.permute.xlu0 %1681
        %1685 = vset.pattern.permute.xlu0 0
        %1686 = vperm.xlu0 %1685, %v1579
        %v1687 = vpop.permute.xlu0 %1686
        %1690 = vset.pattern.permute.xlu0 0
        %1691 = vperm.xlu0 %1690, %v1580
        %v1692 = vpop.permute.xlu0 %1691
        %1695 = vset.pattern.permute.xlu0 0
        %1696 = vperm.xlu0 %1695, %v1581
        %v1697 = vpop.permute.xlu0 %1696
        %1700 = vset.pattern.permute.xlu0 0
        %1701 = vperm.xlu0 %1700, %v1582
        %v1702 = vpop.permute.xlu0 %1701
        %1705 = vset.pattern.permute.xlu0 0
        %1706 = vperm.xlu0 %1705, %v1583
        %v1707 = vpop.permute.xlu0 %1706
        %1710 = vset.pattern.permute.xlu0 0
        %1711 = vperm.xlu0 %1710, %v1584
        %v1712 = vpop.permute.xlu0 %1711
        %1715 = vset.pattern.permute.xlu0 0
        %1716 = vperm.xlu0 %1715, %v1585
        %v1717 = vpop.permute.xlu0 %1716
        %1720 = vset.pattern.permute.xlu0 0
        %1721 = vperm.xlu0 %1720, %v1586
        %v1722 = vpop.permute.xlu0 %1721
        %1725 = vset.pattern.permute.xlu0 0
        %1726 = vperm.xlu0 %1725, %v1587
        %v1727 = vpop.permute.xlu0 %1726
        %1730 = vset.pattern.permute.xlu0 0
        %1731 = vperm.xlu0 %1730, %v1588
        %v1732 = vpop.permute.xlu0 %1731
        %1735 = vset.pattern.permute.xlu0 0
        %1736 = vperm.xlu0 %1735, %v1589
        %v1737 = vpop.permute.xlu0 %1736
        %1740 = vset.pattern.permute.xlu0 0
        %1741 = vperm.xlu0 %1740, %v1590
        %v1742 = vpop.permute.xlu0 %1741
        %1745 = vset.pattern.permute.xlu0 0
        %1746 = vperm.xlu0 %1745, %v1591
        %v1747 = vpop.permute.xlu0 %1746
        %1750 = vset.pattern.permute.xlu0 0
        %1751 = vperm.xlu0 %1750, %v1592
        %v1752 = vpop.permute.xlu0 %1751
        %v1754 = vlaneseq
        %v1755 = vshrl.u32 %v1754, 7
        %v1756 = vsub.s32 0, %v1755
        %v1757 = vrot.slane %v1593, %v1756
        %v1758 = vmul.f32 %v1597, %v1757
        %v1759 = vmul.f32 %v1602, %v1757
        %v1760 = vmul.f32 %v1607, %v1757
        %v1761 = vmul.f32 %v1612, %v1757
        %v1762 = vmul.f32 %v1617, %v1757
        %v1763 = vmul.f32 %v1622, %v1757
        %v1764 = vmul.f32 %v1627, %v1757
        %v1765 = vmul.f32 %v1632, %v1757
        %v1766 = vmul.f32 %v1637, %v1757
        %v1767 = vmul.f32 %v1642, %v1757
        %v1768 = vmul.f32 %v1647, %v1757
        %v1769 = vmul.f32 %v1652, %v1757
        %v1770 = vmul.f32 %v1657, %v1757
        %v1771 = vmul.f32 %v1662, %v1757
        %v1772 = vmul.f32 %v1667, %v1757
        %v1773 = vmul.f32 %v1672, %v1757
        %v1774 = vmul.f32 %v1677, %v1757
        %v1775 = vmul.f32 %v1682, %v1757
        %v1776 = vmul.f32 %v1687, %v1757
        %v1777 = vmul.f32 %v1692, %v1757
        %v1778 = vmul.f32 %v1697, %v1757
        %v1779 = vmul.f32 %v1702, %v1757
        %v1780 = vmul.f32 %v1707, %v1757
        %v1781 = vmul.f32 %v1712, %v1757
        %v1782 = vmul.f32 %v1717, %v1757
        %v1783 = vmul.f32 %v1722, %v1757
        %v1784 = vmul.f32 %v1727, %v1757
        %v1785 = vmul.f32 %v1732, %v1757
        %v1786 = vmul.f32 %v1737, %v1757
        %v1787 = vmul.f32 %v1742, %v1757
        %v1788 = vmul.f32 %v1747, %v1757
        %v1789 = vmul.f32 %v1752, %v1757
        %v1790 = vadd.f32 %v1529, %v1758
        %v1791 = vadd.f32 %v1530, %v1759
        %v1792 = vadd.f32 %v1531, %v1760
        %v1793 = vadd.f32 %v1532, %v1761
        %v1794 = vadd.f32 %v1533, %v1762
        %v1795 = vadd.f32 %v1534, %v1763
        %v1796 = vadd.f32 %v1535, %v1764
        %v1797 = vadd.f32 %v1536, %v1765
        %v1798 = vadd.f32 %v1537, %v1766
        %v1799 = vadd.f32 %v1538, %v1767
        %v1800 = vadd.f32 %v1539, %v1768
        %v1801 = vadd.f32 %v1540, %v1769
        %v1802 = vadd.f32 %v1541, %v1770
        %v1803 = vadd.f32 %v1542, %v1771
        %v1804 = vadd.f32 %v1543, %v1772
        %v1805 = vadd.f32 %v1544, %v1773
        %v1806 = vadd.f32 %v1545, %v1774
        %v1807 = vadd.f32 %v1546, %v1775
        %v1808 = vadd.f32 %v1547, %v1776
        %v1809 = vadd.f32 %v1548, %v1777
        %v1810 = vadd.f32 %v1549, %v1778
        %v1811 = vadd.f32 %v1550, %v1779
        %v1812 = vadd.f32 %v1551, %v1780
        %v1813 = vadd.f32 %v1552, %v1781
        %v1814 = vadd.f32 %v1553, %v1782
        %v1815 = vadd.f32 %v1554, %v1783
        %v1816 = vadd.f32 %v1555, %v1784
        %v1817 = vadd.f32 %v1556, %v1785
        %v1818 = vadd.f32 %v1557, %v1786
        %v1819 = vadd.f32 %v1558, %v1787
        %v1820 = vadd.f32 %v1559, %v1788
        %v1821 = vadd.f32 %v1560, %v1789
        %v1822 = vld [vmem:[%s745 + $0x1] sm:$0xff]
        %v1823 = vld [vmem:[%s745 + $0x9] sm:$0xff]
        %v1824 = vld [vmem:[%s745 + $0x19] sm:$0xff]
        %v1825 = vld [vmem:[%s745 + $0x21] sm:$0xff]
        %v1826 = vld [vmem:[%s745 + $0x31] sm:$0xff]
        %v1827 = vld [vmem:[%s745 + $0x39] sm:$0xff]
        %v1828 = vld [vmem:[%s745 + $0x49] sm:$0xff]
        %v1829 = vld [vmem:[%s745 + $0x51] sm:$0xff]
        %v1830 = vld [vmem:[%s745 + $0x61] sm:$0xff]
        %v1831 = vld [vmem:[%s745 + $0x69] sm:$0xff]
        %v1832 = vld [vmem:[%s745 + $0x79] sm:$0xff]
        %v1833 = vld [vmem:[%s745 + $0x81] sm:$0xff]
        %v1834 = vld [vmem:[%s745 + $0x91] sm:$0xff]
        %v1835 = vld [vmem:[%s745 + $0x99] sm:$0xff]
        %v1836 = vld [vmem:[%s745 + $0xa9] sm:$0xff]
        %v1837 = vld [vmem:[%s745 + $0xb1] sm:$0xff]
        %v1838 = vld [vmem:[%s745 + $0xc1] sm:$0xff]
        %v1839 = vld [vmem:[%s745 + $0xc9] sm:$0xff]
        %v1840 = vld [vmem:[%s745 + $0xd9] sm:$0xff]
        %v1841 = vld [vmem:[%s745 + $0xe1] sm:$0xff]
        %v1842 = vld [vmem:[%s745 + $0xf1] sm:$0xff]
        %v1843 = vld [vmem:[%s745 + $0xf9] sm:$0xff]
        %v1844 = vld [vmem:[%s745 + $0x109] sm:$0xff]
        %v1845 = vld [vmem:[%s745 + $0x111] sm:$0xff]
        %v1846 = vld [vmem:[%s745 + $0x121] sm:$0xff]
        %v1847 = vld [vmem:[%s745 + $0x129] sm:$0xff]
        %v1848 = vld [vmem:[%s745 + $0x139] sm:$0xff]
        %v1849 = vld [vmem:[%s745 + $0x141] sm:$0xff]
        %v1850 = vld [vmem:[%s745 + $0x151] sm:$0xff]
        %v1851 = vld [vmem:[%s745 + $0x159] sm:$0xff]
        %v1852 = vld [vmem:[%s745 + $0x169] sm:$0xff]
        %v1853 = vld [vmem:[%s745 + $0x171] sm:$0xff]
        %v1854 = vld [vmem:[%s1 + $0x4] sm:$0x1]
        %1856 = vset.pattern.permute.xlu0 0
        %1857 = vperm.xlu0 %1856, %v1822
        %v1858 = vpop.permute.xlu0 %1857
        %1861 = vset.pattern.permute.xlu0 0
        %1862 = vperm.xlu0 %1861, %v1823
        %v1863 = vpop.permute.xlu0 %1862
        %1866 = vset.pattern.permute.xlu0 0
        %1867 = vperm.xlu0 %1866, %v1824
        %v1868 = vpop.permute.xlu0 %1867
        %1871 = vset.pattern.permute.xlu0 0
        %1872 = vperm.xlu0 %1871, %v1825
        %v1873 = vpop.permute.xlu0 %1872
        %1876 = vset.pattern.permute.xlu0 0
        %1877 = vperm.xlu0 %1876, %v1826
        %v1878 = vpop.permute.xlu0 %1877
        %1881 = vset.pattern.permute.xlu0 0
        %1882 = vperm.xlu0 %1881, %v1827
        %v1883 = vpop.permute.xlu0 %1882
        %1886 = vset.pattern.permute.xlu0 0
        %1887 = vperm.xlu0 %1886, %v1828
        %v1888 = vpop.permute.xlu0 %1887
        %1891 = vset.pattern.permute.xlu0 0
        %1892 = vperm.xlu0 %1891, %v1829
        %v1893 = vpop.permute.xlu0 %1892
        %1896 = vset.pattern.permute.xlu0 0
        %1897 = vperm.xlu0 %1896, %v1830
        %v1898 = vpop.permute.xlu0 %1897
        %1901 = vset.pattern.permute.xlu0 0
        %1902 = vperm.xlu0 %1901, %v1831
        %v1903 = vpop.permute.xlu0 %1902
        %1906 = vset.pattern.permute.xlu0 0
        %1907 = vperm.xlu0 %1906, %v1832
        %v1908 = vpop.permute.xlu0 %1907
        %1911 = vset.pattern.permute.xlu0 0
        %1912 = vperm.xlu0 %1911, %v1833
        %v1913 = vpop.permute.xlu0 %1912
        %1916 = vset.pattern.permute.xlu0 0
        %1917 = vperm.xlu0 %1916, %v1834
        %v1918 = vpop.permute.xlu0 %1917
        %1921 = vset.pattern.permute.xlu0 0
        %1922 = vperm.xlu0 %1921, %v1835
        %v1923 = vpop.permute.xlu0 %1922
        %1926 = vset.pattern.permute.xlu0 0
        %1927 = vperm.xlu0 %1926, %v1836
        %v1928 = vpop.permute.xlu0 %1927
        %1931 = vset.pattern.permute.xlu0 0
        %1932 = vperm.xlu0 %1931, %v1837
        %v1933 = vpop.permute.xlu0 %1932
        %1936 = vset.pattern.permute.xlu0 0
        %1937 = vperm.xlu0 %1936, %v1838
        %v1938 = vpop.permute.xlu0 %1937
        %1941 = vset.pattern.permute.xlu0 0
        %1942 = vperm.xlu0 %1941, %v1839
        %v1943 = vpop.permute.xlu0 %1942
        %1946 = vset.pattern.permute.xlu0 0
        %1947 = vperm.xlu0 %1946, %v1840
        %v1948 = vpop.permute.xlu0 %1947
        %1951 = vset.pattern.permute.xlu0 0
        %1952 = vperm.xlu0 %1951, %v1841
        %v1953 = vpop.permute.xlu0 %1952
        %1956 = vset.pattern.permute.xlu0 0
        %1957 = vperm.xlu0 %1956, %v1842
        %v1958 = vpop.permute.xlu0 %1957
        %1961 = vset.pattern.permute.xlu0 0
        %1962 = vperm.xlu0 %1961, %v1843
        %v1963 = vpop.permute.xlu0 %1962
        %1966 = vset.pattern.permute.xlu0 0
        %1967 = vperm.xlu0 %1966, %v1844
        %v1968 = vpop.permute.xlu0 %1967
        %1971 = vset.pattern.permute.xlu0 0
        %1972 = vperm.xlu0 %1971, %v1845
        %v1973 = vpop.permute.xlu0 %1972
        %1976 = vset.pattern.permute.xlu0 0
        %1977 = vperm.xlu0 %1976, %v1846
        %v1978 = vpop.permute.xlu0 %1977
        %1981 = vset.pattern.permute.xlu0 0
        %1982 = vperm.xlu0 %1981, %v1847
        %v1983 = vpop.permute.xlu0 %1982
        %1986 = vset.pattern.permute.xlu0 0
        %1987 = vperm.xlu0 %1986, %v1848
        %v1988 = vpop.permute.xlu0 %1987
        %1991 = vset.pattern.permute.xlu0 0
        %1992 = vperm.xlu0 %1991, %v1849
        %v1993 = vpop.permute.xlu0 %1992
        %1996 = vset.pattern.permute.xlu0 0
        %1997 = vperm.xlu0 %1996, %v1850
        %v1998 = vpop.permute.xlu0 %1997
        %2001 = vset.pattern.permute.xlu0 0
        %2002 = vperm.xlu0 %2001, %v1851
        %v2003 = vpop.permute.xlu0 %2002
        %2006 = vset.pattern.permute.xlu0 0
        %2007 = vperm.xlu0 %2006, %v1852
        %v2008 = vpop.permute.xlu0 %2007
        %2011 = vset.pattern.permute.xlu0 0
        %2012 = vperm.xlu0 %2011, %v1853
        %v2013 = vpop.permute.xlu0 %2012
        %v2015 = vlaneseq
        %v2016 = vshrl.u32 %v2015, 7
        %v2017 = vsub.s32 0, %v2016
        %v2018 = vrot.slane %v1854, %v2017
        %v2019 = vmul.f32 %v1858, %v2018
        %v2020 = vmul.f32 %v1863, %v2018
        %v2021 = vmul.f32 %v1868, %v2018
        %v2022 = vmul.f32 %v1873, %v2018
        %v2023 = vmul.f32 %v1878, %v2018
        %v2024 = vmul.f32 %v1883, %v2018
        %v2025 = vmul.f32 %v1888, %v2018
        %v2026 = vmul.f32 %v1893, %v2018
        %v2027 = vmul.f32 %v1898, %v2018
        %v2028 = vmul.f32 %v1903, %v2018
        %v2029 = vmul.f32 %v1908, %v2018
        %v2030 = vmul.f32 %v1913, %v2018
        %v2031 = vmul.f32 %v1918, %v2018
        %v2032 = vmul.f32 %v1923, %v2018
        %v2033 = vmul.f32 %v1928, %v2018
        %v2034 = vmul.f32 %v1933, %v2018
        %v2035 = vmul.f32 %v1938, %v2018
        %v2036 = vmul.f32 %v1943, %v2018
        %v2037 = vmul.f32 %v1948, %v2018
        %v2038 = vmul.f32 %v1953, %v2018
        %v2039 = vmul.f32 %v1958, %v2018
        %v2040 = vmul.f32 %v1963, %v2018
        %v2041 = vmul.f32 %v1968, %v2018
        %v2042 = vmul.f32 %v1973, %v2018
        %v2043 = vmul.f32 %v1978, %v2018
        %v2044 = vmul.f32 %v1983, %v2018
        %v2045 = vmul.f32 %v1988, %v2018
        %v2046 = vmul.f32 %v1993, %v2018
        %v2047 = vmul.f32 %v1998, %v2018
        %v2048 = vmul.f32 %v2003, %v2018
        %v2049 = vmul.f32 %v2008, %v2018
        %v2050 = vmul.f32 %v2013, %v2018
        %v2051 = vadd.f32 %v1790, %v2019
        %v2052 = vadd.f32 %v1791, %v2020
        %v2053 = vadd.f32 %v1792, %v2021
        %v2054 = vadd.f32 %v1793, %v2022
        %v2055 = vadd.f32 %v1794, %v2023
        %v2056 = vadd.f32 %v1795, %v2024
        %v2057 = vadd.f32 %v1796, %v2025
        %v2058 = vadd.f32 %v1797, %v2026
        %v2059 = vadd.f32 %v1798, %v2027
        %v2060 = vadd.f32 %v1799, %v2028
        %v2061 = vadd.f32 %v1800, %v2029
        %v2062 = vadd.f32 %v1801, %v2030
        %v2063 = vadd.f32 %v1802, %v2031
        %v2064 = vadd.f32 %v1803, %v2032
        %v2065 = vadd.f32 %v1804, %v2033
        %v2066 = vadd.f32 %v1805, %v2034
        %v2067 = vadd.f32 %v1806, %v2035
        %v2068 = vadd.f32 %v1807, %v2036
        %v2069 = vadd.f32 %v1808, %v2037
        %v2070 = vadd.f32 %v1809, %v2038
        %v2071 = vadd.f32 %v1810, %v2039
        %v2072 = vadd.f32 %v1811, %v2040
        %v2073 = vadd.f32 %v1812, %v2041
        %v2074 = vadd.f32 %v1813, %v2042
        %v2075 = vadd.f32 %v1814, %v2043
        %v2076 = vadd.f32 %v1815, %v2044
        %v2077 = vadd.f32 %v1816, %v2045
        %v2078 = vadd.f32 %v1817, %v2046
        %v2079 = vadd.f32 %v1818, %v2047
        %v2080 = vadd.f32 %v1819, %v2048
        %v2081 = vadd.f32 %v1820, %v2049
        %v2082 = vadd.f32 %v1821, %v2050
        %v2083 = vld [vmem:[%s745 + $0x2] sm:$0xff]
        %v2084 = vld [vmem:[%s745 + $0xa] sm:$0xff]
        %v2085 = vld [vmem:[%s745 + $0x1a] sm:$0xff]
        %v2086 = vld [vmem:[%s745 + $0x22] sm:$0xff]
        %v2087 = vld [vmem:[%s745 + $0x32] sm:$0xff]
        %v2088 = vld [vmem:[%s745 + $0x3a] sm:$0xff]
        %v2089 = vld [vmem:[%s745 + $0x4a] sm:$0xff]
        %v2090 = vld [vmem:[%s745 + $0x52] sm:$0xff]
        %v2091 = vld [vmem:[%s745 + $0x62] sm:$0xff]
        %v2092 = vld [vmem:[%s745 + $0x6a] sm:$0xff]
        %v2093 = vld [vmem:[%s745 + $0x7a] sm:$0xff]
        %v2094 = vld [vmem:[%s745 + $0x82] sm:$0xff]
        %v2095 = vld [vmem:[%s745 + $0x92] sm:$0xff]
        %v2096 = vld [vmem:[%s745 + $0x9a] sm:$0xff]
        %v2097 = vld [vmem:[%s745 + $0xaa] sm:$0xff]
        %v2098 = vld [vmem:[%s745 + $0xb2] sm:$0xff]
        %v2099 = vld [vmem:[%s745 + $0xc2] sm:$0xff]
        %v2100 = vld [vmem:[%s745 + $0xca] sm:$0xff]
        %v2101 = vld [vmem:[%s745 + $0xda] sm:$0xff]
        %v2102 = vld [vmem:[%s745 + $0xe2] sm:$0xff]
        %v2103 = vld [vmem:[%s745 + $0xf2] sm:$0xff]
        %v2104 = vld [vmem:[%s745 + $0xfa] sm:$0xff]
        %v2105 = vld [vmem:[%s745 + $0x10a] sm:$0xff]
        %v2106 = vld [vmem:[%s745 + $0x112] sm:$0xff]
        %v2107 = vld [vmem:[%s745 + $0x122] sm:$0xff]
        %v2108 = vld [vmem:[%s745 + $0x12a] sm:$0xff]
        %v2109 = vld [vmem:[%s745 + $0x13a] sm:$0xff]
        %v2110 = vld [vmem:[%s745 + $0x142] sm:$0xff]
        %v2111 = vld [vmem:[%s745 + $0x152] sm:$0xff]
        %v2112 = vld [vmem:[%s745 + $0x15a] sm:$0xff]
        %v2113 = vld [vmem:[%s745 + $0x16a] sm:$0xff]
        %v2114 = vld [vmem:[%s745 + $0x172] sm:$0xff]
        %v2115 = vld [vmem:[%s1 + $0x5] sm:$0x1]
        %2117 = vset.pattern.permute.xlu0 0
        %2118 = vperm.xlu0 %2117, %v2083
        %v2119 = vpop.permute.xlu0 %2118
        %2122 = vset.pattern.permute.xlu0 0
        %2123 = vperm.xlu0 %2122, %v2084
        %v2124 = vpop.permute.xlu0 %2123
        %2127 = vset.pattern.permute.xlu0 0
        %2128 = vperm.xlu0 %2127, %v2085
        %v2129 = vpop.permute.xlu0 %2128
        %2132 = vset.pattern.permute.xlu0 0
        %2133 = vperm.xlu0 %2132, %v2086
        %v2134 = vpop.permute.xlu0 %2133
        %2137 = vset.pattern.permute.xlu0 0
        %2138 = vperm.xlu0 %2137, %v2087
        %v2139 = vpop.permute.xlu0 %2138
        %2142 = vset.pattern.permute.xlu0 0
        %2143 = vperm.xlu0 %2142, %v2088
        %v2144 = vpop.permute.xlu0 %2143
        %2147 = vset.pattern.permute.xlu0 0
        %2148 = vperm.xlu0 %2147, %v2089
        %v2149 = vpop.permute.xlu0 %2148
        %2152 = vset.pattern.permute.xlu0 0
        %2153 = vperm.xlu0 %2152, %v2090
        %v2154 = vpop.permute.xlu0 %2153
        %2157 = vset.pattern.permute.xlu0 0
        %2158 = vperm.xlu0 %2157, %v2091
        %v2159 = vpop.permute.xlu0 %2158
        %2162 = vset.pattern.permute.xlu0 0
        %2163 = vperm.xlu0 %2162, %v2092
        %v2164 = vpop.permute.xlu0 %2163
        %2167 = vset.pattern.permute.xlu0 0
        %2168 = vperm.xlu0 %2167, %v2093
        %v2169 = vpop.permute.xlu0 %2168
        %2172 = vset.pattern.permute.xlu0 0
        %2173 = vperm.xlu0 %2172, %v2094
        %v2174 = vpop.permute.xlu0 %2173
        %2177 = vset.pattern.permute.xlu0 0
        %2178 = vperm.xlu0 %2177, %v2095
        %v2179 = vpop.permute.xlu0 %2178
        %2182 = vset.pattern.permute.xlu0 0
        %2183 = vperm.xlu0 %2182, %v2096
        %v2184 = vpop.permute.xlu0 %2183
        %2187 = vset.pattern.permute.xlu0 0
        %2188 = vperm.xlu0 %2187, %v2097
        %v2189 = vpop.permute.xlu0 %2188
        %2192 = vset.pattern.permute.xlu0 0
        %2193 = vperm.xlu0 %2192, %v2098
        %v2194 = vpop.permute.xlu0 %2193
        %2197 = vset.pattern.permute.xlu0 0
        %2198 = vperm.xlu0 %2197, %v2099
        %v2199 = vpop.permute.xlu0 %2198
        %2202 = vset.pattern.permute.xlu0 0
        %2203 = vperm.xlu0 %2202, %v2100
        %v2204 = vpop.permute.xlu0 %2203
        %2207 = vset.pattern.permute.xlu0 0
        %2208 = vperm.xlu0 %2207, %v2101
        %v2209 = vpop.permute.xlu0 %2208
        %2212 = vset.pattern.permute.xlu0 0
        %2213 = vperm.xlu0 %2212, %v2102
        %v2214 = vpop.permute.xlu0 %2213
        %2217 = vset.pattern.permute.xlu0 0
        %2218 = vperm.xlu0 %2217, %v2103
        %v2219 = vpop.permute.xlu0 %2218
        %2222 = vset.pattern.permute.xlu0 0
        %2223 = vperm.xlu0 %2222, %v2104
        %v2224 = vpop.permute.xlu0 %2223
        %2227 = vset.pattern.permute.xlu0 0
        %2228 = vperm.xlu0 %2227, %v2105
        %v2229 = vpop.permute.xlu0 %2228
        %2232 = vset.pattern.permute.xlu0 0
        %2233 = vperm.xlu0 %2232, %v2106
        %v2234 = vpop.permute.xlu0 %2233
        %2237 = vset.pattern.permute.xlu0 0
        %2238 = vperm.xlu0 %2237, %v2107
        %v2239 = vpop.permute.xlu0 %2238
        %2242 = vset.pattern.permute.xlu0 0
        %2243 = vperm.xlu0 %2242, %v2108
        %v2244 = vpop.permute.xlu0 %2243
        %2247 = vset.pattern.permute.xlu0 0
        %2248 = vperm.xlu0 %2247, %v2109
        %v2249 = vpop.permute.xlu0 %2248
        %2252 = vset.pattern.permute.xlu0 0
        %2253 = vperm.xlu0 %2252, %v2110
        %v2254 = vpop.permute.xlu0 %2253
        %2257 = vset.pattern.permute.xlu0 0
        %2258 = vperm.xlu0 %2257, %v2111
        %v2259 = vpop.permute.xlu0 %2258
        %2262 = vset.pattern.permute.xlu0 0
        %2263 = vperm.xlu0 %2262, %v2112
        %v2264 = vpop.permute.xlu0 %2263
        %2267 = vset.pattern.permute.xlu0 0
        %2268 = vperm.xlu0 %2267, %v2113
        %v2269 = vpop.permute.xlu0 %2268
        %2272 = vset.pattern.permute.xlu0 0
        %2273 = vperm.xlu0 %2272, %v2114
        %v2274 = vpop.permute.xlu0 %2273
        %v2276 = vlaneseq
        %v2277 = vshrl.u32 %v2276, 7
        %v2278 = vsub.s32 0, %v2277
        %v2279 = vrot.slane %v2115, %v2278
        %v2280 = vmul.f32 %v2119, %v2279
        %v2281 = vmul.f32 %v2124, %v2279
        %v2282 = vmul.f32 %v2129, %v2279
        %v2283 = vmul.f32 %v2134, %v2279
        %v2284 = vmul.f32 %v2139, %v2279
        %v2285 = vmul.f32 %v2144, %v2279
        %v2286 = vmul.f32 %v2149, %v2279
        %v2287 = vmul.f32 %v2154, %v2279
        %v2288 = vmul.f32 %v2159, %v2279
        %v2289 = vmul.f32 %v2164, %v2279
        %v2290 = vmul.f32 %v2169, %v2279
        %v2291 = vmul.f32 %v2174, %v2279
        %v2292 = vmul.f32 %v2179, %v2279
        %v2293 = vmul.f32 %v2184, %v2279
        %v2294 = vmul.f32 %v2189, %v2279
        %v2295 = vmul.f32 %v2194, %v2279
        %v2296 = vmul.f32 %v2199, %v2279
        %v2297 = vmul.f32 %v2204, %v2279
        %v2298 = vmul.f32 %v2209, %v2279
        %v2299 = vmul.f32 %v2214, %v2279
        %v2300 = vmul.f32 %v2219, %v2279
        %v2301 = vmul.f32 %v2224, %v2279
        %v2302 = vmul.f32 %v2229, %v2279
        %v2303 = vmul.f32 %v2234, %v2279
        %v2304 = vmul.f32 %v2239, %v2279
        %v2305 = vmul.f32 %v2244, %v2279
        %v2306 = vmul.f32 %v2249, %v2279
        %v2307 = vmul.f32 %v2254, %v2279
        %v2308 = vmul.f32 %v2259, %v2279
        %v2309 = vmul.f32 %v2264, %v2279
        %v2310 = vmul.f32 %v2269, %v2279
        %v2311 = vmul.f32 %v2274, %v2279
        %v2312 = vadd.f32 %v2051, %v2280
        %v2313 = vadd.f32 %v2052, %v2281
        %v2314 = vadd.f32 %v2053, %v2282
        %v2315 = vadd.f32 %v2054, %v2283
        %v2316 = vadd.f32 %v2055, %v2284
        %v2317 = vadd.f32 %v2056, %v2285
        %v2318 = vadd.f32 %v2057, %v2286
        %v2319 = vadd.f32 %v2058, %v2287
        %v2320 = vadd.f32 %v2059, %v2288
        %v2321 = vadd.f32 %v2060, %v2289
        %v2322 = vadd.f32 %v2061, %v2290
        %v2323 = vadd.f32 %v2062, %v2291
        %v2324 = vadd.f32 %v2063, %v2292
        %v2325 = vadd.f32 %v2064, %v2293
        %v2326 = vadd.f32 %v2065, %v2294
        %v2327 = vadd.f32 %v2066, %v2295
        %v2328 = vadd.f32 %v2067, %v2296
        %v2329 = vadd.f32 %v2068, %v2297
        %v2330 = vadd.f32 %v2069, %v2298
        %v2331 = vadd.f32 %v2070, %v2299
        %v2332 = vadd.f32 %v2071, %v2300
        %v2333 = vadd.f32 %v2072, %v2301
        %v2334 = vadd.f32 %v2073, %v2302
        %v2335 = vadd.f32 %v2074, %v2303
        %v2336 = vadd.f32 %v2075, %v2304
        %v2337 = vadd.f32 %v2076, %v2305
        %v2338 = vadd.f32 %v2077, %v2306
        %v2339 = vadd.f32 %v2078, %v2307
        %v2340 = vadd.f32 %v2079, %v2308
        %v2341 = vadd.f32 %v2080, %v2309
        %v2342 = vadd.f32 %v2081, %v2310
        %v2343 = vadd.f32 %v2082, %v2311
        %s2344 = scalar_lea.vmem [#allocation2], 48
        %v2345 = vld [vmem:[%s2344] sm:$0xff]
        %v2346 = vld [vmem:[%s2344 + $0x8] sm:$0xff]
        %v2347 = vld [vmem:[%s2344 + $0x18] sm:$0xff]
        %v2348 = vld [vmem:[%s2344 + $0x20] sm:$0xff]
        %v2349 = vld [vmem:[%s2344 + $0x30] sm:$0xff]
        %v2350 = vld [vmem:[%s2344 + $0x38] sm:$0xff]
        %v2351 = vld [vmem:[%s2344 + $0x48] sm:$0xff]
        %v2352 = vld [vmem:[%s2344 + $0x50] sm:$0xff]
        %v2353 = vld [vmem:[%s2344 + $0x60] sm:$0xff]
        %v2354 = vld [vmem:[%s2344 + $0x68] sm:$0xff]
        %v2355 = vld [vmem:[%s2344 + $0x78] sm:$0xff]
        %v2356 = vld [vmem:[%s2344 + $0x80] sm:$0xff]
        %v2357 = vld [vmem:[%s2344 + $0x90] sm:$0xff]
        %v2358 = vld [vmem:[%s2344 + $0x98] sm:$0xff]
        %v2359 = vld [vmem:[%s2344 + $0xa8] sm:$0xff]
        %v2360 = vld [vmem:[%s2344 + $0xb0] sm:$0xff]
        %v2361 = vld [vmem:[%s2344 + $0xc0] sm:$0xff]
        %v2362 = vld [vmem:[%s2344 + $0xc8] sm:$0xff]
        %v2363 = vld [vmem:[%s2344 + $0xd8] sm:$0xff]
        %v2364 = vld [vmem:[%s2344 + $0xe0] sm:$0xff]
        %v2365 = vld [vmem:[%s2344 + $0xf0] sm:$0xff]
        %v2366 = vld [vmem:[%s2344 + $0xf8] sm:$0xff]
        %v2367 = vld [vmem:[%s2344 + $0x108] sm:$0xff]
        %v2368 = vld [vmem:[%s2344 + $0x110] sm:$0xff]
        %v2369 = vld [vmem:[%s2344 + $0x120] sm:$0xff]
        %v2370 = vld [vmem:[%s2344 + $0x128] sm:$0xff]
        %v2371 = vld [vmem:[%s2344 + $0x138] sm:$0xff]
        %v2372 = vld [vmem:[%s2344 + $0x140] sm:$0xff]
        %v2373 = vld [vmem:[%s2344 + $0x150] sm:$0xff]
        %v2374 = vld [vmem:[%s2344 + $0x158] sm:$0xff]
        %v2375 = vld [vmem:[%s2344 + $0x168] sm:$0xff]
        %v2376 = vld [vmem:[%s2344 + $0x170] sm:$0xff]
        %v2377 = vld [vmem:[%s1 + $0x6] sm:$0x1]
        %2379 = vset.pattern.permute.xlu0 0
        %2380 = vperm.xlu0 %2379, %v2345
        %v2381 = vpop.permute.xlu0 %2380
        %2384 = vset.pattern.permute.xlu0 0
        %2385 = vperm.xlu0 %2384, %v2346
        %v2386 = vpop.permute.xlu0 %2385
        %2389 = vset.pattern.permute.xlu0 0
        %2390 = vperm.xlu0 %2389, %v2347
        %v2391 = vpop.permute.xlu0 %2390
        %2394 = vset.pattern.permute.xlu0 0
        %2395 = vperm.xlu0 %2394, %v2348
        %v2396 = vpop.permute.xlu0 %2395
        %2399 = vset.pattern.permute.xlu0 0
        %2400 = vperm.xlu0 %2399, %v2349
        %v2401 = vpop.permute.xlu0 %2400
        %2404 = vset.pattern.permute.xlu0 0
        %2405 = vperm.xlu0 %2404, %v2350
        %v2406 = vpop.permute.xlu0 %2405
        %2409 = vset.pattern.permute.xlu0 0
        %2410 = vperm.xlu0 %2409, %v2351
        %v2411 = vpop.permute.xlu0 %2410
        %2414 = vset.pattern.permute.xlu0 0
        %2415 = vperm.xlu0 %2414, %v2352
        %v2416 = vpop.permute.xlu0 %2415
        %2419 = vset.pattern.permute.xlu0 0
        %2420 = vperm.xlu0 %2419, %v2353
        %v2421 = vpop.permute.xlu0 %2420
        %2424 = vset.pattern.permute.xlu0 0
        %2425 = vperm.xlu0 %2424, %v2354
        %v2426 = vpop.permute.xlu0 %2425
        %2429 = vset.pattern.permute.xlu0 0
        %2430 = vperm.xlu0 %2429, %v2355
        %v2431 = vpop.permute.xlu0 %2430
        %2434 = vset.pattern.permute.xlu0 0
        %2435 = vperm.xlu0 %2434, %v2356
        %v2436 = vpop.permute.xlu0 %2435
        %2439 = vset.pattern.permute.xlu0 0
        %2440 = vperm.xlu0 %2439, %v2357
        %v2441 = vpop.permute.xlu0 %2440
        %2444 = vset.pattern.permute.xlu0 0
        %2445 = vperm.xlu0 %2444, %v2358
        %v2446 = vpop.permute.xlu0 %2445
        %2449 = vset.pattern.permute.xlu0 0
        %2450 = vperm.xlu0 %2449, %v2359
        %v2451 = vpop.permute.xlu0 %2450
        %2454 = vset.pattern.permute.xlu0 0
        %2455 = vperm.xlu0 %2454, %v2360
        %v2456 = vpop.permute.xlu0 %2455
        %2459 = vset.pattern.permute.xlu0 0
        %2460 = vperm.xlu0 %2459, %v2361
        %v2461 = vpop.permute.xlu0 %2460
        %2464 = vset.pattern.permute.xlu0 0
        %2465 = vperm.xlu0 %2464, %v2362
        %v2466 = vpop.permute.xlu0 %2465
        %2469 = vset.pattern.permute.xlu0 0
        %2470 = vperm.xlu0 %2469, %v2363
        %v2471 = vpop.permute.xlu0 %2470
        %2474 = vset.pattern.permute.xlu0 0
        %2475 = vperm.xlu0 %2474, %v2364
        %v2476 = vpop.permute.xlu0 %2475
        %2479 = vset.pattern.permute.xlu0 0
        %2480 = vperm.xlu0 %2479, %v2365
        %v2481 = vpop.permute.xlu0 %2480
        %2484 = vset.pattern.permute.xlu0 0
        %2485 = vperm.xlu0 %2484, %v2366
        %v2486 = vpop.permute.xlu0 %2485
        %2489 = vset.pattern.permute.xlu0 0
        %2490 = vperm.xlu0 %2489, %v2367
        %v2491 = vpop.permute.xlu0 %2490
        %2494 = vset.pattern.permute.xlu0 0
        %2495 = vperm.xlu0 %2494, %v2368
        %v2496 = vpop.permute.xlu0 %2495
        %2499 = vset.pattern.permute.xlu0 0
        %2500 = vperm.xlu0 %2499, %v2369
        %v2501 = vpop.permute.xlu0 %2500
        %2504 = vset.pattern.permute.xlu0 0
        %2505 = vperm.xlu0 %2504, %v2370
        %v2506 = vpop.permute.xlu0 %2505
        %2509 = vset.pattern.permute.xlu0 0
        %2510 = vperm.xlu0 %2509, %v2371
        %v2511 = vpop.permute.xlu0 %2510
        %2514 = vset.pattern.permute.xlu0 0
        %2515 = vperm.xlu0 %2514, %v2372
        %v2516 = vpop.permute.xlu0 %2515
        %2519 = vset.pattern.permute.xlu0 0
        %2520 = vperm.xlu0 %2519, %v2373
        %v2521 = vpop.permute.xlu0 %2520
        %2524 = vset.pattern.permute.xlu0 0
        %2525 = vperm.xlu0 %2524, %v2374
        %v2526 = vpop.permute.xlu0 %2525
        %2529 = vset.pattern.permute.xlu0 0
        %2530 = vperm.xlu0 %2529, %v2375
        %v2531 = vpop.permute.xlu0 %2530
        %2534 = vset.pattern.permute.xlu0 0
        %2535 = vperm.xlu0 %2534, %v2376
        %v2536 = vpop.permute.xlu0 %2535
        %v2538 = vlaneseq
        %v2539 = vshrl.u32 %v2538, 7
        %v2540 = vsub.s32 0, %v2539
        %v2541 = vrot.slane %v2377, %v2540
        %v2542 = vmul.f32 %v2381, %v2541
        %v2543 = vmul.f32 %v2386, %v2541
        %v2544 = vmul.f32 %v2391, %v2541
        %v2545 = vmul.f32 %v2396, %v2541
        %v2546 = vmul.f32 %v2401, %v2541
        %v2547 = vmul.f32 %v2406, %v2541
        %v2548 = vmul.f32 %v2411, %v2541
        %v2549 = vmul.f32 %v2416, %v2541
        %v2550 = vmul.f32 %v2421, %v2541
        %v2551 = vmul.f32 %v2426, %v2541
        %v2552 = vmul.f32 %v2431, %v2541
        %v2553 = vmul.f32 %v2436, %v2541
        %v2554 = vmul.f32 %v2441, %v2541
        %v2555 = vmul.f32 %v2446, %v2541
        %v2556 = vmul.f32 %v2451, %v2541
        %v2557 = vmul.f32 %v2456, %v2541
        %v2558 = vmul.f32 %v2461, %v2541
        %v2559 = vmul.f32 %v2466, %v2541
        %v2560 = vmul.f32 %v2471, %v2541
        %v2561 = vmul.f32 %v2476, %v2541
        %v2562 = vmul.f32 %v2481, %v2541
        %v2563 = vmul.f32 %v2486, %v2541
        %v2564 = vmul.f32 %v2491, %v2541
        %v2565 = vmul.f32 %v2496, %v2541
        %v2566 = vmul.f32 %v2501, %v2541
        %v2567 = vmul.f32 %v2506, %v2541
        %v2568 = vmul.f32 %v2511, %v2541
        %v2569 = vmul.f32 %v2516, %v2541
        %v2570 = vmul.f32 %v2521, %v2541
        %v2571 = vmul.f32 %v2526, %v2541
        %v2572 = vmul.f32 %v2531, %v2541
        %v2573 = vmul.f32 %v2536, %v2541
        %v2574 = vadd.f32 %v2312, %v2542
        %v2575 = vadd.f32 %v2313, %v2543
        %v2576 = vadd.f32 %v2314, %v2544
        %v2577 = vadd.f32 %v2315, %v2545
        %v2578 = vadd.f32 %v2316, %v2546
        %v2579 = vadd.f32 %v2317, %v2547
        %v2580 = vadd.f32 %v2318, %v2548
        %v2581 = vadd.f32 %v2319, %v2549
        %v2582 = vadd.f32 %v2320, %v2550
        %v2583 = vadd.f32 %v2321, %v2551
        %v2584 = vadd.f32 %v2322, %v2552
        %v2585 = vadd.f32 %v2323, %v2553
        %v2586 = vadd.f32 %v2324, %v2554
        %v2587 = vadd.f32 %v2325, %v2555
        %v2588 = vadd.f32 %v2326, %v2556
        %v2589 = vadd.f32 %v2327, %v2557
        %v2590 = vadd.f32 %v2328, %v2558
        %v2591 = vadd.f32 %v2329, %v2559
        %v2592 = vadd.f32 %v2330, %v2560
        %v2593 = vadd.f32 %v2331, %v2561
        %v2594 = vadd.f32 %v2332, %v2562
        %v2595 = vadd.f32 %v2333, %v2563
        %v2596 = vadd.f32 %v2334, %v2564
        %v2597 = vadd.f32 %v2335, %v2565
        %v2598 = vadd.f32 %v2336, %v2566
        %v2599 = vadd.f32 %v2337, %v2567
        %v2600 = vadd.f32 %v2338, %v2568
        %v2601 = vadd.f32 %v2339, %v2569
        %v2602 = vadd.f32 %v2340, %v2570
        %v2603 = vadd.f32 %v2341, %v2571
        %v2604 = vadd.f32 %v2342, %v2572
        %v2605 = vadd.f32 %v2343, %v2573
        %v2606 = vld [vmem:[%s2344 + $0x1] sm:$0xff]
        %v2607 = vld [vmem:[%s2344 + $0x9] sm:$0xff]
        %v2608 = vld [vmem:[%s2344 + $0x19] sm:$0xff]
        %v2609 = vld [vmem:[%s2344 + $0x21] sm:$0xff]
        %v2610 = vld [vmem:[%s2344 + $0x31] sm:$0xff]
        %v2611 = vld [vmem:[%s2344 + $0x39] sm:$0xff]
        %v2612 = vld [vmem:[%s2344 + $0x49] sm:$0xff]
        %v2613 = vld [vmem:[%s2344 + $0x51] sm:$0xff]
        %v2614 = vld [vmem:[%s2344 + $0x61] sm:$0xff]
        %v2615 = vld [vmem:[%s2344 + $0x69] sm:$0xff]
        %v2616 = vld [vmem:[%s2344 + $0x79] sm:$0xff]
        %v2617 = vld [vmem:[%s2344 + $0x81] sm:$0xff]
        %v2618 = vld [vmem:[%s2344 + $0x91] sm:$0xff]
        %v2619 = vld [vmem:[%s2344 + $0x99] sm:$0xff]
        %v2620 = vld [vmem:[%s2344 + $0xa9] sm:$0xff]
        %v2621 = vld [vmem:[%s2344 + $0xb1] sm:$0xff]
        %v2622 = vld [vmem:[%s2344 + $0xc1] sm:$0xff]
        %v2623 = vld [vmem:[%s2344 + $0xc9] sm:$0xff]
        %v2624 = vld [vmem:[%s2344 + $0xd9] sm:$0xff]
        %v2625 = vld [vmem:[%s2344 + $0xe1] sm:$0xff]
        %v2626 = vld [vmem:[%s2344 + $0xf1] sm:$0xff]
        %v2627 = vld [vmem:[%s2344 + $0xf9] sm:$0xff]
        %v2628 = vld [vmem:[%s2344 + $0x109] sm:$0xff]
        %v2629 = vld [vmem:[%s2344 + $0x111] sm:$0xff]
        %v2630 = vld [vmem:[%s2344 + $0x121] sm:$0xff]
        %v2631 = vld [vmem:[%s2344 + $0x129] sm:$0xff]
        %v2632 = vld [vmem:[%s2344 + $0x139] sm:$0xff]
        %v2633 = vld [vmem:[%s2344 + $0x141] sm:$0xff]
        %v2634 = vld [vmem:[%s2344 + $0x151] sm:$0xff]
        %v2635 = vld [vmem:[%s2344 + $0x159] sm:$0xff]
        %v2636 = vld [vmem:[%s2344 + $0x169] sm:$0xff]
        %v2637 = vld [vmem:[%s2344 + $0x171] sm:$0xff]
        %v2638 = vld [vmem:[%s1 + $0x7] sm:$0x1]
        %2640 = vset.pattern.permute.xlu0 0
        %2641 = vperm.xlu0 %2640, %v2606
        %v2642 = vpop.permute.xlu0 %2641
        %2645 = vset.pattern.permute.xlu0 0
        %2646 = vperm.xlu0 %2645, %v2607
        %v2647 = vpop.permute.xlu0 %2646
        %2650 = vset.pattern.permute.xlu0 0
        %2651 = vperm.xlu0 %2650, %v2608
        %v2652 = vpop.permute.xlu0 %2651
        %2655 = vset.pattern.permute.xlu0 0
        %2656 = vperm.xlu0 %2655, %v2609
        %v2657 = vpop.permute.xlu0 %2656
        %2660 = vset.pattern.permute.xlu0 0
        %2661 = vperm.xlu0 %2660, %v2610
        %v2662 = vpop.permute.xlu0 %2661
        %2665 = vset.pattern.permute.xlu0 0
        %2666 = vperm.xlu0 %2665, %v2611
        %v2667 = vpop.permute.xlu0 %2666
        %2670 = vset.pattern.permute.xlu0 0
        %2671 = vperm.xlu0 %2670, %v2612
        %v2672 = vpop.permute.xlu0 %2671
        %2675 = vset.pattern.permute.xlu0 0
        %2676 = vperm.xlu0 %2675, %v2613
        %v2677 = vpop.permute.xlu0 %2676
        %2680 = vset.pattern.permute.xlu0 0
        %2681 = vperm.xlu0 %2680, %v2614
        %v2682 = vpop.permute.xlu0 %2681
        %2685 = vset.pattern.permute.xlu0 0
        %2686 = vperm.xlu0 %2685, %v2615
        %v2687 = vpop.permute.xlu0 %2686
        %2690 = vset.pattern.permute.xlu0 0
        %2691 = vperm.xlu0 %2690, %v2616
        %v2692 = vpop.permute.xlu0 %2691
        %2695 = vset.pattern.permute.xlu0 0
        %2696 = vperm.xlu0 %2695, %v2617
        %v2697 = vpop.permute.xlu0 %2696
        %2700 = vset.pattern.permute.xlu0 0
        %2701 = vperm.xlu0 %2700, %v2618
        %v2702 = vpop.permute.xlu0 %2701
        %2705 = vset.pattern.permute.xlu0 0
        %2706 = vperm.xlu0 %2705, %v2619
        %v2707 = vpop.permute.xlu0 %2706
        %2710 = vset.pattern.permute.xlu0 0
        %2711 = vperm.xlu0 %2710, %v2620
        %v2712 = vpop.permute.xlu0 %2711
        %2715 = vset.pattern.permute.xlu0 0
        %2716 = vperm.xlu0 %2715, %v2621
        %v2717 = vpop.permute.xlu0 %2716
        %2720 = vset.pattern.permute.xlu0 0
        %2721 = vperm.xlu0 %2720, %v2622
        %v2722 = vpop.permute.xlu0 %2721
        %2725 = vset.pattern.permute.xlu0 0
        %2726 = vperm.xlu0 %2725, %v2623
        %v2727 = vpop.permute.xlu0 %2726
        %2730 = vset.pattern.permute.xlu0 0
        %2731 = vperm.xlu0 %2730, %v2624
        %v2732 = vpop.permute.xlu0 %2731
        %2735 = vset.pattern.permute.xlu0 0
        %2736 = vperm.xlu0 %2735, %v2625
        %v2737 = vpop.permute.xlu0 %2736
        %2740 = vset.pattern.permute.xlu0 0
        %2741 = vperm.xlu0 %2740, %v2626
        %v2742 = vpop.permute.xlu0 %2741
        %2745 = vset.pattern.permute.xlu0 0
        %2746 = vperm.xlu0 %2745, %v2627
        %v2747 = vpop.permute.xlu0 %2746
        %2750 = vset.pattern.permute.xlu0 0
        %2751 = vperm.xlu0 %2750, %v2628
        %v2752 = vpop.permute.xlu0 %2751
        %2755 = vset.pattern.permute.xlu0 0
        %2756 = vperm.xlu0 %2755, %v2629
        %v2757 = vpop.permute.xlu0 %2756
        %2760 = vset.pattern.permute.xlu0 0
        %2761 = vperm.xlu0 %2760, %v2630
        %v2762 = vpop.permute.xlu0 %2761
        %2765 = vset.pattern.permute.xlu0 0
        %2766 = vperm.xlu0 %2765, %v2631
        %v2767 = vpop.permute.xlu0 %2766
        %2770 = vset.pattern.permute.xlu0 0
        %2771 = vperm.xlu0 %2770, %v2632
        %v2772 = vpop.permute.xlu0 %2771
        %2775 = vset.pattern.permute.xlu0 0
        %2776 = vperm.xlu0 %2775, %v2633
        %v2777 = vpop.permute.xlu0 %2776
        %2780 = vset.pattern.permute.xlu0 0
        %2781 = vperm.xlu0 %2780, %v2634
        %v2782 = vpop.permute.xlu0 %2781
        %2785 = vset.pattern.permute.xlu0 0
        %2786 = vperm.xlu0 %2785, %v2635
        %v2787 = vpop.permute.xlu0 %2786
        %2790 = vset.pattern.permute.xlu0 0
        %2791 = vperm.xlu0 %2790, %v2636
        %v2792 = vpop.permute.xlu0 %2791
        %2795 = vset.pattern.permute.xlu0 0
        %2796 = vperm.xlu0 %2795, %v2637
        %v2797 = vpop.permute.xlu0 %2796
        %v2799 = vlaneseq
        %v2800 = vshrl.u32 %v2799, 7
        %v2801 = vsub.s32 0, %v2800
        %v2802 = vrot.slane %v2638, %v2801
        %v2803 = vmul.f32 %v2642, %v2802
        %v2804 = vmul.f32 %v2647, %v2802
        %v2805 = vmul.f32 %v2652, %v2802
        %v2806 = vmul.f32 %v2657, %v2802
        %v2807 = vmul.f32 %v2662, %v2802
        %v2808 = vmul.f32 %v2667, %v2802
        %v2809 = vmul.f32 %v2672, %v2802
        %v2810 = vmul.f32 %v2677, %v2802
        %v2811 = vmul.f32 %v2682, %v2802
        %v2812 = vmul.f32 %v2687, %v2802
        %v2813 = vmul.f32 %v2692, %v2802
        %v2814 = vmul.f32 %v2697, %v2802
        %v2815 = vmul.f32 %v2702, %v2802
        %v2816 = vmul.f32 %v2707, %v2802
        %v2817 = vmul.f32 %v2712, %v2802
        %v2818 = vmul.f32 %v2717, %v2802
        %v2819 = vmul.f32 %v2722, %v2802
        %v2820 = vmul.f32 %v2727, %v2802
        %v2821 = vmul.f32 %v2732, %v2802
        %v2822 = vmul.f32 %v2737, %v2802
        %v2823 = vmul.f32 %v2742, %v2802
        %v2824 = vmul.f32 %v2747, %v2802
        %v2825 = vmul.f32 %v2752, %v2802
        %v2826 = vmul.f32 %v2757, %v2802
        %v2827 = vmul.f32 %v2762, %v2802
        %v2828 = vmul.f32 %v2767, %v2802
        %v2829 = vmul.f32 %v2772, %v2802
        %v2830 = vmul.f32 %v2777, %v2802
        %v2831 = vmul.f32 %v2782, %v2802
        %v2832 = vmul.f32 %v2787, %v2802
        %v2833 = vmul.f32 %v2792, %v2802
        %v2834 = vmul.f32 %v2797, %v2802
        %v2835 = vadd.f32 %v2574, %v2803
        %v2836 = vadd.f32 %v2575, %v2804
        %v2837 = vadd.f32 %v2576, %v2805
        %v2838 = vadd.f32 %v2577, %v2806
        %v2839 = vadd.f32 %v2578, %v2807
        %v2840 = vadd.f32 %v2579, %v2808
        %v2841 = vadd.f32 %v2580, %v2809
        %v2842 = vadd.f32 %v2581, %v2810
        %v2843 = vadd.f32 %v2582, %v2811
        %v2844 = vadd.f32 %v2583, %v2812
        %v2845 = vadd.f32 %v2584, %v2813
        %v2846 = vadd.f32 %v2585, %v2814
        %v2847 = vadd.f32 %v2586, %v2815
        %v2848 = vadd.f32 %v2587, %v2816
        %v2849 = vadd.f32 %v2588, %v2817
        %v2850 = vadd.f32 %v2589, %v2818
        %v2851 = vadd.f32 %v2590, %v2819
        %v2852 = vadd.f32 %v2591, %v2820
        %v2853 = vadd.f32 %v2592, %v2821
        %v2854 = vadd.f32 %v2593, %v2822
        %v2855 = vadd.f32 %v2594, %v2823
        %v2856 = vadd.f32 %v2595, %v2824
        %v2857 = vadd.f32 %v2596, %v2825
        %v2858 = vadd.f32 %v2597, %v2826
        %v2859 = vadd.f32 %v2598, %v2827
        %v2860 = vadd.f32 %v2599, %v2828
        %v2861 = vadd.f32 %v2600, %v2829
        %v2862 = vadd.f32 %v2601, %v2830
        %v2863 = vadd.f32 %v2602, %v2831
        %v2864 = vadd.f32 %v2603, %v2832
        %v2865 = vadd.f32 %v2604, %v2833
        %v2866 = vadd.f32 %v2605, %v2834
        %v2867 = vld [vmem:[%s2344 + $0x2] sm:$0xff]
        %v2868 = vld [vmem:[%s2344 + $0xa] sm:$0xff]
        %v2869 = vld [vmem:[%s2344 + $0x1a] sm:$0xff]
        %v2870 = vld [vmem:[%s2344 + $0x22] sm:$0xff]
        %v2871 = vld [vmem:[%s2344 + $0x32] sm:$0xff]
        %v2872 = vld [vmem:[%s2344 + $0x3a] sm:$0xff]
        %v2873 = vld [vmem:[%s2344 + $0x4a] sm:$0xff]
        %v2874 = vld [vmem:[%s2344 + $0x52] sm:$0xff]
        %v2875 = vld [vmem:[%s2344 + $0x62] sm:$0xff]
        %v2876 = vld [vmem:[%s2344 + $0x6a] sm:$0xff]
        %v2877 = vld [vmem:[%s2344 + $0x7a] sm:$0xff]
        %v2878 = vld [vmem:[%s2344 + $0x82] sm:$0xff]
        %v2879 = vld [vmem:[%s2344 + $0x92] sm:$0xff]
        %v2880 = vld [vmem:[%s2344 + $0x9a] sm:$0xff]
        %v2881 = vld [vmem:[%s2344 + $0xaa] sm:$0xff]
        %v2882 = vld [vmem:[%s2344 + $0xb2] sm:$0xff]
        %v2883 = vld [vmem:[%s2344 + $0xc2] sm:$0xff]
        %v2884 = vld [vmem:[%s2344 + $0xca] sm:$0xff]
        %v2885 = vld [vmem:[%s2344 + $0xda] sm:$0xff]
        %v2886 = vld [vmem:[%s2344 + $0xe2] sm:$0xff]
        %v2887 = vld [vmem:[%s2344 + $0xf2] sm:$0xff]
        %v2888 = vld [vmem:[%s2344 + $0xfa] sm:$0xff]
        %v2889 = vld [vmem:[%s2344 + $0x10a] sm:$0xff]
        %v2890 = vld [vmem:[%s2344 + $0x112] sm:$0xff]
        %v2891 = vld [vmem:[%s2344 + $0x122] sm:$0xff]
        %v2892 = vld [vmem:[%s2344 + $0x12a] sm:$0xff]
        %v2893 = vld [vmem:[%s2344 + $0x13a] sm:$0xff]
        %v2894 = vld [vmem:[%s2344 + $0x142] sm:$0xff]
        %v2895 = vld [vmem:[%s2344 + $0x152] sm:$0xff]
        %v2896 = vld [vmem:[%s2344 + $0x15a] sm:$0xff]
        %v2897 = vld [vmem:[%s2344 + $0x16a] sm:$0xff]
        %v2898 = vld [vmem:[%s2344 + $0x172] sm:$0xff]
        %v2899 = vld [vmem:[%s1 + $0x8] sm:$0x1]
        %2901 = vset.pattern.permute.xlu0 0
        %2902 = vperm.xlu0 %2901, %v2867
        %v2903 = vpop.permute.xlu0 %2902
        %2906 = vset.pattern.permute.xlu0 0
        %2907 = vperm.xlu0 %2906, %v2868
        %v2908 = vpop.permute.xlu0 %2907
        %2911 = vset.pattern.permute.xlu0 0
        %2912 = vperm.xlu0 %2911, %v2869
        %v2913 = vpop.permute.xlu0 %2912
        %2916 = vset.pattern.permute.xlu0 0
        %2917 = vperm.xlu0 %2916, %v2870
        %v2918 = vpop.permute.xlu0 %2917
        %2921 = vset.pattern.permute.xlu0 0
        %2922 = vperm.xlu0 %2921, %v2871
        %v2923 = vpop.permute.xlu0 %2922
        %2926 = vset.pattern.permute.xlu0 0
        %2927 = vperm.xlu0 %2926, %v2872
        %v2928 = vpop.permute.xlu0 %2927
        %2931 = vset.pattern.permute.xlu0 0
        %2932 = vperm.xlu0 %2931, %v2873
        %v2933 = vpop.permute.xlu0 %2932
        %2936 = vset.pattern.permute.xlu0 0
        %2937 = vperm.xlu0 %2936, %v2874
        %v2938 = vpop.permute.xlu0 %2937
        %2941 = vset.pattern.permute.xlu0 0
        %2942 = vperm.xlu0 %2941, %v2875
        %v2943 = vpop.permute.xlu0 %2942
        %2946 = vset.pattern.permute.xlu0 0
        %2947 = vperm.xlu0 %2946, %v2876
        %v2948 = vpop.permute.xlu0 %2947
        %2951 = vset.pattern.permute.xlu0 0
        %2952 = vperm.xlu0 %2951, %v2877
        %v2953 = vpop.permute.xlu0 %2952
        %2956 = vset.pattern.permute.xlu0 0
        %2957 = vperm.xlu0 %2956, %v2878
        %v2958 = vpop.permute.xlu0 %2957
        %2961 = vset.pattern.permute.xlu0 0
        %2962 = vperm.xlu0 %2961, %v2879
        %v2963 = vpop.permute.xlu0 %2962
        %2966 = vset.pattern.permute.xlu0 0
        %2967 = vperm.xlu0 %2966, %v2880
        %v2968 = vpop.permute.xlu0 %2967
        %2971 = vset.pattern.permute.xlu0 0
        %2972 = vperm.xlu0 %2971, %v2881
        %v2973 = vpop.permute.xlu0 %2972
        %2976 = vset.pattern.permute.xlu0 0
        %2977 = vperm.xlu0 %2976, %v2882
        %v2978 = vpop.permute.xlu0 %2977
        %2981 = vset.pattern.permute.xlu0 0
        %2982 = vperm.xlu0 %2981, %v2883
        %v2983 = vpop.permute.xlu0 %2982
        %2986 = vset.pattern.permute.xlu0 0
        %2987 = vperm.xlu0 %2986, %v2884
        %v2988 = vpop.permute.xlu0 %2987
        %2991 = vset.pattern.permute.xlu0 0
        %2992 = vperm.xlu0 %2991, %v2885
        %v2993 = vpop.permute.xlu0 %2992
        %2996 = vset.pattern.permute.xlu0 0
        %2997 = vperm.xlu0 %2996, %v2886
        %v2998 = vpop.permute.xlu0 %2997
        %3001 = vset.pattern.permute.xlu0 0
        %3002 = vperm.xlu0 %3001, %v2887
        %v3003 = vpop.permute.xlu0 %3002
        %3006 = vset.pattern.permute.xlu0 0
        %3007 = vperm.xlu0 %3006, %v2888
        %v3008 = vpop.permute.xlu0 %3007
        %3011 = vset.pattern.permute.xlu0 0
        %3012 = vperm.xlu0 %3011, %v2889
        %v3013 = vpop.permute.xlu0 %3012
        %3016 = vset.pattern.permute.xlu0 0
        %3017 = vperm.xlu0 %3016, %v2890
        %v3018 = vpop.permute.xlu0 %3017
        %3021 = vset.pattern.permute.xlu0 0
        %3022 = vperm.xlu0 %3021, %v2891
        %v3023 = vpop.permute.xlu0 %3022
        %3026 = vset.pattern.permute.xlu0 0
        %3027 = vperm.xlu0 %3026, %v2892
        %v3028 = vpop.permute.xlu0 %3027
        %3031 = vset.pattern.permute.xlu0 0
        %3032 = vperm.xlu0 %3031, %v2893
        %v3033 = vpop.permute.xlu0 %3032
        %3036 = vset.pattern.permute.xlu0 0
        %3037 = vperm.xlu0 %3036, %v2894
        %v3038 = vpop.permute.xlu0 %3037
        %3041 = vset.pattern.permute.xlu0 0
        %3042 = vperm.xlu0 %3041, %v2895
        %v3043 = vpop.permute.xlu0 %3042
        %3046 = vset.pattern.permute.xlu0 0
        %3047 = vperm.xlu0 %3046, %v2896
        %v3048 = vpop.permute.xlu0 %3047
        %3051 = vset.pattern.permute.xlu0 0
        %3052 = vperm.xlu0 %3051, %v2897
        %v3053 = vpop.permute.xlu0 %3052
        %3056 = vset.pattern.permute.xlu0 0
        %3057 = vperm.xlu0 %3056, %v2898
        %v3058 = vpop.permute.xlu0 %3057
        %v3060 = vlaneseq
        %v3061 = vshrl.u32 %v3060, 7
        %v3062 = vsub.s32 0, %v3061
        %v3063 = vrot.slane %v2899, %v3062
        %v3064 = vmul.f32 %v2903, %v3063
        %v3065 = vmul.f32 %v2908, %v3063
        %v3066 = vmul.f32 %v2913, %v3063
        %v3067 = vmul.f32 %v2918, %v3063
        %v3068 = vmul.f32 %v2923, %v3063
        %v3069 = vmul.f32 %v2928, %v3063
        %v3070 = vmul.f32 %v2933, %v3063
        %v3071 = vmul.f32 %v2938, %v3063
        %v3072 = vmul.f32 %v2943, %v3063
        %v3073 = vmul.f32 %v2948, %v3063
        %v3074 = vmul.f32 %v2953, %v3063
        %v3075 = vmul.f32 %v2958, %v3063
        %v3076 = vmul.f32 %v2963, %v3063
        %v3077 = vmul.f32 %v2968, %v3063
        %v3078 = vmul.f32 %v2973, %v3063
        %v3079 = vmul.f32 %v2978, %v3063
        %v3080 = vmul.f32 %v2983, %v3063
        %v3081 = vmul.f32 %v2988, %v3063
        %v3082 = vmul.f32 %v2993, %v3063
        %v3083 = vmul.f32 %v2998, %v3063
        %v3084 = vmul.f32 %v3003, %v3063
        %v3085 = vmul.f32 %v3008, %v3063
        %v3086 = vmul.f32 %v3013, %v3063
        %v3087 = vmul.f32 %v3018, %v3063
        %v3088 = vmul.f32 %v3023, %v3063
        %v3089 = vmul.f32 %v3028, %v3063
        %v3090 = vmul.f32 %v3033, %v3063
        %v3091 = vmul.f32 %v3038, %v3063
        %v3092 = vmul.f32 %v3043, %v3063
        %v3093 = vmul.f32 %v3048, %v3063
        %v3094 = vmul.f32 %v3053, %v3063
        %v3095 = vmul.f32 %v3058, %v3063
        %v3096 = vadd.f32 %v2835, %v3064
        %v3097 = vadd.f32 %v2836, %v3065
        %v3098 = vadd.f32 %v2837, %v3066
        %v3099 = vadd.f32 %v2838, %v3067
        %v3100 = vadd.f32 %v2839, %v3068
        %v3101 = vadd.f32 %v2840, %v3069
        %v3102 = vadd.f32 %v2841, %v3070
        %v3103 = vadd.f32 %v2842, %v3071
        %v3104 = vadd.f32 %v2843, %v3072
        %v3105 = vadd.f32 %v2844, %v3073
        %v3106 = vadd.f32 %v2845, %v3074
        %v3107 = vadd.f32 %v2846, %v3075
        %v3108 = vadd.f32 %v2847, %v3076
        %v3109 = vadd.f32 %v2848, %v3077
        %v3110 = vadd.f32 %v2849, %v3078
        %v3111 = vadd.f32 %v2850, %v3079
        %v3112 = vadd.f32 %v2851, %v3080
        %v3113 = vadd.f32 %v2852, %v3081
        %v3114 = vadd.f32 %v2853, %v3082
        %v3115 = vadd.f32 %v2854, %v3083
        %v3116 = vadd.f32 %v2855, %v3084
        %v3117 = vadd.f32 %v2856, %v3085
        %v3118 = vadd.f32 %v2857, %v3086
        %v3119 = vadd.f32 %v2858, %v3087
        %v3120 = vadd.f32 %v2859, %v3088
        %v3121 = vadd.f32 %v2860, %v3089
        %v3122 = vadd.f32 %v2861, %v3090
        %v3123 = vadd.f32 %v2862, %v3091
        %v3124 = vadd.f32 %v2863, %v3092
        %v3125 = vadd.f32 %v2864, %v3093
        %v3126 = vadd.f32 %v2865, %v3094
        %v3127 = vadd.f32 %v2866, %v3095
        %v3128 = vld [vmem:[%s2] sm:$0x1]
        %v3130 = vlaneseq
        %v3131 = vshrl.u32 %v3130, 7
        %v3132 = vsub.s32 0, %v3131
        %v3133 = vrot.slane %v3128, %v3132
        %v3135 = vmul.f32 %v3096, %v3133
        %v3136 = vmul.f32 %v3097, %v3133
        %v3137 = vmul.f32 %v3098, %v3133
        %v3138 = vmul.f32 %v3099, %v3133
        %v3139 = vmul.f32 %v3100, %v3133
        %v3140 = vmul.f32 %v3101, %v3133
        %v3141 = vmul.f32 %v3102, %v3133
        %v3142 = vmul.f32 %v3103, %v3133
        %v3143 = vmul.f32 %v3104, %v3133
        %v3144 = vmul.f32 %v3105, %v3133
        %v3145 = vmul.f32 %v3106, %v3133
        %v3146 = vmul.f32 %v3107, %v3133
        %v3147 = vmul.f32 %v3108, %v3133
        %v3148 = vmul.f32 %v3109, %v3133
        %v3149 = vmul.f32 %v3110, %v3133
        %v3150 = vmul.f32 %v3111, %v3133
        %v3151 = vmul.f32 %v3112, %v3133
        %v3152 = vmul.f32 %v3113, %v3133
        %v3153 = vmul.f32 %v3114, %v3133
        %v3154 = vmul.f32 %v3115, %v3133
        %v3155 = vmul.f32 %v3116, %v3133
        %v3156 = vmul.f32 %v3117, %v3133
        %v3157 = vmul.f32 %v3118, %v3133
        %v3158 = vmul.f32 %v3119, %v3133
        %v3159 = vmul.f32 %v3120, %v3133
        %v3160 = vmul.f32 %v3121, %v3133
        %v3161 = vmul.f32 %v3122, %v3133
        %v3162 = vmul.f32 %v3123, %v3133
        %v3163 = vmul.f32 %v3124, %v3133
        %v3164 = vmul.f32 %v3125, %v3133
        %v3165 = vmul.f32 %v3126, %v3133
        %v3166 = vmul.f32 %v3127, %v3133
        %v3167 = vld [vmem:[%s3] sm:$0x1]
        %v3169 = vlaneseq
        %v3170 = vshrl.u32 %v3169, 7
        %v3171 = vsub.s32 0, %v3170
        %v3172 = vrot.slane %v3167, %v3171
        %v3174 = vadd.f32 %v3135, %v3172
        %v3175 = vadd.f32 %v3136, %v3172
        %v3176 = vadd.f32 %v3137, %v3172
        %v3177 = vadd.f32 %v3138, %v3172
        %v3178 = vadd.f32 %v3139, %v3172
        %v3179 = vadd.f32 %v3140, %v3172
        %v3180 = vadd.f32 %v3141, %v3172
        %v3181 = vadd.f32 %v3142, %v3172
        %v3182 = vadd.f32 %v3143, %v3172
        %v3183 = vadd.f32 %v3144, %v3172
        %v3184 = vadd.f32 %v3145, %v3172
        %v3185 = vadd.f32 %v3146, %v3172
        %v3186 = vadd.f32 %v3147, %v3172
        %v3187 = vadd.f32 %v3148, %v3172
        %v3188 = vadd.f32 %v3149, %v3172
        %v3189 = vadd.f32 %v3150, %v3172
        %v3190 = vadd.f32 %v3151, %v3172
        %v3191 = vadd.f32 %v3152, %v3172
        %v3192 = vadd.f32 %v3153, %v3172
        %v3193 = vadd.f32 %v3154, %v3172
        %v3194 = vadd.f32 %v3155, %v3172
        %v3195 = vadd.f32 %v3156, %v3172
        %v3196 = vadd.f32 %v3157, %v3172
        %v3197 = vadd.f32 %v3158, %v3172
        %v3198 = vadd.f32 %v3159, %v3172
        %v3199 = vadd.f32 %v3160, %v3172
        %v3200 = vadd.f32 %v3161, %v3172
        %v3201 = vadd.f32 %v3162, %v3172
        %v3202 = vadd.f32 %v3163, %v3172
        %v3203 = vadd.f32 %v3164, %v3172
        %v3204 = vadd.f32 %v3165, %v3172
        %v3205 = vadd.f32 %v3166, %v3172
        %v3206 = vmax.f32 %v3174, 0.0
        %v3207 = vmax.f32 %v3175, 0.0
        %v3208 = vmax.f32 %v3176, 0.0
        %v3209 = vmax.f32 %v3177, 0.0
        %v3210 = vmax.f32 %v3178, 0.0
        %v3211 = vmax.f32 %v3179, 0.0
        %v3212 = vmax.f32 %v3180, 0.0
        %v3213 = vmax.f32 %v3181, 0.0
        %v3214 = vmax.f32 %v3182, 0.0
        %v3215 = vmax.f32 %v3183, 0.0
        %v3216 = vmax.f32 %v3184, 0.0
        %v3217 = vmax.f32 %v3185, 0.0
        %v3218 = vmax.f32 %v3186, 0.0
        %v3219 = vmax.f32 %v3187, 0.0
        %v3220 = vmax.f32 %v3188, 0.0
        %v3221 = vmax.f32 %v3189, 0.0
        %v3222 = vmax.f32 %v3190, 0.0
        %v3223 = vmax.f32 %v3191, 0.0
        %v3224 = vmax.f32 %v3192, 0.0
        %v3225 = vmax.f32 %v3193, 0.0
        %v3226 = vmax.f32 %v3194, 0.0
        %v3227 = vmax.f32 %v3195, 0.0
        %v3228 = vmax.f32 %v3196, 0.0
        %v3229 = vmax.f32 %v3197, 0.0
        %v3230 = vmax.f32 %v3198, 0.0
        %v3231 = vmax.f32 %v3199, 0.0
        %v3232 = vmax.f32 %v3200, 0.0
        %v3233 = vmax.f32 %v3201, 0.0
        %v3234 = vmax.f32 %v3202, 0.0
        %v3235 = vmax.f32 %v3203, 0.0
        %v3236 = vmax.f32 %v3204, 0.0
        %v3237 = vmax.f32 %v3205, 0.0
        %s3238 = scalar_lea.vmem [#allocation3], 24
        %3239 = vst.msk [vmem:[%s3238 + $0x1] sm:$0xff] %vm657, %v3206
        %3240 = vst.msk [vmem:[%s3238 + $0x9] sm:$0xff] %vm657, %v3207
        %3241 = vst.msk [vmem:[%s3238 + $0x19] sm:$0xff] %vm657, %v3208
        %3242 = vst.msk [vmem:[%s3238 + $0x21] sm:$0xff] %vm657, %v3209
        %3243 = vst.msk [vmem:[%s3238 + $0x31] sm:$0xff] %vm657, %v3210
        %3244 = vst.msk [vmem:[%s3238 + $0x39] sm:$0xff] %vm657, %v3211
        %3245 = vst.msk [vmem:[%s3238 + $0x49] sm:$0xff] %vm657, %v3212
        %3246 = vst.msk [vmem:[%s3238 + $0x51] sm:$0xff] %vm657, %v3213
        %3247 = vst.msk [vmem:[%s3238 + $0x61] sm:$0xff] %vm657, %v3214
        %3248 = vst.msk [vmem:[%s3238 + $0x69] sm:$0xff] %vm657, %v3215
        %3249 = vst.msk [vmem:[%s3238 + $0x79] sm:$0xff] %vm657, %v3216
        %3250 = vst.msk [vmem:[%s3238 + $0x81] sm:$0xff] %vm657, %v3217
        %3251 = vst.msk [vmem:[%s3238 + $0x91] sm:$0xff] %vm657, %v3218
        %3252 = vst.msk [vmem:[%s3238 + $0x99] sm:$0xff] %vm657, %v3219
        %3253 = vst.msk [vmem:[%s3238 + $0xa9] sm:$0xff] %vm657, %v3220
        %3254 = vst.msk [vmem:[%s3238 + $0xb1] sm:$0xff] %vm657, %v3221
        %3255 = vst.msk [vmem:[%s3238 + $0xc1] sm:$0xff] %vm657, %v3222
        %3256 = vst.msk [vmem:[%s3238 + $0xc9] sm:$0xff] %vm657, %v3223
        %3257 = vst.msk [vmem:[%s3238 + $0xd9] sm:$0xff] %vm657, %v3224
        %3258 = vst.msk [vmem:[%s3238 + $0xe1] sm:$0xff] %vm657, %v3225
        %3259 = vst.msk [vmem:[%s3238 + $0xf1] sm:$0xff] %vm657, %v3226
        %3260 = vst.msk [vmem:[%s3238 + $0xf9] sm:$0xff] %vm657, %v3227
        %3261 = vst.msk [vmem:[%s3238 + $0x109] sm:$0xff] %vm657, %v3228
        %3262 = vst.msk [vmem:[%s3238 + $0x111] sm:$0xff] %vm657, %v3229
        %3263 = vst.msk [vmem:[%s3238 + $0x121] sm:$0xff] %vm657, %v3230
        %3264 = vst.msk [vmem:[%s3238 + $0x129] sm:$0xff] %vm657, %v3231
        %3265 = vst.msk [vmem:[%s3238 + $0x139] sm:$0xff] %vm657, %v3232
        %3266 = vst.msk [vmem:[%s3238 + $0x141] sm:$0xff] %vm657, %v3233
        %3267 = vst.msk [vmem:[%s3238 + $0x151] sm:$0xff] %vm657, %v3234
        %3268 = vst.msk [vmem:[%s3238 + $0x159] sm:$0xff] %vm657, %v3235
        %3269 = vst.msk [vmem:[%s3238 + $0x169] sm:$0xff] %vm657, %v3236
        %3270 = vst.msk [vmem:[%s3238 + $0x171] sm:$0xff] %vm657, %v3237
        %v3271 = vld [vmem:[#allocation3] sm:$0xff]
        %v3272 = vld [vmem:[#allocation3 + $0x8] sm:$0xff]
        %v3273 = vld [vmem:[#allocation3 + $0x18] sm:$0xff]
        %v3274 = vld [vmem:[#allocation3 + $0x20] sm:$0xff]
        %v3275 = vld [vmem:[#allocation3 + $0x30] sm:$0xff]
        %v3276 = vld [vmem:[#allocation3 + $0x38] sm:$0xff]
        %v3277 = vld [vmem:[#allocation3 + $0x48] sm:$0xff]
        %v3278 = vld [vmem:[#allocation3 + $0x50] sm:$0xff]
        %v3279 = vld [vmem:[#allocation3 + $0x60] sm:$0xff]
        %v3280 = vld [vmem:[#allocation3 + $0x68] sm:$0xff]
        %v3281 = vld [vmem:[#allocation3 + $0x78] sm:$0xff]
        %v3282 = vld [vmem:[#allocation3 + $0x80] sm:$0xff]
        %v3283 = vld [vmem:[#allocation3 + $0x90] sm:$0xff]
        %v3284 = vld [vmem:[#allocation3 + $0x98] sm:$0xff]
        %v3285 = vld [vmem:[#allocation3 + $0xa8] sm:$0xff]
        %v3286 = vld [vmem:[#allocation3 + $0xb0] sm:$0xff]
        %v3287 = vld [vmem:[#allocation3 + $0xc0] sm:$0xff]
        %v3288 = vld [vmem:[#allocation3 + $0xc8] sm:$0xff]
        %v3289 = vld [vmem:[#allocation3 + $0xd8] sm:$0xff]
        %v3290 = vld [vmem:[#allocation3 + $0xe0] sm:$0xff]
        %v3291 = vld [vmem:[#allocation3 + $0xf0] sm:$0xff]
        %v3292 = vld [vmem:[#allocation3 + $0xf8] sm:$0xff]
        %v3293 = vld [vmem:[#allocation3 + $0x108] sm:$0xff]
        %v3294 = vld [vmem:[#allocation3 + $0x110] sm:$0xff]
        %v3295 = vld [vmem:[#allocation3 + $0x120] sm:$0xff]
        %v3296 = vld [vmem:[#allocation3 + $0x128] sm:$0xff]
        %v3297 = vld [vmem:[#allocation3 + $0x138] sm:$0xff]
        %v3298 = vld [vmem:[#allocation3 + $0x140] sm:$0xff]
        %v3299 = vld [vmem:[#allocation3 + $0x150] sm:$0xff]
        %v3300 = vld [vmem:[#allocation3 + $0x158] sm:$0xff]
        %v3301 = vld [vmem:[#allocation3 + $0x168] sm:$0xff]
        %v3302 = vld [vmem:[#allocation3 + $0x170] sm:$0xff]
        %v3303 = vpack.c.bf16 %v3272, %v3271
        %v3304 = vpack.c.bf16 %v3274, %v3273
        %v3305 = vpack.c.bf16 %v3276, %v3275
        %v3306 = vpack.c.bf16 %v3278, %v3277
        %v3307 = vpack.c.bf16 %v3280, %v3279
        %v3308 = vpack.c.bf16 %v3282, %v3281
        %v3309 = vpack.c.bf16 %v3284, %v3283
        %v3310 = vpack.c.bf16 %v3286, %v3285
        %v3311 = vpack.c.bf16 %v3288, %v3287
        %v3312 = vpack.c.bf16 %v3290, %v3289
        %v3313 = vpack.c.bf16 %v3292, %v3291
        %v3314 = vpack.c.bf16 %v3294, %v3293
        %v3315 = vpack.c.bf16 %v3296, %v3295
        %v3316 = vpack.c.bf16 %v3298, %v3297
        %v3317 = vpack.c.bf16 %v3300, %v3299
        %v3318 = vpack.c.bf16 %v3302, %v3301
        %3319 = vst.msk [vmem:[#allocation4] sm:$0xff] %vm657, %v3303
        %3320 = vst.msk [vmem:[#allocation4 + $0x18] sm:$0xff] %vm657, %v3304
        %3321 = vst.msk [vmem:[#allocation4 + $0x30] sm:$0xff] %vm657, %v3305
        %3322 = vst.msk [vmem:[#allocation4 + $0x48] sm:$0xff] %vm657, %v3306
        %3323 = vst.msk [vmem:[#allocation4 + $0x60] sm:$0xff] %vm657, %v3307
        %3324 = vst.msk [vmem:[#allocation4 + $0x78] sm:$0xff] %vm657, %v3308
        %3325 = vst.msk [vmem:[#allocation4 + $0x90] sm:$0xff] %vm657, %v3309
        %3326 = vst.msk [vmem:[#allocation4 + $0xa8] sm:$0xff] %vm657, %v3310
        %3327 = vst.msk [vmem:[#allocation4 + $0xc0] sm:$0xff] %vm657, %v3311
        %3328 = vst.msk [vmem:[#allocation4 + $0xd8] sm:$0xff] %vm657, %v3312
        %3329 = vst.msk [vmem:[#allocation4 + $0xf0] sm:$0xff] %vm657, %v3313
        %3330 = vst.msk [vmem:[#allocation4 + $0x108] sm:$0xff] %vm657, %v3314
        %3331 = vst.msk [vmem:[#allocation4 + $0x120] sm:$0xff] %vm657, %v3315
        %3332 = vst.msk [vmem:[#allocation4 + $0x138] sm:$0xff] %vm657, %v3316
        %3333 = vst.msk [vmem:[#allocation4 + $0x150] sm:$0xff] %vm657, %v3317
        %3334 = vst.msk [vmem:[#allocation4 + $0x168] sm:$0xff] %vm657, %v3318
        %v3335 = vld [vmem:[#allocation3 + $0x1] sm:$0xff]
        %v3336 = vld [vmem:[#allocation3 + $0x9] sm:$0xff]
        %v3337 = vld [vmem:[#allocation3 + $0x19] sm:$0xff]
        %v3338 = vld [vmem:[#allocation3 + $0x21] sm:$0xff]
        %v3339 = vld [vmem:[#allocation3 + $0x31] sm:$0xff]
        %v3340 = vld [vmem:[#allocation3 + $0x39] sm:$0xff]
        %v3341 = vld [vmem:[#allocation3 + $0x49] sm:$0xff]
        %v3342 = vld [vmem:[#allocation3 + $0x51] sm:$0xff]
        %v3343 = vld [vmem:[#allocation3 + $0x61] sm:$0xff]
        %v3344 = vld [vmem:[#allocation3 + $0x69] sm:$0xff]
        %v3345 = vld [vmem:[#allocation3 + $0x79] sm:$0xff]
        %v3346 = vld [vmem:[#allocation3 + $0x81] sm:$0xff]
        %v3347 = vld [vmem:[#allocation3 + $0x91] sm:$0xff]
        %v3348 = vld [vmem:[#allocation3 + $0x99] sm:$0xff]
        %v3349 = vld [vmem:[#allocation3 + $0xa9] sm:$0xff]
        %v3350 = vld [vmem:[#allocation3 + $0xb1] sm:$0xff]
        %v3351 = vld [vmem:[#allocation3 + $0xc1] sm:$0xff]
        %v3352 = vld [vmem:[#allocation3 + $0xc9] sm:$0xff]
        %v3353 = vld [vmem:[#allocation3 + $0xd9] sm:$0xff]
        %v3354 = vld [vmem:[#allocation3 + $0xe1] sm:$0xff]
        %v3355 = vld [vmem:[#allocation3 + $0xf1] sm:$0xff]
        %v3356 = vld [vmem:[#allocation3 + $0xf9] sm:$0xff]
        %v3357 = vld [vmem:[#allocation3 + $0x109] sm:$0xff]
        %v3358 = vld [vmem:[#allocation3 + $0x111] sm:$0xff]
        %v3359 = vld [vmem:[#allocation3 + $0x121] sm:$0xff]
        %v3360 = vld [vmem:[#allocation3 + $0x129] sm:$0xff]
        %v3361 = vld [vmem:[#allocation3 + $0x139] sm:$0xff]
        %v3362 = vld [vmem:[#allocation3 + $0x141] sm:$0xff]
        %v3363 = vld [vmem:[#allocation3 + $0x151] sm:$0xff]
        %v3364 = vld [vmem:[#allocation3 + $0x159] sm:$0xff]
        %v3365 = vld [vmem:[#allocation3 + $0x169] sm:$0xff]
        %v3366 = vld [vmem:[#allocation3 + $0x171] sm:$0xff]
        %v3367 = vpack.c.bf16 %v3336, %v3335
        %v3368 = vpack.c.bf16 %v3338, %v3337
        %v3369 = vpack.c.bf16 %v3340, %v3339
        %v3370 = vpack.c.bf16 %v3342, %v3341
        %v3371 = vpack.c.bf16 %v3344, %v3343
        %v3372 = vpack.c.bf16 %v3346, %v3345
        %v3373 = vpack.c.bf16 %v3348, %v3347
        %v3374 = vpack.c.bf16 %v3350, %v3349
        %v3375 = vpack.c.bf16 %v3352, %v3351
        %v3376 = vpack.c.bf16 %v3354, %v3353
        %v3377 = vpack.c.bf16 %v3356, %v3355
        %v3378 = vpack.c.bf16 %v3358, %v3357
        %v3379 = vpack.c.bf16 %v3360, %v3359
        %v3380 = vpack.c.bf16 %v3362, %v3361
        %v3381 = vpack.c.bf16 %v3364, %v3363
        %v3382 = vpack.c.bf16 %v3366, %v3365
        %3399 = vrot.lane.b32.xlu0 %v3367, 32
        %v3400 = vpop.permute.xlu0 %3399
        %3401 = vrot.lane.b32.xlu0 %v3368, 32
        %v3402 = vpop.permute.xlu0 %3401
        %3403 = vrot.lane.b32.xlu0 %v3369, 32
        %v3404 = vpop.permute.xlu0 %3403
        %3405 = vrot.lane.b32.xlu0 %v3370, 32
        %v3406 = vpop.permute.xlu0 %3405
        %3407 = vrot.lane.b32.xlu0 %v3371, 32
        %v3408 = vpop.permute.xlu0 %3407
        %3409 = vrot.lane.b32.xlu0 %v3372, 32
        %v3410 = vpop.permute.xlu0 %3409
        %3411 = vrot.lane.b32.xlu0 %v3373, 32
        %v3412 = vpop.permute.xlu0 %3411
        %3413 = vrot.lane.b32.xlu0 %v3374, 32
        %v3414 = vpop.permute.xlu0 %3413
        %3415 = vrot.lane.b32.xlu0 %v3375, 32
        %v3416 = vpop.permute.xlu0 %3415
        %3417 = vrot.lane.b32.xlu0 %v3376, 32
        %v3418 = vpop.permute.xlu0 %3417
        %3419 = vrot.lane.b32.xlu0 %v3377, 32
        %v3420 = vpop.permute.xlu0 %3419
        %3421 = vrot.lane.b32.xlu0 %v3378, 32
        %v3422 = vpop.permute.xlu0 %3421
        %3423 = vrot.lane.b32.xlu0 %v3379, 32
        %v3424 = vpop.permute.xlu0 %3423
        %3425 = vrot.lane.b32.xlu0 %v3380, 32
        %v3426 = vpop.permute.xlu0 %3425
        %3427 = vrot.lane.b32.xlu0 %v3381, 32
        %v3428 = vpop.permute.xlu0 %3427
        %3429 = vrot.lane.b32.xlu0 %v3382, 32
        %v3430 = vpop.permute.xlu0 %3429
        %vm3447 = vcmask 523520
        %3448 = vst.msk [vmem:[#allocation4] sm:$0xff] %vm3447, %v3400
        %3449 = vst.msk [vmem:[#allocation4 + $0x18] sm:$0xff] %vm3447, %v3402
        %3450 = vst.msk [vmem:[#allocation4 + $0x30] sm:$0xff] %vm3447, %v3404
        %3451 = vst.msk [vmem:[#allocation4 + $0x48] sm:$0xff] %vm3447, %v3406
        %3452 = vst.msk [vmem:[#allocation4 + $0x60] sm:$0xff] %vm3447, %v3408
        %3453 = vst.msk [vmem:[#allocation4 + $0x78] sm:$0xff] %vm3447, %v3410
        %3454 = vst.msk [vmem:[#allocation4 + $0x90] sm:$0xff] %vm3447, %v3412
        %3455 = vst.msk [vmem:[#allocation4 + $0xa8] sm:$0xff] %vm3447, %v3414
        %3456 = vst.msk [vmem:[#allocation4 + $0xc0] sm:$0xff] %vm3447, %v3416
        %3457 = vst.msk [vmem:[#allocation4 + $0xd8] sm:$0xff] %vm3447, %v3418
        %3458 = vst.msk [vmem:[#allocation4 + $0xf0] sm:$0xff] %vm3447, %v3420
        %3459 = vst.msk [vmem:[#allocation4 + $0x108] sm:$0xff] %vm3447, %v3422
        %3460 = vst.msk [vmem:[#allocation4 + $0x120] sm:$0xff] %vm3447, %v3424
        %3461 = vst.msk [vmem:[#allocation4 + $0x138] sm:$0xff] %vm3447, %v3426
        %3462 = vst.msk [vmem:[#allocation4 + $0x150] sm:$0xff] %vm3447, %v3428
        %3463 = vst.msk [vmem:[#allocation4 + $0x168] sm:$0xff] %vm3447, %v3430
        %v3464 = vld [vmem:[#allocation3 + $0x2] sm:$0xff]
        %v3465 = vld [vmem:[#allocation3 + $0xa] sm:$0xff]
        %v3466 = vld [vmem:[#allocation3 + $0x1a] sm:$0xff]
        %v3467 = vld [vmem:[#allocation3 + $0x22] sm:$0xff]
        %v3468 = vld [vmem:[#allocation3 + $0x32] sm:$0xff]
        %v3469 = vld [vmem:[#allocation3 + $0x3a] sm:$0xff]
        %v3470 = vld [vmem:[#allocation3 + $0x4a] sm:$0xff]
        %v3471 = vld [vmem:[#allocation3 + $0x52] sm:$0xff]
        %v3472 = vld [vmem:[#allocation3 + $0x62] sm:$0xff]
        %v3473 = vld [vmem:[#allocation3 + $0x6a] sm:$0xff]
        %v3474 = vld [vmem:[#allocation3 + $0x7a] sm:$0xff]
        %v3475 = vld [vmem:[#allocation3 + $0x82] sm:$0xff]
        %v3476 = vld [vmem:[#allocation3 + $0x92] sm:$0xff]
        %v3477 = vld [vmem:[#allocation3 + $0x9a] sm:$0xff]
        %v3478 = vld [vmem:[#allocation3 + $0xaa] sm:$0xff]
        %v3479 = vld [vmem:[#allocation3 + $0xb2] sm:$0xff]
        %v3480 = vld [vmem:[#allocation3 + $0xc2] sm:$0xff]
        %v3481 = vld [vmem:[#allocation3 + $0xca] sm:$0xff]
        %v3482 = vld [vmem:[#allocation3 + $0xda] sm:$0xff]
        %v3483 = vld [vmem:[#allocation3 + $0xe2] sm:$0xff]
        %v3484 = vld [vmem:[#allocation3 + $0xf2] sm:$0xff]
        %v3485 = vld [vmem:[#allocation3 + $0xfa] sm:$0xff]
        %v3486 = vld [vmem:[#allocation3 + $0x10a] sm:$0xff]
        %v3487 = vld [vmem:[#allocation3 + $0x112] sm:$0xff]
        %v3488 = vld [vmem:[#allocation3 + $0x122] sm:$0xff]
        %v3489 = vld [vmem:[#allocation3 + $0x12a] sm:$0xff]
        %v3490 = vld [vmem:[#allocation3 + $0x13a] sm:$0xff]
        %v3491 = vld [vmem:[#allocation3 + $0x142] sm:$0xff]
        %v3492 = vld [vmem:[#allocation3 + $0x152] sm:$0xff]
        %v3493 = vld [vmem:[#allocation3 + $0x15a] sm:$0xff]
        %v3494 = vld [vmem:[#allocation3 + $0x16a] sm:$0xff]
        %v3495 = vld [vmem:[#allocation3 + $0x172] sm:$0xff]
        %v3496 = vpack.c.bf16 %v3465, %v3464
        %v3497 = vpack.c.bf16 %v3467, %v3466
        %v3498 = vpack.c.bf16 %v3469, %v3468
        %v3499 = vpack.c.bf16 %v3471, %v3470
        %v3500 = vpack.c.bf16 %v3473, %v3472
        %v3501 = vpack.c.bf16 %v3475, %v3474
        %v3502 = vpack.c.bf16 %v3477, %v3476
        %v3503 = vpack.c.bf16 %v3479, %v3478
        %v3504 = vpack.c.bf16 %v3481, %v3480
        %v3505 = vpack.c.bf16 %v3483, %v3482
        %v3506 = vpack.c.bf16 %v3485, %v3484
        %v3507 = vpack.c.bf16 %v3487, %v3486
        %v3508 = vpack.c.bf16 %v3489, %v3488
        %v3509 = vpack.c.bf16 %v3491, %v3490
        %v3510 = vpack.c.bf16 %v3493, %v3492
        %v3511 = vpack.c.bf16 %v3495, %v3494
        %3528 = vrot.lane.b32.xlu0 %v3496, 64
        %v3529 = vpop.permute.xlu0 %3528
        %3530 = vrot.lane.b32.xlu0 %v3497, 64
        %v3531 = vpop.permute.xlu0 %3530
        %3532 = vrot.lane.b32.xlu0 %v3498, 64
        %v3533 = vpop.permute.xlu0 %3532
        %3534 = vrot.lane.b32.xlu0 %v3499, 64
        %v3535 = vpop.permute.xlu0 %3534
        %3536 = vrot.lane.b32.xlu0 %v3500, 64
        %v3537 = vpop.permute.xlu0 %3536
        %3538 = vrot.lane.b32.xlu0 %v3501, 64
        %v3539 = vpop.permute.xlu0 %3538
        %3540 = vrot.lane.b32.xlu0 %v3502, 64
        %v3541 = vpop.permute.xlu0 %3540
        %3542 = vrot.lane.b32.xlu0 %v3503, 64
        %v3543 = vpop.permute.xlu0 %3542
        %3544 = vrot.lane.b32.xlu0 %v3504, 64
        %v3545 = vpop.permute.xlu0 %3544
        %3546 = vrot.lane.b32.xlu0 %v3505, 64
        %v3547 = vpop.permute.xlu0 %3546
        %3548 = vrot.lane.b32.xlu0 %v3506, 64
        %v3549 = vpop.permute.xlu0 %3548
        %3550 = vrot.lane.b32.xlu0 %v3507, 64
        %v3551 = vpop.permute.xlu0 %3550
        %3552 = vrot.lane.b32.xlu0 %v3508, 64
        %v3553 = vpop.permute.xlu0 %3552
        %3554 = vrot.lane.b32.xlu0 %v3509, 64
        %v3555 = vpop.permute.xlu0 %3554
        %3556 = vrot.lane.b32.xlu0 %v3510, 64
        %v3557 = vpop.permute.xlu0 %3556
        %3558 = vrot.lane.b32.xlu0 %v3511, 64
        %v3559 = vpop.permute.xlu0 %3558
        %vm3576 = vcmask 785920
        %3577 = vst.msk [vmem:[#allocation4] sm:$0xff] %vm3576, %v3529
        %3578 = vst.msk [vmem:[#allocation4 + $0x18] sm:$0xff] %vm3576, %v3531
        %3579 = vst.msk [vmem:[#allocation4 + $0x30] sm:$0xff] %vm3576, %v3533
        %3580 = vst.msk [vmem:[#allocation4 + $0x48] sm:$0xff] %vm3576, %v3535
        %3581 = vst.msk [vmem:[#allocation4 + $0x60] sm:$0xff] %vm3576, %v3537
        %3582 = vst.msk [vmem:[#allocation4 + $0x78] sm:$0xff] %vm3576, %v3539
        %3583 = vst.msk [vmem:[#allocation4 + $0x90] sm:$0xff] %vm3576, %v3541
        %3584 = vst.msk [vmem:[#allocation4 + $0xa8] sm:$0xff] %vm3576, %v3543
        %3585 = vst.msk [vmem:[#allocation4 + $0xc0] sm:$0xff] %vm3576, %v3545
        %3586 = vst.msk [vmem:[#allocation4 + $0xd8] sm:$0xff] %vm3576, %v3547
        %3587 = vst.msk [vmem:[#allocation4 + $0xf0] sm:$0xff] %vm3576, %v3549
        %3588 = vst.msk [vmem:[#allocation4 + $0x108] sm:$0xff] %vm3576, %v3551
        %3589 = vst.msk [vmem:[#allocation4 + $0x120] sm:$0xff] %vm3576, %v3553
        %3590 = vst.msk [vmem:[#allocation4 + $0x138] sm:$0xff] %vm3576, %v3555
        %3591 = vst.msk [vmem:[#allocation4 + $0x150] sm:$0xff] %vm3576, %v3557
        %3592 = vst.msk [vmem:[#allocation4 + $0x168] sm:$0xff] %vm3576, %v3559
        %v3593 = vld [vmem:[%s3238] sm:$0xff]
        %v3594 = vld [vmem:[%s3238 + $0x8] sm:$0xff]
        %v3595 = vld [vmem:[%s3238 + $0x18] sm:$0xff]
        %v3596 = vld [vmem:[%s3238 + $0x20] sm:$0xff]
        %v3597 = vld [vmem:[%s3238 + $0x30] sm:$0xff]
        %v3598 = vld [vmem:[%s3238 + $0x38] sm:$0xff]
        %v3599 = vld [vmem:[%s3238 + $0x48] sm:$0xff]
        %v3600 = vld [vmem:[%s3238 + $0x50] sm:$0xff]
        %v3601 = vld [vmem:[%s3238 + $0x60] sm:$0xff]
        %v3602 = vld [vmem:[%s3238 + $0x68] sm:$0xff]
        %v3603 = vld [vmem:[%s3238 + $0x78] sm:$0xff]
        %v3604 = vld [vmem:[%s3238 + $0x80] sm:$0xff]
        %v3605 = vld [vmem:[%s3238 + $0x90] sm:$0xff]
        %v3606 = vld [vmem:[%s3238 + $0x98] sm:$0xff]
        %v3607 = vld [vmem:[%s3238 + $0xa8] sm:$0xff]
        %v3608 = vld [vmem:[%s3238 + $0xb0] sm:$0xff]
        %v3609 = vld [vmem:[%s3238 + $0xc0] sm:$0xff]
        %v3610 = vld [vmem:[%s3238 + $0xc8] sm:$0xff]
        %v3611 = vld [vmem:[%s3238 + $0xd8] sm:$0xff]
        %v3612 = vld [vmem:[%s3238 + $0xe0] sm:$0xff]
        %v3613 = vld [vmem:[%s3238 + $0xf0] sm:$0xff]
        %v3614 = vld [vmem:[%s3238 + $0xf8] sm:$0xff]
        %v3615 = vld [vmem:[%s3238 + $0x108] sm:$0xff]
        %v3616 = vld [vmem:[%s3238 + $0x110] sm:$0xff]
        %v3617 = vld [vmem:[%s3238 + $0x120] sm:$0xff]
        %v3618 = vld [vmem:[%s3238 + $0x128] sm:$0xff]
        %v3619 = vld [vmem:[%s3238 + $0x138] sm:$0xff]
        %v3620 = vld [vmem:[%s3238 + $0x140] sm:$0xff]
        %v3621 = vld [vmem:[%s3238 + $0x150] sm:$0xff]
        %v3622 = vld [vmem:[%s3238 + $0x158] sm:$0xff]
        %v3623 = vld [vmem:[%s3238 + $0x168] sm:$0xff]
        %v3624 = vld [vmem:[%s3238 + $0x170] sm:$0xff]
        %v3625 = vpack.c.bf16 %v3594, %v3593
        %v3626 = vpack.c.bf16 %v3596, %v3595
        %v3627 = vpack.c.bf16 %v3598, %v3597
        %v3628 = vpack.c.bf16 %v3600, %v3599
        %v3629 = vpack.c.bf16 %v3602, %v3601
        %v3630 = vpack.c.bf16 %v3604, %v3603
        %v3631 = vpack.c.bf16 %v3606, %v3605
        %v3632 = vpack.c.bf16 %v3608, %v3607
        %v3633 = vpack.c.bf16 %v3610, %v3609
        %v3634 = vpack.c.bf16 %v3612, %v3611
        %v3635 = vpack.c.bf16 %v3614, %v3613
        %v3636 = vpack.c.bf16 %v3616, %v3615
        %v3637 = vpack.c.bf16 %v3618, %v3617
        %v3638 = vpack.c.bf16 %v3620, %v3619
        %v3639 = vpack.c.bf16 %v3622, %v3621
        %v3640 = vpack.c.bf16 %v3624, %v3623
        %3657 = vrot.lane.b32.xlu0 %v3625, 96
        %v3658 = vpop.permute.xlu0 %3657
        %3659 = vrot.lane.b32.xlu0 %v3626, 96
        %v3660 = vpop.permute.xlu0 %3659
        %3661 = vrot.lane.b32.xlu0 %v3627, 96
        %v3662 = vpop.permute.xlu0 %3661
        %3663 = vrot.lane.b32.xlu0 %v3628, 96
        %v3664 = vpop.permute.xlu0 %3663
        %3665 = vrot.lane.b32.xlu0 %v3629, 96
        %v3666 = vpop.permute.xlu0 %3665
        %3667 = vrot.lane.b32.xlu0 %v3630, 96
        %v3668 = vpop.permute.xlu0 %3667
        %3669 = vrot.lane.b32.xlu0 %v3631, 96
        %v3670 = vpop.permute.xlu0 %3669
        %3671 = vrot.lane.b32.xlu0 %v3632, 96
        %v3672 = vpop.permute.xlu0 %3671
        %3673 = vrot.lane.b32.xlu0 %v3633, 96
        %v3674 = vpop.permute.xlu0 %3673
        %3675 = vrot.lane.b32.xlu0 %v3634, 96
        %v3676 = vpop.permute.xlu0 %3675
        %3677 = vrot.lane.b32.xlu0 %v3635, 96
        %v3678 = vpop.permute.xlu0 %3677
        %3679 = vrot.lane.b32.xlu0 %v3636, 96
        %v3680 = vpop.permute.xlu0 %3679
        %3681 = vrot.lane.b32.xlu0 %v3637, 96
        %v3682 = vpop.permute.xlu0 %3681
        %3683 = vrot.lane.b32.xlu0 %v3638, 96
        %v3684 = vpop.permute.xlu0 %3683
        %3685 = vrot.lane.b32.xlu0 %v3639, 96
        %v3686 = vpop.permute.xlu0 %3685
        %3687 = vrot.lane.b32.xlu0 %v3640, 96
        %v3688 = vpop.permute.xlu0 %3687
        %vm3705 = vcmask 1048320
        %3706 = vst.msk [vmem:[#allocation4] sm:$0xff] %vm3705, %v3658
        %3707 = vst.msk [vmem:[#allocation4 + $0x18] sm:$0xff] %vm3705, %v3660
        %3708 = vst.msk [vmem:[#allocation4 + $0x30] sm:$0xff] %vm3705, %v3662
        %3709 = vst.msk [vmem:[#allocation4 + $0x48] sm:$0xff] %vm3705, %v3664
        %3710 = vst.msk [vmem:[#allocation4 + $0x60] sm:$0xff] %vm3705, %v3666
        %3711 = vst.msk [vmem:[#allocation4 + $0x78] sm:$0xff] %vm3705, %v3668
        %3712 = vst.msk [vmem:[#allocation4 + $0x90] sm:$0xff] %vm3705, %v3670
        %3713 = vst.msk [vmem:[#allocation4 + $0xa8] sm:$0xff] %vm3705, %v3672
        %3714 = vst.msk [vmem:[#allocation4 + $0xc0] sm:$0xff] %vm3705, %v3674
        %3715 = vst.msk [vmem:[#allocation4 + $0xd8] sm:$0xff] %vm3705, %v3676
        %3716 = vst.msk [vmem:[#allocation4 + $0xf0] sm:$0xff] %vm3705, %v3678
        %3717 = vst.msk [vmem:[#allocation4 + $0x108] sm:$0xff] %vm3705, %v3680
        %3718 = vst.msk [vmem:[#allocation4 + $0x120] sm:$0xff] %vm3705, %v3682
        %3719 = vst.msk [vmem:[#allocation4 + $0x138] sm:$0xff] %vm3705, %v3684
        %3720 = vst.msk [vmem:[#allocation4 + $0x150] sm:$0xff] %vm3705, %v3686
        %3721 = vst.msk [vmem:[#allocation4 + $0x168] sm:$0xff] %vm3705, %v3688
        %v3722 = vld [vmem:[%s3238 + $0x1] sm:$0xff]
        %v3723 = vld [vmem:[%s3238 + $0x9] sm:$0xff]
        %v3724 = vld [vmem:[%s3238 + $0x19] sm:$0xff]
        %v3725 = vld [vmem:[%s3238 + $0x21] sm:$0xff]
        %v3726 = vld [vmem:[%s3238 + $0x31] sm:$0xff]
        %v3727 = vld [vmem:[%s3238 + $0x39] sm:$0xff]
        %v3728 = vld [vmem:[%s3238 + $0x49] sm:$0xff]
        %v3729 = vld [vmem:[%s3238 + $0x51] sm:$0xff]
        %v3730 = vld [vmem:[%s3238 + $0x61] sm:$0xff]
        %v3731 = vld [vmem:[%s3238 + $0x69] sm:$0xff]
        %v3732 = vld [vmem:[%s3238 + $0x79] sm:$0xff]
        %v3733 = vld [vmem:[%s3238 + $0x81] sm:$0xff]
        %v3734 = vld [vmem:[%s3238 + $0x91] sm:$0xff]
        %v3735 = vld [vmem:[%s3238 + $0x99] sm:$0xff]
        %v3736 = vld [vmem:[%s3238 + $0xa9] sm:$0xff]
        %v3737 = vld [vmem:[%s3238 + $0xb1] sm:$0xff]
        %v3738 = vld [vmem:[%s3238 + $0xc1] sm:$0xff]
        %v3739 = vld [vmem:[%s3238 + $0xc9] sm:$0xff]
        %v3740 = vld [vmem:[%s3238 + $0xd9] sm:$0xff]
        %v3741 = vld [vmem:[%s3238 + $0xe1] sm:$0xff]
        %v3742 = vld [vmem:[%s3238 + $0xf1] sm:$0xff]
        %v3743 = vld [vmem:[%s3238 + $0xf9] sm:$0xff]
        %v3744 = vld [vmem:[%s3238 + $0x109] sm:$0xff]
        %v3745 = vld [vmem:[%s3238 + $0x111] sm:$0xff]
        %v3746 = vld [vmem:[%s3238 + $0x121] sm:$0xff]
        %v3747 = vld [vmem:[%s3238 + $0x129] sm:$0xff]
        %v3748 = vld [vmem:[%s3238 + $0x139] sm:$0xff]
        %v3749 = vld [vmem:[%s3238 + $0x141] sm:$0xff]
        %v3750 = vld [vmem:[%s3238 + $0x151] sm:$0xff]
        %v3751 = vld [vmem:[%s3238 + $0x159] sm:$0xff]
        %v3752 = vld [vmem:[%s3238 + $0x169] sm:$0xff]
        %v3753 = vld [vmem:[%s3238 + $0x171] sm:$0xff]
        %v3754 = vpack.c.bf16 %v3723, %v3722
        %v3755 = vpack.c.bf16 %v3725, %v3724
        %v3756 = vpack.c.bf16 %v3727, %v3726
        %v3757 = vpack.c.bf16 %v3729, %v3728
        %v3758 = vpack.c.bf16 %v3731, %v3730
        %v3759 = vpack.c.bf16 %v3733, %v3732
        %v3760 = vpack.c.bf16 %v3735, %v3734
        %v3761 = vpack.c.bf16 %v3737, %v3736
        %v3762 = vpack.c.bf16 %v3739, %v3738
        %v3763 = vpack.c.bf16 %v3741, %v3740
        %v3764 = vpack.c.bf16 %v3743, %v3742
        %v3765 = vpack.c.bf16 %v3745, %v3744
        %v3766 = vpack.c.bf16 %v3747, %v3746
        %v3767 = vpack.c.bf16 %v3749, %v3748
        %v3768 = vpack.c.bf16 %v3751, %v3750
        %v3769 = vpack.c.bf16 %v3753, %v3752
        %3770 = vst.msk [vmem:[#allocation4 + $0x8] sm:$0xff] %vm657, %v3754
        %3771 = vst.msk [vmem:[#allocation4 + $0x20] sm:$0xff] %vm657, %v3755
        %3772 = vst.msk [vmem:[#allocation4 + $0x38] sm:$0xff] %vm657, %v3756
        %3773 = vst.msk [vmem:[#allocation4 + $0x50] sm:$0xff] %vm657, %v3757
        %3774 = vst.msk [vmem:[#allocation4 + $0x68] sm:$0xff] %vm657, %v3758
        %3775 = vst.msk [vmem:[#allocation4 + $0x80] sm:$0xff] %vm657, %v3759
        %3776 = vst.msk [vmem:[#allocation4 + $0x98] sm:$0xff] %vm657, %v3760
        %3777 = vst.msk [vmem:[#allocation4 + $0xb0] sm:$0xff] %vm657, %v3761
        %3778 = vst.msk [vmem:[#allocation4 + $0xc8] sm:$0xff] %vm657, %v3762
        %3779 = vst.msk [vmem:[#allocation4 + $0xe0] sm:$0xff] %vm657, %v3763
        %3780 = vst.msk [vmem:[#allocation4 + $0xf8] sm:$0xff] %vm657, %v3764
        %3781 = vst.msk [vmem:[#allocation4 + $0x110] sm:$0xff] %vm657, %v3765
        %3782 = vst.msk [vmem:[#allocation4 + $0x128] sm:$0xff] %vm657, %v3766
        %3783 = vst.msk [vmem:[#allocation4 + $0x140] sm:$0xff] %vm657, %v3767
        %3784 = vst.msk [vmem:[#allocation4 + $0x158] sm:$0xff] %vm657, %v3768
        %3785 = vst.msk [vmem:[#allocation4 + $0x170] sm:$0xff] %vm657, %v3769
        %v3786 = vld [vmem:[%s3238 + $0x2] sm:$0xff]
        %v3787 = vld [vmem:[%s3238 + $0xa] sm:$0xff]
        %v3788 = vld [vmem:[%s3238 + $0x1a] sm:$0xff]
        %v3789 = vld [vmem:[%s3238 + $0x22] sm:$0xff]
        %v3790 = vld [vmem:[%s3238 + $0x32] sm:$0xff]
        %v3791 = vld [vmem:[%s3238 + $0x3a] sm:$0xff]
        %v3792 = vld [vmem:[%s3238 + $0x4a] sm:$0xff]
        %v3793 = vld [vmem:[%s3238 + $0x52] sm:$0xff]
        %v3794 = vld [vmem:[%s3238 + $0x62] sm:$0xff]
        %v3795 = vld [vmem:[%s3238 + $0x6a] sm:$0xff]
        %v3796 = vld [vmem:[%s3238 + $0x7a] sm:$0xff]
        %v3797 = vld [vmem:[%s3238 + $0x82] sm:$0xff]
        %v3798 = vld [vmem:[%s3238 + $0x92] sm:$0xff]
        %v3799 = vld [vmem:[%s3238 + $0x9a] sm:$0xff]
        %v3800 = vld [vmem:[%s3238 + $0xaa] sm:$0xff]
        %v3801 = vld [vmem:[%s3238 + $0xb2] sm:$0xff]
        %v3802 = vld [vmem:[%s3238 + $0xc2] sm:$0xff]
        %v3803 = vld [vmem:[%s3238 + $0xca] sm:$0xff]
        %v3804 = vld [vmem:[%s3238 + $0xda] sm:$0xff]
        %v3805 = vld [vmem:[%s3238 + $0xe2] sm:$0xff]
        %v3806 = vld [vmem:[%s3238 + $0xf2] sm:$0xff]
        %v3807 = vld [vmem:[%s3238 + $0xfa] sm:$0xff]
        %v3808 = vld [vmem:[%s3238 + $0x10a] sm:$0xff]
        %v3809 = vld [vmem:[%s3238 + $0x112] sm:$0xff]
        %v3810 = vld [vmem:[%s3238 + $0x122] sm:$0xff]
        %v3811 = vld [vmem:[%s3238 + $0x12a] sm:$0xff]
        %v3812 = vld [vmem:[%s3238 + $0x13a] sm:$0xff]
        %v3813 = vld [vmem:[%s3238 + $0x142] sm:$0xff]
        %v3814 = vld [vmem:[%s3238 + $0x152] sm:$0xff]
        %v3815 = vld [vmem:[%s3238 + $0x15a] sm:$0xff]
        %v3816 = vld [vmem:[%s3238 + $0x16a] sm:$0xff]
        %v3817 = vld [vmem:[%s3238 + $0x172] sm:$0xff]
        %v3818 = vpack.c.bf16 %v3787, %v3786
        %v3819 = vpack.c.bf16 %v3789, %v3788
        %v3820 = vpack.c.bf16 %v3791, %v3790
        %v3821 = vpack.c.bf16 %v3793, %v3792
        %v3822 = vpack.c.bf16 %v3795, %v3794
        %v3823 = vpack.c.bf16 %v3797, %v3796
        %v3824 = vpack.c.bf16 %v3799, %v3798
        %v3825 = vpack.c.bf16 %v3801, %v3800
        %v3826 = vpack.c.bf16 %v3803, %v3802
        %v3827 = vpack.c.bf16 %v3805, %v3804
        %v3828 = vpack.c.bf16 %v3807, %v3806
        %v3829 = vpack.c.bf16 %v3809, %v3808
        %v3830 = vpack.c.bf16 %v3811, %v3810
        %v3831 = vpack.c.bf16 %v3813, %v3812
        %v3832 = vpack.c.bf16 %v3815, %v3814
        %v3833 = vpack.c.bf16 %v3817, %v3816
        %3850 = vrot.lane.b32.xlu0 %v3818, 32
        %v3851 = vpop.permute.xlu0 %3850
        %3852 = vrot.lane.b32.xlu0 %v3819, 32
        %v3853 = vpop.permute.xlu0 %3852
        %3854 = vrot.lane.b32.xlu0 %v3820, 32
        %v3855 = vpop.permute.xlu0 %3854
        %3856 = vrot.lane.b32.xlu0 %v3821, 32
        %v3857 = vpop.permute.xlu0 %3856
        %3858 = vrot.lane.b32.xlu0 %v3822, 32
        %v3859 = vpop.permute.xlu0 %3858
        %3860 = vrot.lane.b32.xlu0 %v3823, 32
        %v3861 = vpop.permute.xlu0 %3860
        %3862 = vrot.lane.b32.xlu0 %v3824, 32
        %v3863 = vpop.permute.xlu0 %3862
        %3864 = vrot.lane.b32.xlu0 %v3825, 32
        %v3865 = vpop.permute.xlu0 %3864
        %3866 = vrot.lane.b32.xlu0 %v3826, 32
        %v3867 = vpop.permute.xlu0 %3866
        %3868 = vrot.lane.b32.xlu0 %v3827, 32
        %v3869 = vpop.permute.xlu0 %3868
        %3870 = vrot.lane.b32.xlu0 %v3828, 32
        %v3871 = vpop.permute.xlu0 %3870
        %3872 = vrot.lane.b32.xlu0 %v3829, 32
        %v3873 = vpop.permute.xlu0 %3872
        %3874 = vrot.lane.b32.xlu0 %v3830, 32
        %v3875 = vpop.permute.xlu0 %3874
        %3876 = vrot.lane.b32.xlu0 %v3831, 32
        %v3877 = vpop.permute.xlu0 %3876
        %3878 = vrot.lane.b32.xlu0 %v3832, 32
        %v3879 = vpop.permute.xlu0 %3878
        %3880 = vrot.lane.b32.xlu0 %v3833, 32
        %v3881 = vpop.permute.xlu0 %3880
        %3898 = vst.msk [vmem:[#allocation4 + $0x8] sm:$0xff] %vm3447, %v3851
        %3899 = vst.msk [vmem:[#allocation4 + $0x20] sm:$0xff] %vm3447, %v3853
        %3900 = vst.msk [vmem:[#allocation4 + $0x38] sm:$0xff] %vm3447, %v3855
        %3901 = vst.msk [vmem:[#allocation4 + $0x50] sm:$0xff] %vm3447, %v3857
        %3902 = vst.msk [vmem:[#allocation4 + $0x68] sm:$0xff] %vm3447, %v3859
        %3903 = vst.msk [vmem:[#allocation4 + $0x80] sm:$0xff] %vm3447, %v3861
        %3904 = vst.msk [vmem:[#allocation4 + $0x98] sm:$0xff] %vm3447, %v3863
        %3905 = vst.msk [vmem:[#allocation4 + $0xb0] sm:$0xff] %vm3447, %v3865
        %3906 = vst.msk [vmem:[#allocation4 + $0xc8] sm:$0xff] %vm3447, %v3867
        %3907 = vst.msk [vmem:[#allocation4 + $0xe0] sm:$0xff] %vm3447, %v3869
        %3908 = vst.msk [vmem:[#allocation4 + $0xf8] sm:$0xff] %vm3447, %v3871
        %3909 = vst.msk [vmem:[#allocation4 + $0x110] sm:$0xff] %vm3447, %v3873
        %3910 = vst.msk [vmem:[#allocation4 + $0x128] sm:$0xff] %vm3447, %v3875
        %3911 = vst.msk [vmem:[#allocation4 + $0x140] sm:$0xff] %vm3447, %v3877
        %3912 = vst.msk [vmem:[#allocation4 + $0x158] sm:$0xff] %vm3447, %v3879
        %3913 = vst.msk [vmem:[#allocation4 + $0x170] sm:$0xff] %vm3447, %v3881
        %s3914 = scalar_lea.vmem [#allocation3], 48
        %v3915 = vld [vmem:[%s3914] sm:$0xff]
        %v3916 = vld [vmem:[%s3914 + $0x8] sm:$0xff]
        %v3917 = vld [vmem:[%s3914 + $0x18] sm:$0xff]
        %v3918 = vld [vmem:[%s3914 + $0x20] sm:$0xff]
        %v3919 = vld [vmem:[%s3914 + $0x30] sm:$0xff]
        %v3920 = vld [vmem:[%s3914 + $0x38] sm:$0xff]
        %v3921 = vld [vmem:[%s3914 + $0x48] sm:$0xff]
        %v3922 = vld [vmem:[%s3914 + $0x50] sm:$0xff]
        %v3923 = vld [vmem:[%s3914 + $0x60] sm:$0xff]
        %v3924 = vld [vmem:[%s3914 + $0x68] sm:$0xff]
        %v3925 = vld [vmem:[%s3914 + $0x78] sm:$0xff]
        %v3926 = vld [vmem:[%s3914 + $0x80] sm:$0xff]
        %v3927 = vld [vmem:[%s3914 + $0x90] sm:$0xff]
        %v3928 = vld [vmem:[%s3914 + $0x98] sm:$0xff]
        %v3929 = vld [vmem:[%s3914 + $0xa8] sm:$0xff]
        %v3930 = vld [vmem:[%s3914 + $0xb0] sm:$0xff]
        %v3931 = vld [vmem:[%s3914 + $0xc0] sm:$0xff]
        %v3932 = vld [vmem:[%s3914 + $0xc8] sm:$0xff]
        %v3933 = vld [vmem:[%s3914 + $0xd8] sm:$0xff]
        %v3934 = vld [vmem:[%s3914 + $0xe0] sm:$0xff]
        %v3935 = vld [vmem:[%s3914 + $0xf0] sm:$0xff]
        %v3936 = vld [vmem:[%s3914 + $0xf8] sm:$0xff]
        %v3937 = vld [vmem:[%s3914 + $0x108] sm:$0xff]
        %v3938 = vld [vmem:[%s3914 + $0x110] sm:$0xff]
        %v3939 = vld [vmem:[%s3914 + $0x120] sm:$0xff]
        %v3940 = vld [vmem:[%s3914 + $0x128] sm:$0xff]
        %v3941 = vld [vmem:[%s3914 + $0x138] sm:$0xff]
        %v3942 = vld [vmem:[%s3914 + $0x140] sm:$0xff]
        %v3943 = vld [vmem:[%s3914 + $0x150] sm:$0xff]
        %v3944 = vld [vmem:[%s3914 + $0x158] sm:$0xff]
        %v3945 = vld [vmem:[%s3914 + $0x168] sm:$0xff]
        %v3946 = vld [vmem:[%s3914 + $0x170] sm:$0xff]
        %v3947 = vpack.c.bf16 %v3916, %v3915
        %v3948 = vpack.c.bf16 %v3918, %v3917
        %v3949 = vpack.c.bf16 %v3920, %v3919
        %v3950 = vpack.c.bf16 %v3922, %v3921
        %v3951 = vpack.c.bf16 %v3924, %v3923
        %v3952 = vpack.c.bf16 %v3926, %v3925
        %v3953 = vpack.c.bf16 %v3928, %v3927
        %v3954 = vpack.c.bf16 %v3930, %v3929
        %v3955 = vpack.c.bf16 %v3932, %v3931
        %v3956 = vpack.c.bf16 %v3934, %v3933
        %v3957 = vpack.c.bf16 %v3936, %v3935
        %v3958 = vpack.c.bf16 %v3938, %v3937
        %v3959 = vpack.c.bf16 %v3940, %v3939
        %v3960 = vpack.c.bf16 %v3942, %v3941
        %v3961 = vpack.c.bf16 %v3944, %v3943
        %v3962 = vpack.c.bf16 %v3946, %v3945
        %3979 = vrot.lane.b32.xlu0 %v3947, 64
        %v3980 = vpop.permute.xlu0 %3979
        %3981 = vrot.lane.b32.xlu0 %v3948, 64
        %v3982 = vpop.permute.xlu0 %3981
        %3983 = vrot.lane.b32.xlu0 %v3949, 64
        %v3984 = vpop.permute.xlu0 %3983
        %3985 = vrot.lane.b32.xlu0 %v3950, 64
        %v3986 = vpop.permute.xlu0 %3985
        %3987 = vrot.lane.b32.xlu0 %v3951, 64
        %v3988 = vpop.permute.xlu0 %3987
        %3989 = vrot.lane.b32.xlu0 %v3952, 64
        %v3990 = vpop.permute.xlu0 %3989
        %3991 = vrot.lane.b32.xlu0 %v3953, 64
        %v3992 = vpop.permute.xlu0 %3991
        %3993 = vrot.lane.b32.xlu0 %v3954, 64
        %v3994 = vpop.permute.xlu0 %3993
        %3995 = vrot.lane.b32.xlu0 %v3955, 64
        %v3996 = vpop.permute.xlu0 %3995
        %3997 = vrot.lane.b32.xlu0 %v3956, 64
        %v3998 = vpop.permute.xlu0 %3997
        %3999 = vrot.lane.b32.xlu0 %v3957, 64
        %v4000 = vpop.permute.xlu0 %3999
        %4001 = vrot.lane.b32.xlu0 %v3958, 64
        %v4002 = vpop.permute.xlu0 %4001
        %4003 = vrot.lane.b32.xlu0 %v3959, 64
        %v4004 = vpop.permute.xlu0 %4003
        %4005 = vrot.lane.b32.xlu0 %v3960, 64
        %v4006 = vpop.permute.xlu0 %4005
        %4007 = vrot.lane.b32.xlu0 %v3961, 64
        %v4008 = vpop.permute.xlu0 %4007
        %4009 = vrot.lane.b32.xlu0 %v3962, 64
        %v4010 = vpop.permute.xlu0 %4009
        %4027 = vst.msk [vmem:[#allocation4 + $0x8] sm:$0xff] %vm3576, %v3980
        %4028 = vst.msk [vmem:[#allocation4 + $0x20] sm:$0xff] %vm3576, %v3982
        %4029 = vst.msk [vmem:[#allocation4 + $0x38] sm:$0xff] %vm3576, %v3984
        %4030 = vst.msk [vmem:[#allocation4 + $0x50] sm:$0xff] %vm3576, %v3986
        %4031 = vst.msk [vmem:[#allocation4 + $0x68] sm:$0xff] %vm3576, %v3988
        %4032 = vst.msk [vmem:[#allocation4 + $0x80] sm:$0xff] %vm3576, %v3990
        %4033 = vst.msk [vmem:[#allocation4 + $0x98] sm:$0xff] %vm3576, %v3992
        %4034 = vst.msk [vmem:[#allocation4 + $0xb0] sm:$0xff] %vm3576, %v3994
        %4035 = vst.msk [vmem:[#allocation4 + $0xc8] sm:$0xff] %vm3576, %v3996
        %4036 = vst.msk [vmem:[#allocation4 + $0xe0] sm:$0xff] %vm3576, %v3998
        %4037 = vst.msk [vmem:[#allocation4 + $0xf8] sm:$0xff] %vm3576, %v4000
        %4038 = vst.msk [vmem:[#allocation4 + $0x110] sm:$0xff] %vm3576, %v4002
        %4039 = vst.msk [vmem:[#allocation4 + $0x128] sm:$0xff] %vm3576, %v4004
        %4040 = vst.msk [vmem:[#allocation4 + $0x140] sm:$0xff] %vm3576, %v4006
        %4041 = vst.msk [vmem:[#allocation4 + $0x158] sm:$0xff] %vm3576, %v4008
        %4042 = vst.msk [vmem:[#allocation4 + $0x170] sm:$0xff] %vm3576, %v4010
        %v4043 = vld [vmem:[%s3914 + $0x1] sm:$0xff]
        %v4044 = vld [vmem:[%s3914 + $0x9] sm:$0xff]
        %v4045 = vld [vmem:[%s3914 + $0x19] sm:$0xff]
        %v4046 = vld [vmem:[%s3914 + $0x21] sm:$0xff]
        %v4047 = vld [vmem:[%s3914 + $0x31] sm:$0xff]
        %v4048 = vld [vmem:[%s3914 + $0x39] sm:$0xff]
        %v4049 = vld [vmem:[%s3914 + $0x49] sm:$0xff]
        %v4050 = vld [vmem:[%s3914 + $0x51] sm:$0xff]
        %v4051 = vld [vmem:[%s3914 + $0x61] sm:$0xff]
        %v4052 = vld [vmem:[%s3914 + $0x69] sm:$0xff]
        %v4053 = vld [vmem:[%s3914 + $0x79] sm:$0xff]
        %v4054 = vld [vmem:[%s3914 + $0x81] sm:$0xff]
        %v4055 = vld [vmem:[%s3914 + $0x91] sm:$0xff]
        %v4056 = vld [vmem:[%s3914 + $0x99] sm:$0xff]
        %v4057 = vld [vmem:[%s3914 + $0xa9] sm:$0xff]
        %v4058 = vld [vmem:[%s3914 + $0xb1] sm:$0xff]
        %v4059 = vld [vmem:[%s3914 + $0xc1] sm:$0xff]
        %v4060 = vld [vmem:[%s3914 + $0xc9] sm:$0xff]
        %v4061 = vld [vmem:[%s3914 + $0xd9] sm:$0xff]
        %v4062 = vld [vmem:[%s3914 + $0xe1] sm:$0xff]
        %v4063 = vld [vmem:[%s3914 + $0xf1] sm:$0xff]
        %v4064 = vld [vmem:[%s3914 + $0xf9] sm:$0xff]
        %v4065 = vld [vmem:[%s3914 + $0x109] sm:$0xff]
        %v4066 = vld [vmem:[%s3914 + $0x111] sm:$0xff]
        %v4067 = vld [vmem:[%s3914 + $0x121] sm:$0xff]
        %v4068 = vld [vmem:[%s3914 + $0x129] sm:$0xff]
        %v4069 = vld [vmem:[%s3914 + $0x139] sm:$0xff]
        %v4070 = vld [vmem:[%s3914 + $0x141] sm:$0xff]
        %v4071 = vld [vmem:[%s3914 + $0x151] sm:$0xff]
        %v4072 = vld [vmem:[%s3914 + $0x159] sm:$0xff]
        %v4073 = vld [vmem:[%s3914 + $0x169] sm:$0xff]
        %v4074 = vld [vmem:[%s3914 + $0x171] sm:$0xff]
        %v4075 = vpack.c.bf16 %v4044, %v4043
        %v4076 = vpack.c.bf16 %v4046, %v4045
        %v4077 = vpack.c.bf16 %v4048, %v4047
        %v4078 = vpack.c.bf16 %v4050, %v4049
        %v4079 = vpack.c.bf16 %v4052, %v4051
        %v4080 = vpack.c.bf16 %v4054, %v4053
        %v4081 = vpack.c.bf16 %v4056, %v4055
        %v4082 = vpack.c.bf16 %v4058, %v4057
        %v4083 = vpack.c.bf16 %v4060, %v4059
        %v4084 = vpack.c.bf16 %v4062, %v4061
        %v4085 = vpack.c.bf16 %v4064, %v4063
        %v4086 = vpack.c.bf16 %v4066, %v4065
        %v4087 = vpack.c.bf16 %v4068, %v4067
        %v4088 = vpack.c.bf16 %v4070, %v4069
        %v4089 = vpack.c.bf16 %v4072, %v4071
        %v4090 = vpack.c.bf16 %v4074, %v4073
        %4107 = vrot.lane.b32.xlu0 %v4075, 96
        %v4108 = vpop.permute.xlu0 %4107
        %4109 = vrot.lane.b32.xlu0 %v4076, 96
        %v4110 = vpop.permute.xlu0 %4109
        %4111 = vrot.lane.b32.xlu0 %v4077, 96
        %v4112 = vpop.permute.xlu0 %4111
        %4113 = vrot.lane.b32.xlu0 %v4078, 96
        %v4114 = vpop.permute.xlu0 %4113
        %4115 = vrot.lane.b32.xlu0 %v4079, 96
        %v4116 = vpop.permute.xlu0 %4115
        %4117 = vrot.lane.b32.xlu0 %v4080, 96
        %v4118 = vpop.permute.xlu0 %4117
        %4119 = vrot.lane.b32.xlu0 %v4081, 96
        %v4120 = vpop.permute.xlu0 %4119
        %4121 = vrot.lane.b32.xlu0 %v4082, 96
        %v4122 = vpop.permute.xlu0 %4121
        %4123 = vrot.lane.b32.xlu0 %v4083, 96
        %v4124 = vpop.permute.xlu0 %4123
        %4125 = vrot.lane.b32.xlu0 %v4084, 96
        %v4126 = vpop.permute.xlu0 %4125
        %4127 = vrot.lane.b32.xlu0 %v4085, 96
        %v4128 = vpop.permute.xlu0 %4127
        %4129 = vrot.lane.b32.xlu0 %v4086, 96
        %v4130 = vpop.permute.xlu0 %4129
        %4131 = vrot.lane.b32.xlu0 %v4087, 96
        %v4132 = vpop.permute.xlu0 %4131
        %4133 = vrot.lane.b32.xlu0 %v4088, 96
        %v4134 = vpop.permute.xlu0 %4133
        %4135 = vrot.lane.b32.xlu0 %v4089, 96
        %v4136 = vpop.permute.xlu0 %4135
        %4137 = vrot.lane.b32.xlu0 %v4090, 96
        %v4138 = vpop.permute.xlu0 %4137
        %4155 = vst.msk [vmem:[#allocation4 + $0x8] sm:$0xff] %vm3705, %v4108
        %4156 = vst.msk [vmem:[#allocation4 + $0x20] sm:$0xff] %vm3705, %v4110
        %4157 = vst.msk [vmem:[#allocation4 + $0x38] sm:$0xff] %vm3705, %v4112
        %4158 = vst.msk [vmem:[#allocation4 + $0x50] sm:$0xff] %vm3705, %v4114
        %4159 = vst.msk [vmem:[#allocation4 + $0x68] sm:$0xff] %vm3705, %v4116
        %4160 = vst.msk [vmem:[#allocation4 + $0x80] sm:$0xff] %vm3705, %v4118
        %4161 = vst.msk [vmem:[#allocation4 + $0x98] sm:$0xff] %vm3705, %v4120
        %4162 = vst.msk [vmem:[#allocation4 + $0xb0] sm:$0xff] %vm3705, %v4122
        %4163 = vst.msk [vmem:[#allocation4 + $0xc8] sm:$0xff] %vm3705, %v4124
        %4164 = vst.msk [vmem:[#allocation4 + $0xe0] sm:$0xff] %vm3705, %v4126
        %4165 = vst.msk [vmem:[#allocation4 + $0xf8] sm:$0xff] %vm3705, %v4128
        %4166 = vst.msk [vmem:[#allocation4 + $0x110] sm:$0xff] %vm3705, %v4130
        %4167 = vst.msk [vmem:[#allocation4 + $0x128] sm:$0xff] %vm3705, %v4132
        %4168 = vst.msk [vmem:[#allocation4 + $0x140] sm:$0xff] %vm3705, %v4134
        %4169 = vst.msk [vmem:[#allocation4 + $0x158] sm:$0xff] %vm3705, %v4136
        %4170 = vst.msk [vmem:[#allocation4 + $0x170] sm:$0xff] %vm3705, %v4138
        %v4171 = vld [vmem:[%s3914 + $0x2] sm:$0xff]
        %v4172 = vld [vmem:[%s3914 + $0xa] sm:$0xff]
        %v4173 = vld [vmem:[%s3914 + $0x1a] sm:$0xff]
        %v4174 = vld [vmem:[%s3914 + $0x22] sm:$0xff]
        %v4175 = vld [vmem:[%s3914 + $0x32] sm:$0xff]
        %v4176 = vld [vmem:[%s3914 + $0x3a] sm:$0xff]
        %v4177 = vld [vmem:[%s3914 + $0x4a] sm:$0xff]
        %v4178 = vld [vmem:[%s3914 + $0x52] sm:$0xff]
        %v4179 = vld [vmem:[%s3914 + $0x62] sm:$0xff]
        %v4180 = vld [vmem:[%s3914 + $0x6a] sm:$0xff]
        %v4181 = vld [vmem:[%s3914 + $0x7a] sm:$0xff]
        %v4182 = vld [vmem:[%s3914 + $0x82] sm:$0xff]
        %v4183 = vld [vmem:[%s3914 + $0x92] sm:$0xff]
        %v4184 = vld [vmem:[%s3914 + $0x9a] sm:$0xff]
        %v4185 = vld [vmem:[%s3914 + $0xaa] sm:$0xff]
        %v4186 = vld [vmem:[%s3914 + $0xb2] sm:$0xff]
        %v4187 = vld [vmem:[%s3914 + $0xc2] sm:$0xff]
        %v4188 = vld [vmem:[%s3914 + $0xca] sm:$0xff]
        %v4189 = vld [vmem:[%s3914 + $0xda] sm:$0xff]
        %v4190 = vld [vmem:[%s3914 + $0xe2] sm:$0xff]
        %v4191 = vld [vmem:[%s3914 + $0xf2] sm:$0xff]
        %v4192 = vld [vmem:[%s3914 + $0xfa] sm:$0xff]
        %v4193 = vld [vmem:[%s3914 + $0x10a] sm:$0xff]
        %v4194 = vld [vmem:[%s3914 + $0x112] sm:$0xff]
        %v4195 = vld [vmem:[%s3914 + $0x122] sm:$0xff]
        %v4196 = vld [vmem:[%s3914 + $0x12a] sm:$0xff]
        %v4197 = vld [vmem:[%s3914 + $0x13a] sm:$0xff]
        %v4198 = vld [vmem:[%s3914 + $0x142] sm:$0xff]
        %v4199 = vld [vmem:[%s3914 + $0x152] sm:$0xff]
        %v4200 = vld [vmem:[%s3914 + $0x15a] sm:$0xff]
        %v4201 = vld [vmem:[%s3914 + $0x16a] sm:$0xff]
        %v4202 = vld [vmem:[%s3914 + $0x172] sm:$0xff]
        %v4203 = vpack.c.bf16 %v4172, %v4171
        %v4204 = vpack.c.bf16 %v4174, %v4173
        %v4205 = vpack.c.bf16 %v4176, %v4175
        %v4206 = vpack.c.bf16 %v4178, %v4177
        %v4207 = vpack.c.bf16 %v4180, %v4179
        %v4208 = vpack.c.bf16 %v4182, %v4181
        %v4209 = vpack.c.bf16 %v4184, %v4183
        %v4210 = vpack.c.bf16 %v4186, %v4185
        %v4211 = vpack.c.bf16 %v4188, %v4187
        %v4212 = vpack.c.bf16 %v4190, %v4189
        %v4213 = vpack.c.bf16 %v4192, %v4191
        %v4214 = vpack.c.bf16 %v4194, %v4193
        %v4215 = vpack.c.bf16 %v4196, %v4195
        %v4216 = vpack.c.bf16 %v4198, %v4197
        %v4217 = vpack.c.bf16 %v4200, %v4199
        %v4218 = vpack.c.bf16 %v4202, %v4201
        %4219 = vst.msk [vmem:[#allocation4 + $0x10] sm:$0xff] %vm657, %v4203
        %4220 = vst.msk [vmem:[#allocation4 + $0x28] sm:$0xff] %vm657, %v4204
        %4221 = vst.msk [vmem:[#allocation4 + $0x40] sm:$0xff] %vm657, %v4205
        %4222 = vst.msk [vmem:[#allocation4 + $0x58] sm:$0xff] %vm657, %v4206
        %4223 = vst.msk [vmem:[#allocation4 + $0x70] sm:$0xff] %vm657, %v4207
        %4224 = vst.msk [vmem:[#allocation4 + $0x88] sm:$0xff] %vm657, %v4208
        %4225 = vst.msk [vmem:[#allocation4 + $0xa0] sm:$0xff] %vm657, %v4209
        %4226 = vst.msk [vmem:[#allocation4 + $0xb8] sm:$0xff] %vm657, %v4210
        %4227 = vst.msk [vmem:[#allocation4 + $0xd0] sm:$0xff] %vm657, %v4211
        %4228 = vst.msk [vmem:[#allocation4 + $0xe8] sm:$0xff] %vm657, %v4212
        %4229 = vst.msk [vmem:[#allocation4 + $0x100] sm:$0xff] %vm657, %v4213
        %4230 = vst.msk [vmem:[#allocation4 + $0x118] sm:$0xff] %vm657, %v4214
        %4231 = vst.msk [vmem:[#allocation4 + $0x130] sm:$0xff] %vm657, %v4215
        %4232 = vst.msk [vmem:[#allocation4 + $0x148] sm:$0xff] %vm657, %v4216
        %4233 = vst.msk [vmem:[#allocation4 + $0x160] sm:$0xff] %vm657, %v4217
        %4234 = vst.msk [vmem:[#allocation4 + $0x178] sm:$0xff] %vm657, %v4218
        %v4235 = vld [vmem:[#allocation4] sm:$0xff]
        %v4236 = vld [vmem:[#allocation4 + $0x8] sm:$0xff]
        %v4237 = vld [vmem:[#allocation4 + $0x10] sm:$0xff]
        %v4238 = vld [vmem:[#allocation4 + $0x18] sm:$0xff]
        %v4239 = vld [vmem:[#allocation4 + $0x20] sm:$0xff]
        %v4240 = vld [vmem:[#allocation4 + $0x28] sm:$0xff]
        %v4241 = vld [vmem:[#allocation4 + $0x30] sm:$0xff]
        %v4242 = vld [vmem:[#allocation4 + $0x38] sm:$0xff]
        %v4243 = vld [vmem:[#allocation4 + $0x40] sm:$0xff]
        %v4244 = vld [vmem:[#allocation4 + $0x48] sm:$0xff]
        %v4245 = vld [vmem:[#allocation4 + $0x50] sm:$0xff]
        %v4246 = vld [vmem:[#allocation4 + $0x58] sm:$0xff]
        %v4247 = vld [vmem:[#allocation4 + $0x60] sm:$0xff]
        %v4248 = vld [vmem:[#allocation4 + $0x68] sm:$0xff]
        %v4249 = vld [vmem:[#allocation4 + $0x70] sm:$0xff]
        %v4250 = vld [vmem:[#allocation4 + $0x78] sm:$0xff]
        %v4251 = vld [vmem:[#allocation4 + $0x80] sm:$0xff]
        %v4252 = vld [vmem:[#allocation4 + $0x88] sm:$0xff]
        %v4253 = vld [vmem:[#allocation4 + $0x90] sm:$0xff]
        %v4254 = vld [vmem:[#allocation4 + $0x98] sm:$0xff]
        %v4255 = vld [vmem:[#allocation4 + $0xa0] sm:$0xff]
        %v4256 = vld [vmem:[#allocation4 + $0xa8] sm:$0xff]
        %v4257 = vld [vmem:[#allocation4 + $0xb0] sm:$0xff]
        %v4258 = vld [vmem:[#allocation4 + $0xb8] sm:$0xff]
        %v4259 = vld [vmem:[#allocation4 + $0xc0] sm:$0xff]
        %v4260 = vld [vmem:[#allocation4 + $0xc8] sm:$0xff]
        %v4261 = vld [vmem:[#allocation4 + $0xd0] sm:$0xff]
        %v4262 = vld [vmem:[#allocation4 + $0xd8] sm:$0xff]
        %v4263 = vld [vmem:[#allocation4 + $0xe0] sm:$0xff]
        %v4264 = vld [vmem:[#allocation4 + $0xe8] sm:$0xff]
        %v4265 = vld [vmem:[#allocation4 + $0xf0] sm:$0xff]
        %v4266 = vld [vmem:[#allocation4 + $0xf8] sm:$0xff]
        %v4267 = vld [vmem:[#allocation4 + $0x100] sm:$0xff]
        %v4268 = vld [vmem:[#allocation4 + $0x108] sm:$0xff]
        %v4269 = vld [vmem:[#allocation4 + $0x110] sm:$0xff]
        %v4270 = vld [vmem:[#allocation4 + $0x118] sm:$0xff]
        %v4271 = vld [vmem:[#allocation4 + $0x120] sm:$0xff]
        %v4272 = vld [vmem:[#allocation4 + $0x128] sm:$0xff]
        %v4273 = vld [vmem:[#allocation4 + $0x130] sm:$0xff]
        %v4274 = vld [vmem:[#allocation4 + $0x138] sm:$0xff]
        %v4275 = vld [vmem:[#allocation4 + $0x140] sm:$0xff]
        %v4276 = vld [vmem:[#allocation4 + $0x148] sm:$0xff]
        %v4277 = vld [vmem:[#allocation4 + $0x150] sm:$0xff]
        %v4278 = vld [vmem:[#allocation4 + $0x158] sm:$0xff]
        %v4279 = vld [vmem:[#allocation4 + $0x160] sm:$0xff]
        %v4280 = vld [vmem:[#allocation4 + $0x168] sm:$0xff]
        %v4281 = vld [vmem:[#allocation4 + $0x170] sm:$0xff]
        %v4282 = vld [vmem:[#allocation4 + $0x178] sm:$0xff]
        %v4283 = vld [vmem:[%s4] sm:$0xf]
        %v4284 = vld [vmem:[%s4 + $0x4] sm:$0xf]
        %v4285 = vld [vmem:[%s4 + $0x8] sm:$0xf]
        %v4286 = vld [vmem:[%s4 + $0xc] sm:$0xf]
        %v4287 = vld [vmem:[%s4 + $0x10] sm:$0xf]
        %v4288 = vld [vmem:[%s4 + $0x14] sm:$0xf]
        %v4289 = vld [vmem:[%s4 + $0x18] sm:$0xf]
        %v4290 = vld [vmem:[%s4 + $0x1c] sm:$0xf]
        %v4291 = vld [vmem:[%s4 + $0x20] sm:$0xf]
        %v4292 = vld [vmem:[%s4 + $0x24] sm:$0xf]
        %v4293 = vld [vmem:[%s4 + $0x28] sm:$0xf]
        %v4294 = vld [vmem:[%s4 + $0x2c] sm:$0xf]
        %v4295 = vld [vmem:[%s4 + $0x30] sm:$0xf]
        %v4296 = vld [vmem:[%s4 + $0x34] sm:$0xf]
        %v4297 = vld [vmem:[%s4 + $0x38] sm:$0xf]
        %v4298 = vld [vmem:[%s4 + $0x3c] sm:$0xf]
        %v4299 = vld [vmem:[%s4 + $0x40] sm:$0xf]
        %v4300 = vld [vmem:[%s4 + $0x44] sm:$0xf]
        %v4301 = vld [vmem:[%s4 + $0x48] sm:$0xf]
        %v4302 = vld [vmem:[%s4 + $0x4c] sm:$0xf]
        %v4303 = vld [vmem:[%s4 + $0x50] sm:$0xf]
        %v4304 = vld [vmem:[%s4 + $0x54] sm:$0xf]
        %v4305 = vld [vmem:[%s4 + $0x58] sm:$0xf]
        %v4306 = vld [vmem:[%s4 + $0x5c] sm:$0xf]
        %v4307 = vld [vmem:[%s4 + $0x60] sm:$0xf]
        %v4308 = vld [vmem:[%s4 + $0x64] sm:$0xf]
        %v4309 = vld [vmem:[%s4 + $0x68] sm:$0xf]
        %v4310 = vld [vmem:[%s4 + $0x6c] sm:$0xf]
        %v4311 = vld [vmem:[%s4 + $0x70] sm:$0xf]
        %v4312 = vld [vmem:[%s4 + $0x74] sm:$0xf]
        %v4313 = vld [vmem:[%s4 + $0x78] sm:$0xf]
        %v4314 = vld [vmem:[%s4 + $0x7c] sm:$0xf]
        %v4315 = vld [vmem:[%s4 + $0x80] sm:$0xf]
        %v4316 = vld [vmem:[%s4 + $0x84] sm:$0xf]
        %v4317 = vld [vmem:[%s4 + $0x88] sm:$0xf]
        %v4318 = vld [vmem:[%s4 + $0x8c] sm:$0xf]
        %v4355 = vunpack.c.l.b16 %v4283
        %v4356 = vunpack.c.l.b16 %v4284
        %v4357 = vunpack.c.l.b16 %v4285
        %v4358 = vunpack.c.l.b16 %v4286
        %v4359 = vunpack.c.l.b16 %v4287
        %v4360 = vunpack.c.l.b16 %v4288
        %v4361 = vunpack.c.l.b16 %v4289
        %v4362 = vunpack.c.l.b16 %v4290
        %v4363 = vunpack.c.l.b16 %v4291
        %v4364 = vunpack.c.l.b16 %v4292
        %v4365 = vunpack.c.l.b16 %v4293
        %v4366 = vunpack.c.l.b16 %v4294
        %v4367 = vunpack.c.l.b16 %v4295
        %v4368 = vunpack.c.l.b16 %v4296
        %v4369 = vunpack.c.l.b16 %v4297
        %v4370 = vunpack.c.l.b16 %v4298
        %v4371 = vunpack.c.l.b16 %v4299
        %v4372 = vunpack.c.l.b16 %v4300
        %v4373 = vunpack.c.l.b16 %v4301
        %v4374 = vunpack.c.l.b16 %v4302
        %v4375 = vunpack.c.l.b16 %v4303
        %v4376 = vunpack.c.l.b16 %v4304
        %v4377 = vunpack.c.l.b16 %v4305
        %v4378 = vunpack.c.l.b16 %v4306
        %v4379 = vunpack.c.l.b16 %v4307
        %v4380 = vunpack.c.l.b16 %v4308
        %v4381 = vunpack.c.l.b16 %v4309
        %v4382 = vunpack.c.l.b16 %v4310
        %v4383 = vunpack.c.l.b16 %v4311
        %v4384 = vunpack.c.l.b16 %v4312
        %v4385 = vunpack.c.l.b16 %v4313
        %v4386 = vunpack.c.l.b16 %v4314
        %v4387 = vunpack.c.l.b16 %v4315
        %v4388 = vunpack.c.l.b16 %v4316
        %v4389 = vunpack.c.l.b16 %v4317
        %v4390 = vunpack.c.l.b16 %v4318
        %v4391 = vpack.c.b16 %v4356, %v4355
        %v4392 = vpack.c.b16 %v4358, %v4357
        %v4393 = vpack.c.b16 %v4360, %v4359
        %v4394 = vpack.c.b16 %v4362, %v4361
        %v4395 = vpack.c.b16 %v4364, %v4363
        %v4396 = vpack.c.b16 %v4366, %v4365
        %v4397 = vpack.c.b16 %v4368, %v4367
        %v4398 = vpack.c.b16 %v4370, %v4369
        %v4399 = vpack.c.b16 %v4372, %v4371
        %v4400 = vpack.c.b16 %v4374, %v4373
        %v4401 = vpack.c.b16 %v4376, %v4375
        %v4402 = vpack.c.b16 %v4378, %v4377
        %v4403 = vpack.c.b16 %v4380, %v4379
        %v4404 = vpack.c.b16 %v4382, %v4381
        %v4405 = vpack.c.b16 %v4384, %v4383
        %v4406 = vpack.c.b16 %v4386, %v4385
        %v4407 = vpack.c.b16 %v4388, %v4387
        %v4408 = vpack.c.b16 %v4390, %v4389
        %v4428 = vsel %vm657, %v4237, 0
        %v4431 = vsel %vm657, %v4240, 0
        %v4434 = vsel %vm657, %v4243, 0
        %v4437 = vsel %vm657, %v4246, 0
        %v4440 = vsel %vm657, %v4249, 0
        %v4443 = vsel %vm657, %v4252, 0
        %v4446 = vsel %vm657, %v4255, 0
        %v4449 = vsel %vm657, %v4258, 0
        %v4452 = vsel %vm657, %v4261, 0
        %v4455 = vsel %vm657, %v4264, 0
        %v4458 = vsel %vm657, %v4267, 0
        %v4461 = vsel %vm657, %v4270, 0
        %v4464 = vsel %vm657, %v4273, 0
        %v4467 = vsel %vm657, %v4276, 0
        %v4470 = vsel %vm657, %v4279, 0
        %v4473 = vsel %vm657, %v4282, 0
        %4475 = vmatprep.subr.bf16.mxu0 0
        %4476 = vmatpush1.bf16.msra.mxu0 %v4391
        %4477 = vmatprep.subr.bf16.mxu0 0
        %4478 = vmatpush1.bf16.msra.mxu0 %v4392
        %4479 = vmatprep.subr.bf16.mxu0 0
        %4480 = vmatpush1.bf16.msra.mxu0 %v4393
        %4481 = vmatprep.subr.bf16.mxu0 0
        %4482 = vmatpush1.bf16.msra.mxu0 %v4394
        %4483 = vmatprep.subr.bf16.mxu0 0
        %4484 = vmatpush1.bf16.msra.mxu0 %v4395
        %4485 = vmatprep.subr.bf16.mxu0 0
        %4486 = vmatpush1.bf16.msra.mxu0 %v4396
        %4487 = vmatprep.subr.bf16.mxu0 0
        %4488 = vmatpush1.bf16.msra.mxu0 %v4397
        %4489 = vmatprep.subr.bf16.mxu0 0
        %4490 = vmatpush1.bf16.msra.mxu0 %v4398
        %4491 = vmatprep.subr.bf16.mxu0 0
        %4492 = vmatpush1.bf16.msra.mxu0 %v4399
        %4493 = vmatprep.subr.bf16.mxu0 0
        %4494 = vmatpush1.bf16.msra.mxu0 %v4400
        %4495 = vmatprep.subr.bf16.mxu0 0
        %4496 = vmatpush1.bf16.msra.mxu0 %v4401
        %4497 = vmatprep.subr.bf16.mxu0 0
        %4498 = vmatpush1.bf16.msra.mxu0 %v4402
        %4499 = vmatprep.subr.bf16.mxu0 0
        %4500 = vmatpush1.bf16.msra.mxu0 %v4403
        %4501 = vmatprep.subr.bf16.mxu0 0
        %4502 = vmatpush1.bf16.msra.mxu0 %v4404
        %4503 = vmatprep.subr.bf16.mxu0 0
        %4504 = vmatpush1.bf16.msra.mxu0 %v4405
        %4505 = vmatprep.subr.bf16.mxu0 0
        %4506 = vmatpush1.bf16.msra.mxu0 %v4406
        %4507 = vmatprep.mubr.bf16.mxu0 %v4236
        %4508 = vmatmul.mubr.bf16.gmra.mrb[0].mxu0 %v4235
        %v4509 = vpop.f32.mrb[0].mxu0
        %v4510 = vadd.f32 0.0, %v4509
        %v4511 = vpop.f32.mrb[0].mxu0
        %v4512 = vpop.f32.mrb[0].mxu0
        %v4513 = vadd.f32 0.0, %v4512
        %v4514 = vpop.f32.mrb[0].mxu0
        %4515 = vmatprep.mubr.bf16.mxu0 %v4239
        %4516 = vmatmul.mubr.bf16.gmra.mrb[0].mxu0 %v4238
        %v4517 = vpop.f32.mrb[0].mxu0
        %v4518 = vadd.f32 0.0, %v4517
        %v4519 = vpop.f32.mrb[0].mxu0
        %v4520 = vpop.f32.mrb[0].mxu0
        %v4521 = vadd.f32 0.0, %v4520
        %v4522 = vpop.f32.mrb[0].mxu0
        %4523 = vmatprep.mubr.bf16.mxu0 %v4242
        %4524 = vmatmul.mubr.bf16.gmra.mrb[0].mxu0 %v4241
        %v4525 = vpop.f32.mrb[0].mxu0
        %v4526 = vadd.f32 0.0, %v4525
        %v4527 = vpop.f32.mrb[0].mxu0
        %v4528 = vpop.f32.mrb[0].mxu0
        %v4529 = vadd.f32 0.0, %v4528
        %v4530 = vpop.f32.mrb[0].mxu0
        %4531 = vmatprep.mubr.bf16.mxu0 %v4245
        %4532 = vmatmul.mubr.bf16.gmra.mrb[0].mxu0 %v4244
        %v4533 = vpop.f32.mrb[0].mxu0
        %v4534 = vadd.f32 0.0, %v4533
        %v4535 = vpop.f32.mrb[0].mxu0
        %v4536 = vpop.f32.mrb[0].mxu0
        %v4537 = vadd.f32 0.0, %v4536
        %v4538 = vpop.f32.mrb[0].mxu0
        %4539 = vmatprep.mubr.bf16.mxu0 %v4248
        %4540 = vmatmul.mubr.bf16.gmra.mrb[0].mxu0 %v4247
        %v4541 = vpop.f32.mrb[0].mxu0
        %v4542 = vadd.f32 0.0, %v4541
        %v4543 = vpop.f32.mrb[0].mxu0
        %v4544 = vpop.f32.mrb[0].mxu0
        %v4545 = vadd.f32 0.0, %v4544
        %v4546 = vpop.f32.mrb[0].mxu0
        %4547 = vmatprep.mubr.bf16.mxu0 %v4251
        %4548 = vmatmul.mubr.bf16.gmra.mrb[0].mxu0 %v4250
        %v4549 = vpop.f32.mrb[0].mxu0
        %v4550 = vadd.f32 0.0, %v4549
        %v4551 = vpop.f32.mrb[0].mxu0
        %v4552 = vpop.f32.mrb[0].mxu0
        %v4553 = vadd.f32 0.0, %v4552
        %v4554 = vpop.f32.mrb[0].mxu0
        %4555 = vmatprep.mubr.bf16.mxu0 %v4254
        %4556 = vmatmul.mubr.bf16.gmra.mrb[0].mxu0 %v4253
        %v4557 = vpop.f32.mrb[0].mxu0
        %v4558 = vadd.f32 0.0, %v4557
        %v4559 = vpop.f32.mrb[0].mxu0
        %v4560 = vpop.f32.mrb[0].mxu0
        %v4561 = vadd.f32 0.0, %v4560
        %v4562 = vpop.f32.mrb[0].mxu0
        %4563 = vmatprep.mubr.bf16.mxu0 %v4257
        %4564 = vmatmul.mubr.bf16.gmra.mrb[0].mxu0 %v4256
        %v4565 = vpop.f32.mrb[0].mxu0
        %v4566 = vadd.f32 0.0, %v4565
        %v4567 = vpop.f32.mrb[0].mxu0
        %v4568 = vpop.f32.mrb[0].mxu0
        %v4569 = vadd.f32 0.0, %v4568
        %v4570 = vpop.f32.mrb[0].mxu0
        %4571 = vmatprep.mubr.bf16.mxu0 %v4260
        %4572 = vmatmul.mubr.bf16.gmra.mrb[0].mxu0 %v4259
        %v4573 = vpop.f32.mrb[0].mxu0
        %v4574 = vadd.f32 0.0, %v4573
        %v4575 = vpop.f32.mrb[0].mxu0
        %v4576 = vpop.f32.mrb[0].mxu0
        %v4577 = vadd.f32 0.0, %v4576
        %v4578 = vpop.f32.mrb[0].mxu0
        %4579 = vmatprep.mubr.bf16.mxu0 %v4263
        %4580 = vmatmul.mubr.bf16.gmra.mrb[0].mxu0 %v4262
        %v4581 = vpop.f32.mrb[0].mxu0
        %v4582 = vadd.f32 0.0, %v4581
        %v4583 = vpop.f32.mrb[0].mxu0
        %v4584 = vpop.f32.mrb[0].mxu0
        %v4585 = vadd.f32 0.0, %v4584
        %v4586 = vpop.f32.mrb[0].mxu0
        %4587 = vmatprep.mubr.bf16.mxu0 %v4266
        %4588 = vmatmul.mubr.bf16.gmra.mrb[0].mxu0 %v4265
        %v4589 = vpop.f32.mrb[0].mxu0
        %v4590 = vadd.f32 0.0, %v4589
        %v4591 = vpop.f32.mrb[0].mxu0
        %v4592 = vpop.f32.mrb[0].mxu0
        %v4593 = vadd.f32 0.0, %v4592
        %v4594 = vpop.f32.mrb[0].mxu0
        %4595 = vmatprep.mubr.bf16.mxu0 %v4269
        %4596 = vmatmul.mubr.bf16.gmra.mrb[0].mxu0 %v4268
        %v4597 = vpop.f32.mrb[0].mxu0
        %v4598 = vadd.f32 0.0, %v4597
        %v4599 = vpop.f32.mrb[0].mxu0
        %v4600 = vpop.f32.mrb[0].mxu0
        %v4601 = vadd.f32 0.0, %v4600
        %v4602 = vpop.f32.mrb[0].mxu0
        %4603 = vmatprep.mubr.bf16.mxu0 %v4272
        %4604 = vmatmul.mubr.bf16.gmra.mrb[0].mxu0 %v4271
        %v4605 = vpop.f32.mrb[0].mxu0
        %v4606 = vadd.f32 0.0, %v4605
        %v4607 = vpop.f32.mrb[0].mxu0
        %v4608 = vpop.f32.mrb[0].mxu0
        %v4609 = vadd.f32 0.0, %v4608
        %v4610 = vpop.f32.mrb[0].mxu0
        %4611 = vmatprep.mubr.bf16.mxu0 %v4275
        %4612 = vmatmul.mubr.bf16.gmra.mrb[0].mxu0 %v4274
        %v4613 = vpop.f32.mrb[0].mxu0
        %v4614 = vadd.f32 0.0, %v4613
        %v4615 = vpop.f32.mrb[0].mxu0
        %v4616 = vpop.f32.mrb[0].mxu0
        %v4617 = vadd.f32 0.0, %v4616
        %v4618 = vpop.f32.mrb[0].mxu0
        %4619 = vmatprep.mubr.bf16.mxu0 %v4278
        %4620 = vmatmul.mubr.bf16.gmra.mrb[0].mxu0 %v4277
        %v4621 = vpop.f32.mrb[0].mxu0
        %v4622 = vadd.f32 0.0, %v4621
        %v4623 = vpop.f32.mrb[0].mxu0
        %v4624 = vpop.f32.mrb[0].mxu0
        %v4625 = vadd.f32 0.0, %v4624
        %v4626 = vpop.f32.mrb[0].mxu0
        %4627 = vmatprep.mubr.bf16.mxu0 %v4281
        %4628 = vmatmul.mubr.bf16.gmra.mrb[0].mxu0 %v4280
        %v4629 = vpop.f32.mrb[0].mxu0
        %v4630 = vadd.f32 0.0, %v4629
        %v4631 = vpop.f32.mrb[0].mxu0
        %v4632 = vpop.f32.mrb[0].mxu0
        %v4633 = vadd.f32 0.0, %v4632
        %v4634 = vpop.f32.mrb[0].mxu0
        %4635 = vdwg.mxu0
        %4636 = vmatprep.subr.bf16.mxu0 0
        %4637 = vmatpush1.bf16.msra.mxu0 %v4407
        %4638 = vmatprep.subr.bf16.mxu0 0
        %4639 = vmatpush1.bf16.msra.mxu0 %v4408
        %4640 = vmatprep.subr.bf16.mxu0 0
        %4641 = vmatpush1.bf16.msra.mxu0 0
        %4642 = vmatprep.subr.bf16.mxu0 0
        %4643 = vmatpush1.bf16.msra.mxu0 0
        %4644 = vmatprep.subr.bf16.mxu0 0
        %4645 = vmatpush1.bf16.msra.mxu0 0
        %4646 = vmatprep.subr.bf16.mxu0 0
        %4647 = vmatpush1.bf16.msra.mxu0 0
        %4648 = vmatprep.subr.bf16.mxu0 0
        %4649 = vmatpush1.bf16.msra.mxu0 0
        %4650 = vmatprep.subr.bf16.mxu0 0
        %4651 = vmatpush1.bf16.msra.mxu0 0
        %4652 = vmatprep.subr.bf16.mxu0 0
        %4653 = vmatpush1.bf16.msra.mxu0 0
        %4654 = vmatprep.subr.bf16.mxu0 0
        %4655 = vmatpush1.bf16.msra.mxu0 0
        %4656 = vmatprep.subr.bf16.mxu0 0
        %4657 = vmatpush1.bf16.msra.mxu0 0
        %4658 = vmatprep.subr.bf16.mxu0 0
        %4659 = vmatpush1.bf16.msra.mxu0 0
        %4660 = vmatprep.subr.bf16.mxu0 0
        %4661 = vmatpush1.bf16.msra.mxu0 0
        %4662 = vmatprep.subr.bf16.mxu0 0
        %4663 = vmatpush1.bf16.msra.mxu0 0
        %4664 = vmatprep.subr.bf16.mxu0 0
        %4665 = vmatpush1.bf16.msra.mxu0 0
        %4666 = vmatprep.subr.bf16.mxu0 0
        %4667 = vmatpush1.bf16.msra.mxu0 0
        %4668 = vmatprep.mubr.bf16.mxu0 0
        %4669 = vmatmul.mubr.bf16.gmra.mrb[0].mxu0 %v4428
        %v4670 = vpop.f32.mrb[0].mxu0
        %v4671 = vadd.f32 %v4510, %v4670
        %v4672 = vpop.f32.mrb[0].mxu0
        %v4673 = vpop.f32.mrb[0].mxu0
        %v4674 = vadd.f32 %v4513, %v4673
        %v4675 = vpop.f32.mrb[0].mxu0
        %4676 = vmatprep.mubr.bf16.mxu0 0
        %4677 = vmatmul.mubr.bf16.gmra.mrb[0].mxu0 %v4431
        %v4678 = vpop.f32.mrb[0].mxu0
        %v4679 = vadd.f32 %v4518, %v4678
        %v4680 = vpop.f32.mrb[0].mxu0
        %v4681 = vpop.f32.mrb[0].mxu0
        %v4682 = vadd.f32 %v4521, %v4681
        %v4683 = vpop.f32.mrb[0].mxu0
        %4684 = vmatprep.mubr.bf16.mxu0 0
        %4685 = vmatmul.mubr.bf16.gmra.mrb[0].mxu0 %v4434
        %v4686 = vpop.f32.mrb[0].mxu0
        %v4687 = vadd.f32 %v4526, %v4686
        %v4688 = vpop.f32.mrb[0].mxu0
        %v4689 = vpop.f32.mrb[0].mxu0
        %v4690 = vadd.f32 %v4529, %v4689
        %v4691 = vpop.f32.mrb[0].mxu0
        %4692 = vmatprep.mubr.bf16.mxu0 0
        %4693 = vmatmul.mubr.bf16.gmra.mrb[0].mxu0 %v4437
        %v4694 = vpop.f32.mrb[0].mxu0
        %v4695 = vadd.f32 %v4534, %v4694
        %v4696 = vpop.f32.mrb[0].mxu0
        %v4697 = vpop.f32.mrb[0].mxu0
        %v4698 = vadd.f32 %v4537, %v4697
        %v4699 = vpop.f32.mrb[0].mxu0
        %4700 = vmatprep.mubr.bf16.mxu0 0
        %4701 = vmatmul.mubr.bf16.gmra.mrb[0].mxu0 %v4440
        %v4702 = vpop.f32.mrb[0].mxu0
        %v4703 = vadd.f32 %v4542, %v4702
        %v4704 = vpop.f32.mrb[0].mxu0
        %v4705 = vpop.f32.mrb[0].mxu0
        %v4706 = vadd.f32 %v4545, %v4705
        %v4707 = vpop.f32.mrb[0].mxu0
        %4708 = vmatprep.mubr.bf16.mxu0 0
        %4709 = vmatmul.mubr.bf16.gmra.mrb[0].mxu0 %v4443
        %v4710 = vpop.f32.mrb[0].mxu0
        %v4711 = vadd.f32 %v4550, %v4710
        %v4712 = vpop.f32.mrb[0].mxu0
        %v4713 = vpop.f32.mrb[0].mxu0
        %v4714 = vadd.f32 %v4553, %v4713
        %v4715 = vpop.f32.mrb[0].mxu0
        %4716 = vmatprep.mubr.bf16.mxu0 0
        %4717 = vmatmul.mubr.bf16.gmra.mrb[0].mxu0 %v4446
        %v4718 = vpop.f32.mrb[0].mxu0
        %v4719 = vadd.f32 %v4558, %v4718
        %v4720 = vpop.f32.mrb[0].mxu0
        %v4721 = vpop.f32.mrb[0].mxu0
        %v4722 = vadd.f32 %v4561, %v4721
        %v4723 = vpop.f32.mrb[0].mxu0
        %4724 = vmatprep.mubr.bf16.mxu0 0
        %4725 = vmatmul.mubr.bf16.gmra.mrb[0].mxu0 %v4449
        %v4726 = vpop.f32.mrb[0].mxu0
        %v4727 = vadd.f32 %v4566, %v4726
        %v4728 = vpop.f32.mrb[0].mxu0
        %v4729 = vpop.f32.mrb[0].mxu0
        %v4730 = vadd.f32 %v4569, %v4729
        %v4731 = vpop.f32.mrb[0].mxu0
        %4732 = vmatprep.mubr.bf16.mxu0 0
        %4733 = vmatmul.mubr.bf16.gmra.mrb[0].mxu0 %v4452
        %v4734 = vpop.f32.mrb[0].mxu0
        %v4735 = vadd.f32 %v4574, %v4734
        %v4736 = vpop.f32.mrb[0].mxu0
        %v4737 = vpop.f32.mrb[0].mxu0
        %v4738 = vadd.f32 %v4577, %v4737
        %v4739 = vpop.f32.mrb[0].mxu0
        %4740 = vmatprep.mubr.bf16.mxu0 0
        %4741 = vmatmul.mubr.bf16.gmra.mrb[0].mxu0 %v4455
        %v4742 = vpop.f32.mrb[0].mxu0
        %v4743 = vadd.f32 %v4582, %v4742
        %v4744 = vpop.f32.mrb[0].mxu0
        %v4745 = vpop.f32.mrb[0].mxu0
        %v4746 = vadd.f32 %v4585, %v4745
        %v4747 = vpop.f32.mrb[0].mxu0
        %4748 = vmatprep.mubr.bf16.mxu0 0
        %4749 = vmatmul.mubr.bf16.gmra.mrb[0].mxu0 %v4458
        %v4750 = vpop.f32.mrb[0].mxu0
        %v4751 = vadd.f32 %v4590, %v4750
        %v4752 = vpop.f32.mrb[0].mxu0
        %v4753 = vpop.f32.mrb[0].mxu0
        %v4754 = vadd.f32 %v4593, %v4753
        %v4755 = vpop.f32.mrb[0].mxu0
        %4756 = vmatprep.mubr.bf16.mxu0 0
        %4757 = vmatmul.mubr.bf16.gmra.mrb[0].mxu0 %v4461
        %v4758 = vpop.f32.mrb[0].mxu0
        %v4759 = vadd.f32 %v4598, %v4758
        %v4760 = vpop.f32.mrb[0].mxu0
        %v4761 = vpop.f32.mrb[0].mxu0
        %v4762 = vadd.f32 %v4601, %v4761
        %v4763 = vpop.f32.mrb[0].mxu0
        %4764 = vmatprep.mubr.bf16.mxu0 0
        %4765 = vmatmul.mubr.bf16.gmra.mrb[0].mxu0 %v4464
        %v4766 = vpop.f32.mrb[0].mxu0
        %v4767 = vadd.f32 %v4606, %v4766
        %v4768 = vpop.f32.mrb[0].mxu0
        %v4769 = vpop.f32.mrb[0].mxu0
        %v4770 = vadd.f32 %v4609, %v4769
        %v4771 = vpop.f32.mrb[0].mxu0
        %4772 = vmatprep.mubr.bf16.mxu0 0
        %4773 = vmatmul.mubr.bf16.gmra.mrb[0].mxu0 %v4467
        %v4774 = vpop.f32.mrb[0].mxu0
        %v4775 = vadd.f32 %v4614, %v4774
        %v4776 = vpop.f32.mrb[0].mxu0
        %v4777 = vpop.f32.mrb[0].mxu0
        %v4778 = vadd.f32 %v4617, %v4777
        %v4779 = vpop.f32.mrb[0].mxu0
        %4780 = vmatprep.mubr.bf16.mxu0 0
        %4781 = vmatmul.mubr.bf16.gmra.mrb[0].mxu0 %v4470
        %v4782 = vpop.f32.mrb[0].mxu0
        %v4783 = vadd.f32 %v4622, %v4782
        %v4784 = vpop.f32.mrb[0].mxu0
        %v4785 = vpop.f32.mrb[0].mxu0
        %v4786 = vadd.f32 %v4625, %v4785
        %v4787 = vpop.f32.mrb[0].mxu0
        %4788 = vmatprep.mubr.bf16.mxu0 0
        %4789 = vmatmul.mubr.bf16.gmra.mrb[0].mxu0 %v4473
        %v4790 = vpop.f32.mrb[0].mxu0
        %v4791 = vadd.f32 %v4630, %v4790
        %v4792 = vpop.f32.mrb[0].mxu0
        %v4793 = vpop.f32.mrb[0].mxu0
        %v4794 = vadd.f32 %v4633, %v4793
        %v4795 = vpop.f32.mrb[0].mxu0
        %4796 = vdwg.mxu0
        %v4797 = vld [vmem:[%s5] sm:$0x1]
        %v4799 = vlaneseq
        %v4800 = vshrl.u32 %v4799, 7
        %v4801 = vsub.s32 0, %v4800
        %v4802 = vrot.slane %v4797, %v4801
        %v4804 = vmul.f32 %v4671, %v4802
        %v4805 = vmul.f32 %v4674, %v4802
        %v4806 = vmul.f32 %v4679, %v4802
        %v4807 = vmul.f32 %v4682, %v4802
        %v4808 = vmul.f32 %v4687, %v4802
        %v4809 = vmul.f32 %v4690, %v4802
        %v4810 = vmul.f32 %v4695, %v4802
        %v4811 = vmul.f32 %v4698, %v4802
        %v4812 = vmul.f32 %v4703, %v4802
        %v4813 = vmul.f32 %v4706, %v4802
        %v4814 = vmul.f32 %v4711, %v4802
        %v4815 = vmul.f32 %v4714, %v4802
        %v4816 = vmul.f32 %v4719, %v4802
        %v4817 = vmul.f32 %v4722, %v4802
        %v4818 = vmul.f32 %v4727, %v4802
        %v4819 = vmul.f32 %v4730, %v4802
        %v4820 = vmul.f32 %v4735, %v4802
        %v4821 = vmul.f32 %v4738, %v4802
        %v4822 = vmul.f32 %v4743, %v4802
        %v4823 = vmul.f32 %v4746, %v4802
        %v4824 = vmul.f32 %v4751, %v4802
        %v4825 = vmul.f32 %v4754, %v4802
        %v4826 = vmul.f32 %v4759, %v4802
        %v4827 = vmul.f32 %v4762, %v4802
        %v4828 = vmul.f32 %v4767, %v4802
        %v4829 = vmul.f32 %v4770, %v4802
        %v4830 = vmul.f32 %v4775, %v4802
        %v4831 = vmul.f32 %v4778, %v4802
        %v4832 = vmul.f32 %v4783, %v4802
        %v4833 = vmul.f32 %v4786, %v4802
        %v4834 = vmul.f32 %v4791, %v4802
        %v4835 = vmul.f32 %v4794, %v4802
        %v4836 = vld [vmem:[%s6] sm:$0x1]
        %v4838 = vlaneseq
        %v4839 = vshrl.u32 %v4838, 7
        %v4840 = vsub.s32 0, %v4839
        %v4841 = vrot.slane %v4836, %v4840
        %v4843 = vadd.f32 %v4804, %v4841
        %v4844 = vadd.f32 %v4805, %v4841
        %v4845 = vadd.f32 %v4806, %v4841
        %v4846 = vadd.f32 %v4807, %v4841
        %v4847 = vadd.f32 %v4808, %v4841
        %v4848 = vadd.f32 %v4809, %v4841
        %v4849 = vadd.f32 %v4810, %v4841
        %v4850 = vadd.f32 %v4811, %v4841
        %v4851 = vadd.f32 %v4812, %v4841
        %v4852 = vadd.f32 %v4813, %v4841
        %v4853 = vadd.f32 %v4814, %v4841
        %v4854 = vadd.f32 %v4815, %v4841
        %v4855 = vadd.f32 %v4816, %v4841
        %v4856 = vadd.f32 %v4817, %v4841
        %v4857 = vadd.f32 %v4818, %v4841
        %v4858 = vadd.f32 %v4819, %v4841
        %v4859 = vadd.f32 %v4820, %v4841
        %v4860 = vadd.f32 %v4821, %v4841
        %v4861 = vadd.f32 %v4822, %v4841
        %v4862 = vadd.f32 %v4823, %v4841
        %v4863 = vadd.f32 %v4824, %v4841
        %v4864 = vadd.f32 %v4825, %v4841
        %v4865 = vadd.f32 %v4826, %v4841
        %v4866 = vadd.f32 %v4827, %v4841
        %v4867 = vadd.f32 %v4828, %v4841
        %v4868 = vadd.f32 %v4829, %v4841
        %v4869 = vadd.f32 %v4830, %v4841
        %v4870 = vadd.f32 %v4831, %v4841
        %v4871 = vadd.f32 %v4832, %v4841
        %v4872 = vadd.f32 %v4833, %v4841
        %v4873 = vadd.f32 %v4834, %v4841
        %v4874 = vadd.f32 %v4835, %v4841
        %v4875 = vmax.f32 %v4843, 0.0
        %v4876 = vmax.f32 %v4844, 0.0
        %v4877 = vmax.f32 %v4845, 0.0
        %v4878 = vmax.f32 %v4846, 0.0
        %v4879 = vmax.f32 %v4847, 0.0
        %v4880 = vmax.f32 %v4848, 0.0
        %v4881 = vmax.f32 %v4849, 0.0
        %v4882 = vmax.f32 %v4850, 0.0
        %v4883 = vmax.f32 %v4851, 0.0
        %v4884 = vmax.f32 %v4852, 0.0
        %v4885 = vmax.f32 %v4853, 0.0
        %v4886 = vmax.f32 %v4854, 0.0
        %v4887 = vmax.f32 %v4855, 0.0
        %v4888 = vmax.f32 %v4856, 0.0
        %v4889 = vmax.f32 %v4857, 0.0
        %v4890 = vmax.f32 %v4858, 0.0
        %v4891 = vmax.f32 %v4859, 0.0
        %v4892 = vmax.f32 %v4860, 0.0
        %v4893 = vmax.f32 %v4861, 0.0
        %v4894 = vmax.f32 %v4862, 0.0
        %v4895 = vmax.f32 %v4863, 0.0
        %v4896 = vmax.f32 %v4864, 0.0
        %v4897 = vmax.f32 %v4865, 0.0
        %v4898 = vmax.f32 %v4866, 0.0
        %v4899 = vmax.f32 %v4867, 0.0
        %v4900 = vmax.f32 %v4868, 0.0
        %v4901 = vmax.f32 %v4869, 0.0
        %v4902 = vmax.f32 %v4870, 0.0
        %v4903 = vmax.f32 %v4871, 0.0
        %v4904 = vmax.f32 %v4872, 0.0
        %v4905 = vmax.f32 %v4873, 0.0
        %v4906 = vmax.f32 %v4874, 0.0
        %4907 = vst.msk [vmem:[%s3238 + $0x1] sm:$0xff] %vm657, %v4875
        %4908 = vst.msk [vmem:[%s3238 + $0x9] sm:$0xff] %vm657, %v4876
        %4909 = vst.msk [vmem:[%s3238 + $0x19] sm:$0xff] %vm657, %v4877
        %4910 = vst.msk [vmem:[%s3238 + $0x21] sm:$0xff] %vm657, %v4878
        %4911 = vst.msk [vmem:[%s3238 + $0x31] sm:$0xff] %vm657, %v4879
        %4912 = vst.msk [vmem:[%s3238 + $0x39] sm:$0xff] %vm657, %v4880
        %4913 = vst.msk [vmem:[%s3238 + $0x49] sm:$0xff] %vm657, %v4881
        %4914 = vst.msk [vmem:[%s3238 + $0x51] sm:$0xff] %vm657, %v4882
        %4915 = vst.msk [vmem:[%s3238 + $0x61] sm:$0xff] %vm657, %v4883
        %4916 = vst.msk [vmem:[%s3238 + $0x69] sm:$0xff] %vm657, %v4884
        %4917 = vst.msk [vmem:[%s3238 + $0x79] sm:$0xff] %vm657, %v4885
        %4918 = vst.msk [vmem:[%s3238 + $0x81] sm:$0xff] %vm657, %v4886
        %4919 = vst.msk [vmem:[%s3238 + $0x91] sm:$0xff] %vm657, %v4887
        %4920 = vst.msk [vmem:[%s3238 + $0x99] sm:$0xff] %vm657, %v4888
        %4921 = vst.msk [vmem:[%s3238 + $0xa9] sm:$0xff] %vm657, %v4889
        %4922 = vst.msk [vmem:[%s3238 + $0xb1] sm:$0xff] %vm657, %v4890
        %4923 = vst.msk [vmem:[%s3238 + $0xc1] sm:$0xff] %vm657, %v4891
        %4924 = vst.msk [vmem:[%s3238 + $0xc9] sm:$0xff] %vm657, %v4892
        %4925 = vst.msk [vmem:[%s3238 + $0xd9] sm:$0xff] %vm657, %v4893
        %4926 = vst.msk [vmem:[%s3238 + $0xe1] sm:$0xff] %vm657, %v4894
        %4927 = vst.msk [vmem:[%s3238 + $0xf1] sm:$0xff] %vm657, %v4895
        %4928 = vst.msk [vmem:[%s3238 + $0xf9] sm:$0xff] %vm657, %v4896
        %4929 = vst.msk [vmem:[%s3238 + $0x109] sm:$0xff] %vm657, %v4897
        %4930 = vst.msk [vmem:[%s3238 + $0x111] sm:$0xff] %vm657, %v4898
        %4931 = vst.msk [vmem:[%s3238 + $0x121] sm:$0xff] %vm657, %v4899
        %4932 = vst.msk [vmem:[%s3238 + $0x129] sm:$0xff] %vm657, %v4900
        %4933 = vst.msk [vmem:[%s3238 + $0x139] sm:$0xff] %vm657, %v4901
        %4934 = vst.msk [vmem:[%s3238 + $0x141] sm:$0xff] %vm657, %v4902
        %4935 = vst.msk [vmem:[%s3238 + $0x151] sm:$0xff] %vm657, %v4903
        %4936 = vst.msk [vmem:[%s3238 + $0x159] sm:$0xff] %vm657, %v4904
        %4937 = vst.msk [vmem:[%s3238 + $0x169] sm:$0xff] %vm657, %v4905
        %4938 = vst.msk [vmem:[%s3238 + $0x171] sm:$0xff] %vm657, %v4906
        %v4939 = vld [vmem:[#allocation3] sm:$0xff]
        %v4940 = vld [vmem:[#allocation3 + $0x8] sm:$0xff]
        %v4941 = vld [vmem:[#allocation3 + $0x18] sm:$0xff]
        %v4942 = vld [vmem:[#allocation3 + $0x20] sm:$0xff]
        %v4943 = vld [vmem:[#allocation3 + $0x30] sm:$0xff]
        %v4944 = vld [vmem:[#allocation3 + $0x38] sm:$0xff]
        %v4945 = vld [vmem:[#allocation3 + $0x48] sm:$0xff]
        %v4946 = vld [vmem:[#allocation3 + $0x50] sm:$0xff]
        %v4947 = vld [vmem:[#allocation3 + $0x60] sm:$0xff]
        %v4948 = vld [vmem:[#allocation3 + $0x68] sm:$0xff]
        %v4949 = vld [vmem:[#allocation3 + $0x78] sm:$0xff]
        %v4950 = vld [vmem:[#allocation3 + $0x80] sm:$0xff]
        %v4951 = vld [vmem:[#allocation3 + $0x90] sm:$0xff]
        %v4952 = vld [vmem:[#allocation3 + $0x98] sm:$0xff]
        %v4953 = vld [vmem:[#allocation3 + $0xa8] sm:$0xff]
        %v4954 = vld [vmem:[#allocation3 + $0xb0] sm:$0xff]
        %v4955 = vld [vmem:[#allocation3 + $0xc0] sm:$0xff]
        %v4956 = vld [vmem:[#allocation3 + $0xc8] sm:$0xff]
        %v4957 = vld [vmem:[#allocation3 + $0xd8] sm:$0xff]
        %v4958 = vld [vmem:[#allocation3 + $0xe0] sm:$0xff]
        %v4959 = vld [vmem:[#allocation3 + $0xf0] sm:$0xff]
        %v4960 = vld [vmem:[#allocation3 + $0xf8] sm:$0xff]
        %v4961 = vld [vmem:[#allocation3 + $0x108] sm:$0xff]
        %v4962 = vld [vmem:[#allocation3 + $0x110] sm:$0xff]
        %v4963 = vld [vmem:[#allocation3 + $0x120] sm:$0xff]
        %v4964 = vld [vmem:[#allocation3 + $0x128] sm:$0xff]
        %v4965 = vld [vmem:[#allocation3 + $0x138] sm:$0xff]
        %v4966 = vld [vmem:[#allocation3 + $0x140] sm:$0xff]
        %v4967 = vld [vmem:[#allocation3 + $0x150] sm:$0xff]
        %v4968 = vld [vmem:[#allocation3 + $0x158] sm:$0xff]
        %v4969 = vld [vmem:[#allocation3 + $0x168] sm:$0xff]
        %v4970 = vld [vmem:[#allocation3 + $0x170] sm:$0xff]
        %v4971 = vpack.c.bf16 %v4940, %v4939
        %v4972 = vpack.c.bf16 %v4942, %v4941
        %v4973 = vpack.c.bf16 %v4944, %v4943
        %v4974 = vpack.c.bf16 %v4946, %v4945
        %v4975 = vpack.c.bf16 %v4948, %v4947
        %v4976 = vpack.c.bf16 %v4950, %v4949
        %v4977 = vpack.c.bf16 %v4952, %v4951
        %v4978 = vpack.c.bf16 %v4954, %v4953
        %v4979 = vpack.c.bf16 %v4956, %v4955
        %v4980 = vpack.c.bf16 %v4958, %v4957
        %v4981 = vpack.c.bf16 %v4960, %v4959
        %v4982 = vpack.c.bf16 %v4962, %v4961
        %v4983 = vpack.c.bf16 %v4964, %v4963
        %v4984 = vpack.c.bf16 %v4966, %v4965
        %v4985 = vpack.c.bf16 %v4968, %v4967
        %v4986 = vpack.c.bf16 %v4970, %v4969
        %4987 = vst.msk [vmem:[#allocation4] sm:$0xff] %vm657, %v4971
        %4988 = vst.msk [vmem:[#allocation4 + $0x18] sm:$0xff] %vm657, %v4972
        %4989 = vst.msk [vmem:[#allocation4 + $0x30] sm:$0xff] %vm657, %v4973
        %4990 = vst.msk [vmem:[#allocation4 + $0x48] sm:$0xff] %vm657, %v4974
        %4991 = vst.msk [vmem:[#allocation4 + $0x60] sm:$0xff] %vm657, %v4975
        %4992 = vst.msk [vmem:[#allocation4 + $0x78] sm:$0xff] %vm657, %v4976
        %4993 = vst.msk [vmem:[#allocation4 + $0x90] sm:$0xff] %vm657, %v4977
        %4994 = vst.msk [vmem:[#allocation4 + $0xa8] sm:$0xff] %vm657, %v4978
        %4995 = vst.msk [vmem:[#allocation4 + $0xc0] sm:$0xff] %vm657, %v4979
        %4996 = vst.msk [vmem:[#allocation4 + $0xd8] sm:$0xff] %vm657, %v4980
        %4997 = vst.msk [vmem:[#allocation4 + $0xf0] sm:$0xff] %vm657, %v4981
        %4998 = vst.msk [vmem:[#allocation4 + $0x108] sm:$0xff] %vm657, %v4982
        %4999 = vst.msk [vmem:[#allocation4 + $0x120] sm:$0xff] %vm657, %v4983
        %5000 = vst.msk [vmem:[#allocation4 + $0x138] sm:$0xff] %vm657, %v4984
        %5001 = vst.msk [vmem:[#allocation4 + $0x150] sm:$0xff] %vm657, %v4985
        %5002 = vst.msk [vmem:[#allocation4 + $0x168] sm:$0xff] %vm657, %v4986
        %v5003 = vld [vmem:[#allocation3 + $0x1] sm:$0xff]
        %v5004 = vld [vmem:[#allocation3 + $0x9] sm:$0xff]
        %v5005 = vld [vmem:[#allocation3 + $0x19] sm:$0xff]
        %v5006 = vld [vmem:[#allocation3 + $0x21] sm:$0xff]
        %v5007 = vld [vmem:[#allocation3 + $0x31] sm:$0xff]
        %v5008 = vld [vmem:[#allocation3 + $0x39] sm:$0xff]
        %v5009 = vld [vmem:[#allocation3 + $0x49] sm:$0xff]
        %v5010 = vld [vmem:[#allocation3 + $0x51] sm:$0xff]
        %v5011 = vld [vmem:[#allocation3 + $0x61] sm:$0xff]
        %v5012 = vld [vmem:[#allocation3 + $0x69] sm:$0xff]
        %v5013 = vld [vmem:[#allocation3 + $0x79] sm:$0xff]
        %v5014 = vld [vmem:[#allocation3 + $0x81] sm:$0xff]
        %v5015 = vld [vmem:[#allocation3 + $0x91] sm:$0xff]
        %v5016 = vld [vmem:[#allocation3 + $0x99] sm:$0xff]
        %v5017 = vld [vmem:[#allocation3 + $0xa9] sm:$0xff]
        %v5018 = vld [vmem:[#allocation3 + $0xb1] sm:$0xff]
        %v5019 = vld [vmem:[#allocation3 + $0xc1] sm:$0xff]
        %v5020 = vld [vmem:[#allocation3 + $0xc9] sm:$0xff]
        %v5021 = vld [vmem:[#allocation3 + $0xd9] sm:$0xff]
        %v5022 = vld [vmem:[#allocation3 + $0xe1] sm:$0xff]
        %v5023 = vld [vmem:[#allocation3 + $0xf1] sm:$0xff]
        %v5024 = vld [vmem:[#allocation3 + $0xf9] sm:$0xff]
        %v5025 = vld [vmem:[#allocation3 + $0x109] sm:$0xff]
        %v5026 = vld [vmem:[#allocation3 + $0x111] sm:$0xff]
        %v5027 = vld [vmem:[#allocation3 + $0x121] sm:$0xff]
        %v5028 = vld [vmem:[#allocation3 + $0x129] sm:$0xff]
        %v5029 = vld [vmem:[#allocation3 + $0x139] sm:$0xff]
        %v5030 = vld [vmem:[#allocation3 + $0x141] sm:$0xff]
        %v5031 = vld [vmem:[#allocation3 + $0x151] sm:$0xff]
        %v5032 = vld [vmem:[#allocation3 + $0x159] sm:$0xff]
        %v5033 = vld [vmem:[#allocation3 + $0x169] sm:$0xff]
        %v5034 = vld [vmem:[#allocation3 + $0x171] sm:$0xff]
        %v5035 = vpack.c.bf16 %v5004, %v5003
        %v5036 = vpack.c.bf16 %v5006, %v5005
        %v5037 = vpack.c.bf16 %v5008, %v5007
        %v5038 = vpack.c.bf16 %v5010, %v5009
        %v5039 = vpack.c.bf16 %v5012, %v5011
        %v5040 = vpack.c.bf16 %v5014, %v5013
        %v5041 = vpack.c.bf16 %v5016, %v5015
        %v5042 = vpack.c.bf16 %v5018, %v5017
        %v5043 = vpack.c.bf16 %v5020, %v5019
        %v5044 = vpack.c.bf16 %v5022, %v5021
        %v5045 = vpack.c.bf16 %v5024, %v5023
        %v5046 = vpack.c.bf16 %v5026, %v5025
        %v5047 = vpack.c.bf16 %v5028, %v5027
        %v5048 = vpack.c.bf16 %v5030, %v5029
        %v5049 = vpack.c.bf16 %v5032, %v5031
        %v5050 = vpack.c.bf16 %v5034, %v5033
        %5067 = vrot.lane.b32.xlu0 %v5035, 32
        %v5068 = vpop.permute.xlu0 %5067
        %5069 = vrot.lane.b32.xlu0 %v5036, 32
        %v5070 = vpop.permute.xlu0 %5069
        %5071 = vrot.lane.b32.xlu0 %v5037, 32
        %v5072 = vpop.permute.xlu0 %5071
        %5073 = vrot.lane.b32.xlu0 %v5038, 32
        %v5074 = vpop.permute.xlu0 %5073
        %5075 = vrot.lane.b32.xlu0 %v5039, 32
        %v5076 = vpop.permute.xlu0 %5075
        %5077 = vrot.lane.b32.xlu0 %v5040, 32
        %v5078 = vpop.permute.xlu0 %5077
        %5079 = vrot.lane.b32.xlu0 %v5041, 32
        %v5080 = vpop.permute.xlu0 %5079
        %5081 = vrot.lane.b32.xlu0 %v5042, 32
        %v5082 = vpop.permute.xlu0 %5081
        %5083 = vrot.lane.b32.xlu0 %v5043, 32
        %v5084 = vpop.permute.xlu0 %5083
        %5085 = vrot.lane.b32.xlu0 %v5044, 32
        %v5086 = vpop.permute.xlu0 %5085
        %5087 = vrot.lane.b32.xlu0 %v5045, 32
        %v5088 = vpop.permute.xlu0 %5087
        %5089 = vrot.lane.b32.xlu0 %v5046, 32
        %v5090 = vpop.permute.xlu0 %5089
        %5091 = vrot.lane.b32.xlu0 %v5047, 32
        %v5092 = vpop.permute.xlu0 %5091
        %5093 = vrot.lane.b32.xlu0 %v5048, 32
        %v5094 = vpop.permute.xlu0 %5093
        %5095 = vrot.lane.b32.xlu0 %v5049, 32
        %v5096 = vpop.permute.xlu0 %5095
        %5097 = vrot.lane.b32.xlu0 %v5050, 32
        %v5098 = vpop.permute.xlu0 %5097
        %5115 = vst.msk [vmem:[#allocation4] sm:$0xff] %vm3447, %v5068
        %5116 = vst.msk [vmem:[#allocation4 + $0x18] sm:$0xff] %vm3447, %v5070
        %5117 = vst.msk [vmem:[#allocation4 + $0x30] sm:$0xff] %vm3447, %v5072
        %5118 = vst.msk [vmem:[#allocation4 + $0x48] sm:$0xff] %vm3447, %v5074
        %5119 = vst.msk [vmem:[#allocation4 + $0x60] sm:$0xff] %vm3447, %v5076
        %5120 = vst.msk [vmem:[#allocation4 + $0x78] sm:$0xff] %vm3447, %v5078
        %5121 = vst.msk [vmem:[#allocation4 + $0x90] sm:$0xff] %vm3447, %v5080
        %5122 = vst.msk [vmem:[#allocation4 + $0xa8] sm:$0xff] %vm3447, %v5082
        %5123 = vst.msk [vmem:[#allocation4 + $0xc0] sm:$0xff] %vm3447, %v5084
        %5124 = vst.msk [vmem:[#allocation4 + $0xd8] sm:$0xff] %vm3447, %v5086
        %5125 = vst.msk [vmem:[#allocation4 + $0xf0] sm:$0xff] %vm3447, %v5088
        %5126 = vst.msk [vmem:[#allocation4 + $0x108] sm:$0xff] %vm3447, %v5090
        %5127 = vst.msk [vmem:[#allocation4 + $0x120] sm:$0xff] %vm3447, %v5092
        %5128 = vst.msk [vmem:[#allocation4 + $0x138] sm:$0xff] %vm3447, %v5094
        %5129 = vst.msk [vmem:[#allocation4 + $0x150] sm:$0xff] %vm3447, %v5096
        %5130 = vst.msk [vmem:[#allocation4 + $0x168] sm:$0xff] %vm3447, %v5098
        %v5131 = vld [vmem:[#allocation3 + $0x2] sm:$0xff]
        %v5132 = vld [vmem:[#allocation3 + $0xa] sm:$0xff]
        %v5133 = vld [vmem:[#allocation3 + $0x1a] sm:$0xff]
        %v5134 = vld [vmem:[#allocation3 + $0x22] sm:$0xff]
        %v5135 = vld [vmem:[#allocation3 + $0x32] sm:$0xff]
        %v5136 = vld [vmem:[#allocation3 + $0x3a] sm:$0xff]
        %v5137 = vld [vmem:[#allocation3 + $0x4a] sm:$0xff]
        %v5138 = vld [vmem:[#allocation3 + $0x52] sm:$0xff]
        %v5139 = vld [vmem:[#allocation3 + $0x62] sm:$0xff]
        %v5140 = vld [vmem:[#allocation3 + $0x6a] sm:$0xff]
        %v5141 = vld [vmem:[#allocation3 + $0x7a] sm:$0xff]
        %v5142 = vld [vmem:[#allocation3 + $0x82] sm:$0xff]
        %v5143 = vld [vmem:[#allocation3 + $0x92] sm:$0xff]
        %v5144 = vld [vmem:[#allocation3 + $0x9a] sm:$0xff]
        %v5145 = vld [vmem:[#allocation3 + $0xaa] sm:$0xff]
        %v5146 = vld [vmem:[#allocation3 + $0xb2] sm:$0xff]
        %v5147 = vld [vmem:[#allocation3 + $0xc2] sm:$0xff]
        %v5148 = vld [vmem:[#allocation3 + $0xca] sm:$0xff]
        %v5149 = vld [vmem:[#allocation3 + $0xda] sm:$0xff]
        %v5150 = vld [vmem:[#allocation3 + $0xe2] sm:$0xff]
        %v5151 = vld [vmem:[#allocation3 + $0xf2] sm:$0xff]
        %v5152 = vld [vmem:[#allocation3 + $0xfa] sm:$0xff]
        %v5153 = vld [vmem:[#allocation3 + $0x10a] sm:$0xff]
        %v5154 = vld [vmem:[#allocation3 + $0x112] sm:$0xff]
        %v5155 = vld [vmem:[#allocation3 + $0x122] sm:$0xff]
        %v5156 = vld [vmem:[#allocation3 + $0x12a] sm:$0xff]
        %v5157 = vld [vmem:[#allocation3 + $0x13a] sm:$0xff]
        %v5158 = vld [vmem:[#allocation3 + $0x142] sm:$0xff]
        %v5159 = vld [vmem:[#allocation3 + $0x152] sm:$0xff]
        %v5160 = vld [vmem:[#allocation3 + $0x15a] sm:$0xff]
        %v5161 = vld [vmem:[#allocation3 + $0x16a] sm:$0xff]
        %v5162 = vld [vmem:[#allocation3 + $0x172] sm:$0xff]
        %v5163 = vpack.c.bf16 %v5132, %v5131
        %v5164 = vpack.c.bf16 %v5134, %v5133
        %v5165 = vpack.c.bf16 %v5136, %v5135
        %v5166 = vpack.c.bf16 %v5138, %v5137
        %v5167 = vpack.c.bf16 %v5140, %v5139
        %v5168 = vpack.c.bf16 %v5142, %v5141
        %v5169 = vpack.c.bf16 %v5144, %v5143
        %v5170 = vpack.c.bf16 %v5146, %v5145
        %v5171 = vpack.c.bf16 %v5148, %v5147
        %v5172 = vpack.c.bf16 %v5150, %v5149
        %v5173 = vpack.c.bf16 %v5152, %v5151
        %v5174 = vpack.c.bf16 %v5154, %v5153
        %v5175 = vpack.c.bf16 %v5156, %v5155
        %v5176 = vpack.c.bf16 %v5158, %v5157
        %v5177 = vpack.c.bf16 %v5160, %v5159
        %v5178 = vpack.c.bf16 %v5162, %v5161
        %5195 = vrot.lane.b32.xlu0 %v5163, 64
        %v5196 = vpop.permute.xlu0 %5195
        %5197 = vrot.lane.b32.xlu0 %v5164, 64
        %v5198 = vpop.permute.xlu0 %5197
        %5199 = vrot.lane.b32.xlu0 %v5165, 64
        %v5200 = vpop.permute.xlu0 %5199
        %5201 = vrot.lane.b32.xlu0 %v5166, 64
        %v5202 = vpop.permute.xlu0 %5201
        %5203 = vrot.lane.b32.xlu0 %v5167, 64
        %v5204 = vpop.permute.xlu0 %5203
        %5205 = vrot.lane.b32.xlu0 %v5168, 64
        %v5206 = vpop.permute.xlu0 %5205
        %5207 = vrot.lane.b32.xlu0 %v5169, 64
        %v5208 = vpop.permute.xlu0 %5207
        %5209 = vrot.lane.b32.xlu0 %v5170, 64
        %v5210 = vpop.permute.xlu0 %5209
        %5211 = vrot.lane.b32.xlu0 %v5171, 64
        %v5212 = vpop.permute.xlu0 %5211
        %5213 = vrot.lane.b32.xlu0 %v5172, 64
        %v5214 = vpop.permute.xlu0 %5213
        %5215 = vrot.lane.b32.xlu0 %v5173, 64
        %v5216 = vpop.permute.xlu0 %5215
        %5217 = vrot.lane.b32.xlu0 %v5174, 64
        %v5218 = vpop.permute.xlu0 %5217
        %5219 = vrot.lane.b32.xlu0 %v5175, 64
        %v5220 = vpop.permute.xlu0 %5219
        %5221 = vrot.lane.b32.xlu0 %v5176, 64
        %v5222 = vpop.permute.xlu0 %5221
        %5223 = vrot.lane.b32.xlu0 %v5177, 64
        %v5224 = vpop.permute.xlu0 %5223
        %5225 = vrot.lane.b32.xlu0 %v5178, 64
        %v5226 = vpop.permute.xlu0 %5225
        %5243 = vst.msk [vmem:[#allocation4] sm:$0xff] %vm3576, %v5196
        %5244 = vst.msk [vmem:[#allocation4 + $0x18] sm:$0xff] %vm3576, %v5198
        %5245 = vst.msk [vmem:[#allocation4 + $0x30] sm:$0xff] %vm3576, %v5200
        %5246 = vst.msk [vmem:[#allocation4 + $0x48] sm:$0xff] %vm3576, %v5202
        %5247 = vst.msk [vmem:[#allocation4 + $0x60] sm:$0xff] %vm3576, %v5204
        %5248 = vst.msk [vmem:[#allocation4 + $0x78] sm:$0xff] %vm3576, %v5206
        %5249 = vst.msk [vmem:[#allocation4 + $0x90] sm:$0xff] %vm3576, %v5208
        %5250 = vst.msk [vmem:[#allocation4 + $0xa8] sm:$0xff] %vm3576, %v5210
        %5251 = vst.msk [vmem:[#allocation4 + $0xc0] sm:$0xff] %vm3576, %v5212
        %5252 = vst.msk [vmem:[#allocation4 + $0xd8] sm:$0xff] %vm3576, %v5214
        %5253 = vst.msk [vmem:[#allocation4 + $0xf0] sm:$0xff] %vm3576, %v5216
        %5254 = vst.msk [vmem:[#allocation4 + $0x108] sm:$0xff] %vm3576, %v5218
        %5255 = vst.msk [vmem:[#allocation4 + $0x120] sm:$0xff] %vm3576, %v5220
        %5256 = vst.msk [vmem:[#allocation4 + $0x138] sm:$0xff] %vm3576, %v5222
        %5257 = vst.msk [vmem:[#allocation4 + $0x150] sm:$0xff] %vm3576, %v5224
        %5258 = vst.msk [vmem:[#allocation4 + $0x168] sm:$0xff] %vm3576, %v5226
        %v5259 = vld [vmem:[%s3238] sm:$0xff]
        %v5260 = vld [vmem:[%s3238 + $0x8] sm:$0xff]
        %v5261 = vld [vmem:[%s3238 + $0x18] sm:$0xff]
        %v5262 = vld [vmem:[%s3238 + $0x20] sm:$0xff]
        %v5263 = vld [vmem:[%s3238 + $0x30] sm:$0xff]
        %v5264 = vld [vmem:[%s3238 + $0x38] sm:$0xff]
        %v5265 = vld [vmem:[%s3238 + $0x48] sm:$0xff]
        %v5266 = vld [vmem:[%s3238 + $0x50] sm:$0xff]
        %v5267 = vld [vmem:[%s3238 + $0x60] sm:$0xff]
        %v5268 = vld [vmem:[%s3238 + $0x68] sm:$0xff]
        %v5269 = vld [vmem:[%s3238 + $0x78] sm:$0xff]
        %v5270 = vld [vmem:[%s3238 + $0x80] sm:$0xff]
        %v5271 = vld [vmem:[%s3238 + $0x90] sm:$0xff]
        %v5272 = vld [vmem:[%s3238 + $0x98] sm:$0xff]
        %v5273 = vld [vmem:[%s3238 + $0xa8] sm:$0xff]
        %v5274 = vld [vmem:[%s3238 + $0xb0] sm:$0xff]
        %v5275 = vld [vmem:[%s3238 + $0xc0] sm:$0xff]
        %v5276 = vld [vmem:[%s3238 + $0xc8] sm:$0xff]
        %v5277 = vld [vmem:[%s3238 + $0xd8] sm:$0xff]
        %v5278 = vld [vmem:[%s3238 + $0xe0] sm:$0xff]
        %v5279 = vld [vmem:[%s3238 + $0xf0] sm:$0xff]
        %v5280 = vld [vmem:[%s3238 + $0xf8] sm:$0xff]
        %v5281 = vld [vmem:[%s3238 + $0x108] sm:$0xff]
        %v5282 = vld [vmem:[%s3238 + $0x110] sm:$0xff]
        %v5283 = vld [vmem:[%s3238 + $0x120] sm:$0xff]
        %v5284 = vld [vmem:[%s3238 + $0x128] sm:$0xff]
        %v5285 = vld [vmem:[%s3238 + $0x138] sm:$0xff]
        %v5286 = vld [vmem:[%s3238 + $0x140] sm:$0xff]
        %v5287 = vld [vmem:[%s3238 + $0x150] sm:$0xff]
        %v5288 = vld [vmem:[%s3238 + $0x158] sm:$0xff]
        %v5289 = vld [vmem:[%s3238 + $0x168] sm:$0xff]
        %v5290 = vld [vmem:[%s3238 + $0x170] sm:$0xff]
        %v5291 = vpack.c.bf16 %v5260, %v5259
        %v5292 = vpack.c.bf16 %v5262, %v5261
        %v5293 = vpack.c.bf16 %v5264, %v5263
        %v5294 = vpack.c.bf16 %v5266, %v5265
        %v5295 = vpack.c.bf16 %v5268, %v5267
        %v5296 = vpack.c.bf16 %v5270, %v5269
        %v5297 = vpack.c.bf16 %v5272, %v5271
        %v5298 = vpack.c.bf16 %v5274, %v5273
        %v5299 = vpack.c.bf16 %v5276, %v5275
        %v5300 = vpack.c.bf16 %v5278, %v5277
        %v5301 = vpack.c.bf16 %v5280, %v5279
        %v5302 = vpack.c.bf16 %v5282, %v5281
        %v5303 = vpack.c.bf16 %v5284, %v5283
        %v5304 = vpack.c.bf16 %v5286, %v5285
        %v5305 = vpack.c.bf16 %v5288, %v5287
        %v5306 = vpack.c.bf16 %v5290, %v5289
        %5323 = vrot.lane.b32.xlu0 %v5291, 96
        %v5324 = vpop.permute.xlu0 %5323
        %5325 = vrot.lane.b32.xlu0 %v5292, 96
        %v5326 = vpop.permute.xlu0 %5325
        %5327 = vrot.lane.b32.xlu0 %v5293, 96
        %v5328 = vpop.permute.xlu0 %5327
        %5329 = vrot.lane.b32.xlu0 %v5294, 96
        %v5330 = vpop.permute.xlu0 %5329
        %5331 = vrot.lane.b32.xlu0 %v5295, 96
        %v5332 = vpop.permute.xlu0 %5331
        %5333 = vrot.lane.b32.xlu0 %v5296, 96
        %v5334 = vpop.permute.xlu0 %5333
        %5335 = vrot.lane.b32.xlu0 %v5297, 96
        %v5336 = vpop.permute.xlu0 %5335
        %5337 = vrot.lane.b32.xlu0 %v5298, 96
        %v5338 = vpop.permute.xlu0 %5337
        %5339 = vrot.lane.b32.xlu0 %v5299, 96
        %v5340 = vpop.permute.xlu0 %5339
        %5341 = vrot.lane.b32.xlu0 %v5300, 96
        %v5342 = vpop.permute.xlu0 %5341
        %5343 = vrot.lane.b32.xlu0 %v5301, 96
        %v5344 = vpop.permute.xlu0 %5343
        %5345 = vrot.lane.b32.xlu0 %v5302, 96
        %v5346 = vpop.permute.xlu0 %5345
        %5347 = vrot.lane.b32.xlu0 %v5303, 96
        %v5348 = vpop.permute.xlu0 %5347
        %5349 = vrot.lane.b32.xlu0 %v5304, 96
        %v5350 = vpop.permute.xlu0 %5349
        %5351 = vrot.lane.b32.xlu0 %v5305, 96
        %v5352 = vpop.permute.xlu0 %5351
        %5353 = vrot.lane.b32.xlu0 %v5306, 96
        %v5354 = vpop.permute.xlu0 %5353
        %5371 = vst.msk [vmem:[#allocation4] sm:$0xff] %vm3705, %v5324
        %5372 = vst.msk [vmem:[#allocation4 + $0x18] sm:$0xff] %vm3705, %v5326
        %5373 = vst.msk [vmem:[#allocation4 + $0x30] sm:$0xff] %vm3705, %v5328
        %5374 = vst.msk [vmem:[#allocation4 + $0x48] sm:$0xff] %vm3705, %v5330
        %5375 = vst.msk [vmem:[#allocation4 + $0x60] sm:$0xff] %vm3705, %v5332
        %5376 = vst.msk [vmem:[#allocation4 + $0x78] sm:$0xff] %vm3705, %v5334
        %5377 = vst.msk [vmem:[#allocation4 + $0x90] sm:$0xff] %vm3705, %v5336
        %5378 = vst.msk [vmem:[#allocation4 + $0xa8] sm:$0xff] %vm3705, %v5338
        %5379 = vst.msk [vmem:[#allocation4 + $0xc0] sm:$0xff] %vm3705, %v5340
        %5380 = vst.msk [vmem:[#allocation4 + $0xd8] sm:$0xff] %vm3705, %v5342
        %5381 = vst.msk [vmem:[#allocation4 + $0xf0] sm:$0xff] %vm3705, %v5344
        %5382 = vst.msk [vmem:[#allocation4 + $0x108] sm:$0xff] %vm3705, %v5346
        %5383 = vst.msk [vmem:[#allocation4 + $0x120] sm:$0xff] %vm3705, %v5348
        %5384 = vst.msk [vmem:[#allocation4 + $0x138] sm:$0xff] %vm3705, %v5350
        %5385 = vst.msk [vmem:[#allocation4 + $0x150] sm:$0xff] %vm3705, %v5352
        %5386 = vst.msk [vmem:[#allocation4 + $0x168] sm:$0xff] %vm3705, %v5354
        %v5387 = vld [vmem:[%s3238 + $0x1] sm:$0xff]
        %v5388 = vld [vmem:[%s3238 + $0x9] sm:$0xff]
        %v5389 = vld [vmem:[%s3238 + $0x19] sm:$0xff]
        %v5390 = vld [vmem:[%s3238 + $0x21] sm:$0xff]
        %v5391 = vld [vmem:[%s3238 + $0x31] sm:$0xff]
        %v5392 = vld [vmem:[%s3238 + $0x39] sm:$0xff]
        %v5393 = vld [vmem:[%s3238 + $0x49] sm:$0xff]
        %v5394 = vld [vmem:[%s3238 + $0x51] sm:$0xff]
        %v5395 = vld [vmem:[%s3238 + $0x61] sm:$0xff]
        %v5396 = vld [vmem:[%s3238 + $0x69] sm:$0xff]
        %v5397 = vld [vmem:[%s3238 + $0x79] sm:$0xff]
        %v5398 = vld [vmem:[%s3238 + $0x81] sm:$0xff]
        %v5399 = vld [vmem:[%s3238 + $0x91] sm:$0xff]
        %v5400 = vld [vmem:[%s3238 + $0x99] sm:$0xff]
        %v5401 = vld [vmem:[%s3238 + $0xa9] sm:$0xff]
        %v5402 = vld [vmem:[%s3238 + $0xb1] sm:$0xff]
        %v5403 = vld [vmem:[%s3238 + $0xc1] sm:$0xff]
        %v5404 = vld [vmem:[%s3238 + $0xc9] sm:$0xff]
        %v5405 = vld [vmem:[%s3238 + $0xd9] sm:$0xff]
        %v5406 = vld [vmem:[%s3238 + $0xe1] sm:$0xff]
        %v5407 = vld [vmem:[%s3238 + $0xf1] sm:$0xff]
        %v5408 = vld [vmem:[%s3238 + $0xf9] sm:$0xff]
        %v5409 = vld [vmem:[%s3238 + $0x109] sm:$0xff]
        %v5410 = vld [vmem:[%s3238 + $0x111] sm:$0xff]
        %v5411 = vld [vmem:[%s3238 + $0x121] sm:$0xff]
        %v5412 = vld [vmem:[%s3238 + $0x129] sm:$0xff]
        %v5413 = vld [vmem:[%s3238 + $0x139] sm:$0xff]
        %v5414 = vld [vmem:[%s3238 + $0x141] sm:$0xff]
        %v5415 = vld [vmem:[%s3238 + $0x151] sm:$0xff]
        %v5416 = vld [vmem:[%s3238 + $0x159] sm:$0xff]
        %v5417 = vld [vmem:[%s3238 + $0x169] sm:$0xff]
        %v5418 = vld [vmem:[%s3238 + $0x171] sm:$0xff]
        %v5419 = vpack.c.bf16 %v5388, %v5387
        %v5420 = vpack.c.bf16 %v5390, %v5389
        %v5421 = vpack.c.bf16 %v5392, %v5391
        %v5422 = vpack.c.bf16 %v5394, %v5393
        %v5423 = vpack.c.bf16 %v5396, %v5395
        %v5424 = vpack.c.bf16 %v5398, %v5397
        %v5425 = vpack.c.bf16 %v5400, %v5399
        %v5426 = vpack.c.bf16 %v5402, %v5401
        %v5427 = vpack.c.bf16 %v5404, %v5403
        %v5428 = vpack.c.bf16 %v5406, %v5405
        %v5429 = vpack.c.bf16 %v5408, %v5407
        %v5430 = vpack.c.bf16 %v5410, %v5409
        %v5431 = vpack.c.bf16 %v5412, %v5411
        %v5432 = vpack.c.bf16 %v5414, %v5413
        %v5433 = vpack.c.bf16 %v5416, %v5415
        %v5434 = vpack.c.bf16 %v5418, %v5417
        %5435 = vst.msk [vmem:[#allocation4 + $0x8] sm:$0xff] %vm657, %v5419
        %5436 = vst.msk [vmem:[#allocation4 + $0x20] sm:$0xff] %vm657, %v5420
        %5437 = vst.msk [vmem:[#allocation4 + $0x38] sm:$0xff] %vm657, %v5421
        %5438 = vst.msk [vmem:[#allocation4 + $0x50] sm:$0xff] %vm657, %v5422
        %5439 = vst.msk [vmem:[#allocation4 + $0x68] sm:$0xff] %vm657, %v5423
        %5440 = vst.msk [vmem:[#allocation4 + $0x80] sm:$0xff] %vm657, %v5424
        %5441 = vst.msk [vmem:[#allocation4 + $0x98] sm:$0xff] %vm657, %v5425
        %5442 = vst.msk [vmem:[#allocation4 + $0xb0] sm:$0xff] %vm657, %v5426
        %5443 = vst.msk [vmem:[#allocation4 + $0xc8] sm:$0xff] %vm657, %v5427
        %5444 = vst.msk [vmem:[#allocation4 + $0xe0] sm:$0xff] %vm657, %v5428
        %5445 = vst.msk [vmem:[#allocation4 + $0xf8] sm:$0xff] %vm657, %v5429
        %5446 = vst.msk [vmem:[#allocation4 + $0x110] sm:$0xff] %vm657, %v5430
        %5447 = vst.msk [vmem:[#allocation4 + $0x128] sm:$0xff] %vm657, %v5431
        %5448 = vst.msk [vmem:[#allocation4 + $0x140] sm:$0xff] %vm657, %v5432
        %5449 = vst.msk [vmem:[#allocation4 + $0x158] sm:$0xff] %vm657, %v5433
        %5450 = vst.msk [vmem:[#allocation4 + $0x170] sm:$0xff] %vm657, %v5434
        %v5451 = vld [vmem:[%s3238 + $0x2] sm:$0xff]
        %v5452 = vld [vmem:[%s3238 + $0xa] sm:$0xff]
        %v5453 = vld [vmem:[%s3238 + $0x1a] sm:$0xff]
        %v5454 = vld [vmem:[%s3238 + $0x22] sm:$0xff]
        %v5455 = vld [vmem:[%s3238 + $0x32] sm:$0xff]
        %v5456 = vld [vmem:[%s3238 + $0x3a] sm:$0xff]
        %v5457 = vld [vmem:[%s3238 + $0x4a] sm:$0xff]
        %v5458 = vld [vmem:[%s3238 + $0x52] sm:$0xff]
        %v5459 = vld [vmem:[%s3238 + $0x62] sm:$0xff]
        %v5460 = vld [vmem:[%s3238 + $0x6a] sm:$0xff]
        %v5461 = vld [vmem:[%s3238 + $0x7a] sm:$0xff]
        %v5462 = vld [vmem:[%s3238 + $0x82] sm:$0xff]
        %v5463 = vld [vmem:[%s3238 + $0x92] sm:$0xff]
        %v5464 = vld [vmem:[%s3238 + $0x9a] sm:$0xff]
        %v5465 = vld [vmem:[%s3238 + $0xaa] sm:$0xff]
        %v5466 = vld [vmem:[%s3238 + $0xb2] sm:$0xff]
        %v5467 = vld [vmem:[%s3238 + $0xc2] sm:$0xff]
        %v5468 = vld [vmem:[%s3238 + $0xca] sm:$0xff]
        %v5469 = vld [vmem:[%s3238 + $0xda] sm:$0xff]
        %v5470 = vld [vmem:[%s3238 + $0xe2] sm:$0xff]
        %v5471 = vld [vmem:[%s3238 + $0xf2] sm:$0xff]
        %v5472 = vld [vmem:[%s3238 + $0xfa] sm:$0xff]
        %v5473 = vld [vmem:[%s3238 + $0x10a] sm:$0xff]
        %v5474 = vld [vmem:[%s3238 + $0x112] sm:$0xff]
        %v5475 = vld [vmem:[%s3238 + $0x122] sm:$0xff]
        %v5476 = vld [vmem:[%s3238 + $0x12a] sm:$0xff]
        %v5477 = vld [vmem:[%s3238 + $0x13a] sm:$0xff]
        %v5478 = vld [vmem:[%s3238 + $0x142] sm:$0xff]
        %v5479 = vld [vmem:[%s3238 + $0x152] sm:$0xff]
        %v5480 = vld [vmem:[%s3238 + $0x15a] sm:$0xff]
        %v5481 = vld [vmem:[%s3238 + $0x16a] sm:$0xff]
        %v5482 = vld [vmem:[%s3238 + $0x172] sm:$0xff]
        %v5483 = vpack.c.bf16 %v5452, %v5451
        %v5484 = vpack.c.bf16 %v5454, %v5453
        %v5485 = vpack.c.bf16 %v5456, %v5455
        %v5486 = vpack.c.bf16 %v5458, %v5457
        %v5487 = vpack.c.bf16 %v5460, %v5459
        %v5488 = vpack.c.bf16 %v5462, %v5461
        %v5489 = vpack.c.bf16 %v5464, %v5463
        %v5490 = vpack.c.bf16 %v5466, %v5465
        %v5491 = vpack.c.bf16 %v5468, %v5467
        %v5492 = vpack.c.bf16 %v5470, %v5469
        %v5493 = vpack.c.bf16 %v5472, %v5471
        %v5494 = vpack.c.bf16 %v5474, %v5473
        %v5495 = vpack.c.bf16 %v5476, %v5475
        %v5496 = vpack.c.bf16 %v5478, %v5477
        %v5497 = vpack.c.bf16 %v5480, %v5479
        %v5498 = vpack.c.bf16 %v5482, %v5481
        %5515 = vrot.lane.b32.xlu0 %v5483, 32
        %v5516 = vpop.permute.xlu0 %5515
        %5517 = vrot.lane.b32.xlu0 %v5484, 32
        %v5518 = vpop.permute.xlu0 %5517
        %5519 = vrot.lane.b32.xlu0 %v5485, 32
        %v5520 = vpop.permute.xlu0 %5519
        %5521 = vrot.lane.b32.xlu0 %v5486, 32
        %v5522 = vpop.permute.xlu0 %5521
        %5523 = vrot.lane.b32.xlu0 %v5487, 32
        %v5524 = vpop.permute.xlu0 %5523
        %5525 = vrot.lane.b32.xlu0 %v5488, 32
        %v5526 = vpop.permute.xlu0 %5525
        %5527 = vrot.lane.b32.xlu0 %v5489, 32
        %v5528 = vpop.permute.xlu0 %5527
        %5529 = vrot.lane.b32.xlu0 %v5490, 32
        %v5530 = vpop.permute.xlu0 %5529
        %5531 = vrot.lane.b32.xlu0 %v5491, 32
        %v5532 = vpop.permute.xlu0 %5531
        %5533 = vrot.lane.b32.xlu0 %v5492, 32
        %v5534 = vpop.permute.xlu0 %5533
        %5535 = vrot.lane.b32.xlu0 %v5493, 32
        %v5536 = vpop.permute.xlu0 %5535
        %5537 = vrot.lane.b32.xlu0 %v5494, 32
        %v5538 = vpop.permute.xlu0 %5537
        %5539 = vrot.lane.b32.xlu0 %v5495, 32
        %v5540 = vpop.permute.xlu0 %5539
        %5541 = vrot.lane.b32.xlu0 %v5496, 32
        %v5542 = vpop.permute.xlu0 %5541
        %5543 = vrot.lane.b32.xlu0 %v5497, 32
        %v5544 = vpop.permute.xlu0 %5543
        %5545 = vrot.lane.b32.xlu0 %v5498, 32
        %v5546 = vpop.permute.xlu0 %5545
        %5563 = vst.msk [vmem:[#allocation4 + $0x8] sm:$0xff] %vm3447, %v5516
        %5564 = vst.msk [vmem:[#allocation4 + $0x20] sm:$0xff] %vm3447, %v5518
        %5565 = vst.msk [vmem:[#allocation4 + $0x38] sm:$0xff] %vm3447, %v5520
        %5566 = vst.msk [vmem:[#allocation4 + $0x50] sm:$0xff] %vm3447, %v5522
        %5567 = vst.msk [vmem:[#allocation4 + $0x68] sm:$0xff] %vm3447, %v5524
        %5568 = vst.msk [vmem:[#allocation4 + $0x80] sm:$0xff] %vm3447, %v5526
        %5569 = vst.msk [vmem:[#allocation4 + $0x98] sm:$0xff] %vm3447, %v5528
        %5570 = vst.msk [vmem:[#allocation4 + $0xb0] sm:$0xff] %vm3447, %v5530
        %5571 = vst.msk [vmem:[#allocation4 + $0xc8] sm:$0xff] %vm3447, %v5532
        %5572 = vst.msk [vmem:[#allocation4 + $0xe0] sm:$0xff] %vm3447, %v5534
        %5573 = vst.msk [vmem:[#allocation4 + $0xf8] sm:$0xff] %vm3447, %v5536
        %5574 = vst.msk [vmem:[#allocation4 + $0x110] sm:$0xff] %vm3447, %v5538
        %5575 = vst.msk [vmem:[#allocation4 + $0x128] sm:$0xff] %vm3447, %v5540
        %5576 = vst.msk [vmem:[#allocation4 + $0x140] sm:$0xff] %vm3447, %v5542
        %5577 = vst.msk [vmem:[#allocation4 + $0x158] sm:$0xff] %vm3447, %v5544
        %5578 = vst.msk [vmem:[#allocation4 + $0x170] sm:$0xff] %vm3447, %v5546
        %v5579 = vld [vmem:[%s3914] sm:$0xff]
        %v5580 = vld [vmem:[%s3914 + $0x8] sm:$0xff]
        %v5581 = vld [vmem:[%s3914 + $0x18] sm:$0xff]
        %v5582 = vld [vmem:[%s3914 + $0x20] sm:$0xff]
        %v5583 = vld [vmem:[%s3914 + $0x30] sm:$0xff]
        %v5584 = vld [vmem:[%s3914 + $0x38] sm:$0xff]
        %v5585 = vld [vmem:[%s3914 + $0x48] sm:$0xff]
        %v5586 = vld [vmem:[%s3914 + $0x50] sm:$0xff]
        %v5587 = vld [vmem:[%s3914 + $0x60] sm:$0xff]
        %v5588 = vld [vmem:[%s3914 + $0x68] sm:$0xff]
        %v5589 = vld [vmem:[%s3914 + $0x78] sm:$0xff]
        %v5590 = vld [vmem:[%s3914 + $0x80] sm:$0xff]
        %v5591 = vld [vmem:[%s3914 + $0x90] sm:$0xff]
        %v5592 = vld [vmem:[%s3914 + $0x98] sm:$0xff]
        %v5593 = vld [vmem:[%s3914 + $0xa8] sm:$0xff]
        %v5594 = vld [vmem:[%s3914 + $0xb0] sm:$0xff]
        %v5595 = vld [vmem:[%s3914 + $0xc0] sm:$0xff]
        %v5596 = vld [vmem:[%s3914 + $0xc8] sm:$0xff]
        %v5597 = vld [vmem:[%s3914 + $0xd8] sm:$0xff]
        %v5598 = vld [vmem:[%s3914 + $0xe0] sm:$0xff]
        %v5599 = vld [vmem:[%s3914 + $0xf0] sm:$0xff]
        %v5600 = vld [vmem:[%s3914 + $0xf8] sm:$0xff]
        %v5601 = vld [vmem:[%s3914 + $0x108] sm:$0xff]
        %v5602 = vld [vmem:[%s3914 + $0x110] sm:$0xff]
        %v5603 = vld [vmem:[%s3914 + $0x120] sm:$0xff]
        %v5604 = vld [vmem:[%s3914 + $0x128] sm:$0xff]
        %v5605 = vld [vmem:[%s3914 + $0x138] sm:$0xff]
        %v5606 = vld [vmem:[%s3914 + $0x140] sm:$0xff]
        %v5607 = vld [vmem:[%s3914 + $0x150] sm:$0xff]
        %v5608 = vld [vmem:[%s3914 + $0x158] sm:$0xff]
        %v5609 = vld [vmem:[%s3914 + $0x168] sm:$0xff]
        %v5610 = vld [vmem:[%s3914 + $0x170] sm:$0xff]
        %v5611 = vpack.c.bf16 %v5580, %v5579
        %v5612 = vpack.c.bf16 %v5582, %v5581
        %v5613 = vpack.c.bf16 %v5584, %v5583
        %v5614 = vpack.c.bf16 %v5586, %v5585
        %v5615 = vpack.c.bf16 %v5588, %v5587
        %v5616 = vpack.c.bf16 %v5590, %v5589
        %v5617 = vpack.c.bf16 %v5592, %v5591
        %v5618 = vpack.c.bf16 %v5594, %v5593
        %v5619 = vpack.c.bf16 %v5596, %v5595
        %v5620 = vpack.c.bf16 %v5598, %v5597
        %v5621 = vpack.c.bf16 %v5600, %v5599
        %v5622 = vpack.c.bf16 %v5602, %v5601
        %v5623 = vpack.c.bf16 %v5604, %v5603
        %v5624 = vpack.c.bf16 %v5606, %v5605
        %v5625 = vpack.c.bf16 %v5608, %v5607
        %v5626 = vpack.c.bf16 %v5610, %v5609
        %5643 = vrot.lane.b32.xlu0 %v5611, 64
        %v5644 = vpop.permute.xlu0 %5643
        %5645 = vrot.lane.b32.xlu0 %v5612, 64
        %v5646 = vpop.permute.xlu0 %5645
        %5647 = vrot.lane.b32.xlu0 %v5613, 64
        %v5648 = vpop.permute.xlu0 %5647
        %5649 = vrot.lane.b32.xlu0 %v5614, 64
        %v5650 = vpop.permute.xlu0 %5649
        %5651 = vrot.lane.b32.xlu0 %v5615, 64
        %v5652 = vpop.permute.xlu0 %5651
        %5653 = vrot.lane.b32.xlu0 %v5616, 64
        %v5654 = vpop.permute.xlu0 %5653
        %5655 = vrot.lane.b32.xlu0 %v5617, 64
        %v5656 = vpop.permute.xlu0 %5655
        %5657 = vrot.lane.b32.xlu0 %v5618, 64
        %v5658 = vpop.permute.xlu0 %5657
        %5659 = vrot.lane.b32.xlu0 %v5619, 64
        %v5660 = vpop.permute.xlu0 %5659
        %5661 = vrot.lane.b32.xlu0 %v5620, 64
        %v5662 = vpop.permute.xlu0 %5661
        %5663 = vrot.lane.b32.xlu0 %v5621, 64
        %v5664 = vpop.permute.xlu0 %5663
        %5665 = vrot.lane.b32.xlu0 %v5622, 64
        %v5666 = vpop.permute.xlu0 %5665
        %5667 = vrot.lane.b32.xlu0 %v5623, 64
        %v5668 = vpop.permute.xlu0 %5667
        %5669 = vrot.lane.b32.xlu0 %v5624, 64
        %v5670 = vpop.permute.xlu0 %5669
        %5671 = vrot.lane.b32.xlu0 %v5625, 64
        %v5672 = vpop.permute.xlu0 %5671
        %5673 = vrot.lane.b32.xlu0 %v5626, 64
        %v5674 = vpop.permute.xlu0 %5673
        %5691 = vst.msk [vmem:[#allocation4 + $0x8] sm:$0xff] %vm3576, %v5644
        %5692 = vst.msk [vmem:[#allocation4 + $0x20] sm:$0xff] %vm3576, %v5646
        %5693 = vst.msk [vmem:[#allocation4 + $0x38] sm:$0xff] %vm3576, %v5648
        %5694 = vst.msk [vmem:[#allocation4 + $0x50] sm:$0xff] %vm3576, %v5650
        %5695 = vst.msk [vmem:[#allocation4 + $0x68] sm:$0xff] %vm3576, %v5652
        %5696 = vst.msk [vmem:[#allocation4 + $0x80] sm:$0xff] %vm3576, %v5654
        %5697 = vst.msk [vmem:[#allocation4 + $0x98] sm:$0xff] %vm3576, %v5656
        %5698 = vst.msk [vmem:[#allocation4 + $0xb0] sm:$0xff] %vm3576, %v5658
        %5699 = vst.msk [vmem:[#allocation4 + $0xc8] sm:$0xff] %vm3576, %v5660
        %5700 = vst.msk [vmem:[#allocation4 + $0xe0] sm:$0xff] %vm3576, %v5662
        %5701 = vst.msk [vmem:[#allocation4 + $0xf8] sm:$0xff] %vm3576, %v5664
        %5702 = vst.msk [vmem:[#allocation4 + $0x110] sm:$0xff] %vm3576, %v5666
        %5703 = vst.msk [vmem:[#allocation4 + $0x128] sm:$0xff] %vm3576, %v5668
        %5704 = vst.msk [vmem:[#allocation4 + $0x140] sm:$0xff] %vm3576, %v5670
        %5705 = vst.msk [vmem:[#allocation4 + $0x158] sm:$0xff] %vm3576, %v5672
        %5706 = vst.msk [vmem:[#allocation4 + $0x170] sm:$0xff] %vm3576, %v5674
        %v5707 = vld [vmem:[%s3914 + $0x1] sm:$0xff]
        %v5708 = vld [vmem:[%s3914 + $0x9] sm:$0xff]
        %v5709 = vld [vmem:[%s3914 + $0x19] sm:$0xff]
        %v5710 = vld [vmem:[%s3914 + $0x21] sm:$0xff]
        %v5711 = vld [vmem:[%s3914 + $0x31] sm:$0xff]
        %v5712 = vld [vmem:[%s3914 + $0x39] sm:$0xff]
        %v5713 = vld [vmem:[%s3914 + $0x49] sm:$0xff]
        %v5714 = vld [vmem:[%s3914 + $0x51] sm:$0xff]
        %v5715 = vld [vmem:[%s3914 + $0x61] sm:$0xff]
        %v5716 = vld [vmem:[%s3914 + $0x69] sm:$0xff]
        %v5717 = vld [vmem:[%s3914 + $0x79] sm:$0xff]
        %v5718 = vld [vmem:[%s3914 + $0x81] sm:$0xff]
        %v5719 = vld [vmem:[%s3914 + $0x91] sm:$0xff]
        %v5720 = vld [vmem:[%s3914 + $0x99] sm:$0xff]
        %v5721 = vld [vmem:[%s3914 + $0xa9] sm:$0xff]
        %v5722 = vld [vmem:[%s3914 + $0xb1] sm:$0xff]
        %v5723 = vld [vmem:[%s3914 + $0xc1] sm:$0xff]
        %v5724 = vld [vmem:[%s3914 + $0xc9] sm:$0xff]
        %v5725 = vld [vmem:[%s3914 + $0xd9] sm:$0xff]
        %v5726 = vld [vmem:[%s3914 + $0xe1] sm:$0xff]
        %v5727 = vld [vmem:[%s3914 + $0xf1] sm:$0xff]
        %v5728 = vld [vmem:[%s3914 + $0xf9] sm:$0xff]
        %v5729 = vld [vmem:[%s3914 + $0x109] sm:$0xff]
        %v5730 = vld [vmem:[%s3914 + $0x111] sm:$0xff]
        %v5731 = vld [vmem:[%s3914 + $0x121] sm:$0xff]
        %v5732 = vld [vmem:[%s3914 + $0x129] sm:$0xff]
        %v5733 = vld [vmem:[%s3914 + $0x139] sm:$0xff]
        %v5734 = vld [vmem:[%s3914 + $0x141] sm:$0xff]
        %v5735 = vld [vmem:[%s3914 + $0x151] sm:$0xff]
        %v5736 = vld [vmem:[%s3914 + $0x159] sm:$0xff]
        %v5737 = vld [vmem:[%s3914 + $0x169] sm:$0xff]
        %v5738 = vld [vmem:[%s3914 + $0x171] sm:$0xff]
        %v5739 = vpack.c.bf16 %v5708, %v5707
        %v5740 = vpack.c.bf16 %v5710, %v5709
        %v5741 = vpack.c.bf16 %v5712, %v5711
        %v5742 = vpack.c.bf16 %v5714, %v5713
        %v5743 = vpack.c.bf16 %v5716, %v5715
        %v5744 = vpack.c.bf16 %v5718, %v5717
        %v5745 = vpack.c.bf16 %v5720, %v5719
        %v5746 = vpack.c.bf16 %v5722, %v5721
        %v5747 = vpack.c.bf16 %v5724, %v5723
        %v5748 = vpack.c.bf16 %v5726, %v5725
        %v5749 = vpack.c.bf16 %v5728, %v5727
        %v5750 = vpack.c.bf16 %v5730, %v5729
        %v5751 = vpack.c.bf16 %v5732, %v5731
        %v5752 = vpack.c.bf16 %v5734, %v5733
        %v5753 = vpack.c.bf16 %v5736, %v5735
        %v5754 = vpack.c.bf16 %v5738, %v5737
        %5771 = vrot.lane.b32.xlu0 %v5739, 96
        %v5772 = vpop.permute.xlu0 %5771
        %5773 = vrot.lane.b32.xlu0 %v5740, 96
        %v5774 = vpop.permute.xlu0 %5773
        %5775 = vrot.lane.b32.xlu0 %v5741, 96
        %v5776 = vpop.permute.xlu0 %5775
        %5777 = vrot.lane.b32.xlu0 %v5742, 96
        %v5778 = vpop.permute.xlu0 %5777
        %5779 = vrot.lane.b32.xlu0 %v5743, 96
        %v5780 = vpop.permute.xlu0 %5779
        %5781 = vrot.lane.b32.xlu0 %v5744, 96
        %v5782 = vpop.permute.xlu0 %5781
        %5783 = vrot.lane.b32.xlu0 %v5745, 96
        %v5784 = vpop.permute.xlu0 %5783
        %5785 = vrot.lane.b32.xlu0 %v5746, 96
        %v5786 = vpop.permute.xlu0 %5785
        %5787 = vrot.lane.b32.xlu0 %v5747, 96
        %v5788 = vpop.permute.xlu0 %5787
        %5789 = vrot.lane.b32.xlu0 %v5748, 96
        %v5790 = vpop.permute.xlu0 %5789
        %5791 = vrot.lane.b32.xlu0 %v5749, 96
        %v5792 = vpop.permute.xlu0 %5791
        %5793 = vrot.lane.b32.xlu0 %v5750, 96
        %v5794 = vpop.permute.xlu0 %5793
        %5795 = vrot.lane.b32.xlu0 %v5751, 96
        %v5796 = vpop.permute.xlu0 %5795
        %5797 = vrot.lane.b32.xlu0 %v5752, 96
        %v5798 = vpop.permute.xlu0 %5797
        %5799 = vrot.lane.b32.xlu0 %v5753, 96
        %v5800 = vpop.permute.xlu0 %5799
        %5801 = vrot.lane.b32.xlu0 %v5754, 96
        %v5802 = vpop.permute.xlu0 %5801
        %5819 = vst.msk [vmem:[#allocation4 + $0x8] sm:$0xff] %vm3705, %v5772
        %5820 = vst.msk [vmem:[#allocation4 + $0x20] sm:$0xff] %vm3705, %v5774
        %5821 = vst.msk [vmem:[#allocation4 + $0x38] sm:$0xff] %vm3705, %v5776
        %5822 = vst.msk [vmem:[#allocation4 + $0x50] sm:$0xff] %vm3705, %v5778
        %5823 = vst.msk [vmem:[#allocation4 + $0x68] sm:$0xff] %vm3705, %v5780
        %5824 = vst.msk [vmem:[#allocation4 + $0x80] sm:$0xff] %vm3705, %v5782
        %5825 = vst.msk [vmem:[#allocation4 + $0x98] sm:$0xff] %vm3705, %v5784
        %5826 = vst.msk [vmem:[#allocation4 + $0xb0] sm:$0xff] %vm3705, %v5786
        %5827 = vst.msk [vmem:[#allocation4 + $0xc8] sm:$0xff] %vm3705, %v5788
        %5828 = vst.msk [vmem:[#allocation4 + $0xe0] sm:$0xff] %vm3705, %v5790
        %5829 = vst.msk [vmem:[#allocation4 + $0xf8] sm:$0xff] %vm3705, %v5792
        %5830 = vst.msk [vmem:[#allocation4 + $0x110] sm:$0xff] %vm3705, %v5794
        %5831 = vst.msk [vmem:[#allocation4 + $0x128] sm:$0xff] %vm3705, %v5796
        %5832 = vst.msk [vmem:[#allocation4 + $0x140] sm:$0xff] %vm3705, %v5798
        %5833 = vst.msk [vmem:[#allocation4 + $0x158] sm:$0xff] %vm3705, %v5800
        %5834 = vst.msk [vmem:[#allocation4 + $0x170] sm:$0xff] %vm3705, %v5802
        %v5835 = vld [vmem:[%s3914 + $0x2] sm:$0xff]
        %v5836 = vld [vmem:[%s3914 + $0xa] sm:$0xff]
        %v5837 = vld [vmem:[%s3914 + $0x1a] sm:$0xff]
        %v5838 = vld [vmem:[%s3914 + $0x22] sm:$0xff]
        %v5839 = vld [vmem:[%s3914 + $0x32] sm:$0xff]
        %v5840 = vld [vmem:[%s3914 + $0x3a] sm:$0xff]
        %v5841 = vld [vmem:[%s3914 + $0x4a] sm:$0xff]
        %v5842 = vld [vmem:[%s3914 + $0x52] sm:$0xff]
        %v5843 = vld [vmem:[%s3914 + $0x62] sm:$0xff]
        %v5844 = vld [vmem:[%s3914 + $0x6a] sm:$0xff]
        %v5845 = vld [vmem:[%s3914 + $0x7a] sm:$0xff]
        %v5846 = vld [vmem:[%s3914 + $0x82] sm:$0xff]
        %v5847 = vld [vmem:[%s3914 + $0x92] sm:$0xff]
        %v5848 = vld [vmem:[%s3914 + $0x9a] sm:$0xff]
        %v5849 = vld [vmem:[%s3914 + $0xaa] sm:$0xff]
        %v5850 = vld [vmem:[%s3914 + $0xb2] sm:$0xff]
        %v5851 = vld [vmem:[%s3914 + $0xc2] sm:$0xff]
        %v5852 = vld [vmem:[%s3914 + $0xca] sm:$0xff]
        %v5853 = vld [vmem:[%s3914 + $0xda] sm:$0xff]
        %v5854 = vld [vmem:[%s3914 + $0xe2] sm:$0xff]
        %v5855 = vld [vmem:[%s3914 + $0xf2] sm:$0xff]
        %v5856 = vld [vmem:[%s3914 + $0xfa] sm:$0xff]
        %v5857 = vld [vmem:[%s3914 + $0x10a] sm:$0xff]
        %v5858 = vld [vmem:[%s3914 + $0x112] sm:$0xff]
        %v5859 = vld [vmem:[%s3914 + $0x122] sm:$0xff]
        %v5860 = vld [vmem:[%s3914 + $0x12a] sm:$0xff]
        %v5861 = vld [vmem:[%s3914 + $0x13a] sm:$0xff]
        %v5862 = vld [vmem:[%s3914 + $0x142] sm:$0xff]
        %v5863 = vld [vmem:[%s3914 + $0x152] sm:$0xff]
        %v5864 = vld [vmem:[%s3914 + $0x15a] sm:$0xff]
        %v5865 = vld [vmem:[%s3914 + $0x16a] sm:$0xff]
        %v5866 = vld [vmem:[%s3914 + $0x172] sm:$0xff]
        %v5867 = vpack.c.bf16 %v5836, %v5835
        %v5868 = vpack.c.bf16 %v5838, %v5837
        %v5869 = vpack.c.bf16 %v5840, %v5839
        %v5870 = vpack.c.bf16 %v5842, %v5841
        %v5871 = vpack.c.bf16 %v5844, %v5843
        %v5872 = vpack.c.bf16 %v5846, %v5845
        %v5873 = vpack.c.bf16 %v5848, %v5847
        %v5874 = vpack.c.bf16 %v5850, %v5849
        %v5875 = vpack.c.bf16 %v5852, %v5851
        %v5876 = vpack.c.bf16 %v5854, %v5853
        %v5877 = vpack.c.bf16 %v5856, %v5855
        %v5878 = vpack.c.bf16 %v5858, %v5857
        %v5879 = vpack.c.bf16 %v5860, %v5859
        %v5880 = vpack.c.bf16 %v5862, %v5861
        %v5881 = vpack.c.bf16 %v5864, %v5863
        %v5882 = vpack.c.bf16 %v5866, %v5865
        %5883 = vst.msk [vmem:[#allocation4 + $0x10] sm:$0xff] %vm657, %v5867
        %5884 = vst.msk [vmem:[#allocation4 + $0x28] sm:$0xff] %vm657, %v5868
        %5885 = vst.msk [vmem:[#allocation4 + $0x40] sm:$0xff] %vm657, %v5869
        %5886 = vst.msk [vmem:[#allocation4 + $0x58] sm:$0xff] %vm657, %v5870
        %5887 = vst.msk [vmem:[#allocation4 + $0x70] sm:$0xff] %vm657, %v5871
        %5888 = vst.msk [vmem:[#allocation4 + $0x88] sm:$0xff] %vm657, %v5872
        %5889 = vst.msk [vmem:[#allocation4 + $0xa0] sm:$0xff] %vm657, %v5873
        %5890 = vst.msk [vmem:[#allocation4 + $0xb8] sm:$0xff] %vm657, %v5874
        %5891 = vst.msk [vmem:[#allocation4 + $0xd0] sm:$0xff] %vm657, %v5875
        %5892 = vst.msk [vmem:[#allocation4 + $0xe8] sm:$0xff] %vm657, %v5876
        %5893 = vst.msk [vmem:[#allocation4 + $0x100] sm:$0xff] %vm657, %v5877
        %5894 = vst.msk [vmem:[#allocation4 + $0x118] sm:$0xff] %vm657, %v5878
        %5895 = vst.msk [vmem:[#allocation4 + $0x130] sm:$0xff] %vm657, %v5879
        %5896 = vst.msk [vmem:[#allocation4 + $0x148] sm:$0xff] %vm657, %v5880
        %5897 = vst.msk [vmem:[#allocation4 + $0x160] sm:$0xff] %vm657, %v5881
        %5898 = vst.msk [vmem:[#allocation4 + $0x178] sm:$0xff] %vm657, %v5882
        %v5899 = vld [vmem:[#allocation4] sm:$0xff]
        %v5900 = vld [vmem:[#allocation4 + $0x8] sm:$0xff]
        %v5901 = vld [vmem:[#allocation4 + $0x10] sm:$0xff]
        %v5902 = vld [vmem:[#allocation4 + $0x18] sm:$0xff]
        %v5903 = vld [vmem:[#allocation4 + $0x20] sm:$0xff]
        %v5904 = vld [vmem:[#allocation4 + $0x28] sm:$0xff]
        %v5905 = vld [vmem:[#allocation4 + $0x30] sm:$0xff]
        %v5906 = vld [vmem:[#allocation4 + $0x38] sm:$0xff]
        %v5907 = vld [vmem:[#allocation4 + $0x40] sm:$0xff]
        %v5908 = vld [vmem:[#allocation4 + $0x48] sm:$0xff]
        %v5909 = vld [vmem:[#allocation4 + $0x50] sm:$0xff]
        %v5910 = vld [vmem:[#allocation4 + $0x58] sm:$0xff]
        %v5911 = vld [vmem:[#allocation4 + $0x60] sm:$0xff]
        %v5912 = vld [vmem:[#allocation4 + $0x68] sm:$0xff]
        %v5913 = vld [vmem:[#allocation4 + $0x70] sm:$0xff]
        %v5914 = vld [vmem:[#allocation4 + $0x78] sm:$0xff]
        %v5915 = vld [vmem:[#allocation4 + $0x80] sm:$0xff]
        %v5916 = vld [vmem:[#allocation4 + $0x88] sm:$0xff]
        %v5917 = vld [vmem:[#allocation4 + $0x90] sm:$0xff]
        %v5918 = vld [vmem:[#allocation4 + $0x98] sm:$0xff]
        %v5919 = vld [vmem:[#allocation4 + $0xa0] sm:$0xff]
        %v5920 = vld [vmem:[#allocation4 + $0xa8] sm:$0xff]
        %v5921 = vld [vmem:[#allocation4 + $0xb0] sm:$0xff]
        %v5922 = vld [vmem:[#allocation4 + $0xb8] sm:$0xff]
        %v5923 = vld [vmem:[#allocation4 + $0xc0] sm:$0xff]
        %v5924 = vld [vmem:[#allocation4 + $0xc8] sm:$0xff]
        %v5925 = vld [vmem:[#allocation4 + $0xd0] sm:$0xff]
        %v5926 = vld [vmem:[#allocation4 + $0xd8] sm:$0xff]
        %v5927 = vld [vmem:[#allocation4 + $0xe0] sm:$0xff]
        %v5928 = vld [vmem:[#allocation4 + $0xe8] sm:$0xff]
        %v5929 = vld [vmem:[#allocation4 + $0xf0] sm:$0xff]
        %v5930 = vld [vmem:[#allocation4 + $0xf8] sm:$0xff]
        %v5931 = vld [vmem:[#allocation4 + $0x100] sm:$0xff]
        %v5932 = vld [vmem:[#allocation4 + $0x108] sm:$0xff]
        %v5933 = vld [vmem:[#allocation4 + $0x110] sm:$0xff]
        %v5934 = vld [vmem:[#allocation4 + $0x118] sm:$0xff]
        %v5935 = vld [vmem:[#allocation4 + $0x120] sm:$0xff]
        %v5936 = vld [vmem:[#allocation4 + $0x128] sm:$0xff]
        %v5937 = vld [vmem:[#allocation4 + $0x130] sm:$0xff]
        %v5938 = vld [vmem:[#allocation4 + $0x138] sm:$0xff]
        %v5939 = vld [vmem:[#allocation4 + $0x140] sm:$0xff]
        %v5940 = vld [vmem:[#allocation4 + $0x148] sm:$0xff]
        %v5941 = vld [vmem:[#allocation4 + $0x150] sm:$0xff]
        %v5942 = vld [vmem:[#allocation4 + $0x158] sm:$0xff]
        %v5943 = vld [vmem:[#allocation4 + $0x160] sm:$0xff]
        %v5944 = vld [vmem:[#allocation4 + $0x168] sm:$0xff]
        %v5945 = vld [vmem:[#allocation4 + $0x170] sm:$0xff]
        %v5946 = vld [vmem:[#allocation4 + $0x178] sm:$0xff]
        %v5947 = vld [vmem:[%s7] sm:$0xf]
        %v5948 = vld [vmem:[%s7 + $0x4] sm:$0xf]
        %v5949 = vld [vmem:[%s7 + $0x8] sm:$0xf]
        %v5950 = vld [vmem:[%s7 + $0xc] sm:$0xf]
        %v5951 = vld [vmem:[%s7 + $0x10] sm:$0xf]
        %v5952 = vld [vmem:[%s7 + $0x14] sm:$0xf]
        %v5953 = vld [vmem:[%s7 + $0x18] sm:$0xf]
        %v5954 = vld [vmem:[%s7 + $0x1c] sm:$0xf]
        %v5955 = vld [vmem:[%s7 + $0x20] sm:$0xf]
        %v5956 = vld [vmem:[%s7 + $0x24] sm:$0xf]
        %v5957 = vld [vmem:[%s7 + $0x28] sm:$0xf]
        %v5958 = vld [vmem:[%s7 + $0x2c] sm:$0xf]
        %v5959 = vld [vmem:[%s7 + $0x30] sm:$0xf]
        %v5960 = vld [vmem:[%s7 + $0x34] sm:$0xf]
        %v5961 = vld [vmem:[%s7 + $0x38] sm:$0xf]
        %v5962 = vld [vmem:[%s7 + $0x3c] sm:$0xf]
        %v5963 = vld [vmem:[%s7 + $0x40] sm:$0xf]
        %v5964 = vld [vmem:[%s7 + $0x44] sm:$0xf]
        %v5965 = vld [vmem:[%s7 + $0x48] sm:$0xf]
        %v5966 = vld [vmem:[%s7 + $0x4c] sm:$0xf]
        %v5967 = vld [vmem:[%s7 + $0x50] sm:$0xf]
        %v5968 = vld [vmem:[%s7 + $0x54] sm:$0xf]
        %v5969 = vld [vmem:[%s7 + $0x58] sm:$0xf]
        %v5970 = vld [vmem:[%s7 + $0x5c] sm:$0xf]
        %v5971 = vld [vmem:[%s7 + $0x60] sm:$0xf]
        %v5972 = vld [vmem:[%s7 + $0x64] sm:$0xf]
        %v5973 = vld [vmem:[%s7 + $0x68] sm:$0xf]
        %v5974 = vld [vmem:[%s7 + $0x6c] sm:$0xf]
        %v5975 = vld [vmem:[%s7 + $0x70] sm:$0xf]
        %v5976 = vld [vmem:[%s7 + $0x74] sm:$0xf]
        %v5977 = vld [vmem:[%s7 + $0x78] sm:$0xf]
        %v5978 = vld [vmem:[%s7 + $0x7c] sm:$0xf]
        %v5979 = vld [vmem:[%s7 + $0x80] sm:$0xf]
        %v5980 = vld [vmem:[%s7 + $0x84] sm:$0xf]
        %v5981 = vld [vmem:[%s7 + $0x88] sm:$0xf]
        %v5982 = vld [vmem:[%s7 + $0x8c] sm:$0xf]
        %v6019 = vunpack.c.l.b16 %v5947
        %v6020 = vunpack.c.l.b16 %v5948
        %v6021 = vunpack.c.l.b16 %v5949
        %v6022 = vunpack.c.l.b16 %v5950
        %v6023 = vunpack.c.l.b16 %v5951
        %v6024 = vunpack.c.l.b16 %v5952
        %v6025 = vunpack.c.l.b16 %v5953
        %v6026 = vunpack.c.l.b16 %v5954
        %v6027 = vunpack.c.l.b16 %v5955
        %v6028 = vunpack.c.l.b16 %v5956
        %v6029 = vunpack.c.l.b16 %v5957
        %v6030 = vunpack.c.l.b16 %v5958
        %v6031 = vunpack.c.l.b16 %v5959
        %v6032 = vunpack.c.l.b16 %v5960
        %v6033 = vunpack.c.l.b16 %v5961
        %v6034 = vunpack.c.l.b16 %v5962
        %v6035 = vunpack.c.l.b16 %v5963
        %v6036 = vunpack.c.l.b16 %v5964
        %v6037 = vunpack.c.l.b16 %v5965
        %v6038 = vunpack.c.l.b16 %v5966
        %v6039 = vunpack.c.l.b16 %v5967
        %v6040 = vunpack.c.l.b16 %v5968
        %v6041 = vunpack.c.l.b16 %v5969
        %v6042 = vunpack.c.l.b16 %v5970
        %v6043 = vunpack.c.l.b16 %v5971
        %v6044 = vunpack.c.l.b16 %v5972
        %v6045 = vunpack.c.l.b16 %v5973
        %v6046 = vunpack.c.l.b16 %v5974
        %v6047 = vunpack.c.l.b16 %v5975
        %v6048 = vunpack.c.l.b16 %v5976
        %v6049 = vunpack.c.l.b16 %v5977
        %v6050 = vunpack.c.l.b16 %v5978
        %v6051 = vunpack.c.l.b16 %v5979
        %v6052 = vunpack.c.l.b16 %v5980
        %v6053 = vunpack.c.l.b16 %v5981
        %v6054 = vunpack.c.l.b16 %v5982
        %v6055 = vpack.c.b16 %v6020, %v6019
        %v6056 = vpack.c.b16 %v6022, %v6021
        %v6057 = vpack.c.b16 %v6024, %v6023
        %v6058 = vpack.c.b16 %v6026, %v6025
        %v6059 = vpack.c.b16 %v6028, %v6027
        %v6060 = vpack.c.b16 %v6030, %v6029
        %v6061 = vpack.c.b16 %v6032, %v6031
        %v6062 = vpack.c.b16 %v6034, %v6033
        %v6063 = vpack.c.b16 %v6036, %v6035
        %v6064 = vpack.c.b16 %v6038, %v6037
        %v6065 = vpack.c.b16 %v6040, %v6039
        %v6066 = vpack.c.b16 %v6042, %v6041
        %v6067 = vpack.c.b16 %v6044, %v6043
        %v6068 = vpack.c.b16 %v6046, %v6045
        %v6069 = vpack.c.b16 %v6048, %v6047
        %v6070 = vpack.c.b16 %v6050, %v6049
        %v6071 = vpack.c.b16 %v6052, %v6051
        %v6072 = vpack.c.b16 %v6054, %v6053
        %v6092 = vsel %vm657, %v5901, 0
        %v6095 = vsel %vm657, %v5904, 0
        %v6098 = vsel %vm657, %v5907, 0
        %v6101 = vsel %vm657, %v5910, 0
        %v6104 = vsel %vm657, %v5913, 0
        %v6107 = vsel %vm657, %v5916, 0
        %v6110 = vsel %vm657, %v5919, 0
        %v6113 = vsel %vm657, %v5922, 0
        %v6116 = vsel %vm657, %v5925, 0
        %v6119 = vsel %vm657, %v5928, 0
        %v6122 = vsel %vm657, %v5931, 0
        %v6125 = vsel %vm657, %v5934, 0
        %v6128 = vsel %vm657, %v5937, 0
        %v6131 = vsel %vm657, %v5940, 0
        %v6134 = vsel %vm657, %v5943, 0
        %v6137 = vsel %vm657, %v5946, 0
        %6139 = vmatprep.subr.bf16.mxu0 0
        %6140 = vmatpush1.bf16.msra.mxu0 %v6055
        %6141 = vmatprep.subr.bf16.mxu0 0
        %6142 = vmatpush1.bf16.msra.mxu0 %v6056
        %6143 = vmatprep.subr.bf16.mxu0 0
        %6144 = vmatpush1.bf16.msra.mxu0 %v6057
        %6145 = vmatprep.subr.bf16.mxu0 0
        %6146 = vmatpush1.bf16.msra.mxu0 %v6058
        %6147 = vmatprep.subr.bf16.mxu0 0
        %6148 = vmatpush1.bf16.msra.mxu0 %v6059
        %6149 = vmatprep.subr.bf16.mxu0 0
        %6150 = vmatpush1.bf16.msra.mxu0 %v6060
        %6151 = vmatprep.subr.bf16.mxu0 0
        %6152 = vmatpush1.bf16.msra.mxu0 %v6061
        %6153 = vmatprep.subr.bf16.mxu0 0
        %6154 = vmatpush1.bf16.msra.mxu0 %v6062
        %6155 = vmatprep.subr.bf16.mxu0 0
        %6156 = vmatpush1.bf16.msra.mxu0 %v6063
        %6157 = vmatprep.subr.bf16.mxu0 0
        %6158 = vmatpush1.bf16.msra.mxu0 %v6064
        %6159 = vmatprep.subr.bf16.mxu0 0
        %6160 = vmatpush1.bf16.msra.mxu0 %v6065
        %6161 = vmatprep.subr.bf16.mxu0 0
        %6162 = vmatpush1.bf16.msra.mxu0 %v6066
        %6163 = vmatprep.subr.bf16.mxu0 0
        %6164 = vmatpush1.bf16.msra.mxu0 %v6067
        %6165 = vmatprep.subr.bf16.mxu0 0
        %6166 = vmatpush1.bf16.msra.mxu0 %v6068
        %6167 = vmatprep.subr.bf16.mxu0 0
        %6168 = vmatpush1.bf16.msra.mxu0 %v6069
        %6169 = vmatprep.subr.bf16.mxu0 0
        %6170 = vmatpush1.bf16.msra.mxu0 %v6070
        %6171 = vmatprep.mubr.bf16.mxu0 %v5900
        %6172 = vmatmul.mubr.bf16.gmra.mrb[0].mxu0 %v5899
        %v6173 = vpop.f32.mrb[0].mxu0
        %v6174 = vadd.f32 0.0, %v6173
        %v6175 = vpop.f32.mrb[0].mxu0
        %v6176 = vpop.f32.mrb[0].mxu0
        %v6177 = vadd.f32 0.0, %v6176
        %v6178 = vpop.f32.mrb[0].mxu0
        %6179 = vmatprep.mubr.bf16.mxu0 %v5903
        %6180 = vmatmul.mubr.bf16.gmra.mrb[0].mxu0 %v5902
        %v6181 = vpop.f32.mrb[0].mxu0
        %v6182 = vadd.f32 0.0, %v6181
        %v6183 = vpop.f32.mrb[0].mxu0
        %v6184 = vpop.f32.mrb[0].mxu0
        %v6185 = vadd.f32 0.0, %v6184
        %v6186 = vpop.f32.mrb[0].mxu0
        %6187 = vmatprep.mubr.bf16.mxu0 %v5906
        %6188 = vmatmul.mubr.bf16.gmra.mrb[0].mxu0 %v5905
        %v6189 = vpop.f32.mrb[0].mxu0
        %v6190 = vadd.f32 0.0, %v6189
        %v6191 = vpop.f32.mrb[0].mxu0
        %v6192 = vpop.f32.mrb[0].mxu0
        %v6193 = vadd.f32 0.0, %v6192
        %v6194 = vpop.f32.mrb[0].mxu0
        %6195 = vmatprep.mubr.bf16.mxu0 %v5909
        %6196 = vmatmul.mubr.bf16.gmra.mrb[0].mxu0 %v5908
        %v6197 = vpop.f32.mrb[0].mxu0
        %v6198 = vadd.f32 0.0, %v6197
        %v6199 = vpop.f32.mrb[0].mxu0
        %v6200 = vpop.f32.mrb[0].mxu0
        %v6201 = vadd.f32 0.0, %v6200
        %v6202 = vpop.f32.mrb[0].mxu0
        %6203 = vmatprep.mubr.bf16.mxu0 %v5912
        %6204 = vmatmul.mubr.bf16.gmra.mrb[0].mxu0 %v5911
        %v6205 = vpop.f32.mrb[0].mxu0
        %v6206 = vadd.f32 0.0, %v6205
        %v6207 = vpop.f32.mrb[0].mxu0
        %v6208 = vpop.f32.mrb[0].mxu0
        %v6209 = vadd.f32 0.0, %v6208
        %v6210 = vpop.f32.mrb[0].mxu0
        %6211 = vmatprep.mubr.bf16.mxu0 %v5915
        %6212 = vmatmul.mubr.bf16.gmra.mrb[0].mxu0 %v5914
        %v6213 = vpop.f32.mrb[0].mxu0
        %v6214 = vadd.f32 0.0, %v6213
        %v6215 = vpop.f32.mrb[0].mxu0
        %v6216 = vpop.f32.mrb[0].mxu0
        %v6217 = vadd.f32 0.0, %v6216
        %v6218 = vpop.f32.mrb[0].mxu0
        %6219 = vmatprep.mubr.bf16.mxu0 %v5918
        %6220 = vmatmul.mubr.bf16.gmra.mrb[0].mxu0 %v5917
        %v6221 = vpop.f32.mrb[0].mxu0
        %v6222 = vadd.f32 0.0, %v6221
        %v6223 = vpop.f32.mrb[0].mxu0
        %v6224 = vpop.f32.mrb[0].mxu0
        %v6225 = vadd.f32 0.0, %v6224
        %v6226 = vpop.f32.mrb[0].mxu0
        %6227 = vmatprep.mubr.bf16.mxu0 %v5921
        %6228 = vmatmul.mubr.bf16.gmra.mrb[0].mxu0 %v5920
        %v6229 = vpop.f32.mrb[0].mxu0
        %v6230 = vadd.f32 0.0, %v6229
        %v6231 = vpop.f32.mrb[0].mxu0
        %v6232 = vpop.f32.mrb[0].mxu0
        %v6233 = vadd.f32 0.0, %v6232
        %v6234 = vpop.f32.mrb[0].mxu0
        %6235 = vmatprep.mubr.bf16.mxu0 %v5924
        %6236 = vmatmul.mubr.bf16.gmra.mrb[0].mxu0 %v5923
        %v6237 = vpop.f32.mrb[0].mxu0
        %v6238 = vadd.f32 0.0, %v6237
        %v6239 = vpop.f32.mrb[0].mxu0
        %v6240 = vpop.f32.mrb[0].mxu0
        %v6241 = vadd.f32 0.0, %v6240
        %v6242 = vpop.f32.mrb[0].mxu0
        %6243 = vmatprep.mubr.bf16.mxu0 %v5927
        %6244 = vmatmul.mubr.bf16.gmra.mrb[0].mxu0 %v5926
        %v6245 = vpop.f32.mrb[0].mxu0
        %v6246 = vadd.f32 0.0, %v6245
        %v6247 = vpop.f32.mrb[0].mxu0
        %v6248 = vpop.f32.mrb[0].mxu0
        %v6249 = vadd.f32 0.0, %v6248
        %v6250 = vpop.f32.mrb[0].mxu0
        %6251 = vmatprep.mubr.bf16.mxu0 %v5930
        %6252 = vmatmul.mubr.bf16.gmra.mrb[0].mxu0 %v5929
        %v6253 = vpop.f32.mrb[0].mxu0
        %v6254 = vadd.f32 0.0, %v6253
        %v6255 = vpop.f32.mrb[0].mxu0
        %v6256 = vpop.f32.mrb[0].mxu0
        %v6257 = vadd.f32 0.0, %v6256
        %v6258 = vpop.f32.mrb[0].mxu0
        %6259 = vmatprep.mubr.bf16.mxu0 %v5933
        %6260 = vmatmul.mubr.bf16.gmra.mrb[0].mxu0 %v5932
        %v6261 = vpop.f32.mrb[0].mxu0
        %v6262 = vadd.f32 0.0, %v6261
        %v6263 = vpop.f32.mrb[0].mxu0
        %v6264 = vpop.f32.mrb[0].mxu0
        %v6265 = vadd.f32 0.0, %v6264
        %v6266 = vpop.f32.mrb[0].mxu0
        %6267 = vmatprep.mubr.bf16.mxu0 %v5936
        %6268 = vmatmul.mubr.bf16.gmra.mrb[0].mxu0 %v5935
        %v6269 = vpop.f32.mrb[0].mxu0
        %v6270 = vadd.f32 0.0, %v6269
        %v6271 = vpop.f32.mrb[0].mxu0
        %v6272 = vpop.f32.mrb[0].mxu0
        %v6273 = vadd.f32 0.0, %v6272
        %v6274 = vpop.f32.mrb[0].mxu0
        %6275 = vmatprep.mubr.bf16.mxu0 %v5939
        %6276 = vmatmul.mubr.bf16.gmra.mrb[0].mxu0 %v5938
        %v6277 = vpop.f32.mrb[0].mxu0
        %v6278 = vadd.f32 0.0, %v6277
        %v6279 = vpop.f32.mrb[0].mxu0
        %v6280 = vpop.f32.mrb[0].mxu0
        %v6281 = vadd.f32 0.0, %v6280
        %v6282 = vpop.f32.mrb[0].mxu0
        %6283 = vmatprep.mubr.bf16.mxu0 %v5942
        %6284 = vmatmul.mubr.bf16.gmra.mrb[0].mxu0 %v5941
        %v6285 = vpop.f32.mrb[0].mxu0
        %v6286 = vadd.f32 0.0, %v6285
        %v6287 = vpop.f32.mrb[0].mxu0
        %v6288 = vpop.f32.mrb[0].mxu0
        %v6289 = vadd.f32 0.0, %v6288
        %v6290 = vpop.f32.mrb[0].mxu0
        %6291 = vmatprep.mubr.bf16.mxu0 %v5945
        %6292 = vmatmul.mubr.bf16.gmra.mrb[0].mxu0 %v5944
        %v6293 = vpop.f32.mrb[0].mxu0
        %v6294 = vadd.f32 0.0, %v6293
        %v6295 = vpop.f32.mrb[0].mxu0
        %v6296 = vpop.f32.mrb[0].mxu0
        %v6297 = vadd.f32 0.0, %v6296
        %v6298 = vpop.f32.mrb[0].mxu0
        %6299 = vdwg.mxu0
        %6300 = vmatprep.subr.bf16.mxu0 0
        %6301 = vmatpush1.bf16.msra.mxu0 %v6071
        %6302 = vmatprep.subr.bf16.mxu0 0
        %6303 = vmatpush1.bf16.msra.mxu0 %v6072
        %6304 = vmatprep.subr.bf16.mxu0 0
        %6305 = vmatpush1.bf16.msra.mxu0 0
        %6306 = vmatprep.subr.bf16.mxu0 0
        %6307 = vmatpush1.bf16.msra.mxu0 0
        %6308 = vmatprep.subr.bf16.mxu0 0
        %6309 = vmatpush1.bf16.msra.mxu0 0
        %6310 = vmatprep.subr.bf16.mxu0 0
        %6311 = vmatpush1.bf16.msra.mxu0 0
        %6312 = vmatprep.subr.bf16.mxu0 0
        %6313 = vmatpush1.bf16.msra.mxu0 0
        %6314 = vmatprep.subr.bf16.mxu0 0
        %6315 = vmatpush1.bf16.msra.mxu0 0
        %6316 = vmatprep.subr.bf16.mxu0 0
        %6317 = vmatpush1.bf16.msra.mxu0 0
        %6318 = vmatprep.subr.bf16.mxu0 0
        %6319 = vmatpush1.bf16.msra.mxu0 0
        %6320 = vmatprep.subr.bf16.mxu0 0
        %6321 = vmatpush1.bf16.msra.mxu0 0
        %6322 = vmatprep.subr.bf16.mxu0 0
        %6323 = vmatpush1.bf16.msra.mxu0 0
        %6324 = vmatprep.subr.bf16.mxu0 0
        %6325 = vmatpush1.bf16.msra.mxu0 0
        %6326 = vmatprep.subr.bf16.mxu0 0
        %6327 = vmatpush1.bf16.msra.mxu0 0
        %6328 = vmatprep.subr.bf16.mxu0 0
        %6329 = vmatpush1.bf16.msra.mxu0 0
        %6330 = vmatprep.subr.bf16.mxu0 0
        %6331 = vmatpush1.bf16.msra.mxu0 0
        %6332 = vmatprep.mubr.bf16.mxu0 0
        %6333 = vmatmul.mubr.bf16.gmra.mrb[0].mxu0 %v6092
        %v6334 = vpop.f32.mrb[0].mxu0
        %v6335 = vadd.f32 %v6174, %v6334
        %v6336 = vpop.f32.mrb[0].mxu0
        %v6337 = vpop.f32.mrb[0].mxu0
        %v6338 = vadd.f32 %v6177, %v6337
        %v6339 = vpop.f32.mrb[0].mxu0
        %6340 = vmatprep.mubr.bf16.mxu0 0
        %6341 = vmatmul.mubr.bf16.gmra.mrb[0].mxu0 %v6095
        %v6342 = vpop.f32.mrb[0].mxu0
        %v6343 = vadd.f32 %v6182, %v6342
        %v6344 = vpop.f32.mrb[0].mxu0
        %v6345 = vpop.f32.mrb[0].mxu0
        %v6346 = vadd.f32 %v6185, %v6345
        %v6347 = vpop.f32.mrb[0].mxu0
        %6348 = vmatprep.mubr.bf16.mxu0 0
        %6349 = vmatmul.mubr.bf16.gmra.mrb[0].mxu0 %v6098
        %v6350 = vpop.f32.mrb[0].mxu0
        %v6351 = vadd.f32 %v6190, %v6350
        %v6352 = vpop.f32.mrb[0].mxu0
        %v6353 = vpop.f32.mrb[0].mxu0
        %v6354 = vadd.f32 %v6193, %v6353
        %v6355 = vpop.f32.mrb[0].mxu0
        %6356 = vmatprep.mubr.bf16.mxu0 0
        %6357 = vmatmul.mubr.bf16.gmra.mrb[0].mxu0 %v6101
        %v6358 = vpop.f32.mrb[0].mxu0
        %v6359 = vadd.f32 %v6198, %v6358
        %v6360 = vpop.f32.mrb[0].mxu0
        %v6361 = vpop.f32.mrb[0].mxu0
        %v6362 = vadd.f32 %v6201, %v6361
        %v6363 = vpop.f32.mrb[0].mxu0
        %6364 = vmatprep.mubr.bf16.mxu0 0
        %6365 = vmatmul.mubr.bf16.gmra.mrb[0].mxu0 %v6104
        %v6366 = vpop.f32.mrb[0].mxu0
        %v6367 = vadd.f32 %v6206, %v6366
        %v6368 = vpop.f32.mrb[0].mxu0
        %v6369 = vpop.f32.mrb[0].mxu0
        %v6370 = vadd.f32 %v6209, %v6369
        %v6371 = vpop.f32.mrb[0].mxu0
        %6372 = vmatprep.mubr.bf16.mxu0 0
        %6373 = vmatmul.mubr.bf16.gmra.mrb[0].mxu0 %v6107
        %v6374 = vpop.f32.mrb[0].mxu0
        %v6375 = vadd.f32 %v6214, %v6374
        %v6376 = vpop.f32.mrb[0].mxu0
        %v6377 = vpop.f32.mrb[0].mxu0
        %v6378 = vadd.f32 %v6217, %v6377
        %v6379 = vpop.f32.mrb[0].mxu0
        %6380 = vmatprep.mubr.bf16.mxu0 0
        %6381 = vmatmul.mubr.bf16.gmra.mrb[0].mxu0 %v6110
        %v6382 = vpop.f32.mrb[0].mxu0
        %v6383 = vadd.f32 %v6222, %v6382
        %v6384 = vpop.f32.mrb[0].mxu0
        %v6385 = vpop.f32.mrb[0].mxu0
        %v6386 = vadd.f32 %v6225, %v6385
        %v6387 = vpop.f32.mrb[0].mxu0
        %6388 = vmatprep.mubr.bf16.mxu0 0
        %6389 = vmatmul.mubr.bf16.gmra.mrb[0].mxu0 %v6113
        %v6390 = vpop.f32.mrb[0].mxu0
        %v6391 = vadd.f32 %v6230, %v6390
        %v6392 = vpop.f32.mrb[0].mxu0
        %v6393 = vpop.f32.mrb[0].mxu0
        %v6394 = vadd.f32 %v6233, %v6393
        %v6395 = vpop.f32.mrb[0].mxu0
        %6396 = vmatprep.mubr.bf16.mxu0 0
        %6397 = vmatmul.mubr.bf16.gmra.mrb[0].mxu0 %v6116
        %v6398 = vpop.f32.mrb[0].mxu0
        %v6399 = vadd.f32 %v6238, %v6398
        %v6400 = vpop.f32.mrb[0].mxu0
        %v6401 = vpop.f32.mrb[0].mxu0
        %v6402 = vadd.f32 %v6241, %v6401
        %v6403 = vpop.f32.mrb[0].mxu0
        %6404 = vmatprep.mubr.bf16.mxu0 0
        %6405 = vmatmul.mubr.bf16.gmra.mrb[0].mxu0 %v6119
        %v6406 = vpop.f32.mrb[0].mxu0
        %v6407 = vadd.f32 %v6246, %v6406
        %v6408 = vpop.f32.mrb[0].mxu0
        %v6409 = vpop.f32.mrb[0].mxu0
        %v6410 = vadd.f32 %v6249, %v6409
        %v6411 = vpop.f32.mrb[0].mxu0
        %6412 = vmatprep.mubr.bf16.mxu0 0
        %6413 = vmatmul.mubr.bf16.gmra.mrb[0].mxu0 %v6122
        %v6414 = vpop.f32.mrb[0].mxu0
        %v6415 = vadd.f32 %v6254, %v6414
        %v6416 = vpop.f32.mrb[0].mxu0
        %v6417 = vpop.f32.mrb[0].mxu0
        %v6418 = vadd.f32 %v6257, %v6417
        %v6419 = vpop.f32.mrb[0].mxu0
        %6420 = vmatprep.mubr.bf16.mxu0 0
        %6421 = vmatmul.mubr.bf16.gmra.mrb[0].mxu0 %v6125
        %v6422 = vpop.f32.mrb[0].mxu0
        %v6423 = vadd.f32 %v6262, %v6422
        %v6424 = vpop.f32.mrb[0].mxu0
        %v6425 = vpop.f32.mrb[0].mxu0
        %v6426 = vadd.f32 %v6265, %v6425
        %v6427 = vpop.f32.mrb[0].mxu0
        %6428 = vmatprep.mubr.bf16.mxu0 0
        %6429 = vmatmul.mubr.bf16.gmra.mrb[0].mxu0 %v6128
        %v6430 = vpop.f32.mrb[0].mxu0
        %v6431 = vadd.f32 %v6270, %v6430
        %v6432 = vpop.f32.mrb[0].mxu0
        %v6433 = vpop.f32.mrb[0].mxu0
        %v6434 = vadd.f32 %v6273, %v6433
        %v6435 = vpop.f32.mrb[0].mxu0
        %6436 = vmatprep.mubr.bf16.mxu0 0
        %6437 = vmatmul.mubr.bf16.gmra.mrb[0].mxu0 %v6131
        %v6438 = vpop.f32.mrb[0].mxu0
        %v6439 = vadd.f32 %v6278, %v6438
        %v6440 = vpop.f32.mrb[0].mxu0
        %v6441 = vpop.f32.mrb[0].mxu0
        %v6442 = vadd.f32 %v6281, %v6441
        %v6443 = vpop.f32.mrb[0].mxu0
        %6444 = vmatprep.mubr.bf16.mxu0 0
        %6445 = vmatmul.mubr.bf16.gmra.mrb[0].mxu0 %v6134
        %v6446 = vpop.f32.mrb[0].mxu0
        %v6447 = vadd.f32 %v6286, %v6446
        %v6448 = vpop.f32.mrb[0].mxu0
        %v6449 = vpop.f32.mrb[0].mxu0
        %v6450 = vadd.f32 %v6289, %v6449
        %v6451 = vpop.f32.mrb[0].mxu0
        %6452 = vmatprep.mubr.bf16.mxu0 0
        %6453 = vmatmul.mubr.bf16.gmra.mrb[0].mxu0 %v6137
        %v6454 = vpop.f32.mrb[0].mxu0
        %v6455 = vadd.f32 %v6294, %v6454
        %v6456 = vpop.f32.mrb[0].mxu0
        %v6457 = vpop.f32.mrb[0].mxu0
        %v6458 = vadd.f32 %v6297, %v6457
        %v6459 = vpop.f32.mrb[0].mxu0
        %6460 = vdwg.mxu0
        %v6461 = vld [vmem:[%s8] sm:$0x1]
        %v6463 = vlaneseq
        %v6464 = vshrl.u32 %v6463, 7
        %v6465 = vsub.s32 0, %v6464
        %v6466 = vrot.slane %v6461, %v6465
        %v6468 = vmul.f32 %v6335, %v6466
        %v6469 = vmul.f32 %v6338, %v6466
        %v6470 = vmul.f32 %v6343, %v6466
        %v6471 = vmul.f32 %v6346, %v6466
        %v6472 = vmul.f32 %v6351, %v6466
        %v6473 = vmul.f32 %v6354, %v6466
        %v6474 = vmul.f32 %v6359, %v6466
        %v6475 = vmul.f32 %v6362, %v6466
        %v6476 = vmul.f32 %v6367, %v6466
        %v6477 = vmul.f32 %v6370, %v6466
        %v6478 = vmul.f32 %v6375, %v6466
        %v6479 = vmul.f32 %v6378, %v6466
        %v6480 = vmul.f32 %v6383, %v6466
        %v6481 = vmul.f32 %v6386, %v6466
        %v6482 = vmul.f32 %v6391, %v6466
        %v6483 = vmul.f32 %v6394, %v6466
        %v6484 = vmul.f32 %v6399, %v6466
        %v6485 = vmul.f32 %v6402, %v6466
        %v6486 = vmul.f32 %v6407, %v6466
        %v6487 = vmul.f32 %v6410, %v6466
        %v6488 = vmul.f32 %v6415, %v6466
        %v6489 = vmul.f32 %v6418, %v6466
        %v6490 = vmul.f32 %v6423, %v6466
        %v6491 = vmul.f32 %v6426, %v6466
        %v6492 = vmul.f32 %v6431, %v6466
        %v6493 = vmul.f32 %v6434, %v6466
        %v6494 = vmul.f32 %v6439, %v6466
        %v6495 = vmul.f32 %v6442, %v6466
        %v6496 = vmul.f32 %v6447, %v6466
        %v6497 = vmul.f32 %v6450, %v6466
        %v6498 = vmul.f32 %v6455, %v6466
        %v6499 = vmul.f32 %v6458, %v6466
        %v6500 = vld [vmem:[%s9] sm:$0x1]
        %v6502 = vlaneseq
        %v6503 = vshrl.u32 %v6502, 7
        %v6504 = vsub.s32 0, %v6503
        %v6505 = vrot.slane %v6500, %v6504
        %v6507 = vadd.f32 %v6468, %v6505
        %v6508 = vadd.f32 %v6469, %v6505
        %v6509 = vadd.f32 %v6470, %v6505
        %v6510 = vadd.f32 %v6471, %v6505
        %v6511 = vadd.f32 %v6472, %v6505
        %v6512 = vadd.f32 %v6473, %v6505
        %v6513 = vadd.f32 %v6474, %v6505
        %v6514 = vadd.f32 %v6475, %v6505
        %v6515 = vadd.f32 %v6476, %v6505
        %v6516 = vadd.f32 %v6477, %v6505
        %v6517 = vadd.f32 %v6478, %v6505
        %v6518 = vadd.f32 %v6479, %v6505
        %v6519 = vadd.f32 %v6480, %v6505
        %v6520 = vadd.f32 %v6481, %v6505
        %v6521 = vadd.f32 %v6482, %v6505
        %v6522 = vadd.f32 %v6483, %v6505
        %v6523 = vadd.f32 %v6484, %v6505
        %v6524 = vadd.f32 %v6485, %v6505
        %v6525 = vadd.f32 %v6486, %v6505
        %v6526 = vadd.f32 %v6487, %v6505
        %v6527 = vadd.f32 %v6488, %v6505
        %v6528 = vadd.f32 %v6489, %v6505
        %v6529 = vadd.f32 %v6490, %v6505
        %v6530 = vadd.f32 %v6491, %v6505
        %v6531 = vadd.f32 %v6492, %v6505
        %v6532 = vadd.f32 %v6493, %v6505
        %v6533 = vadd.f32 %v6494, %v6505
        %v6534 = vadd.f32 %v6495, %v6505
        %v6535 = vadd.f32 %v6496, %v6505
        %v6536 = vadd.f32 %v6497, %v6505
        %v6537 = vadd.f32 %v6498, %v6505
        %v6538 = vadd.f32 %v6499, %v6505
        %v6539 = vmax.f32 %v6507, 0.0
        %v6540 = vmax.f32 %v6508, 0.0
        %v6541 = vmax.f32 %v6509, 0.0
        %v6542 = vmax.f32 %v6510, 0.0
        %v6543 = vmax.f32 %v6511, 0.0
        %v6544 = vmax.f32 %v6512, 0.0
        %v6545 = vmax.f32 %v6513, 0.0
        %v6546 = vmax.f32 %v6514, 0.0
        %v6547 = vmax.f32 %v6515, 0.0
        %v6548 = vmax.f32 %v6516, 0.0
        %v6549 = vmax.f32 %v6517, 0.0
        %v6550 = vmax.f32 %v6518, 0.0
        %v6551 = vmax.f32 %v6519, 0.0
        %v6552 = vmax.f32 %v6520, 0.0
        %v6553 = vmax.f32 %v6521, 0.0
        %v6554 = vmax.f32 %v6522, 0.0
        %v6555 = vmax.f32 %v6523, 0.0
        %v6556 = vmax.f32 %v6524, 0.0
        %v6557 = vmax.f32 %v6525, 0.0
        %v6558 = vmax.f32 %v6526, 0.0
        %v6559 = vmax.f32 %v6527, 0.0
        %v6560 = vmax.f32 %v6528, 0.0
        %v6561 = vmax.f32 %v6529, 0.0
        %v6562 = vmax.f32 %v6530, 0.0
        %v6563 = vmax.f32 %v6531, 0.0
        %v6564 = vmax.f32 %v6532, 0.0
        %v6565 = vmax.f32 %v6533, 0.0
        %v6566 = vmax.f32 %v6534, 0.0
        %v6567 = vmax.f32 %v6535, 0.0
        %v6568 = vmax.f32 %v6536, 0.0
        %v6569 = vmax.f32 %v6537, 0.0
        %v6570 = vmax.f32 %v6538, 0.0
        %6571 = vst.msk [vmem:[%s3238 + $0x1] sm:$0xff] %vm657, %v6539
        %6572 = vst.msk [vmem:[%s3238 + $0x9] sm:$0xff] %vm657, %v6540
        %6573 = vst.msk [vmem:[%s3238 + $0x19] sm:$0xff] %vm657, %v6541
        %6574 = vst.msk [vmem:[%s3238 + $0x21] sm:$0xff] %vm657, %v6542
        %6575 = vst.msk [vmem:[%s3238 + $0x31] sm:$0xff] %vm657, %v6543
        %6576 = vst.msk [vmem:[%s3238 + $0x39] sm:$0xff] %vm657, %v6544
        %6577 = vst.msk [vmem:[%s3238 + $0x49] sm:$0xff] %vm657, %v6545
        %6578 = vst.msk [vmem:[%s3238 + $0x51] sm:$0xff] %vm657, %v6546
        %6579 = vst.msk [vmem:[%s3238 + $0x61] sm:$0xff] %vm657, %v6547
        %6580 = vst.msk [vmem:[%s3238 + $0x69] sm:$0xff] %vm657, %v6548
        %6581 = vst.msk [vmem:[%s3238 + $0x79] sm:$0xff] %vm657, %v6549
        %6582 = vst.msk [vmem:[%s3238 + $0x81] sm:$0xff] %vm657, %v6550
        %6583 = vst.msk [vmem:[%s3238 + $0x91] sm:$0xff] %vm657, %v6551
        %6584 = vst.msk [vmem:[%s3238 + $0x99] sm:$0xff] %vm657, %v6552
        %6585 = vst.msk [vmem:[%s3238 + $0xa9] sm:$0xff] %vm657, %v6553
        %6586 = vst.msk [vmem:[%s3238 + $0xb1] sm:$0xff] %vm657, %v6554
        %6587 = vst.msk [vmem:[%s3238 + $0xc1] sm:$0xff] %vm657, %v6555
        %6588 = vst.msk [vmem:[%s3238 + $0xc9] sm:$0xff] %vm657, %v6556
        %6589 = vst.msk [vmem:[%s3238 + $0xd9] sm:$0xff] %vm657, %v6557
        %6590 = vst.msk [vmem:[%s3238 + $0xe1] sm:$0xff] %vm657, %v6558
        %6591 = vst.msk [vmem:[%s3238 + $0xf1] sm:$0xff] %vm657, %v6559
        %6592 = vst.msk [vmem:[%s3238 + $0xf9] sm:$0xff] %vm657, %v6560
        %6593 = vst.msk [vmem:[%s3238 + $0x109] sm:$0xff] %vm657, %v6561
        %6594 = vst.msk [vmem:[%s3238 + $0x111] sm:$0xff] %vm657, %v6562
        %6595 = vst.msk [vmem:[%s3238 + $0x121] sm:$0xff] %vm657, %v6563
        %6596 = vst.msk [vmem:[%s3238 + $0x129] sm:$0xff] %vm657, %v6564
        %6597 = vst.msk [vmem:[%s3238 + $0x139] sm:$0xff] %vm657, %v6565
        %6598 = vst.msk [vmem:[%s3238 + $0x141] sm:$0xff] %vm657, %v6566
        %6599 = vst.msk [vmem:[%s3238 + $0x151] sm:$0xff] %vm657, %v6567
        %6600 = vst.msk [vmem:[%s3238 + $0x159] sm:$0xff] %vm657, %v6568
        %6601 = vst.msk [vmem:[%s3238 + $0x169] sm:$0xff] %vm657, %v6569
        %6602 = vst.msk [vmem:[%s3238 + $0x171] sm:$0xff] %vm657, %v6570
        %v6603 = vld [vmem:[#allocation3] sm:$0xff]
        %v6604 = vld [vmem:[#allocation3 + $0x8] sm:$0xff]
        %v6605 = vld [vmem:[#allocation3 + $0x18] sm:$0xff]
        %v6606 = vld [vmem:[#allocation3 + $0x20] sm:$0xff]
        %v6607 = vld [vmem:[#allocation3 + $0x30] sm:$0xff]
        %v6608 = vld [vmem:[#allocation3 + $0x38] sm:$0xff]
        %v6609 = vld [vmem:[#allocation3 + $0x48] sm:$0xff]
        %v6610 = vld [vmem:[#allocation3 + $0x50] sm:$0xff]
        %v6611 = vld [vmem:[#allocation3 + $0x60] sm:$0xff]
        %v6612 = vld [vmem:[#allocation3 + $0x68] sm:$0xff]
        %v6613 = vld [vmem:[#allocation3 + $0x78] sm:$0xff]
        %v6614 = vld [vmem:[#allocation3 + $0x80] sm:$0xff]
        %v6615 = vld [vmem:[#allocation3 + $0x90] sm:$0xff]
        %v6616 = vld [vmem:[#allocation3 + $0x98] sm:$0xff]
        %v6617 = vld [vmem:[#allocation3 + $0xa8] sm:$0xff]
        %v6618 = vld [vmem:[#allocation3 + $0xb0] sm:$0xff]
        %v6619 = vld [vmem:[#allocation3 + $0xc0] sm:$0xff]
        %v6620 = vld [vmem:[#allocation3 + $0xc8] sm:$0xff]
        %v6621 = vld [vmem:[#allocation3 + $0xd8] sm:$0xff]
        %v6622 = vld [vmem:[#allocation3 + $0xe0] sm:$0xff]
        %v6623 = vld [vmem:[#allocation3 + $0xf0] sm:$0xff]
        %v6624 = vld [vmem:[#allocation3 + $0xf8] sm:$0xff]
        %v6625 = vld [vmem:[#allocation3 + $0x108] sm:$0xff]
        %v6626 = vld [vmem:[#allocation3 + $0x110] sm:$0xff]
        %v6627 = vld [vmem:[#allocation3 + $0x120] sm:$0xff]
        %v6628 = vld [vmem:[#allocation3 + $0x128] sm:$0xff]
        %v6629 = vld [vmem:[#allocation3 + $0x138] sm:$0xff]
        %v6630 = vld [vmem:[#allocation3 + $0x140] sm:$0xff]
        %v6631 = vld [vmem:[#allocation3 + $0x150] sm:$0xff]
        %v6632 = vld [vmem:[#allocation3 + $0x158] sm:$0xff]
        %v6633 = vld [vmem:[#allocation3 + $0x168] sm:$0xff]
        %v6634 = vld [vmem:[#allocation3 + $0x170] sm:$0xff]
        %v6635 = vpack.c.bf16 %v6604, %v6603
        %v6636 = vpack.c.bf16 %v6606, %v6605
        %v6637 = vpack.c.bf16 %v6608, %v6607
        %v6638 = vpack.c.bf16 %v6610, %v6609
        %v6639 = vpack.c.bf16 %v6612, %v6611
        %v6640 = vpack.c.bf16 %v6614, %v6613
        %v6641 = vpack.c.bf16 %v6616, %v6615
        %v6642 = vpack.c.bf16 %v6618, %v6617
        %v6643 = vpack.c.bf16 %v6620, %v6619
        %v6644 = vpack.c.bf16 %v6622, %v6621
        %v6645 = vpack.c.bf16 %v6624, %v6623
        %v6646 = vpack.c.bf16 %v6626, %v6625
        %v6647 = vpack.c.bf16 %v6628, %v6627
        %v6648 = vpack.c.bf16 %v6630, %v6629
        %v6649 = vpack.c.bf16 %v6632, %v6631
        %v6650 = vpack.c.bf16 %v6634, %v6633
        %6651 = vst.msk [vmem:[#allocation4] sm:$0xff] %vm657, %v6635
        %6652 = vst.msk [vmem:[#allocation4 + $0x18] sm:$0xff] %vm657, %v6636
        %6653 = vst.msk [vmem:[#allocation4 + $0x30] sm:$0xff] %vm657, %v6637
        %6654 = vst.msk [vmem:[#allocation4 + $0x48] sm:$0xff] %vm657, %v6638
        %6655 = vst.msk [vmem:[#allocation4 + $0x60] sm:$0xff] %vm657, %v6639
        %6656 = vst.msk [vmem:[#allocation4 + $0x78] sm:$0xff] %vm657, %v6640
        %6657 = vst.msk [vmem:[#allocation4 + $0x90] sm:$0xff] %vm657, %v6641
        %6658 = vst.msk [vmem:[#allocation4 + $0xa8] sm:$0xff] %vm657, %v6642
        %6659 = vst.msk [vmem:[#allocation4 + $0xc0] sm:$0xff] %vm657, %v6643
        %6660 = vst.msk [vmem:[#allocation4 + $0xd8] sm:$0xff] %vm657, %v6644
        %6661 = vst.msk [vmem:[#allocation4 + $0xf0] sm:$0xff] %vm657, %v6645
        %6662 = vst.msk [vmem:[#allocation4 + $0x108] sm:$0xff] %vm657, %v6646
        %6663 = vst.msk [vmem:[#allocation4 + $0x120] sm:$0xff] %vm657, %v6647
        %6664 = vst.msk [vmem:[#allocation4 + $0x138] sm:$0xff] %vm657, %v6648
        %6665 = vst.msk [vmem:[#allocation4 + $0x150] sm:$0xff] %vm657, %v6649
        %6666 = vst.msk [vmem:[#allocation4 + $0x168] sm:$0xff] %vm657, %v6650
        %v6667 = vld [vmem:[#allocation3 + $0x1] sm:$0xff]
        %v6668 = vld [vmem:[#allocation3 + $0x9] sm:$0xff]
        %v6669 = vld [vmem:[#allocation3 + $0x19] sm:$0xff]
        %v6670 = vld [vmem:[#allocation3 + $0x21] sm:$0xff]
        %v6671 = vld [vmem:[#allocation3 + $0x31] sm:$0xff]
        %v6672 = vld [vmem:[#allocation3 + $0x39] sm:$0xff]
        %v6673 = vld [vmem:[#allocation3 + $0x49] sm:$0xff]
        %v6674 = vld [vmem:[#allocation3 + $0x51] sm:$0xff]
        %v6675 = vld [vmem:[#allocation3 + $0x61] sm:$0xff]
        %v6676 = vld [vmem:[#allocation3 + $0x69] sm:$0xff]
        %v6677 = vld [vmem:[#allocation3 + $0x79] sm:$0xff]
        %v6678 = vld [vmem:[#allocation3 + $0x81] sm:$0xff]
        %v6679 = vld [vmem:[#allocation3 + $0x91] sm:$0xff]
        %v6680 = vld [vmem:[#allocation3 + $0x99] sm:$0xff]
        %v6681 = vld [vmem:[#allocation3 + $0xa9] sm:$0xff]
        %v6682 = vld [vmem:[#allocation3 + $0xb1] sm:$0xff]
        %v6683 = vld [vmem:[#allocation3 + $0xc1] sm:$0xff]
        %v6684 = vld [vmem:[#allocation3 + $0xc9] sm:$0xff]
        %v6685 = vld [vmem:[#allocation3 + $0xd9] sm:$0xff]
        %v6686 = vld [vmem:[#allocation3 + $0xe1] sm:$0xff]
        %v6687 = vld [vmem:[#allocation3 + $0xf1] sm:$0xff]
        %v6688 = vld [vmem:[#allocation3 + $0xf9] sm:$0xff]
        %v6689 = vld [vmem:[#allocation3 + $0x109] sm:$0xff]
        %v6690 = vld [vmem:[#allocation3 + $0x111] sm:$0xff]
        %v6691 = vld [vmem:[#allocation3 + $0x121] sm:$0xff]
        %v6692 = vld [vmem:[#allocation3 + $0x129] sm:$0xff]
        %v6693 = vld [vmem:[#allocation3 + $0x139] sm:$0xff]
        %v6694 = vld [vmem:[#allocation3 + $0x141] sm:$0xff]
        %v6695 = vld [vmem:[#allocation3 + $0x151] sm:$0xff]
        %v6696 = vld [vmem:[#allocation3 + $0x159] sm:$0xff]
        %v6697 = vld [vmem:[#allocation3 + $0x169] sm:$0xff]
        %v6698 = vld [vmem:[#allocation3 + $0x171] sm:$0xff]
        %v6699 = vpack.c.bf16 %v6668, %v6667
        %v6700 = vpack.c.bf16 %v6670, %v6669
        %v6701 = vpack.c.bf16 %v6672, %v6671
        %v6702 = vpack.c.bf16 %v6674, %v6673
        %v6703 = vpack.c.bf16 %v6676, %v6675
        %v6704 = vpack.c.bf16 %v6678, %v6677
        %v6705 = vpack.c.bf16 %v6680, %v6679
        %v6706 = vpack.c.bf16 %v6682, %v6681
        %v6707 = vpack.c.bf16 %v6684, %v6683
        %v6708 = vpack.c.bf16 %v6686, %v6685
        %v6709 = vpack.c.bf16 %v6688, %v6687
        %v6710 = vpack.c.bf16 %v6690, %v6689
        %v6711 = vpack.c.bf16 %v6692, %v6691
        %v6712 = vpack.c.bf16 %v6694, %v6693
        %v6713 = vpack.c.bf16 %v6696, %v6695
        %v6714 = vpack.c.bf16 %v6698, %v6697
        %6731 = vrot.lane.b32.xlu0 %v6699, 32
        %v6732 = vpop.permute.xlu0 %6731
        %6733 = vrot.lane.b32.xlu0 %v6700, 32
        %v6734 = vpop.permute.xlu0 %6733
        %6735 = vrot.lane.b32.xlu0 %v6701, 32
        %v6736 = vpop.permute.xlu0 %6735
        %6737 = vrot.lane.b32.xlu0 %v6702, 32
        %v6738 = vpop.permute.xlu0 %6737
        %6739 = vrot.lane.b32.xlu0 %v6703, 32
        %v6740 = vpop.permute.xlu0 %6739
        %6741 = vrot.lane.b32.xlu0 %v6704, 32
        %v6742 = vpop.permute.xlu0 %6741
        %6743 = vrot.lane.b32.xlu0 %v6705, 32
        %v6744 = vpop.permute.xlu0 %6743
        %6745 = vrot.lane.b32.xlu0 %v6706, 32
        %v6746 = vpop.permute.xlu0 %6745
        %6747 = vrot.lane.b32.xlu0 %v6707, 32
        %v6748 = vpop.permute.xlu0 %6747
        %6749 = vrot.lane.b32.xlu0 %v6708, 32
        %v6750 = vpop.permute.xlu0 %6749
        %6751 = vrot.lane.b32.xlu0 %v6709, 32
        %v6752 = vpop.permute.xlu0 %6751
        %6753 = vrot.lane.b32.xlu0 %v6710, 32
        %v6754 = vpop.permute.xlu0 %6753
        %6755 = vrot.lane.b32.xlu0 %v6711, 32
        %v6756 = vpop.permute.xlu0 %6755
        %6757 = vrot.lane.b32.xlu0 %v6712, 32
        %v6758 = vpop.permute.xlu0 %6757
        %6759 = vrot.lane.b32.xlu0 %v6713, 32
        %v6760 = vpop.permute.xlu0 %6759
        %6761 = vrot.lane.b32.xlu0 %v6714, 32
        %v6762 = vpop.permute.xlu0 %6761
        %6779 = vst.msk [vmem:[#allocation4] sm:$0xff] %vm3447, %v6732
        %6780 = vst.msk [vmem:[#allocation4 + $0x18] sm:$0xff] %vm3447, %v6734
        %6781 = vst.msk [vmem:[#allocation4 + $0x30] sm:$0xff] %vm3447, %v6736
        %6782 = vst.msk [vmem:[#allocation4 + $0x48] sm:$0xff] %vm3447, %v6738
        %6783 = vst.msk [vmem:[#allocation4 + $0x60] sm:$0xff] %vm3447, %v6740
        %6784 = vst.msk [vmem:[#allocation4 + $0x78] sm:$0xff] %vm3447, %v6742
        %6785 = vst.msk [vmem:[#allocation4 + $0x90] sm:$0xff] %vm3447, %v6744
        %6786 = vst.msk [vmem:[#allocation4 + $0xa8] sm:$0xff] %vm3447, %v6746
        %6787 = vst.msk [vmem:[#allocation4 + $0xc0] sm:$0xff] %vm3447, %v6748
        %6788 = vst.msk [vmem:[#allocation4 + $0xd8] sm:$0xff] %vm3447, %v6750
        %6789 = vst.msk [vmem:[#allocation4 + $0xf0] sm:$0xff] %vm3447, %v6752
        %6790 = vst.msk [vmem:[#allocation4 + $0x108] sm:$0xff] %vm3447, %v6754
        %6791 = vst.msk [vmem:[#allocation4 + $0x120] sm:$0xff] %vm3447, %v6756
        %6792 = vst.msk [vmem:[#allocation4 + $0x138] sm:$0xff] %vm3447, %v6758
        %6793 = vst.msk [vmem:[#allocation4 + $0x150] sm:$0xff] %vm3447, %v6760
        %6794 = vst.msk [vmem:[#allocation4 + $0x168] sm:$0xff] %vm3447, %v6762
        %v6795 = vld [vmem:[#allocation3 + $0x2] sm:$0xff]
        %v6796 = vld [vmem:[#allocation3 + $0xa] sm:$0xff]
        %v6797 = vld [vmem:[#allocation3 + $0x1a] sm:$0xff]
        %v6798 = vld [vmem:[#allocation3 + $0x22] sm:$0xff]
        %v6799 = vld [vmem:[#allocation3 + $0x32] sm:$0xff]
        %v6800 = vld [vmem:[#allocation3 + $0x3a] sm:$0xff]
        %v6801 = vld [vmem:[#allocation3 + $0x4a] sm:$0xff]
        %v6802 = vld [vmem:[#allocation3 + $0x52] sm:$0xff]
        %v6803 = vld [vmem:[#allocation3 + $0x62] sm:$0xff]
        %v6804 = vld [vmem:[#allocation3 + $0x6a] sm:$0xff]
        %v6805 = vld [vmem:[#allocation3 + $0x7a] sm:$0xff]
        %v6806 = vld [vmem:[#allocation3 + $0x82] sm:$0xff]
        %v6807 = vld [vmem:[#allocation3 + $0x92] sm:$0xff]
        %v6808 = vld [vmem:[#allocation3 + $0x9a] sm:$0xff]
        %v6809 = vld [vmem:[#allocation3 + $0xaa] sm:$0xff]
        %v6810 = vld [vmem:[#allocation3 + $0xb2] sm:$0xff]
        %v6811 = vld [vmem:[#allocation3 + $0xc2] sm:$0xff]
        %v6812 = vld [vmem:[#allocation3 + $0xca] sm:$0xff]
        %v6813 = vld [vmem:[#allocation3 + $0xda] sm:$0xff]
        %v6814 = vld [vmem:[#allocation3 + $0xe2] sm:$0xff]
        %v6815 = vld [vmem:[#allocation3 + $0xf2] sm:$0xff]
        %v6816 = vld [vmem:[#allocation3 + $0xfa] sm:$0xff]
        %v6817 = vld [vmem:[#allocation3 + $0x10a] sm:$0xff]
        %v6818 = vld [vmem:[#allocation3 + $0x112] sm:$0xff]
        %v6819 = vld [vmem:[#allocation3 + $0x122] sm:$0xff]
        %v6820 = vld [vmem:[#allocation3 + $0x12a] sm:$0xff]
        %v6821 = vld [vmem:[#allocation3 + $0x13a] sm:$0xff]
        %v6822 = vld [vmem:[#allocation3 + $0x142] sm:$0xff]
        %v6823 = vld [vmem:[#allocation3 + $0x152] sm:$0xff]
        %v6824 = vld [vmem:[#allocation3 + $0x15a] sm:$0xff]
        %v6825 = vld [vmem:[#allocation3 + $0x16a] sm:$0xff]
        %v6826 = vld [vmem:[#allocation3 + $0x172] sm:$0xff]
        %v6827 = vpack.c.bf16 %v6796, %v6795
        %v6828 = vpack.c.bf16 %v6798, %v6797
        %v6829 = vpack.c.bf16 %v6800, %v6799
        %v6830 = vpack.c.bf16 %v6802, %v6801
        %v6831 = vpack.c.bf16 %v6804, %v6803
        %v6832 = vpack.c.bf16 %v6806, %v6805
        %v6833 = vpack.c.bf16 %v6808, %v6807
        %v6834 = vpack.c.bf16 %v6810, %v6809
        %v6835 = vpack.c.bf16 %v6812, %v6811
        %v6836 = vpack.c.bf16 %v6814, %v6813
        %v6837 = vpack.c.bf16 %v6816, %v6815
        %v6838 = vpack.c.bf16 %v6818, %v6817
        %v6839 = vpack.c.bf16 %v6820, %v6819
        %v6840 = vpack.c.bf16 %v6822, %v6821
        %v6841 = vpack.c.bf16 %v6824, %v6823
        %v6842 = vpack.c.bf16 %v6826, %v6825
        %6859 = vrot.lane.b32.xlu0 %v6827, 64
        %v6860 = vpop.permute.xlu0 %6859
        %6861 = vrot.lane.b32.xlu0 %v6828, 64
        %v6862 = vpop.permute.xlu0 %6861
        %6863 = vrot.lane.b32.xlu0 %v6829, 64
        %v6864 = vpop.permute.xlu0 %6863
        %6865 = vrot.lane.b32.xlu0 %v6830, 64
        %v6866 = vpop.permute.xlu0 %6865
        %6867 = vrot.lane.b32.xlu0 %v6831, 64
        %v6868 = vpop.permute.xlu0 %6867
        %6869 = vrot.lane.b32.xlu0 %v6832, 64
        %v6870 = vpop.permute.xlu0 %6869
        %6871 = vrot.lane.b32.xlu0 %v6833, 64
        %v6872 = vpop.permute.xlu0 %6871
        %6873 = vrot.lane.b32.xlu0 %v6834, 64
        %v6874 = vpop.permute.xlu0 %6873
        %6875 = vrot.lane.b32.xlu0 %v6835, 64
        %v6876 = vpop.permute.xlu0 %6875
        %6877 = vrot.lane.b32.xlu0 %v6836, 64
        %v6878 = vpop.permute.xlu0 %6877
        %6879 = vrot.lane.b32.xlu0 %v6837, 64
        %v6880 = vpop.permute.xlu0 %6879
        %6881 = vrot.lane.b32.xlu0 %v6838, 64
        %v6882 = vpop.permute.xlu0 %6881
        %6883 = vrot.lane.b32.xlu0 %v6839, 64
        %v6884 = vpop.permute.xlu0 %6883
        %6885 = vrot.lane.b32.xlu0 %v6840, 64
        %v6886 = vpop.permute.xlu0 %6885
        %6887 = vrot.lane.b32.xlu0 %v6841, 64
        %v6888 = vpop.permute.xlu0 %6887
        %6889 = vrot.lane.b32.xlu0 %v6842, 64
        %v6890 = vpop.permute.xlu0 %6889
        %6907 = vst.msk [vmem:[#allocation4] sm:$0xff] %vm3576, %v6860
        %6908 = vst.msk [vmem:[#allocation4 + $0x18] sm:$0xff] %vm3576, %v6862
        %6909 = vst.msk [vmem:[#allocation4 + $0x30] sm:$0xff] %vm3576, %v6864
        %6910 = vst.msk [vmem:[#allocation4 + $0x48] sm:$0xff] %vm3576, %v6866
        %6911 = vst.msk [vmem:[#allocation4 + $0x60] sm:$0xff] %vm3576, %v6868
        %6912 = vst.msk [vmem:[#allocation4 + $0x78] sm:$0xff] %vm3576, %v6870
        %6913 = vst.msk [vmem:[#allocation4 + $0x90] sm:$0xff] %vm3576, %v6872
        %6914 = vst.msk [vmem:[#allocation4 + $0xa8] sm:$0xff] %vm3576, %v6874
        %6915 = vst.msk [vmem:[#allocation4 + $0xc0] sm:$0xff] %vm3576, %v6876
        %6916 = vst.msk [vmem:[#allocation4 + $0xd8] sm:$0xff] %vm3576, %v6878
        %6917 = vst.msk [vmem:[#allocation4 + $0xf0] sm:$0xff] %vm3576, %v6880
        %6918 = vst.msk [vmem:[#allocation4 + $0x108] sm:$0xff] %vm3576, %v6882
        %6919 = vst.msk [vmem:[#allocation4 + $0x120] sm:$0xff] %vm3576, %v6884
        %6920 = vst.msk [vmem:[#allocation4 + $0x138] sm:$0xff] %vm3576, %v6886
        %6921 = vst.msk [vmem:[#allocation4 + $0x150] sm:$0xff] %vm3576, %v6888
        %6922 = vst.msk [vmem:[#allocation4 + $0x168] sm:$0xff] %vm3576, %v6890
        %v6923 = vld [vmem:[%s3238] sm:$0xff]
        %v6924 = vld [vmem:[%s3238 + $0x8] sm:$0xff]
        %v6925 = vld [vmem:[%s3238 + $0x18] sm:$0xff]
        %v6926 = vld [vmem:[%s3238 + $0x20] sm:$0xff]
        %v6927 = vld [vmem:[%s3238 + $0x30] sm:$0xff]
        %v6928 = vld [vmem:[%s3238 + $0x38] sm:$0xff]
        %v6929 = vld [vmem:[%s3238 + $0x48] sm:$0xff]
        %v6930 = vld [vmem:[%s3238 + $0x50] sm:$0xff]
        %v6931 = vld [vmem:[%s3238 + $0x60] sm:$0xff]
        %v6932 = vld [vmem:[%s3238 + $0x68] sm:$0xff]
        %v6933 = vld [vmem:[%s3238 + $0x78] sm:$0xff]
        %v6934 = vld [vmem:[%s3238 + $0x80] sm:$0xff]
        %v6935 = vld [vmem:[%s3238 + $0x90] sm:$0xff]
        %v6936 = vld [vmem:[%s3238 + $0x98] sm:$0xff]
        %v6937 = vld [vmem:[%s3238 + $0xa8] sm:$0xff]
        %v6938 = vld [vmem:[%s3238 + $0xb0] sm:$0xff]
        %v6939 = vld [vmem:[%s3238 + $0xc0] sm:$0xff]
        %v6940 = vld [vmem:[%s3238 + $0xc8] sm:$0xff]
        %v6941 = vld [vmem:[%s3238 + $0xd8] sm:$0xff]
        %v6942 = vld [vmem:[%s3238 + $0xe0] sm:$0xff]
        %v6943 = vld [vmem:[%s3238 + $0xf0] sm:$0xff]
        %v6944 = vld [vmem:[%s3238 + $0xf8] sm:$0xff]
        %v6945 = vld [vmem:[%s3238 + $0x108] sm:$0xff]
        %v6946 = vld [vmem:[%s3238 + $0x110] sm:$0xff]
        %v6947 = vld [vmem:[%s3238 + $0x120] sm:$0xff]
        %v6948 = vld [vmem:[%s3238 + $0x128] sm:$0xff]
        %v6949 = vld [vmem:[%s3238 + $0x138] sm:$0xff]
        %v6950 = vld [vmem:[%s3238 + $0x140] sm:$0xff]
        %v6951 = vld [vmem:[%s3238 + $0x150] sm:$0xff]
        %v6952 = vld [vmem:[%s3238 + $0x158] sm:$0xff]
        %v6953 = vld [vmem:[%s3238 + $0x168] sm:$0xff]
        %v6954 = vld [vmem:[%s3238 + $0x170] sm:$0xff]
        %v6955 = vpack.c.bf16 %v6924, %v6923
        %v6956 = vpack.c.bf16 %v6926, %v6925
        %v6957 = vpack.c.bf16 %v6928, %v6927
        %v6958 = vpack.c.bf16 %v6930, %v6929
        %v6959 = vpack.c.bf16 %v6932, %v6931
        %v6960 = vpack.c.bf16 %v6934, %v6933
        %v6961 = vpack.c.bf16 %v6936, %v6935
        %v6962 = vpack.c.bf16 %v6938, %v6937
        %v6963 = vpack.c.bf16 %v6940, %v6939
        %v6964 = vpack.c.bf16 %v6942, %v6941
        %v6965 = vpack.c.bf16 %v6944, %v6943
        %v6966 = vpack.c.bf16 %v6946, %v6945
        %v6967 = vpack.c.bf16 %v6948, %v6947
        %v6968 = vpack.c.bf16 %v6950, %v6949
        %v6969 = vpack.c.bf16 %v6952, %v6951
        %v6970 = vpack.c.bf16 %v6954, %v6953
        %6987 = vrot.lane.b32.xlu0 %v6955, 96
        %v6988 = vpop.permute.xlu0 %6987
        %6989 = vrot.lane.b32.xlu0 %v6956, 96
        %v6990 = vpop.permute.xlu0 %6989
        %6991 = vrot.lane.b32.xlu0 %v6957, 96
        %v6992 = vpop.permute.xlu0 %6991
        %6993 = vrot.lane.b32.xlu0 %v6958, 96
        %v6994 = vpop.permute.xlu0 %6993
        %6995 = vrot.lane.b32.xlu0 %v6959, 96
        %v6996 = vpop.permute.xlu0 %6995
        %6997 = vrot.lane.b32.xlu0 %v6960, 96
        %v6998 = vpop.permute.xlu0 %6997
        %6999 = vrot.lane.b32.xlu0 %v6961, 96
        %v7000 = vpop.permute.xlu0 %6999
        %7001 = vrot.lane.b32.xlu0 %v6962, 96
        %v7002 = vpop.permute.xlu0 %7001
        %7003 = vrot.lane.b32.xlu0 %v6963, 96
        %v7004 = vpop.permute.xlu0 %7003
        %7005 = vrot.lane.b32.xlu0 %v6964, 96
        %v7006 = vpop.permute.xlu0 %7005
        %7007 = vrot.lane.b32.xlu0 %v6965, 96
        %v7008 = vpop.permute.xlu0 %7007
        %7009 = vrot.lane.b32.xlu0 %v6966, 96
        %v7010 = vpop.permute.xlu0 %7009
        %7011 = vrot.lane.b32.xlu0 %v6967, 96
        %v7012 = vpop.permute.xlu0 %7011
        %7013 = vrot.lane.b32.xlu0 %v6968, 96
        %v7014 = vpop.permute.xlu0 %7013
        %7015 = vrot.lane.b32.xlu0 %v6969, 96
        %v7016 = vpop.permute.xlu0 %7015
        %7017 = vrot.lane.b32.xlu0 %v6970, 96
        %v7018 = vpop.permute.xlu0 %7017
        %7035 = vst.msk [vmem:[#allocation4] sm:$0xff] %vm3705, %v6988
        %7036 = vst.msk [vmem:[#allocation4 + $0x18] sm:$0xff] %vm3705, %v6990
        %7037 = vst.msk [vmem:[#allocation4 + $0x30] sm:$0xff] %vm3705, %v6992
        %7038 = vst.msk [vmem:[#allocation4 + $0x48] sm:$0xff] %vm3705, %v6994
        %7039 = vst.msk [vmem:[#allocation4 + $0x60] sm:$0xff] %vm3705, %v6996
        %7040 = vst.msk [vmem:[#allocation4 + $0x78] sm:$0xff] %vm3705, %v6998
        %7041 = vst.msk [vmem:[#allocation4 + $0x90] sm:$0xff] %vm3705, %v7000
        %7042 = vst.msk [vmem:[#allocation4 + $0xa8] sm:$0xff] %vm3705, %v7002
        %7043 = vst.msk [vmem:[#allocation4 + $0xc0] sm:$0xff] %vm3705, %v7004
        %7044 = vst.msk [vmem:[#allocation4 + $0xd8] sm:$0xff] %vm3705, %v7006
        %7045 = vst.msk [vmem:[#allocation4 + $0xf0] sm:$0xff] %vm3705, %v7008
        %7046 = vst.msk [vmem:[#allocation4 + $0x108] sm:$0xff] %vm3705, %v7010
        %7047 = vst.msk [vmem:[#allocation4 + $0x120] sm:$0xff] %vm3705, %v7012
        %7048 = vst.msk [vmem:[#allocation4 + $0x138] sm:$0xff] %vm3705, %v7014
        %7049 = vst.msk [vmem:[#allocation4 + $0x150] sm:$0xff] %vm3705, %v7016
        %7050 = vst.msk [vmem:[#allocation4 + $0x168] sm:$0xff] %vm3705, %v7018
        %v7051 = vld [vmem:[%s3238 + $0x1] sm:$0xff]
        %v7052 = vld [vmem:[%s3238 + $0x9] sm:$0xff]
        %v7053 = vld [vmem:[%s3238 + $0x19] sm:$0xff]
        %v7054 = vld [vmem:[%s3238 + $0x21] sm:$0xff]
        %v7055 = vld [vmem:[%s3238 + $0x31] sm:$0xff]
        %v7056 = vld [vmem:[%s3238 + $0x39] sm:$0xff]
        %v7057 = vld [vmem:[%s3238 + $0x49] sm:$0xff]
        %v7058 = vld [vmem:[%s3238 + $0x51] sm:$0xff]
        %v7059 = vld [vmem:[%s3238 + $0x61] sm:$0xff]
        %v7060 = vld [vmem:[%s3238 + $0x69] sm:$0xff]
        %v7061 = vld [vmem:[%s3238 + $0x79] sm:$0xff]
        %v7062 = vld [vmem:[%s3238 + $0x81] sm:$0xff]
        %v7063 = vld [vmem:[%s3238 + $0x91] sm:$0xff]
        %v7064 = vld [vmem:[%s3238 + $0x99] sm:$0xff]
        %v7065 = vld [vmem:[%s3238 + $0xa9] sm:$0xff]
        %v7066 = vld [vmem:[%s3238 + $0xb1] sm:$0xff]
        %v7067 = vld [vmem:[%s3238 + $0xc1] sm:$0xff]
        %v7068 = vld [vmem:[%s3238 + $0xc9] sm:$0xff]
        %v7069 = vld [vmem:[%s3238 + $0xd9] sm:$0xff]
        %v7070 = vld [vmem:[%s3238 + $0xe1] sm:$0xff]
        %v7071 = vld [vmem:[%s3238 + $0xf1] sm:$0xff]
        %v7072 = vld [vmem:[%s3238 + $0xf9] sm:$0xff]
        %v7073 = vld [vmem:[%s3238 + $0x109] sm:$0xff]
        %v7074 = vld [vmem:[%s3238 + $0x111] sm:$0xff]
        %v7075 = vld [vmem:[%s3238 + $0x121] sm:$0xff]
        %v7076 = vld [vmem:[%s3238 + $0x129] sm:$0xff]
        %v7077 = vld [vmem:[%s3238 + $0x139] sm:$0xff]
        %v7078 = vld [vmem:[%s3238 + $0x141] sm:$0xff]
        %v7079 = vld [vmem:[%s3238 + $0x151] sm:$0xff]
        %v7080 = vld [vmem:[%s3238 + $0x159] sm:$0xff]
        %v7081 = vld [vmem:[%s3238 + $0x169] sm:$0xff]
        %v7082 = vld [vmem:[%s3238 + $0x171] sm:$0xff]
        %v7083 = vpack.c.bf16 %v7052, %v7051
        %v7084 = vpack.c.bf16 %v7054, %v7053
        %v7085 = vpack.c.bf16 %v7056, %v7055
        %v7086 = vpack.c.bf16 %v7058, %v7057
        %v7087 = vpack.c.bf16 %v7060, %v7059
        %v7088 = vpack.c.bf16 %v7062, %v7061
        %v7089 = vpack.c.bf16 %v7064, %v7063
        %v7090 = vpack.c.bf16 %v7066, %v7065
        %v7091 = vpack.c.bf16 %v7068, %v7067
        %v7092 = vpack.c.bf16 %v7070, %v7069
        %v7093 = vpack.c.bf16 %v7072, %v7071
        %v7094 = vpack.c.bf16 %v7074, %v7073
        %v7095 = vpack.c.bf16 %v7076, %v7075
        %v7096 = vpack.c.bf16 %v7078, %v7077
        %v7097 = vpack.c.bf16 %v7080, %v7079
        %v7098 = vpack.c.bf16 %v7082, %v7081
        %7099 = vst.msk [vmem:[#allocation4 + $0x8] sm:$0xff] %vm657, %v7083
        %7100 = vst.msk [vmem:[#allocation4 + $0x20] sm:$0xff] %vm657, %v7084
        %7101 = vst.msk [vmem:[#allocation4 + $0x38] sm:$0xff] %vm657, %v7085
        %7102 = vst.msk [vmem:[#allocation4 + $0x50] sm:$0xff] %vm657, %v7086
        %7103 = vst.msk [vmem:[#allocation4 + $0x68] sm:$0xff] %vm657, %v7087
        %7104 = vst.msk [vmem:[#allocation4 + $0x80] sm:$0xff] %vm657, %v7088
        %7105 = vst.msk [vmem:[#allocation4 + $0x98] sm:$0xff] %vm657, %v7089
        %7106 = vst.msk [vmem:[#allocation4 + $0xb0] sm:$0xff] %vm657, %v7090
        %7107 = vst.msk [vmem:[#allocation4 + $0xc8] sm:$0xff] %vm657, %v7091
        %7108 = vst.msk [vmem:[#allocation4 + $0xe0] sm:$0xff] %vm657, %v7092
        %7109 = vst.msk [vmem:[#allocation4 + $0xf8] sm:$0xff] %vm657, %v7093
        %7110 = vst.msk [vmem:[#allocation4 + $0x110] sm:$0xff] %vm657, %v7094
        %7111 = vst.msk [vmem:[#allocation4 + $0x128] sm:$0xff] %vm657, %v7095
        %7112 = vst.msk [vmem:[#allocation4 + $0x140] sm:$0xff] %vm657, %v7096
        %7113 = vst.msk [vmem:[#allocation4 + $0x158] sm:$0xff] %vm657, %v7097
        %7114 = vst.msk [vmem:[#allocation4 + $0x170] sm:$0xff] %vm657, %v7098
        %v7115 = vld [vmem:[%s3238 + $0x2] sm:$0xff]
        %v7116 = vld [vmem:[%s3238 + $0xa] sm:$0xff]
        %v7117 = vld [vmem:[%s3238 + $0x1a] sm:$0xff]
        %v7118 = vld [vmem:[%s3238 + $0x22] sm:$0xff]
        %v7119 = vld [vmem:[%s3238 + $0x32] sm:$0xff]
        %v7120 = vld [vmem:[%s3238 + $0x3a] sm:$0xff]
        %v7121 = vld [vmem:[%s3238 + $0x4a] sm:$0xff]
        %v7122 = vld [vmem:[%s3238 + $0x52] sm:$0xff]
        %v7123 = vld [vmem:[%s3238 + $0x62] sm:$0xff]
        %v7124 = vld [vmem:[%s3238 + $0x6a] sm:$0xff]
        %v7125 = vld [vmem:[%s3238 + $0x7a] sm:$0xff]
        %v7126 = vld [vmem:[%s3238 + $0x82] sm:$0xff]
        %v7127 = vld [vmem:[%s3238 + $0x92] sm:$0xff]
        %v7128 = vld [vmem:[%s3238 + $0x9a] sm:$0xff]
        %v7129 = vld [vmem:[%s3238 + $0xaa] sm:$0xff]
        %v7130 = vld [vmem:[%s3238 + $0xb2] sm:$0xff]
        %v7131 = vld [vmem:[%s3238 + $0xc2] sm:$0xff]
        %v7132 = vld [vmem:[%s3238 + $0xca] sm:$0xff]
        %v7133 = vld [vmem:[%s3238 + $0xda] sm:$0xff]
        %v7134 = vld [vmem:[%s3238 + $0xe2] sm:$0xff]
        %v7135 = vld [vmem:[%s3238 + $0xf2] sm:$0xff]
        %v7136 = vld [vmem:[%s3238 + $0xfa] sm:$0xff]
        %v7137 = vld [vmem:[%s3238 + $0x10a] sm:$0xff]
        %v7138 = vld [vmem:[%s3238 + $0x112] sm:$0xff]
        %v7139 = vld [vmem:[%s3238 + $0x122] sm:$0xff]
        %v7140 = vld [vmem:[%s3238 + $0x12a] sm:$0xff]
        %v7141 = vld [vmem:[%s3238 + $0x13a] sm:$0xff]
        %v7142 = vld [vmem:[%s3238 + $0x142] sm:$0xff]
        %v7143 = vld [vmem:[%s3238 + $0x152] sm:$0xff]
        %v7144 = vld [vmem:[%s3238 + $0x15a] sm:$0xff]
        %v7145 = vld [vmem:[%s3238 + $0x16a] sm:$0xff]
        %v7146 = vld [vmem:[%s3238 + $0x172] sm:$0xff]
        %v7147 = vpack.c.bf16 %v7116, %v7115
        %v7148 = vpack.c.bf16 %v7118, %v7117
        %v7149 = vpack.c.bf16 %v7120, %v7119
        %v7150 = vpack.c.bf16 %v7122, %v7121
        %v7151 = vpack.c.bf16 %v7124, %v7123
        %v7152 = vpack.c.bf16 %v7126, %v7125
        %v7153 = vpack.c.bf16 %v7128, %v7127
        %v7154 = vpack.c.bf16 %v7130, %v7129
        %v7155 = vpack.c.bf16 %v7132, %v7131
        %v7156 = vpack.c.bf16 %v7134, %v7133
        %v7157 = vpack.c.bf16 %v7136, %v7135
        %v7158 = vpack.c.bf16 %v7138, %v7137
        %v7159 = vpack.c.bf16 %v7140, %v7139
        %v7160 = vpack.c.bf16 %v7142, %v7141
        %v7161 = vpack.c.bf16 %v7144, %v7143
        %v7162 = vpack.c.bf16 %v7146, %v7145
        %7179 = vrot.lane.b32.xlu0 %v7147, 32
        %v7180 = vpop.permute.xlu0 %7179
        %7181 = vrot.lane.b32.xlu0 %v7148, 32
        %v7182 = vpop.permute.xlu0 %7181
        %7183 = vrot.lane.b32.xlu0 %v7149, 32
        %v7184 = vpop.permute.xlu0 %7183
        %7185 = vrot.lane.b32.xlu0 %v7150, 32
        %v7186 = vpop.permute.xlu0 %7185
        %7187 = vrot.lane.b32.xlu0 %v7151, 32
        %v7188 = vpop.permute.xlu0 %7187
        %7189 = vrot.lane.b32.xlu0 %v7152, 32
        %v7190 = vpop.permute.xlu0 %7189
        %7191 = vrot.lane.b32.xlu0 %v7153, 32
        %v7192 = vpop.permute.xlu0 %7191
        %7193 = vrot.lane.b32.xlu0 %v7154, 32
        %v7194 = vpop.permute.xlu0 %7193
        %7195 = vrot.lane.b32.xlu0 %v7155, 32
        %v7196 = vpop.permute.xlu0 %7195
        %7197 = vrot.lane.b32.xlu0 %v7156, 32
        %v7198 = vpop.permute.xlu0 %7197
        %7199 = vrot.lane.b32.xlu0 %v7157, 32
        %v7200 = vpop.permute.xlu0 %7199
        %7201 = vrot.lane.b32.xlu0 %v7158, 32
        %v7202 = vpop.permute.xlu0 %7201
        %7203 = vrot.lane.b32.xlu0 %v7159, 32
        %v7204 = vpop.permute.xlu0 %7203
        %7205 = vrot.lane.b32.xlu0 %v7160, 32
        %v7206 = vpop.permute.xlu0 %7205
        %7207 = vrot.lane.b32.xlu0 %v7161, 32
        %v7208 = vpop.permute.xlu0 %7207
        %7209 = vrot.lane.b32.xlu0 %v7162, 32
        %v7210 = vpop.permute.xlu0 %7209
        %7227 = vst.msk [vmem:[#allocation4 + $0x8] sm:$0xff] %vm3447, %v7180
        %7228 = vst.msk [vmem:[#allocation4 + $0x20] sm:$0xff] %vm3447, %v7182
        %7229 = vst.msk [vmem:[#allocation4 + $0x38] sm:$0xff] %vm3447, %v7184
        %7230 = vst.msk [vmem:[#allocation4 + $0x50] sm:$0xff] %vm3447, %v7186
        %7231 = vst.msk [vmem:[#allocation4 + $0x68] sm:$0xff] %vm3447, %v7188
        %7232 = vst.msk [vmem:[#allocation4 + $0x80] sm:$0xff] %vm3447, %v7190
        %7233 = vst.msk [vmem:[#allocation4 + $0x98] sm:$0xff] %vm3447, %v7192
        %7234 = vst.msk [vmem:[#allocation4 + $0xb0] sm:$0xff] %vm3447, %v7194
        %7235 = vst.msk [vmem:[#allocation4 + $0xc8] sm:$0xff] %vm3447, %v7196
        %7236 = vst.msk [vmem:[#allocation4 + $0xe0] sm:$0xff] %vm3447, %v7198
        %7237 = vst.msk [vmem:[#allocation4 + $0xf8] sm:$0xff] %vm3447, %v7200
        %7238 = vst.msk [vmem:[#allocation4 + $0x110] sm:$0xff] %vm3447, %v7202
        %7239 = vst.msk [vmem:[#allocation4 + $0x128] sm:$0xff] %vm3447, %v7204
        %7240 = vst.msk [vmem:[#allocation4 + $0x140] sm:$0xff] %vm3447, %v7206
        %7241 = vst.msk [vmem:[#allocation4 + $0x158] sm:$0xff] %vm3447, %v7208
        %7242 = vst.msk [vmem:[#allocation4 + $0x170] sm:$0xff] %vm3447, %v7210
        %v7243 = vld [vmem:[%s3914] sm:$0xff]
        %v7244 = vld [vmem:[%s3914 + $0x8] sm:$0xff]
        %v7245 = vld [vmem:[%s3914 + $0x18] sm:$0xff]
        %v7246 = vld [vmem:[%s3914 + $0x20] sm:$0xff]
        %v7247 = vld [vmem:[%s3914 + $0x30] sm:$0xff]
        %v7248 = vld [vmem:[%s3914 + $0x38] sm:$0xff]
        %v7249 = vld [vmem:[%s3914 + $0x48] sm:$0xff]
        %v7250 = vld [vmem:[%s3914 + $0x50] sm:$0xff]
        %v7251 = vld [vmem:[%s3914 + $0x60] sm:$0xff]
        %v7252 = vld [vmem:[%s3914 + $0x68] sm:$0xff]
        %v7253 = vld [vmem:[%s3914 + $0x78] sm:$0xff]
        %v7254 = vld [vmem:[%s3914 + $0x80] sm:$0xff]
        %v7255 = vld [vmem:[%s3914 + $0x90] sm:$0xff]
        %v7256 = vld [vmem:[%s3914 + $0x98] sm:$0xff]
        %v7257 = vld [vmem:[%s3914 + $0xa8] sm:$0xff]
        %v7258 = vld [vmem:[%s3914 + $0xb0] sm:$0xff]
        %v7259 = vld [vmem:[%s3914 + $0xc0] sm:$0xff]
        %v7260 = vld [vmem:[%s3914 + $0xc8] sm:$0xff]
        %v7261 = vld [vmem:[%s3914 + $0xd8] sm:$0xff]
        %v7262 = vld [vmem:[%s3914 + $0xe0] sm:$0xff]
        %v7263 = vld [vmem:[%s3914 + $0xf0] sm:$0xff]
        %v7264 = vld [vmem:[%s3914 + $0xf8] sm:$0xff]
        %v7265 = vld [vmem:[%s3914 + $0x108] sm:$0xff]
        %v7266 = vld [vmem:[%s3914 + $0x110] sm:$0xff]
        %v7267 = vld [vmem:[%s3914 + $0x120] sm:$0xff]
        %v7268 = vld [vmem:[%s3914 + $0x128] sm:$0xff]
        %v7269 = vld [vmem:[%s3914 + $0x138] sm:$0xff]
        %v7270 = vld [vmem:[%s3914 + $0x140] sm:$0xff]
        %v7271 = vld [vmem:[%s3914 + $0x150] sm:$0xff]
        %v7272 = vld [vmem:[%s3914 + $0x158] sm:$0xff]
        %v7273 = vld [vmem:[%s3914 + $0x168] sm:$0xff]
        %v7274 = vld [vmem:[%s3914 + $0x170] sm:$0xff]
        %v7275 = vpack.c.bf16 %v7244, %v7243
        %v7276 = vpack.c.bf16 %v7246, %v7245
        %v7277 = vpack.c.bf16 %v7248, %v7247
        %v7278 = vpack.c.bf16 %v7250, %v7249
        %v7279 = vpack.c.bf16 %v7252, %v7251
        %v7280 = vpack.c.bf16 %v7254, %v7253
        %v7281 = vpack.c.bf16 %v7256, %v7255
        %v7282 = vpack.c.bf16 %v7258, %v7257
        %v7283 = vpack.c.bf16 %v7260, %v7259
        %v7284 = vpack.c.bf16 %v7262, %v7261
        %v7285 = vpack.c.bf16 %v7264, %v7263
        %v7286 = vpack.c.bf16 %v7266, %v7265
        %v7287 = vpack.c.bf16 %v7268, %v7267
        %v7288 = vpack.c.bf16 %v7270, %v7269
        %v7289 = vpack.c.bf16 %v7272, %v7271
        %v7290 = vpack.c.bf16 %v7274, %v7273
        %7307 = vrot.lane.b32.xlu0 %v7275, 64
        %v7308 = vpop.permute.xlu0 %7307
        %7309 = vrot.lane.b32.xlu0 %v7276, 64
        %v7310 = vpop.permute.xlu0 %7309
        %7311 = vrot.lane.b32.xlu0 %v7277, 64
        %v7312 = vpop.permute.xlu0 %7311
        %7313 = vrot.lane.b32.xlu0 %v7278, 64
        %v7314 = vpop.permute.xlu0 %7313
        %7315 = vrot.lane.b32.xlu0 %v7279, 64
        %v7316 = vpop.permute.xlu0 %7315
        %7317 = vrot.lane.b32.xlu0 %v7280, 64
        %v7318 = vpop.permute.xlu0 %7317
        %7319 = vrot.lane.b32.xlu0 %v7281, 64
        %v7320 = vpop.permute.xlu0 %7319
        %7321 = vrot.lane.b32.xlu0 %v7282, 64
        %v7322 = vpop.permute.xlu0 %7321
        %7323 = vrot.lane.b32.xlu0 %v7283, 64
        %v7324 = vpop.permute.xlu0 %7323
        %7325 = vrot.lane.b32.xlu0 %v7284, 64
        %v7326 = vpop.permute.xlu0 %7325
        %7327 = vrot.lane.b32.xlu0 %v7285, 64
        %v7328 = vpop.permute.xlu0 %7327
        %7329 = vrot.lane.b32.xlu0 %v7286, 64
        %v7330 = vpop.permute.xlu0 %7329
        %7331 = vrot.lane.b32.xlu0 %v7287, 64
        %v7332 = vpop.permute.xlu0 %7331
        %7333 = vrot.lane.b32.xlu0 %v7288, 64
        %v7334 = vpop.permute.xlu0 %7333
        %7335 = vrot.lane.b32.xlu0 %v7289, 64
        %v7336 = vpop.permute.xlu0 %7335
        %7337 = vrot.lane.b32.xlu0 %v7290, 64
        %v7338 = vpop.permute.xlu0 %7337
        %7355 = vst.msk [vmem:[#allocation4 + $0x8] sm:$0xff] %vm3576, %v7308
        %7356 = vst.msk [vmem:[#allocation4 + $0x20] sm:$0xff] %vm3576, %v7310
        %7357 = vst.msk [vmem:[#allocation4 + $0x38] sm:$0xff] %vm3576, %v7312
        %7358 = vst.msk [vmem:[#allocation4 + $0x50] sm:$0xff] %vm3576, %v7314
        %7359 = vst.msk [vmem:[#allocation4 + $0x68] sm:$0xff] %vm3576, %v7316
        %7360 = vst.msk [vmem:[#allocation4 + $0x80] sm:$0xff] %vm3576, %v7318
        %7361 = vst.msk [vmem:[#allocation4 + $0x98] sm:$0xff] %vm3576, %v7320
        %7362 = vst.msk [vmem:[#allocation4 + $0xb0] sm:$0xff] %vm3576, %v7322
        %7363 = vst.msk [vmem:[#allocation4 + $0xc8] sm:$0xff] %vm3576, %v7324
        %7364 = vst.msk [vmem:[#allocation4 + $0xe0] sm:$0xff] %vm3576, %v7326
        %7365 = vst.msk [vmem:[#allocation4 + $0xf8] sm:$0xff] %vm3576, %v7328
        %7366 = vst.msk [vmem:[#allocation4 + $0x110] sm:$0xff] %vm3576, %v7330
        %7367 = vst.msk [vmem:[#allocation4 + $0x128] sm:$0xff] %vm3576, %v7332
        %7368 = vst.msk [vmem:[#allocation4 + $0x140] sm:$0xff] %vm3576, %v7334
        %7369 = vst.msk [vmem:[#allocation4 + $0x158] sm:$0xff] %vm3576, %v7336
        %7370 = vst.msk [vmem:[#allocation4 + $0x170] sm:$0xff] %vm3576, %v7338
        %v7371 = vld [vmem:[%s3914 + $0x1] sm:$0xff]
        %v7372 = vld [vmem:[%s3914 + $0x9] sm:$0xff]
        %v7373 = vld [vmem:[%s3914 + $0x19] sm:$0xff]
        %v7374 = vld [vmem:[%s3914 + $0x21] sm:$0xff]
        %v7375 = vld [vmem:[%s3914 + $0x31] sm:$0xff]
        %v7376 = vld [vmem:[%s3914 + $0x39] sm:$0xff]
        %v7377 = vld [vmem:[%s3914 + $0x49] sm:$0xff]
        %v7378 = vld [vmem:[%s3914 + $0x51] sm:$0xff]
        %v7379 = vld [vmem:[%s3914 + $0x61] sm:$0xff]
        %v7380 = vld [vmem:[%s3914 + $0x69] sm:$0xff]
        %v7381 = vld [vmem:[%s3914 + $0x79] sm:$0xff]
        %v7382 = vld [vmem:[%s3914 + $0x81] sm:$0xff]
        %v7383 = vld [vmem:[%s3914 + $0x91] sm:$0xff]
        %v7384 = vld [vmem:[%s3914 + $0x99] sm:$0xff]
        %v7385 = vld [vmem:[%s3914 + $0xa9] sm:$0xff]
        %v7386 = vld [vmem:[%s3914 + $0xb1] sm:$0xff]
        %v7387 = vld [vmem:[%s3914 + $0xc1] sm:$0xff]
        %v7388 = vld [vmem:[%s3914 + $0xc9] sm:$0xff]
        %v7389 = vld [vmem:[%s3914 + $0xd9] sm:$0xff]
        %v7390 = vld [vmem:[%s3914 + $0xe1] sm:$0xff]
        %v7391 = vld [vmem:[%s3914 + $0xf1] sm:$0xff]
        %v7392 = vld [vmem:[%s3914 + $0xf9] sm:$0xff]
        %v7393 = vld [vmem:[%s3914 + $0x109] sm:$0xff]
        %v7394 = vld [vmem:[%s3914 + $0x111] sm:$0xff]
        %v7395 = vld [vmem:[%s3914 + $0x121] sm:$0xff]
        %v7396 = vld [vmem:[%s3914 + $0x129] sm:$0xff]
        %v7397 = vld [vmem:[%s3914 + $0x139] sm:$0xff]
        %v7398 = vld [vmem:[%s3914 + $0x141] sm:$0xff]
        %v7399 = vld [vmem:[%s3914 + $0x151] sm:$0xff]
        %v7400 = vld [vmem:[%s3914 + $0x159] sm:$0xff]
        %v7401 = vld [vmem:[%s3914 + $0x169] sm:$0xff]
        %v7402 = vld [vmem:[%s3914 + $0x171] sm:$0xff]
        %v7403 = vpack.c.bf16 %v7372, %v7371
        %v7404 = vpack.c.bf16 %v7374, %v7373
        %v7405 = vpack.c.bf16 %v7376, %v7375
        %v7406 = vpack.c.bf16 %v7378, %v7377
        %v7407 = vpack.c.bf16 %v7380, %v7379
        %v7408 = vpack.c.bf16 %v7382, %v7381
        %v7409 = vpack.c.bf16 %v7384, %v7383
        %v7410 = vpack.c.bf16 %v7386, %v7385
        %v7411 = vpack.c.bf16 %v7388, %v7387
        %v7412 = vpack.c.bf16 %v7390, %v7389
        %v7413 = vpack.c.bf16 %v7392, %v7391
        %v7414 = vpack.c.bf16 %v7394, %v7393
        %v7415 = vpack.c.bf16 %v7396, %v7395
        %v7416 = vpack.c.bf16 %v7398, %v7397
        %v7417 = vpack.c.bf16 %v7400, %v7399
        %v7418 = vpack.c.bf16 %v7402, %v7401
        %7435 = vrot.lane.b32.xlu0 %v7403, 96
        %v7436 = vpop.permute.xlu0 %7435
        %7437 = vrot.lane.b32.xlu0 %v7404, 96
        %v7438 = vpop.permute.xlu0 %7437
        %7439 = vrot.lane.b32.xlu0 %v7405, 96
        %v7440 = vpop.permute.xlu0 %7439
        %7441 = vrot.lane.b32.xlu0 %v7406, 96
        %v7442 = vpop.permute.xlu0 %7441
        %7443 = vrot.lane.b32.xlu0 %v7407, 96
        %v7444 = vpop.permute.xlu0 %7443
        %7445 = vrot.lane.b32.xlu0 %v7408, 96
        %v7446 = vpop.permute.xlu0 %7445
        %7447 = vrot.lane.b32.xlu0 %v7409, 96
        %v7448 = vpop.permute.xlu0 %7447
        %7449 = vrot.lane.b32.xlu0 %v7410, 96
        %v7450 = vpop.permute.xlu0 %7449
        %7451 = vrot.lane.b32.xlu0 %v7411, 96
        %v7452 = vpop.permute.xlu0 %7451
        %7453 = vrot.lane.b32.xlu0 %v7412, 96
        %v7454 = vpop.permute.xlu0 %7453
        %7455 = vrot.lane.b32.xlu0 %v7413, 96
        %v7456 = vpop.permute.xlu0 %7455
        %7457 = vrot.lane.b32.xlu0 %v7414, 96
        %v7458 = vpop.permute.xlu0 %7457
        %7459 = vrot.lane.b32.xlu0 %v7415, 96
        %v7460 = vpop.permute.xlu0 %7459
        %7461 = vrot.lane.b32.xlu0 %v7416, 96
        %v7462 = vpop.permute.xlu0 %7461
        %7463 = vrot.lane.b32.xlu0 %v7417, 96
        %v7464 = vpop.permute.xlu0 %7463
        %7465 = vrot.lane.b32.xlu0 %v7418, 96
        %v7466 = vpop.permute.xlu0 %7465
        %7483 = vst.msk [vmem:[#allocation4 + $0x8] sm:$0xff] %vm3705, %v7436
        %7484 = vst.msk [vmem:[#allocation4 + $0x20] sm:$0xff] %vm3705, %v7438
        %7485 = vst.msk [vmem:[#allocation4 + $0x38] sm:$0xff] %vm3705, %v7440
        %7486 = vst.msk [vmem:[#allocation4 + $0x50] sm:$0xff] %vm3705, %v7442
        %7487 = vst.msk [vmem:[#allocation4 + $0x68] sm:$0xff] %vm3705, %v7444
        %7488 = vst.msk [vmem:[#allocation4 + $0x80] sm:$0xff] %vm3705, %v7446
        %7489 = vst.msk [vmem:[#allocation4 + $0x98] sm:$0xff] %vm3705, %v7448
        %7490 = vst.msk [vmem:[#allocation4 + $0xb0] sm:$0xff] %vm3705, %v7450
        %7491 = vst.msk [vmem:[#allocation4 + $0xc8] sm:$0xff] %vm3705, %v7452
        %7492 = vst.msk [vmem:[#allocation4 + $0xe0] sm:$0xff] %vm3705, %v7454
        %7493 = vst.msk [vmem:[#allocation4 + $0xf8] sm:$0xff] %vm3705, %v7456
        %7494 = vst.msk [vmem:[#allocation4 + $0x110] sm:$0xff] %vm3705, %v7458
        %7495 = vst.msk [vmem:[#allocation4 + $0x128] sm:$0xff] %vm3705, %v7460
        %7496 = vst.msk [vmem:[#allocation4 + $0x140] sm:$0xff] %vm3705, %v7462
        %7497 = vst.msk [vmem:[#allocation4 + $0x158] sm:$0xff] %vm3705, %v7464
        %7498 = vst.msk [vmem:[#allocation4 + $0x170] sm:$0xff] %vm3705, %v7466
        %v7499 = vld [vmem:[%s3914 + $0x2] sm:$0xff]
        %v7500 = vld [vmem:[%s3914 + $0xa] sm:$0xff]
        %v7501 = vld [vmem:[%s3914 + $0x1a] sm:$0xff]
        %v7502 = vld [vmem:[%s3914 + $0x22] sm:$0xff]
        %v7503 = vld [vmem:[%s3914 + $0x32] sm:$0xff]
        %v7504 = vld [vmem:[%s3914 + $0x3a] sm:$0xff]
        %v7505 = vld [vmem:[%s3914 + $0x4a] sm:$0xff]
        %v7506 = vld [vmem:[%s3914 + $0x52] sm:$0xff]
        %v7507 = vld [vmem:[%s3914 + $0x62] sm:$0xff]
        %v7508 = vld [vmem:[%s3914 + $0x6a] sm:$0xff]
        %v7509 = vld [vmem:[%s3914 + $0x7a] sm:$0xff]
        %v7510 = vld [vmem:[%s3914 + $0x82] sm:$0xff]
        %v7511 = vld [vmem:[%s3914 + $0x92] sm:$0xff]
        %v7512 = vld [vmem:[%s3914 + $0x9a] sm:$0xff]
        %v7513 = vld [vmem:[%s3914 + $0xaa] sm:$0xff]
        %v7514 = vld [vmem:[%s3914 + $0xb2] sm:$0xff]
        %v7515 = vld [vmem:[%s3914 + $0xc2] sm:$0xff]
        %v7516 = vld [vmem:[%s3914 + $0xca] sm:$0xff]
        %v7517 = vld [vmem:[%s3914 + $0xda] sm:$0xff]
        %v7518 = vld [vmem:[%s3914 + $0xe2] sm:$0xff]
        %v7519 = vld [vmem:[%s3914 + $0xf2] sm:$0xff]
        %v7520 = vld [vmem:[%s3914 + $0xfa] sm:$0xff]
        %v7521 = vld [vmem:[%s3914 + $0x10a] sm:$0xff]
        %v7522 = vld [vmem:[%s3914 + $0x112] sm:$0xff]
        %v7523 = vld [vmem:[%s3914 + $0x122] sm:$0xff]
        %v7524 = vld [vmem:[%s3914 + $0x12a] sm:$0xff]
        %v7525 = vld [vmem:[%s3914 + $0x13a] sm:$0xff]
        %v7526 = vld [vmem:[%s3914 + $0x142] sm:$0xff]
        %v7527 = vld [vmem:[%s3914 + $0x152] sm:$0xff]
        %v7528 = vld [vmem:[%s3914 + $0x15a] sm:$0xff]
        %v7529 = vld [vmem:[%s3914 + $0x16a] sm:$0xff]
        %v7530 = vld [vmem:[%s3914 + $0x172] sm:$0xff]
        %v7531 = vpack.c.bf16 %v7500, %v7499
        %v7532 = vpack.c.bf16 %v7502, %v7501
        %v7533 = vpack.c.bf16 %v7504, %v7503
        %v7534 = vpack.c.bf16 %v7506, %v7505
        %v7535 = vpack.c.bf16 %v7508, %v7507
        %v7536 = vpack.c.bf16 %v7510, %v7509
        %v7537 = vpack.c.bf16 %v7512, %v7511
        %v7538 = vpack.c.bf16 %v7514, %v7513
        %v7539 = vpack.c.bf16 %v7516, %v7515
        %v7540 = vpack.c.bf16 %v7518, %v7517
        %v7541 = vpack.c.bf16 %v7520, %v7519
        %v7542 = vpack.c.bf16 %v7522, %v7521
        %v7543 = vpack.c.bf16 %v7524, %v7523
        %v7544 = vpack.c.bf16 %v7526, %v7525
        %v7545 = vpack.c.bf16 %v7528, %v7527
        %v7546 = vpack.c.bf16 %v7530, %v7529
        %7547 = vst.msk [vmem:[#allocation4 + $0x10] sm:$0xff] %vm657, %v7531
        %7548 = vst.msk [vmem:[#allocation4 + $0x28] sm:$0xff] %vm657, %v7532
        %7549 = vst.msk [vmem:[#allocation4 + $0x40] sm:$0xff] %vm657, %v7533
        %7550 = vst.msk [vmem:[#allocation4 + $0x58] sm:$0xff] %vm657, %v7534
        %7551 = vst.msk [vmem:[#allocation4 + $0x70] sm:$0xff] %vm657, %v7535
        %7552 = vst.msk [vmem:[#allocation4 + $0x88] sm:$0xff] %vm657, %v7536
        %7553 = vst.msk [vmem:[#allocation4 + $0xa0] sm:$0xff] %vm657, %v7537
        %7554 = vst.msk [vmem:[#allocation4 + $0xb8] sm:$0xff] %vm657, %v7538
        %7555 = vst.msk [vmem:[#allocation4 + $0xd0] sm:$0xff] %vm657, %v7539
        %7556 = vst.msk [vmem:[#allocation4 + $0xe8] sm:$0xff] %vm657, %v7540
        %7557 = vst.msk [vmem:[#allocation4 + $0x100] sm:$0xff] %vm657, %v7541
        %7558 = vst.msk [vmem:[#allocation4 + $0x118] sm:$0xff] %vm657, %v7542
        %7559 = vst.msk [vmem:[#allocation4 + $0x130] sm:$0xff] %vm657, %v7543
        %7560 = vst.msk [vmem:[#allocation4 + $0x148] sm:$0xff] %vm657, %v7544
        %7561 = vst.msk [vmem:[#allocation4 + $0x160] sm:$0xff] %vm657, %v7545
        %7562 = vst.msk [vmem:[#allocation4 + $0x178] sm:$0xff] %vm657, %v7546
        %v7563 = vld [vmem:[#allocation4] sm:$0xff]
        %v7564 = vld [vmem:[#allocation4 + $0x8] sm:$0xff]
        %v7565 = vld [vmem:[#allocation4 + $0x10] sm:$0xff]
        %v7566 = vld [vmem:[#allocation4 + $0x18] sm:$0xff]
        %v7567 = vld [vmem:[#allocation4 + $0x20] sm:$0xff]
        %v7568 = vld [vmem:[#allocation4 + $0x28] sm:$0xff]
        %v7569 = vld [vmem:[#allocation4 + $0x30] sm:$0xff]
        %v7570 = vld [vmem:[#allocation4 + $0x38] sm:$0xff]
        %v7571 = vld [vmem:[#allocation4 + $0x40] sm:$0xff]
        %v7572 = vld [vmem:[#allocation4 + $0x48] sm:$0xff]
        %v7573 = vld [vmem:[#allocation4 + $0x50] sm:$0xff]
        %v7574 = vld [vmem:[#allocation4 + $0x58] sm:$0xff]
        %v7575 = vld [vmem:[#allocation4 + $0x60] sm:$0xff]
        %v7576 = vld [vmem:[#allocation4 + $0x68] sm:$0xff]
        %v7577 = vld [vmem:[#allocation4 + $0x70] sm:$0xff]
        %v7578 = vld [vmem:[#allocation4 + $0x78] sm:$0xff]
        %v7579 = vld [vmem:[#allocation4 + $0x80] sm:$0xff]
        %v7580 = vld [vmem:[#allocation4 + $0x88] sm:$0xff]
        %v7581 = vld [vmem:[#allocation4 + $0x90] sm:$0xff]
        %v7582 = vld [vmem:[#allocation4 + $0x98] sm:$0xff]
        %v7583 = vld [vmem:[#allocation4 + $0xa0] sm:$0xff]
        %v7584 = vld [vmem:[#allocation4 + $0xa8] sm:$0xff]
        %v7585 = vld [vmem:[#allocation4 + $0xb0] sm:$0xff]
        %v7586 = vld [vmem:[#allocation4 + $0xb8] sm:$0xff]
        %v7587 = vld [vmem:[#allocation4 + $0xc0] sm:$0xff]
        %v7588 = vld [vmem:[#allocation4 + $0xc8] sm:$0xff]
        %v7589 = vld [vmem:[#allocation4 + $0xd0] sm:$0xff]
        %v7590 = vld [vmem:[#allocation4 + $0xd8] sm:$0xff]
        %v7591 = vld [vmem:[#allocation4 + $0xe0] sm:$0xff]
        %v7592 = vld [vmem:[#allocation4 + $0xe8] sm:$0xff]
        %v7593 = vld [vmem:[#allocation4 + $0xf0] sm:$0xff]
        %v7594 = vld [vmem:[#allocation4 + $0xf8] sm:$0xff]
        %v7595 = vld [vmem:[#allocation4 + $0x100] sm:$0xff]
        %v7596 = vld [vmem:[#allocation4 + $0x108] sm:$0xff]
        %v7597 = vld [vmem:[#allocation4 + $0x110] sm:$0xff]
        %v7598 = vld [vmem:[#allocation4 + $0x118] sm:$0xff]
        %v7599 = vld [vmem:[#allocation4 + $0x120] sm:$0xff]
        %v7600 = vld [vmem:[#allocation4 + $0x128] sm:$0xff]
        %v7601 = vld [vmem:[#allocation4 + $0x130] sm:$0xff]
        %v7602 = vld [vmem:[#allocation4 + $0x138] sm:$0xff]
        %v7603 = vld [vmem:[#allocation4 + $0x140] sm:$0xff]
        %v7604 = vld [vmem:[#allocation4 + $0x148] sm:$0xff]
        %v7605 = vld [vmem:[#allocation4 + $0x150] sm:$0xff]
        %v7606 = vld [vmem:[#allocation4 + $0x158] sm:$0xff]
        %v7607 = vld [vmem:[#allocation4 + $0x160] sm:$0xff]
        %v7608 = vld [vmem:[#allocation4 + $0x168] sm:$0xff]
        %v7609 = vld [vmem:[#allocation4 + $0x170] sm:$0xff]
        %v7610 = vld [vmem:[#allocation4 + $0x178] sm:$0xff]
        %v7611 = vld [vmem:[%s10] sm:$0xf]
        %v7612 = vld [vmem:[%s10 + $0x4] sm:$0xf]
        %v7613 = vld [vmem:[%s10 + $0x8] sm:$0xf]
        %v7614 = vld [vmem:[%s10 + $0xc] sm:$0xf]
        %v7615 = vld [vmem:[%s10 + $0x10] sm:$0xf]
        %v7616 = vld [vmem:[%s10 + $0x14] sm:$0xf]
        %v7617 = vld [vmem:[%s10 + $0x18] sm:$0xf]
        %v7618 = vld [vmem:[%s10 + $0x1c] sm:$0xf]
        %v7619 = vld [vmem:[%s10 + $0x20] sm:$0xf]
        %v7620 = vld [vmem:[%s10 + $0x24] sm:$0xf]
        %v7621 = vld [vmem:[%s10 + $0x28] sm:$0xf]
        %v7622 = vld [vmem:[%s10 + $0x2c] sm:$0xf]
        %v7623 = vld [vmem:[%s10 + $0x30] sm:$0xf]
        %v7624 = vld [vmem:[%s10 + $0x34] sm:$0xf]
        %v7625 = vld [vmem:[%s10 + $0x38] sm:$0xf]
        %v7626 = vld [vmem:[%s10 + $0x3c] sm:$0xf]
        %v7627 = vld [vmem:[%s10 + $0x40] sm:$0xf]
        %v7628 = vld [vmem:[%s10 + $0x44] sm:$0xf]
        %v7629 = vld [vmem:[%s10 + $0x48] sm:$0xf]
        %v7630 = vld [vmem:[%s10 + $0x4c] sm:$0xf]
        %v7631 = vld [vmem:[%s10 + $0x50] sm:$0xf]
        %v7632 = vld [vmem:[%s10 + $0x54] sm:$0xf]
        %v7633 = vld [vmem:[%s10 + $0x58] sm:$0xf]
        %v7634 = vld [vmem:[%s10 + $0x5c] sm:$0xf]
        %v7635 = vld [vmem:[%s10 + $0x60] sm:$0xf]
        %v7636 = vld [vmem:[%s10 + $0x64] sm:$0xf]
        %v7637 = vld [vmem:[%s10 + $0x68] sm:$0xf]
        %v7638 = vld [vmem:[%s10 + $0x6c] sm:$0xf]
        %v7639 = vld [vmem:[%s10 + $0x70] sm:$0xf]
        %v7640 = vld [vmem:[%s10 + $0x74] sm:$0xf]
        %v7641 = vld [vmem:[%s10 + $0x78] sm:$0xf]
        %v7642 = vld [vmem:[%s10 + $0x7c] sm:$0xf]
        %v7643 = vld [vmem:[%s10 + $0x80] sm:$0xf]
        %v7644 = vld [vmem:[%s10 + $0x84] sm:$0xf]
        %v7645 = vld [vmem:[%s10 + $0x88] sm:$0xf]
        %v7646 = vld [vmem:[%s10 + $0x8c] sm:$0xf]
        %v7683 = vunpack.c.l.b16 %v7611
        %v7684 = vunpack.c.l.b16 %v7612
        %v7685 = vunpack.c.l.b16 %v7613
        %v7686 = vunpack.c.l.b16 %v7614
        %v7687 = vunpack.c.l.b16 %v7615
        %v7688 = vunpack.c.l.b16 %v7616
        %v7689 = vunpack.c.l.b16 %v7617
        %v7690 = vunpack.c.l.b16 %v7618
        %v7691 = vunpack.c.l.b16 %v7619
        %v7692 = vunpack.c.l.b16 %v7620
        %v7693 = vunpack.c.l.b16 %v7621
        %v7694 = vunpack.c.l.b16 %v7622
        %v7695 = vunpack.c.l.b16 %v7623
        %v7696 = vunpack.c.l.b16 %v7624
        %v7697 = vunpack.c.l.b16 %v7625
        %v7698 = vunpack.c.l.b16 %v7626
        %v7699 = vunpack.c.l.b16 %v7627
        %v7700 = vunpack.c.l.b16 %v7628
        %v7701 = vunpack.c.l.b16 %v7629
        %v7702 = vunpack.c.l.b16 %v7630
        %v7703 = vunpack.c.l.b16 %v7631
        %v7704 = vunpack.c.l.b16 %v7632
        %v7705 = vunpack.c.l.b16 %v7633
        %v7706 = vunpack.c.l.b16 %v7634
        %v7707 = vunpack.c.l.b16 %v7635
        %v7708 = vunpack.c.l.b16 %v7636
        %v7709 = vunpack.c.l.b16 %v7637
        %v7710 = vunpack.c.l.b16 %v7638
        %v7711 = vunpack.c.l.b16 %v7639
        %v7712 = vunpack.c.l.b16 %v7640
        %v7713 = vunpack.c.l.b16 %v7641
        %v7714 = vunpack.c.l.b16 %v7642
        %v7715 = vunpack.c.l.b16 %v7643
        %v7716 = vunpack.c.l.b16 %v7644
        %v7717 = vunpack.c.l.b16 %v7645
        %v7718 = vunpack.c.l.b16 %v7646
        %v7719 = vpack.c.b16 %v7684, %v7683
        %v7720 = vpack.c.b16 %v7686, %v7685
        %v7721 = vpack.c.b16 %v7688, %v7687
        %v7722 = vpack.c.b16 %v7690, %v7689
        %v7723 = vpack.c.b16 %v7692, %v7691
        %v7724 = vpack.c.b16 %v7694, %v7693
        %v7725 = vpack.c.b16 %v7696, %v7695
        %v7726 = vpack.c.b16 %v7698, %v7697
        %v7727 = vpack.c.b16 %v7700, %v7699
        %v7728 = vpack.c.b16 %v7702, %v7701
        %v7729 = vpack.c.b16 %v7704, %v7703
        %v7730 = vpack.c.b16 %v7706, %v7705
        %v7731 = vpack.c.b16 %v7708, %v7707
        %v7732 = vpack.c.b16 %v7710, %v7709
        %v7733 = vpack.c.b16 %v7712, %v7711
        %v7734 = vpack.c.b16 %v7714, %v7713
        %v7735 = vpack.c.b16 %v7716, %v7715
        %v7736 = vpack.c.b16 %v7718, %v7717
        %v7756 = vsel %vm657, %v7565, 0
        %v7759 = vsel %vm657, %v7568, 0
        %v7762 = vsel %vm657, %v7571, 0
        %v7765 = vsel %vm657, %v7574, 0
        %v7768 = vsel %vm657, %v7577, 0
        %v7771 = vsel %vm657, %v7580, 0
        %v7774 = vsel %vm657, %v7583, 0
        %v7777 = vsel %vm657, %v7586, 0
        %v7780 = vsel %vm657, %v7589, 0
        %v7783 = vsel %vm657, %v7592, 0
        %v7786 = vsel %vm657, %v7595, 0
        %v7789 = vsel %vm657, %v7598, 0
        %v7792 = vsel %vm657, %v7601, 0
        %v7795 = vsel %vm657, %v7604, 0
        %v7798 = vsel %vm657, %v7607, 0
        %v7801 = vsel %vm657, %v7610, 0
        %7803 = vmatprep.subr.bf16.mxu0 0
        %7804 = vmatpush1.bf16.msra.mxu0 %v7719
        %7805 = vmatprep.subr.bf16.mxu0 0
        %7806 = vmatpush1.bf16.msra.mxu0 %v7720
        %7807 = vmatprep.subr.bf16.mxu0 0
        %7808 = vmatpush1.bf16.msra.mxu0 %v7721
        %7809 = vmatprep.subr.bf16.mxu0 0
        %7810 = vmatpush1.bf16.msra.mxu0 %v7722
        %7811 = vmatprep.subr.bf16.mxu0 0
        %7812 = vmatpush1.bf16.msra.mxu0 %v7723
        %7813 = vmatprep.subr.bf16.mxu0 0
        %7814 = vmatpush1.bf16.msra.mxu0 %v7724
        %7815 = vmatprep.subr.bf16.mxu0 0
        %7816 = vmatpush1.bf16.msra.mxu0 %v7725
        %7817 = vmatprep.subr.bf16.mxu0 0
        %7818 = vmatpush1.bf16.msra.mxu0 %v7726
        %7819 = vmatprep.subr.bf16.mxu0 0
        %7820 = vmatpush1.bf16.msra.mxu0 %v7727
        %7821 = vmatprep.subr.bf16.mxu0 0
        %7822 = vmatpush1.bf16.msra.mxu0 %v7728
        %7823 = vmatprep.subr.bf16.mxu0 0
        %7824 = vmatpush1.bf16.msra.mxu0 %v7729
        %7825 = vmatprep.subr.bf16.mxu0 0
        %7826 = vmatpush1.bf16.msra.mxu0 %v7730
        %7827 = vmatprep.subr.bf16.mxu0 0
        %7828 = vmatpush1.bf16.msra.mxu0 %v7731
        %7829 = vmatprep.subr.bf16.mxu0 0
        %7830 = vmatpush1.bf16.msra.mxu0 %v7732
        %7831 = vmatprep.subr.bf16.mxu0 0
        %7832 = vmatpush1.bf16.msra.mxu0 %v7733
        %7833 = vmatprep.subr.bf16.mxu0 0
        %7834 = vmatpush1.bf16.msra.mxu0 %v7734
        %7835 = vmatprep.mubr.bf16.mxu0 %v7564
        %7836 = vmatmul.mubr.bf16.gmra.mrb[0].mxu0 %v7563
        %v7837 = vpop.f32.mrb[0].mxu0
        %v7838 = vadd.f32 0.0, %v7837
        %v7839 = vpop.f32.mrb[0].mxu0
        %v7840 = vpop.f32.mrb[0].mxu0
        %v7841 = vadd.f32 0.0, %v7840
        %v7842 = vpop.f32.mrb[0].mxu0
        %7843 = vmatprep.mubr.bf16.mxu0 %v7567
        %7844 = vmatmul.mubr.bf16.gmra.mrb[0].mxu0 %v7566
        %v7845 = vpop.f32.mrb[0].mxu0
        %v7846 = vadd.f32 0.0, %v7845
        %v7847 = vpop.f32.mrb[0].mxu0
        %v7848 = vpop.f32.mrb[0].mxu0
        %v7849 = vadd.f32 0.0, %v7848
        %v7850 = vpop.f32.mrb[0].mxu0
        %7851 = vmatprep.mubr.bf16.mxu0 %v7570
        %7852 = vmatmul.mubr.bf16.gmra.mrb[0].mxu0 %v7569
        %v7853 = vpop.f32.mrb[0].mxu0
        %v7854 = vadd.f32 0.0, %v7853
        %v7855 = vpop.f32.mrb[0].mxu0
        %v7856 = vpop.f32.mrb[0].mxu0
        %v7857 = vadd.f32 0.0, %v7856
        %v7858 = vpop.f32.mrb[0].mxu0
        %7859 = vmatprep.mubr.bf16.mxu0 %v7573
        %7860 = vmatmul.mubr.bf16.gmra.mrb[0].mxu0 %v7572
        %v7861 = vpop.f32.mrb[0].mxu0
        %v7862 = vadd.f32 0.0, %v7861
        %v7863 = vpop.f32.mrb[0].mxu0
        %v7864 = vpop.f32.mrb[0].mxu0
        %v7865 = vadd.f32 0.0, %v7864
        %v7866 = vpop.f32.mrb[0].mxu0
        %7867 = vmatprep.mubr.bf16.mxu0 %v7576
        %7868 = vmatmul.mubr.bf16.gmra.mrb[0].mxu0 %v7575
        %v7869 = vpop.f32.mrb[0].mxu0
        %v7870 = vadd.f32 0.0, %v7869
        %v7871 = vpop.f32.mrb[0].mxu0
        %v7872 = vpop.f32.mrb[0].mxu0
        %v7873 = vadd.f32 0.0, %v7872
        %v7874 = vpop.f32.mrb[0].mxu0
        %7875 = vmatprep.mubr.bf16.mxu0 %v7579
        %7876 = vmatmul.mubr.bf16.gmra.mrb[0].mxu0 %v7578
        %v7877 = vpop.f32.mrb[0].mxu0
        %v7878 = vadd.f32 0.0, %v7877
        %v7879 = vpop.f32.mrb[0].mxu0
        %v7880 = vpop.f32.mrb[0].mxu0
        %v7881 = vadd.f32 0.0, %v7880
        %v7882 = vpop.f32.mrb[0].mxu0
        %7883 = vmatprep.mubr.bf16.mxu0 %v7582
        %7884 = vmatmul.mubr.bf16.gmra.mrb[0].mxu0 %v7581
        %v7885 = vpop.f32.mrb[0].mxu0
        %v7886 = vadd.f32 0.0, %v7885
        %v7887 = vpop.f32.mrb[0].mxu0
        %v7888 = vpop.f32.mrb[0].mxu0
        %v7889 = vadd.f32 0.0, %v7888
        %v7890 = vpop.f32.mrb[0].mxu0
        %7891 = vmatprep.mubr.bf16.mxu0 %v7585
        %7892 = vmatmul.mubr.bf16.gmra.mrb[0].mxu0 %v7584
        %v7893 = vpop.f32.mrb[0].mxu0
        %v7894 = vadd.f32 0.0, %v7893
        %v7895 = vpop.f32.mrb[0].mxu0
        %v7896 = vpop.f32.mrb[0].mxu0
        %v7897 = vadd.f32 0.0, %v7896
        %v7898 = vpop.f32.mrb[0].mxu0
        %7899 = vmatprep.mubr.bf16.mxu0 %v7588
        %7900 = vmatmul.mubr.bf16.gmra.mrb[0].mxu0 %v7587
        %v7901 = vpop.f32.mrb[0].mxu0
        %v7902 = vadd.f32 0.0, %v7901
        %v7903 = vpop.f32.mrb[0].mxu0
        %v7904 = vpop.f32.mrb[0].mxu0
        %v7905 = vadd.f32 0.0, %v7904
        %v7906 = vpop.f32.mrb[0].mxu0
        %7907 = vmatprep.mubr.bf16.mxu0 %v7591
        %7908 = vmatmul.mubr.bf16.gmra.mrb[0].mxu0 %v7590
        %v7909 = vpop.f32.mrb[0].mxu0
        %v7910 = vadd.f32 0.0, %v7909
        %v7911 = vpop.f32.mrb[0].mxu0
        %v7912 = vpop.f32.mrb[0].mxu0
        %v7913 = vadd.f32 0.0, %v7912
        %v7914 = vpop.f32.mrb[0].mxu0
        %7915 = vmatprep.mubr.bf16.mxu0 %v7594
        %7916 = vmatmul.mubr.bf16.gmra.mrb[0].mxu0 %v7593
        %v7917 = vpop.f32.mrb[0].mxu0
        %v7918 = vadd.f32 0.0, %v7917
        %v7919 = vpop.f32.mrb[0].mxu0
        %v7920 = vpop.f32.mrb[0].mxu0
        %v7921 = vadd.f32 0.0, %v7920
        %v7922 = vpop.f32.mrb[0].mxu0
        %7923 = vmatprep.mubr.bf16.mxu0 %v7597
        %7924 = vmatmul.mubr.bf16.gmra.mrb[0].mxu0 %v7596
        %v7925 = vpop.f32.mrb[0].mxu0
        %v7926 = vadd.f32 0.0, %v7925
        %v7927 = vpop.f32.mrb[0].mxu0
        %v7928 = vpop.f32.mrb[0].mxu0
        %v7929 = vadd.f32 0.0, %v7928
        %v7930 = vpop.f32.mrb[0].mxu0
        %7931 = vmatprep.mubr.bf16.mxu0 %v7600
        %7932 = vmatmul.mubr.bf16.gmra.mrb[0].mxu0 %v7599
        %v7933 = vpop.f32.mrb[0].mxu0
        %v7934 = vadd.f32 0.0, %v7933
        %v7935 = vpop.f32.mrb[0].mxu0
        %v7936 = vpop.f32.mrb[0].mxu0
        %v7937 = vadd.f32 0.0, %v7936
        %v7938 = vpop.f32.mrb[0].mxu0
        %7939 = vmatprep.mubr.bf16.mxu0 %v7603
        %7940 = vmatmul.mubr.bf16.gmra.mrb[0].mxu0 %v7602
        %v7941 = vpop.f32.mrb[0].mxu0
        %v7942 = vadd.f32 0.0, %v7941
        %v7943 = vpop.f32.mrb[0].mxu0
        %v7944 = vpop.f32.mrb[0].mxu0
        %v7945 = vadd.f32 0.0, %v7944
        %v7946 = vpop.f32.mrb[0].mxu0
        %7947 = vmatprep.mubr.bf16.mxu0 %v7606
        %7948 = vmatmul.mubr.bf16.gmra.mrb[0].mxu0 %v7605
        %v7949 = vpop.f32.mrb[0].mxu0
        %v7950 = vadd.f32 0.0, %v7949
        %v7951 = vpop.f32.mrb[0].mxu0
        %v7952 = vpop.f32.mrb[0].mxu0
        %v7953 = vadd.f32 0.0, %v7952
        %v7954 = vpop.f32.mrb[0].mxu0
        %7955 = vmatprep.mubr.bf16.mxu0 %v7609
        %7956 = vmatmul.mubr.bf16.gmra.mrb[0].mxu0 %v7608
        %v7957 = vpop.f32.mrb[0].mxu0
        %v7958 = vadd.f32 0.0, %v7957
        %v7959 = vpop.f32.mrb[0].mxu0
        %v7960 = vpop.f32.mrb[0].mxu0
        %v7961 = vadd.f32 0.0, %v7960
        %v7962 = vpop.f32.mrb[0].mxu0
        %7963 = vdwg.mxu0
        %7964 = vmatprep.subr.bf16.mxu0 0
        %7965 = vmatpush1.bf16.msra.mxu0 %v7735
        %7966 = vmatprep.subr.bf16.mxu0 0
        %7967 = vmatpush1.bf16.msra.mxu0 %v7736
        %7968 = vmatprep.subr.bf16.mxu0 0
        %7969 = vmatpush1.bf16.msra.mxu0 0
        %7970 = vmatprep.subr.bf16.mxu0 0
        %7971 = vmatpush1.bf16.msra.mxu0 0
        %7972 = vmatprep.subr.bf16.mxu0 0
        %7973 = vmatpush1.bf16.msra.mxu0 0
        %7974 = vmatprep.subr.bf16.mxu0 0
        %7975 = vmatpush1.bf16.msra.mxu0 0
        %7976 = vmatprep.subr.bf16.mxu0 0
        %7977 = vmatpush1.bf16.msra.mxu0 0
        %7978 = vmatprep.subr.bf16.mxu0 0
        %7979 = vmatpush1.bf16.msra.mxu0 0
        %7980 = vmatprep.subr.bf16.mxu0 0
        %7981 = vmatpush1.bf16.msra.mxu0 0
        %7982 = vmatprep.subr.bf16.mxu0 0
        %7983 = vmatpush1.bf16.msra.mxu0 0
        %7984 = vmatprep.subr.bf16.mxu0 0
        %7985 = vmatpush1.bf16.msra.mxu0 0
        %7986 = vmatprep.subr.bf16.mxu0 0
        %7987 = vmatpush1.bf16.msra.mxu0 0
        %7988 = vmatprep.subr.bf16.mxu0 0
        %7989 = vmatpush1.bf16.msra.mxu0 0
        %7990 = vmatprep.subr.bf16.mxu0 0
        %7991 = vmatpush1.bf16.msra.mxu0 0
        %7992 = vmatprep.subr.bf16.mxu0 0
        %7993 = vmatpush1.bf16.msra.mxu0 0
        %7994 = vmatprep.subr.bf16.mxu0 0
        %7995 = vmatpush1.bf16.msra.mxu0 0
        %7996 = vmatprep.mubr.bf16.mxu0 0
        %7997 = vmatmul.mubr.bf16.gmra.mrb[0].mxu0 %v7756
        %v7998 = vpop.f32.mrb[0].mxu0
        %v7999 = vadd.f32 %v7838, %v7998
        %v8000 = vpop.f32.mrb[0].mxu0
        %v8001 = vpop.f32.mrb[0].mxu0
        %v8002 = vadd.f32 %v7841, %v8001
        %v8003 = vpop.f32.mrb[0].mxu0
        %8004 = vmatprep.mubr.bf16.mxu0 0
        %8005 = vmatmul.mubr.bf16.gmra.mrb[0].mxu0 %v7759
        %v8006 = vpop.f32.mrb[0].mxu0
        %v8007 = vadd.f32 %v7846, %v8006
        %v8008 = vpop.f32.mrb[0].mxu0
        %v8009 = vpop.f32.mrb[0].mxu0
        %v8010 = vadd.f32 %v7849, %v8009
        %v8011 = vpop.f32.mrb[0].mxu0
        %8012 = vmatprep.mubr.bf16.mxu0 0
        %8013 = vmatmul.mubr.bf16.gmra.mrb[0].mxu0 %v7762
        %v8014 = vpop.f32.mrb[0].mxu0
        %v8015 = vadd.f32 %v7854, %v8014
        %v8016 = vpop.f32.mrb[0].mxu0
        %v8017 = vpop.f32.mrb[0].mxu0
        %v8018 = vadd.f32 %v7857, %v8017
        %v8019 = vpop.f32.mrb[0].mxu0
        %8020 = vmatprep.mubr.bf16.mxu0 0
        %8021 = vmatmul.mubr.bf16.gmra.mrb[0].mxu0 %v7765
        %v8022 = vpop.f32.mrb[0].mxu0
        %v8023 = vadd.f32 %v7862, %v8022
        %v8024 = vpop.f32.mrb[0].mxu0
        %v8025 = vpop.f32.mrb[0].mxu0
        %v8026 = vadd.f32 %v7865, %v8025
        %v8027 = vpop.f32.mrb[0].mxu0
        %8028 = vmatprep.mubr.bf16.mxu0 0
        %8029 = vmatmul.mubr.bf16.gmra.mrb[0].mxu0 %v7768
        %v8030 = vpop.f32.mrb[0].mxu0
        %v8031 = vadd.f32 %v7870, %v8030
        %v8032 = vpop.f32.mrb[0].mxu0
        %v8033 = vpop.f32.mrb[0].mxu0
        %v8034 = vadd.f32 %v7873, %v8033
        %v8035 = vpop.f32.mrb[0].mxu0
        %8036 = vmatprep.mubr.bf16.mxu0 0
        %8037 = vmatmul.mubr.bf16.gmra.mrb[0].mxu0 %v7771
        %v8038 = vpop.f32.mrb[0].mxu0
        %v8039 = vadd.f32 %v7878, %v8038
        %v8040 = vpop.f32.mrb[0].mxu0
        %v8041 = vpop.f32.mrb[0].mxu0
        %v8042 = vadd.f32 %v7881, %v8041
        %v8043 = vpop.f32.mrb[0].mxu0
        %8044 = vmatprep.mubr.bf16.mxu0 0
        %8045 = vmatmul.mubr.bf16.gmra.mrb[0].mxu0 %v7774
        %v8046 = vpop.f32.mrb[0].mxu0
        %v8047 = vadd.f32 %v7886, %v8046
        %v8048 = vpop.f32.mrb[0].mxu0
        %v8049 = vpop.f32.mrb[0].mxu0
        %v8050 = vadd.f32 %v7889, %v8049
        %v8051 = vpop.f32.mrb[0].mxu0
        %8052 = vmatprep.mubr.bf16.mxu0 0
        %8053 = vmatmul.mubr.bf16.gmra.mrb[0].mxu0 %v7777
        %v8054 = vpop.f32.mrb[0].mxu0
        %v8055 = vadd.f32 %v7894, %v8054
        %v8056 = vpop.f32.mrb[0].mxu0
        %v8057 = vpop.f32.mrb[0].mxu0
        %v8058 = vadd.f32 %v7897, %v8057
        %v8059 = vpop.f32.mrb[0].mxu0
        %8060 = vmatprep.mubr.bf16.mxu0 0
        %8061 = vmatmul.mubr.bf16.gmra.mrb[0].mxu0 %v7780
        %v8062 = vpop.f32.mrb[0].mxu0
        %v8063 = vadd.f32 %v7902, %v8062
        %v8064 = vpop.f32.mrb[0].mxu0
        %v8065 = vpop.f32.mrb[0].mxu0
        %v8066 = vadd.f32 %v7905, %v8065
        %v8067 = vpop.f32.mrb[0].mxu0
        %8068 = vmatprep.mubr.bf16.mxu0 0
        %8069 = vmatmul.mubr.bf16.gmra.mrb[0].mxu0 %v7783
        %v8070 = vpop.f32.mrb[0].mxu0
        %v8071 = vadd.f32 %v7910, %v8070
        %v8072 = vpop.f32.mrb[0].mxu0
        %v8073 = vpop.f32.mrb[0].mxu0
        %v8074 = vadd.f32 %v7913, %v8073
        %v8075 = vpop.f32.mrb[0].mxu0
        %8076 = vmatprep.mubr.bf16.mxu0 0
        %8077 = vmatmul.mubr.bf16.gmra.mrb[0].mxu0 %v7786
        %v8078 = vpop.f32.mrb[0].mxu0
        %v8079 = vadd.f32 %v7918, %v8078
        %v8080 = vpop.f32.mrb[0].mxu0
        %v8081 = vpop.f32.mrb[0].mxu0
        %v8082 = vadd.f32 %v7921, %v8081
        %v8083 = vpop.f32.mrb[0].mxu0
        %8084 = vmatprep.mubr.bf16.mxu0 0
        %8085 = vmatmul.mubr.bf16.gmra.mrb[0].mxu0 %v7789
        %v8086 = vpop.f32.mrb[0].mxu0
        %v8087 = vadd.f32 %v7926, %v8086
        %v8088 = vpop.f32.mrb[0].mxu0
        %v8089 = vpop.f32.mrb[0].mxu0
        %v8090 = vadd.f32 %v7929, %v8089
        %v8091 = vpop.f32.mrb[0].mxu0
        %8092 = vmatprep.mubr.bf16.mxu0 0
        %8093 = vmatmul.mubr.bf16.gmra.mrb[0].mxu0 %v7792
        %v8094 = vpop.f32.mrb[0].mxu0
        %v8095 = vadd.f32 %v7934, %v8094
        %v8096 = vpop.f32.mrb[0].mxu0
        %v8097 = vpop.f32.mrb[0].mxu0
        %v8098 = vadd.f32 %v7937, %v8097
        %v8099 = vpop.f32.mrb[0].mxu0
        %8100 = vmatprep.mubr.bf16.mxu0 0
        %8101 = vmatmul.mubr.bf16.gmra.mrb[0].mxu0 %v7795
        %v8102 = vpop.f32.mrb[0].mxu0
        %v8103 = vadd.f32 %v7942, %v8102
        %v8104 = vpop.f32.mrb[0].mxu0
        %v8105 = vpop.f32.mrb[0].mxu0
        %v8106 = vadd.f32 %v7945, %v8105
        %v8107 = vpop.f32.mrb[0].mxu0
        %8108 = vmatprep.mubr.bf16.mxu0 0
        %8109 = vmatmul.mubr.bf16.gmra.mrb[0].mxu0 %v7798
        %v8110 = vpop.f32.mrb[0].mxu0
        %v8111 = vadd.f32 %v7950, %v8110
        %v8112 = vpop.f32.mrb[0].mxu0
        %v8113 = vpop.f32.mrb[0].mxu0
        %v8114 = vadd.f32 %v7953, %v8113
        %v8115 = vpop.f32.mrb[0].mxu0
        %8116 = vmatprep.mubr.bf16.mxu0 0
        %8117 = vmatmul.mubr.bf16.gmra.mrb[0].mxu0 %v7801
        %v8118 = vpop.f32.mrb[0].mxu0
        %v8119 = vadd.f32 %v7958, %v8118
        %v8120 = vpop.f32.mrb[0].mxu0
        %v8121 = vpop.f32.mrb[0].mxu0
        %v8122 = vadd.f32 %v7961, %v8121
        %v8123 = vpop.f32.mrb[0].mxu0
        %8124 = vdwg.mxu0
        %v8125 = vld [vmem:[%s11] sm:$0x1]
        %v8127 = vlaneseq
        %v8128 = vshrl.u32 %v8127, 7
        %v8129 = vsub.s32 0, %v8128
        %v8130 = vrot.slane %v8125, %v8129
        %v8132 = vmul.f32 %v7999, %v8130
        %v8133 = vmul.f32 %v8002, %v8130
        %v8134 = vmul.f32 %v8007, %v8130
        %v8135 = vmul.f32 %v8010, %v8130
        %v8136 = vmul.f32 %v8015, %v8130
        %v8137 = vmul.f32 %v8018, %v8130
        %v8138 = vmul.f32 %v8023, %v8130
        %v8139 = vmul.f32 %v8026, %v8130
        %v8140 = vmul.f32 %v8031, %v8130
        %v8141 = vmul.f32 %v8034, %v8130
        %v8142 = vmul.f32 %v8039, %v8130
        %v8143 = vmul.f32 %v8042, %v8130
        %v8144 = vmul.f32 %v8047, %v8130
        %v8145 = vmul.f32 %v8050, %v8130
        %v8146 = vmul.f32 %v8055, %v8130
        %v8147 = vmul.f32 %v8058, %v8130
        %v8148 = vmul.f32 %v8063, %v8130
        %v8149 = vmul.f32 %v8066, %v8130
        %v8150 = vmul.f32 %v8071, %v8130
        %v8151 = vmul.f32 %v8074, %v8130
        %v8152 = vmul.f32 %v8079, %v8130
        %v8153 = vmul.f32 %v8082, %v8130
        %v8154 = vmul.f32 %v8087, %v8130
        %v8155 = vmul.f32 %v8090, %v8130
        %v8156 = vmul.f32 %v8095, %v8130
        %v8157 = vmul.f32 %v8098, %v8130
        %v8158 = vmul.f32 %v8103, %v8130
        %v8159 = vmul.f32 %v8106, %v8130
        %v8160 = vmul.f32 %v8111, %v8130
        %v8161 = vmul.f32 %v8114, %v8130
        %v8162 = vmul.f32 %v8119, %v8130
        %v8163 = vmul.f32 %v8122, %v8130
        %v8164 = vld [vmem:[%s12] sm:$0x1]
        %v8166 = vlaneseq
        %v8167 = vshrl.u32 %v8166, 7
        %v8168 = vsub.s32 0, %v8167
        %v8169 = vrot.slane %v8164, %v8168
        %v8171 = vadd.f32 %v8132, %v8169
        %v8172 = vadd.f32 %v8133, %v8169
        %v8173 = vadd.f32 %v8134, %v8169
        %v8174 = vadd.f32 %v8135, %v8169
        %v8175 = vadd.f32 %v8136, %v8169
        %v8176 = vadd.f32 %v8137, %v8169
        %v8177 = vadd.f32 %v8138, %v8169
        %v8178 = vadd.f32 %v8139, %v8169
        %v8179 = vadd.f32 %v8140, %v8169
        %v8180 = vadd.f32 %v8141, %v8169
        %v8181 = vadd.f32 %v8142, %v8169
        %v8182 = vadd.f32 %v8143, %v8169
        %v8183 = vadd.f32 %v8144, %v8169
        %v8184 = vadd.f32 %v8145, %v8169
        %v8185 = vadd.f32 %v8146, %v8169
        %v8186 = vadd.f32 %v8147, %v8169
        %v8187 = vadd.f32 %v8148, %v8169
        %v8188 = vadd.f32 %v8149, %v8169
        %v8189 = vadd.f32 %v8150, %v8169
        %v8190 = vadd.f32 %v8151, %v8169
        %v8191 = vadd.f32 %v8152, %v8169
        %v8192 = vadd.f32 %v8153, %v8169
        %v8193 = vadd.f32 %v8154, %v8169
        %v8194 = vadd.f32 %v8155, %v8169
        %v8195 = vadd.f32 %v8156, %v8169
        %v8196 = vadd.f32 %v8157, %v8169
        %v8197 = vadd.f32 %v8158, %v8169
        %v8198 = vadd.f32 %v8159, %v8169
        %v8199 = vadd.f32 %v8160, %v8169
        %v8200 = vadd.f32 %v8161, %v8169
        %v8201 = vadd.f32 %v8162, %v8169
        %v8202 = vadd.f32 %v8163, %v8169
        %v8203 = vadd.f32 %v8171, %v4875
        %v8204 = vadd.f32 %v8172, %v4876
        %v8205 = vadd.f32 %v8173, %v4877
        %v8206 = vadd.f32 %v8174, %v4878
        %v8207 = vadd.f32 %v8175, %v4879
        %v8208 = vadd.f32 %v8176, %v4880
        %v8209 = vadd.f32 %v8177, %v4881
        %v8210 = vadd.f32 %v8178, %v4882
        %v8211 = vadd.f32 %v8179, %v4883
        %v8212 = vadd.f32 %v8180, %v4884
        %v8213 = vadd.f32 %v8181, %v4885
        %v8214 = vadd.f32 %v8182, %v4886
        %v8215 = vadd.f32 %v8183, %v4887
        %v8216 = vadd.f32 %v8184, %v4888
        %v8217 = vadd.f32 %v8185, %v4889
        %v8218 = vadd.f32 %v8186, %v4890
        %v8219 = vadd.f32 %v8187, %v4891
        %v8220 = vadd.f32 %v8188, %v4892
        %v8221 = vadd.f32 %v8189, %v4893
        %v8222 = vadd.f32 %v8190, %v4894
        %v8223 = vadd.f32 %v8191, %v4895
        %v8224 = vadd.f32 %v8192, %v4896
        %v8225 = vadd.f32 %v8193, %v4897
        %v8226 = vadd.f32 %v8194, %v4898
        %v8227 = vadd.f32 %v8195, %v4899
        %v8228 = vadd.f32 %v8196, %v4900
        %v8229 = vadd.f32 %v8197, %v4901
        %v8230 = vadd.f32 %v8198, %v4902
        %v8231 = vadd.f32 %v8199, %v4903
        %v8232 = vadd.f32 %v8200, %v4904
        %v8233 = vadd.f32 %v8201, %v4905
        %v8234 = vadd.f32 %v8202, %v4906
        %v8235 = vmax.f32 %v8203, 0.0
        %v8236 = vmax.f32 %v8204, 0.0
        %v8237 = vmax.f32 %v8205, 0.0
        %v8238 = vmax.f32 %v8206, 0.0
        %v8239 = vmax.f32 %v8207, 0.0
        %v8240 = vmax.f32 %v8208, 0.0
        %v8241 = vmax.f32 %v8209, 0.0
        %v8242 = vmax.f32 %v8210, 0.0
        %v8243 = vmax.f32 %v8211, 0.0
        %v8244 = vmax.f32 %v8212, 0.0
        %v8245 = vmax.f32 %v8213, 0.0
        %v8246 = vmax.f32 %v8214, 0.0
        %v8247 = vmax.f32 %v8215, 0.0
        %v8248 = vmax.f32 %v8216, 0.0
        %v8249 = vmax.f32 %v8217, 0.0
        %v8250 = vmax.f32 %v8218, 0.0
        %v8251 = vmax.f32 %v8219, 0.0
        %v8252 = vmax.f32 %v8220, 0.0
        %v8253 = vmax.f32 %v8221, 0.0
        %v8254 = vmax.f32 %v8222, 0.0
        %v8255 = vmax.f32 %v8223, 0.0
        %v8256 = vmax.f32 %v8224, 0.0
        %v8257 = vmax.f32 %v8225, 0.0
        %v8258 = vmax.f32 %v8226, 0.0
        %v8259 = vmax.f32 %v8227, 0.0
        %v8260 = vmax.f32 %v8228, 0.0
        %v8261 = vmax.f32 %v8229, 0.0
        %v8262 = vmax.f32 %v8230, 0.0
        %v8263 = vmax.f32 %v8231, 0.0
        %v8264 = vmax.f32 %v8232, 0.0
        %v8265 = vmax.f32 %v8233, 0.0
        %v8266 = vmax.f32 %v8234, 0.0
        %v8267 = vsel %vm657, %v8235, -inf
        %v8268 = vsel %vm657, %v8236, -inf
        %v8269 = vsel %vm657, %v8237, -inf
        %v8270 = vsel %vm657, %v8238, -inf
        %v8271 = vsel %vm657, %v8239, -inf
        %v8272 = vmax.f32 %v8267, %v8271
        %v8273 = vsel %vm657, %v8240, -inf
        %v8274 = vmax.f32 %v8268, %v8273
        %v8275 = vsel %vm657, %v8241, -inf
        %v8276 = vmax.f32 %v8269, %v8275
        %v8277 = vsel %vm657, %v8242, -inf
        %v8278 = vmax.f32 %v8270, %v8277
        %v8279 = vsel %vm657, %v8243, -inf
        %v8280 = vmax.f32 %v8272, %v8279
        %v8281 = vsel %vm657, %v8244, -inf
        %v8282 = vmax.f32 %v8274, %v8281
        %v8283 = vsel %vm657, %v8245, -inf
        %v8284 = vmax.f32 %v8276, %v8283
        %v8285 = vsel %vm657, %v8246, -inf
        %v8286 = vmax.f32 %v8278, %v8285
        %v8287 = vsel %vm657, %v8247, -inf
        %v8288 = vmax.f32 %v8280, %v8287
        %v8289 = vsel %vm657, %v8248, -inf
        %v8290 = vmax.f32 %v8282, %v8289
        %v8291 = vsel %vm657, %v8249, -inf
        %v8292 = vmax.f32 %v8284, %v8291
        %v8293 = vsel %vm657, %v8250, -inf
        %v8294 = vmax.f32 %v8286, %v8293
        %v8295 = vsel %vm657, %v8251, -inf
        %v8296 = vmax.f32 %v8288, %v8295
        %v8297 = vsel %vm657, %v8252, -inf
        %v8298 = vmax.f32 %v8290, %v8297
        %v8299 = vsel %vm657, %v8253, -inf
        %v8300 = vmax.f32 %v8292, %v8299
        %v8301 = vsel %vm657, %v8254, -inf
        %v8302 = vmax.f32 %v8294, %v8301
        %v8303 = vsel %vm657, %v8255, -inf
        %v8304 = vmax.f32 %v8296, %v8303
        %v8305 = vsel %vm657, %v8256, -inf
        %v8306 = vmax.f32 %v8298, %v8305
        %v8307 = vsel %vm657, %v8257, -inf
        %v8308 = vmax.f32 %v8300, %v8307
        %v8309 = vsel %vm657, %v8258, -inf
        %v8310 = vmax.f32 %v8302, %v8309
        %v8311 = vsel %vm657, %v8259, -inf
        %v8312 = vmax.f32 %v8304, %v8311
        %v8313 = vsel %vm657, %v8260, -inf
        %v8314 = vmax.f32 %v8306, %v8313
        %v8315 = vsel %vm657, %v8261, -inf
        %v8316 = vmax.f32 %v8308, %v8315
        %v8317 = vsel %vm657, %v8262, -inf
        %v8318 = vmax.f32 %v8310, %v8317
        %v8319 = vsel %vm657, %v8263, -inf
        %v8320 = vmax.f32 %v8312, %v8319
        %v8321 = vsel %vm657, %v8264, -inf
        %v8322 = vmax.f32 %v8314, %v8321
        %v8323 = vsel %vm657, %v8265, -inf
        %v8324 = vmax.f32 %v8316, %v8323
        %v8325 = vsel %vm657, %v8266, -inf
        %v8326 = vmax.f32 %v8318, %v8325
        %v8327 = vmax.f32 %v8320, %v8322
        %v8328 = vmax.f32 %v8324, %v8326
        %v8329 = vmax.f32 %v8327, %v8328
        %v8330 = vrot.slane %v8329, 4
        %v8331 = vmax.f32 %v8329, %v8330
        %v8332 = vrot.slane %v8331, 2
        %v8333 = vmax.f32 %v8331, %v8332
        %v8334 = vrot.slane %v8333, 1
        %v8335 = vmax.f32 %v8333, %v8334
        %v8336 = vld [vmem:[%s13] sm:$0xff]
        %v8337 = vld [vmem:[%s13 + $0x8] sm:$0xff]
        %v8338 = vld [vmem:[%s13 + $0x10] sm:$0xff]
        %v8339 = vld [vmem:[%s13 + $0x18] sm:$0xff]
        %v8340 = vld [vmem:[%s14] sm:$0x1]
        %v8342 = vsel %vm657, %v8335, 0
        %8344 = vmatprep.subr.mxu0 0.0
        %8345 = vmatpush1.msra.mxu0 %v8336
        %8346 = vmatprep.subr.mxu0 0.0
        %8347 = vmatpush1.msra.mxu0 %v8337
        %8348 = vmatprep.subr.mxu0 0.0
        %8349 = vmatpush1.msra.mxu0 %v8338
        %8350 = vmatprep.subr.mxu0 0.0
        %8351 = vmatpush1.msra.mxu0 %v8339
        %8352 = vmatprep.subr.mxu0 0.0
        %8353 = vmatpush1.msra.mxu0 0.0
        %8354 = vmatprep.subr.mxu0 0.0
        %8355 = vmatpush1.msra.mxu0 0.0
        %8356 = vmatprep.subr.mxu0 0.0
        %8357 = vmatpush1.msra.mxu0 0.0
        %8358 = vmatprep.subr.mxu0 0.0
        %8359 = vmatpush1.msra.mxu0 0.0
        %8360 = vmatprep.subr.mxu0 0.0
        %8361 = vmatpush1.msra.mxu0 0.0
        %8362 = vmatprep.subr.mxu0 0.0
        %8363 = vmatpush1.msra.mxu0 0.0
        %8364 = vmatprep.subr.mxu0 0.0
        %8365 = vmatpush1.msra.mxu0 0.0
        %8366 = vmatprep.subr.mxu0 0.0
        %8367 = vmatpush1.msra.mxu0 0.0
        %8368 = vmatprep.subr.mxu0 0.0
        %8369 = vmatpush1.msra.mxu0 0.0
        %8370 = vmatprep.subr.mxu0 0.0
        %8371 = vmatpush1.msra.mxu0 0.0
        %8372 = vmatprep.subr.mxu0 0.0
        %8373 = vmatpush1.msra.mxu0 0.0
        %8374 = vmatprep.subr.mxu0 0.0
        %8375 = vmatpush1.msra.mxu0 0.0
        %8376 = vmatprep.subr.mxu0 0.0
        %8377 = vmatpush1.msra.mxu0 0.0
        %8378 = vmatprep.subr.mxu0 0.0
        %8379 = vmatpush1.msra.mxu0 0.0
        %8380 = vmatprep.subr.mxu0 0.0
        %8381 = vmatpush1.msra.mxu0 0.0
        %8382 = vmatprep.subr.mxu0 0.0
        %8383 = vmatpush1.msra.mxu0 0.0
        %8384 = vmatprep.subr.mxu0 0.0
        %8385 = vmatpush1.msra.mxu0 0.0
        %8386 = vmatprep.subr.mxu0 0.0
        %8387 = vmatpush1.msra.mxu0 0.0
        %8388 = vmatprep.subr.mxu0 0.0
        %8389 = vmatpush1.msra.mxu0 0.0
        %8390 = vmatprep.subr.mxu0 0.0
        %8391 = vmatpush1.msra.mxu0 0.0
        %8392 = vmatprep.subr.mxu0 0.0
        %8393 = vmatpush1.msra.mxu0 0.0
        %8394 = vmatprep.subr.mxu0 0.0
        %8395 = vmatpush1.msra.mxu0 0.0
        %8396 = vmatprep.subr.mxu0 0.0
        %8397 = vmatpush1.msra.mxu0 0.0
        %8398 = vmatprep.subr.mxu0 0.0
        %8399 = vmatpush1.msra.mxu0 0.0
        %8400 = vmatprep.subr.mxu0 0.0
        %8401 = vmatpush1.msra.mxu0 0.0
        %8402 = vmatprep.subr.mxu0 0.0
        %8403 = vmatpush1.msra.mxu0 0.0
        %8404 = vmatprep.subr.mxu0 0.0
        %8405 = vmatpush1.msra.mxu0 0.0
        %8406 = vmatprep.subr.mxu0 0.0
        %8407 = vmatpush1.msra.mxu0 0.0
        %8408 = vmatprep.mubr.f32.mxu0 0.0
        %8409 = vmatmul.mubr.f32.gmra.mrb[0].mxu0 %v8342
        %v8410 = vpop.f32.mrb[0].mxu0
        %v8411 = vadd.f32 %v8340, %v8410
        %v8412 = vpop.f32.mrb[0].mxu0
        %8413 = vdwg.mxu0
        %v8414 = vmax.f32 %v8411, 0.0
        %v8415 = vld [vmem:[%s15] sm:$0xff]
        %v8416 = vld [vmem:[%s15 + $0x8] sm:$0xff]
        %v8417 = vld [vmem:[%s15 + $0x10] sm:$0xff]
        %v8418 = vld [vmem:[%s15 + $0x18] sm:$0xff]
        %v8419 = vld [vmem:[%s16] sm:$0x1]
        %v8421 = vsel %vm657, %v8414, 0
        %8423 = vmatprep.subr.mxu0 0.0
        %8424 = vmatpush1.msra.mxu0 %v8415
        %8425 = vmatprep.subr.mxu0 0.0
        %8426 = vmatpush1.msra.mxu0 %v8416
        %8427 = vmatprep.subr.mxu0 0.0
        %8428 = vmatpush1.msra.mxu0 %v8417
        %8429 = vmatprep.subr.mxu0 0.0
        %8430 = vmatpush1.msra.mxu0 %v8418
        %8431 = vmatprep.subr.mxu0 0.0
        %8432 = vmatpush1.msra.mxu0 0.0
        %8433 = vmatprep.subr.mxu0 0.0
        %8434 = vmatpush1.msra.mxu0 0.0
        %8435 = vmatprep.subr.mxu0 0.0
        %8436 = vmatpush1.msra.mxu0 0.0
        %8437 = vmatprep.subr.mxu0 0.0
        %8438 = vmatpush1.msra.mxu0 0.0
        %8439 = vmatprep.subr.mxu0 0.0
        %8440 = vmatpush1.msra.mxu0 0.0
        %8441 = vmatprep.subr.mxu0 0.0
        %8442 = vmatpush1.msra.mxu0 0.0
        %8443 = vmatprep.subr.mxu0 0.0
        %8444 = vmatpush1.msra.mxu0 0.0
        %8445 = vmatprep.subr.mxu0 0.0
        %8446 = vmatpush1.msra.mxu0 0.0
        %8447 = vmatprep.subr.mxu0 0.0
        %8448 = vmatpush1.msra.mxu0 0.0
        %8449 = vmatprep.subr.mxu0 0.0
        %8450 = vmatpush1.msra.mxu0 0.0
        %8451 = vmatprep.subr.mxu0 0.0
        %8452 = vmatpush1.msra.mxu0 0.0
        %8453 = vmatprep.subr.mxu0 0.0
        %8454 = vmatpush1.msra.mxu0 0.0
        %8455 = vmatprep.subr.mxu0 0.0
        %8456 = vmatpush1.msra.mxu0 0.0
        %8457 = vmatprep.subr.mxu0 0.0
        %8458 = vmatpush1.msra.mxu0 0.0
        %8459 = vmatprep.subr.mxu0 0.0
        %8460 = vmatpush1.msra.mxu0 0.0
        %8461 = vmatprep.subr.mxu0 0.0
        %8462 = vmatpush1.msra.mxu0 0.0
        %8463 = vmatprep.subr.mxu0 0.0
        %8464 = vmatpush1.msra.mxu0 0.0
        %8465 = vmatprep.subr.mxu0 0.0
        %8466 = vmatpush1.msra.mxu0 0.0
        %8467 = vmatprep.subr.mxu0 0.0
        %8468 = vmatpush1.msra.mxu0 0.0
        %8469 = vmatprep.subr.mxu0 0.0
        %8470 = vmatpush1.msra.mxu0 0.0
        %8471 = vmatprep.subr.mxu0 0.0
        %8472 = vmatpush1.msra.mxu0 0.0
        %8473 = vmatprep.subr.mxu0 0.0
        %8474 = vmatpush1.msra.mxu0 0.0
        %8475 = vmatprep.subr.mxu0 0.0
        %8476 = vmatpush1.msra.mxu0 0.0
        %8477 = vmatprep.subr.mxu0 0.0
        %8478 = vmatpush1.msra.mxu0 0.0
        %8479 = vmatprep.subr.mxu0 0.0
        %8480 = vmatpush1.msra.mxu0 0.0
        %8481 = vmatprep.subr.mxu0 0.0
        %8482 = vmatpush1.msra.mxu0 0.0
        %8483 = vmatprep.subr.mxu0 0.0
        %8484 = vmatpush1.msra.mxu0 0.0
        %8485 = vmatprep.subr.mxu0 0.0
        %8486 = vmatpush1.msra.mxu0 0.0
        %8487 = vmatprep.mubr.f32.mxu0 0.0
        %8488 = vmatmul.mubr.f32.gmra.mrb[0].mxu0 %v8421
        %v8489 = vpop.f32.mrb[0].mxu0
        %v8490 = vadd.f32 %v8419, %v8489
        %v8491 = vpop.f32.mrb[0].mxu0
        %8492 = vdwg.mxu0
        %v8493 = vmax.f32 %v8490, 0.0
        %v8494 = vld [vmem:[%s17] sm:$0xff]
        %v8495 = vld [vmem:[%s17 + $0x8] sm:$0xff]
        %v8496 = vld [vmem:[%s17 + $0x10] sm:$0xff]
        %v8497 = vld [vmem:[%s17 + $0x18] sm:$0xff]
        %v8498 = vld [vmem:[%s18] sm:$0x1]
        %v8500 = vsel %vm657, %v8493, 0
        %8502 = vmatprep.subr.mxu0 0.0
        %8503 = vmatpush1.msra.mxu0 %v8494
        %8504 = vmatprep.subr.mxu0 0.0
        %8505 = vmatpush1.msra.mxu0 %v8495
        %8506 = vmatprep.subr.mxu0 0.0
        %8507 = vmatpush1.msra.mxu0 %v8496
        %8508 = vmatprep.subr.mxu0 0.0
        %8509 = vmatpush1.msra.mxu0 %v8497
        %8510 = vmatprep.subr.mxu0 0.0
        %8511 = vmatpush1.msra.mxu0 0.0
        %8512 = vmatprep.subr.mxu0 0.0
        %8513 = vmatpush1.msra.mxu0 0.0
        %8514 = vmatprep.subr.mxu0 0.0
        %8515 = vmatpush1.msra.mxu0 0.0
        %8516 = vmatprep.subr.mxu0 0.0
        %8517 = vmatpush1.msra.mxu0 0.0
        %8518 = vmatprep.subr.mxu0 0.0
        %8519 = vmatpush1.msra.mxu0 0.0
        %8520 = vmatprep.subr.mxu0 0.0
        %8521 = vmatpush1.msra.mxu0 0.0
        %8522 = vmatprep.subr.mxu0 0.0
        %8523 = vmatpush1.msra.mxu0 0.0
        %8524 = vmatprep.subr.mxu0 0.0
        %8525 = vmatpush1.msra.mxu0 0.0
        %8526 = vmatprep.subr.mxu0 0.0
        %8527 = vmatpush1.msra.mxu0 0.0
        %8528 = vmatprep.subr.mxu0 0.0
        %8529 = vmatpush1.msra.mxu0 0.0
        %8530 = vmatprep.subr.mxu0 0.0
        %8531 = vmatpush1.msra.mxu0 0.0
        %8532 = vmatprep.subr.mxu0 0.0
        %8533 = vmatpush1.msra.mxu0 0.0
        %8534 = vmatprep.subr.mxu0 0.0
        %8535 = vmatpush1.msra.mxu0 0.0
        %8536 = vmatprep.subr.mxu0 0.0
        %8537 = vmatpush1.msra.mxu0 0.0
        %8538 = vmatprep.subr.mxu0 0.0
        %8539 = vmatpush1.msra.mxu0 0.0
        %8540 = vmatprep.subr.mxu0 0.0
        %8541 = vmatpush1.msra.mxu0 0.0
        %8542 = vmatprep.subr.mxu0 0.0
        %8543 = vmatpush1.msra.mxu0 0.0
        %8544 = vmatprep.subr.mxu0 0.0
        %8545 = vmatpush1.msra.mxu0 0.0
        %8546 = vmatprep.subr.mxu0 0.0
        %8547 = vmatpush1.msra.mxu0 0.0
        %8548 = vmatprep.subr.mxu0 0.0
        %8549 = vmatpush1.msra.mxu0 0.0
        %8550 = vmatprep.subr.mxu0 0.0
        %8551 = vmatpush1.msra.mxu0 0.0
        %8552 = vmatprep.subr.mxu0 0.0
        %8553 = vmatpush1.msra.mxu0 0.0
        %8554 = vmatprep.subr.mxu0 0.0
        %8555 = vmatpush1.msra.mxu0 0.0
        %8556 = vmatprep.subr.mxu0 0.0
        %8557 = vmatpush1.msra.mxu0 0.0
        %8558 = vmatprep.subr.mxu0 0.0
        %8559 = vmatpush1.msra.mxu0 0.0
        %8560 = vmatprep.subr.mxu0 0.0
        %8561 = vmatpush1.msra.mxu0 0.0
        %8562 = vmatprep.subr.mxu0 0.0
        %8563 = vmatpush1.msra.mxu0 0.0
        %8564 = vmatprep.subr.mxu0 0.0
        %8565 = vmatpush1.msra.mxu0 0.0
        %8566 = vmatprep.mubr.f32.mxu0 0.0
        %8567 = vmatmul.mubr.f32.gmra.mrb[0].mxu0 %v8500
        %v8568 = vpop.f32.mrb[0].mxu0
        %v8569 = vadd.f32 %v8498, %v8568
        %v8570 = vpop.f32.mrb[0].mxu0
        %8571 = vdwg.mxu0
        %v8572 = vxor.u32 %v8569, 2147483648
        %v8573 = vmul.f32 %v8572, 1.442695
        %v8574 = vpow.pop %v8573
        %v8575 = vadd.f32 %v8574, 1.0
        %v8576 = vrcp.pop %v8575
        %v8577 = vmul.f32 1.0, %v8576
        %vm8578 = vcmask 24576
        %8579 = vst.msk [vmem:[%s594] sm:$0x1] %vm8578, %v8577
        %s8580 = sand.u32 %s445, 1
        %s8581 = scalar_lea.sflag [#allocation6], %s8580
        %s8582 = sand.u32 %s445, 1
        %s8583 = scalar_lea.vmem [#allocation5], %s8582
        // Predicated region
        $region97: #{initial_model_forward.1} parent=95 // pred_check
          %p8584 = pneg %p455
        $region98: #{initial_model_forward.1} parent=95 // pred_check_branch
          %8586 = sbr.rel (%p8584) target = $region100
        $region99: #{initial_model_forward.1} parent=95 // pred_region
          %s8588 = ssub.s32 16, 16
          %8589 = vsyncadd %s8581, %s8588
          %s8590 = smul.addr %s33, 16
          %s8591 = scalar_lea.hbm %s19, %s8590
          %s8593 = sshll.u32 %s8583, 4
          %s8594 = int_to_ptr.vmem [resolvable:$true] %s8593
          %8596 = dma.vmem_to_hbm [thread:$0]  %s8594, 16, %s8591, %s8581
        $region100: #{initial_model_forward.1} parent=95 // pred_fallthru
          _
      $region96: #{initial_model_forward.1} parent=5 // pred_fallthru
        _
      %p8597 = scmp.le.s32.totalorder 2, %s28
      // Predicated region
      $region101: #{initial_model_forward.1} parent=5 // pred_check
        %p8598 = pneg %p8597
      $region102: #{initial_model_forward.1} parent=5 // pred_check_branch
        %8600 = sbr.rel (%p8598) target = $region104
      $region103: #{initial_model_forward.1} parent=5 // pred_region
        %s8601 = ssub.s32 %s28, 2
        // Predicated region
        $region105: #{initial_model_forward.1} parent=103 // pred_check
          %p8602 = pneg %p461
        $region106: #{initial_model_forward.1} parent=103 // pred_check_branch
          %8604 = sbr.rel (%p8602) target = $region108
        $region107: #{initial_model_forward.1} parent=103 // pred_region
          %s8605 = sand.u32 %s446, 1
          %s8606 = scalar_lea.sflag [#allocation6], %s8605
          %s8607 = sand.u32 %s446, 1
          %s8608 = scalar_lea.vmem [#allocation5], %s8607
          %8609 = dma.done %s8606, 16
        $region108: #{initial_model_forward.1} parent=103 // pred_fallthru
          _
      $region104: #{initial_model_forward.1} parent=5 // pred_fallthru
        _
    $region6: #{initial_model_forward.1} parent=1 // loop_footer
      %s32 = sadd.s32 1, %s28
    $region7: #{initial_model_forward.1} parent=1 // loop_footer_branch
      %27 = sbr.rel target = $region3
    $region8: #{initial_model_forward.1} parent=1 // loop_exit
      _
    %8610 = vsyncpa [#allocation6], 1
    %s8611 = scalar_lea.sflag [#allocation6], 1
    %8612 = vsyncpa %s8611, 1

</llo_original>
